<compile_context>
chip_gen: v7x
topology: tpu7x:2x2x1
jax: 0.10.0
libtpu: 0.0.40
codegen_flags: <defaults>
</compile_context>

<pallas_src>
import functools

import jax
import jax.numpy as jnp
from jax.experimental import pallas as pl
from jax.experimental.pallas import tpu as pltpu

HEADDIM = 64  # Mamba2 default headdim


# ----------------------------------------------------------------------------
# In-kernel math helpers (operate on loaded VMEM values)
# ----------------------------------------------------------------------------
def _silu(x):
    return x * jax.nn.sigmoid(x)


def _softplus(x):
    # F.softplus with beta=1, threshold=20 (matches torch semantics).
    return jnp.where(x > 20.0, x, jnp.log(1.0 + jnp.exp(jnp.minimum(x, 20.0))))


def _layernorm(x, g, b, eps=1e-5):
    mu = jnp.mean(x, axis=-1, keepdims=True)
    xc = x - mu
    var = jnp.mean(xc * xc, axis=-1, keepdims=True)
    return xc * jax.lax.rsqrt(var + eps) * g + b


def _dot(a, b):
    return jnp.dot(a, b, preferred_element_type=jnp.float32)


def _mamba_layer_token(x, m, l, head_expand, H):
    """Exact Mamba2 forward for a single-token sequence (seq_len == 1).

    m is a dict of stacked (n_layers, ...) VMEM refs; l is a static layer index.
    """
    z = _dot(x, m["wz"][l]) + m["bz"][l]            # (B, d_inner)
    xc = _dot(x, m["wx"][l]) + m["bx"][l]           # (B, d_inner)
    Bc = _dot(x, m["wB"][l]) + m["bB"][l]           # (B, N)
    Cc = _dot(x, m["wC"][l]) + m["bC"][l]           # (B, N)
    dtr = _dot(x, m["wdt"][l]) + m["bdt"][l]        # (B, H)
    dt = _softplus(dtr + m["dt_bias"][l])           # (B, H)

    # Depthwise causal conv + SiLU: only the last tap sees the real token,
    # the earlier taps see the causal zero padding.  SiLU covers x, B and C
    # channels (matches mamba_ssm activation='silu' on the whole conv output).
    xs = _silu(xc * m["cw_x"][l] + m["cb_x"][l])    # (B, d_inner)
    Bm = _silu(Bc * m["cw_B"][l] + m["cb_B"][l])    # (B, N)
    Cm = _silu(Cc * m["cw_C"][l] + m["cb_C"][l])    # (B, N)

    # SSD scan, single step from a zero state:  y_h = (dt_h * <C,B> + D_h) * x_h
    # (exp(dt*A) only multiplies the zero initial state, so A_log is unused).
    cb = jnp.sum(Bm * Cm, axis=-1, keepdims=True)   # (B, 1)
    gain = dt * cb + m["D"][l]                      # (B, H)
    if H == 1:
        y = gain * xs
    else:
        # lane-dense broadcast of the per-head gain over headdim via a tiny matmul
        y = _dot(gain, head_expand) * xs            # (B, d_inner)

    # RMSNormGated (norm_before_gate=False): norm(y * silu(z)) * w
    g = y * _silu(z)
    ms = jnp.mean(g * g, axis=-1, keepdims=True)
    gn = g * jax.lax.rsqrt(ms + 1e-5) * m["norm_w"][l]
    return _dot(gn, m["wo"][l]) + m["bo"][l]        # (B, d_model)


def _cross_block_token(x_q, x_kv, c):
    """CrossAttentionBlock with seq_len_q == seq_len_kv == 1.

    With a single key the softmax over keys is identically 1 (for any finite
    score), so MultiheadAttention(q, k, v) == out_proj(v_proj(x_kv)) exactly,
    independent of the number of heads.
    """
    v = _dot(x_kv, c["wv"][...]) + c["bv"][...]
    attn = _dot(v, c["wo"][...]) + c["bo"][...]
    x = _layernorm(x_q + attn, c["ln1_g"][...], c["ln1_b"][...])
    f = jnp.maximum(_dot(x, c["w1"][...]) + c["b1"][...], 0.0)
    f = _dot(f, c["w2"][...]) + c["b2"][...]
    return _layernorm(x + f, c["ln2_g"][...], c["ln2_b"][...])


# ----------------------------------------------------------------------------
# The single fused forward kernel
# ----------------------------------------------------------------------------
def _fused_forward_kernel(treedef, static, *refs):
    o_ref = refs[-1]
    p = jax.tree_util.tree_unflatten(treedef, list(refs[:-1]))
    nl = static["n_layers"]

    # Input projections (seq_len == 1; the singleton seq axis is kept implicit).
    xs = _dot(p["x_s"][...], p["inp_s_w"][...]) + p["inp_s_b"][...]   # (B, d_ms)
    xg = _dot(p["x_g"][...], p["inp_g_w"][...]) + p["inp_g_b"][...]   # (B, d_mg)

    ms, mg = p["mamba_s"], p["mamba_g"]
    he_s = ms["head_expand"][...] if static["H_s"] > 1 else None
    he_g = mg["head_expand"][...] if static["H_g"] > 1 else None
    for l in range(nl):
        xs = _mamba_layer_token(xs, ms, l, he_s, static["H_s"])
    for l in range(nl):
        xg = _mamba_layer_token(xg, mg, l, he_g, static["H_g"])

    # Cross-attention fusion.
    xg_proj = _dot(xg, p["g2s_w"][...]) + p["g2s_b"][...]
    xs_proj = _dot(xs, p["s2g_w"][...]) + p["s2g_b"][...]
    xs_f = _cross_block_token(xs, xg_proj, p["cross_s"])
    xg_f = _cross_block_token(xg, xs_proj, p["cross_g"])

    # Mean over the length-1 seq dim is the identity.
    # Fused LayerNorm over the virtual concat [xs_f, xg_f] + classifier, computed
    # on the two halves (no in-kernel concatenation).
    fusion_dim = float(static["d_ms"] + static["d_mg"])
    mu = (jnp.sum(xs_f, axis=-1, keepdims=True)
          + jnp.sum(xg_f, axis=-1, keepdims=True)) / fusion_dim
    xs_c = xs_f - mu
    xg_c = xg_f - mu
    var = (jnp.sum(xs_c * xs_c, axis=-1, keepdims=True)
           + jnp.sum(xg_c * xg_c, axis=-1, keepdims=True)) / fusion_dim
    inv = jax.lax.rsqrt(var + 1e-5)
    xs_n = xs_c * inv * p["ln_g_s"][...] + p["ln_b_s"][...]
    xg_n = xg_c * inv * p["ln_g_g"][...] + p["ln_b_g"][...]
    logits = (_dot(xs_n, p["cls_w_s"][...]) + _dot(xg_n, p["cls_w_g"][...])
              + p["cls_b"][...])
    o_ref[...] = logits


def forward(prep, x_spectra, x_gaia, static):
    """Whole-model forward = one pallas_call; everything lives in VMEM."""
    B = x_spectra.shape[0]
    bundle = dict(prep)
    bundle["x_s"] = x_spectra.astype(jnp.float32)
    bundle["x_g"] = x_gaia.astype(jnp.float32)
    leaves, treedef = jax.tree_util.tree_flatten(bundle)
    kernel = functools.partial(_fused_forward_kernel, treedef, static)
    return pl.pallas_call(
        kernel,
        out_shape=jax.ShapeDtypeStruct((B, static["num_classes"]), jnp.float32),
        in_specs=[pl.BlockSpec(memory_space=pltpu.MemorySpace.VMEM) for _ in leaves],
        out_specs=pl.BlockSpec(memory_space=pltpu.MemorySpace.VMEM),
    )(*leaves)


# ----------------------------------------------------------------------------
# One-time host-side parameter layout transform (hoisted out of the call path)
# ----------------------------------------------------------------------------
def prepare_inference_params(params, cfg):
    nl = cfg["n_layers"]

    def t(w):          # torch (out, in) -> (in, out)
        return jnp.asarray(w, jnp.float32).T

    def rowvec(b):     # (N,) -> (1, N)
        return jnp.asarray(b, jnp.float32).reshape(1, -1)

    def prep_mamba_branch(layers, d_model, d_state):
        d_inner = cfg["expand"] * d_model
        H = d_inner // HEADDIM
        N = d_state
        K = cfg["d_conv"]
        acc = {}

        def push(k, v):
            acc.setdefault(k, []).append(v)

        for p in layers:
            W, bvec = p["in_w"], p["in_b"]    # torch layout (d_in_proj, d_model)
            s0, s1, s2, s3 = d_inner, 2 * d_inner, 2 * d_inner + N, 2 * d_inner + 2 * N
            push("wz", t(W[:s0]));       push("bz", rowvec(bvec[:s0]))
            push("wx", t(W[s0:s1]));     push("bx", rowvec(bvec[s0:s1]))
            push("wB", t(W[s1:s2]));     push("bB", rowvec(bvec[s1:s2]))
            push("wC", t(W[s2:s3]));     push("bC", rowvec(bvec[s2:s3]))
            push("wdt", t(W[s3:]));      push("bdt", rowvec(bvec[s3:]))
            cw_last = p["conv_w"][K - 1]  # only tap that sees the real token (L == 1)
            cb = p["conv_b"]
            push("cw_x", rowvec(cw_last[:d_inner]))
            push("cb_x", rowvec(cb[:d_inner]))
            push("cw_B", rowvec(cw_last[d_inner:d_inner + N]))
            push("cb_B", rowvec(cb[d_inner:d_inner + N]))
            push("cw_C", rowvec(cw_last[d_inner + N:]))
            push("cb_C", rowvec(cb[d_inner + N:]))
            push("dt_bias", rowvec(p["dt_bias"]))
            push("D", rowvec(p["D"]))
            push("norm_w", rowvec(p["norm_w"]))
            push("wo", t(p["out_w"]));   push("bo", rowvec(p["out_b"]))
            # p["A_log"] intentionally unused: exp(dt*A) multiplies the zero state.
        branch = {k: jnp.stack(v, axis=0) for k, v in acc.items()}
        if H > 1:
            # (H, d_inner) block one-hot so  gain(B,H) @ E -> per-channel gain.
            branch["head_expand"] = jnp.repeat(jnp.eye(H, dtype=jnp.float32),
                                               HEADDIM, axis=1)
        return branch, H

    mamba_s, H_s = prep_mamba_branch(params["mamba_spectra"],
                                     cfg["d_model_spectra"], cfg["d_state_spectra"])
    mamba_g, H_g = prep_mamba_branch(params["mamba_gaia"],
                                     cfg["d_model_gaia"], cfg["d_state_gaia"])

    def prep_cross(p, E):
        return dict(
            wv=t(p["attn"]["in_w"][2 * E:]), bv=rowvec(p["attn"]["in_b"][2 * E:]),
            wo=t(p["attn"]["out_w"]),        bo=rowvec(p["attn"]["out_b"]),
            w1=t(p["ffn1_w"]), b1=rowvec(p["ffn1_b"]),
            w2=t(p["ffn2_w"]), b2=rowvec(p["ffn2_b"]),
            ln1_g=rowvec(p["ln1_g"]), ln1_b=rowvec(p["ln1_b"]),
            ln2_g=rowvec(p["ln2_g"]), ln2_b=rowvec(p["ln2_b"]),
        )

    d_ms, d_mg = cfg["d_model_spectra"], cfg["d_model_gaia"]
    cls_w_t = t(params["cls_w"])   # (fusion_dim, num_classes)
    prep = dict(
        inp_s_w=t(params["inp_s_w"]), inp_s_b=rowvec(params["inp_s_b"]),
        inp_g_w=t(params["inp_g_w"]), inp_g_b=rowvec(params["inp_g_b"]),
        mamba_s=mamba_s, mamba_g=mamba_g,
        g2s_w=t(params["g2s_w"]), g2s_b=rowvec(params["g2s_b"]),
        s2g_w=t(params["s2g_w"]), s2g_b=rowvec(params["s2g_b"]),
        cross_s=prep_cross(params["cross_s"], d_ms),
        cross_g=prep_cross(params["cross_g"], d_mg),
        ln_g_s=rowvec(params["ln_g"][:d_ms]), ln_b_s=rowvec(params["ln_b"][:d_ms]),
        ln_g_g=rowvec(params["ln_g"][d_ms:]), ln_b_g=rowvec(params["ln_b"][d_ms:]),
        cls_w_s=cls_w_t[:d_ms], cls_w_g=cls_w_t[d_ms:],
        cls_b=rowvec(params["cls_b"]),
    )
    static = dict(n_layers=nl, H_s=H_s, H_g=H_g,
                  d_ms=d_ms, d_mg=d_mg, num_classes=cfg["num_classes"])
    return prep, static


# ----------------------------------------------------------------------------
# Deterministic parameter initialization (torch-layout shapes from __init__)
# ----------------------------------------------------------------------------
def _dense_init(key, out_dim, in_dim, scale=0.05):
    kw, kb = jax.random.split(key)
    return (scale * jax.random.normal(kw, (out_dim, in_dim), jnp.float32),
            scale * jax.random.normal(kb, (out_dim,), jnp.float32))


def _mamba_params(key, d_model, d_state, d_conv, expand, headdim=HEADDIM):
    d_inner = expand * d_model
    H = d_inner // headdim
    conv_dim = d_inner + 2 * d_state
    d_in_proj = 2 * d_inner + 2 * d_state + H
    ks = jax.random.split(key, 5)
    in_w, in_b = _dense_init(ks[0], d_in_proj, d_model)
    conv_w = 0.1 * jax.random.normal(ks[1], (d_conv, conv_dim), jnp.float32)  # torch (C,1,K) -> (K,C)
    conv_b = 0.05 * jax.random.normal(ks[2], (conv_dim,), jnp.float32)
    out_w, out_b = _dense_init(ks[3], d_model, d_inner)
    dt_bias = 0.1 * jax.random.normal(ks[4], (H,), jnp.float32)
    return dict(in_w=in_w, in_b=in_b, conv_w=conv_w, conv_b=conv_b,
                out_w=out_w, out_b=out_b, dt_bias=dt_bias,
                A_log=jnp.log(jnp.arange(1, H + 1, dtype=jnp.float32)),  # unused for L=1
                D=jnp.ones((H,), jnp.float32),
                norm_w=jnp.ones((d_inner,), jnp.float32))


def _cross_params(key, d_model):
    ks = jax.random.split(key, 4)
    in_w, in_b = _dense_init(ks[0], 3 * d_model, d_model)
    out_w, out_b = _dense_init(ks[1], d_model, d_model)
    f1_w, f1_b = _dense_init(ks[2], 2 * d_model, d_model)
    f2_w, f2_b = _dense_init(ks[3], d_model, 2 * d_model)
    return dict(attn=dict(in_w=in_w, in_b=in_b, out_w=out_w, out_b=out_b),
                ln1_g=jnp.ones((d_model,), jnp.float32), ln1_b=jnp.zeros((d_model,), jnp.float32),
                ffn1_w=f1_w, ffn1_b=f1_b, ffn2_w=f2_w, ffn2_b=f2_b,
                ln2_g=jnp.ones((d_model,), jnp.float32), ln2_b=jnp.zeros((d_model,), jnp.float32))


def init_params(key, cfg):
    n_layers = cfg["n_layers"]
    ks = iter(jax.random.split(key, 8 + 2 * n_layers))
    d_ms, d_mg = cfg["d_model_spectra"], cfg["d_model_gaia"]
    fusion_dim = d_ms + d_mg
    inp_s_w, inp_s_b = _dense_init(next(ks), d_ms, cfg["input_dim_spectra"])
    inp_g_w, inp_g_b = _dense_init(next(ks), d_mg, cfg["input_dim_gaia"])
    mamba_s = [_mamba_params(next(ks), d_ms, cfg["d_state_spectra"], cfg["d_conv"], cfg["expand"])
               for _ in range(n_layers)]
    mamba_g = [_mamba_params(next(ks), d_mg, cfg["d_state_gaia"], cfg["d_conv"], cfg["expand"])
               for _ in range(n_layers)]
    g2s_w, g2s_b = _dense_init(next(ks), d_ms, d_mg)
    s2g_w, s2g_b = _dense_init(next(ks), d_mg, d_ms)
    cross_s = _cross_params(next(ks), d_ms)
    cross_g = _cross_params(next(ks), d_mg)
    cls_w, cls_b = _dense_init(next(ks), cfg["num_classes"], fusion_dim)
    return dict(inp_s_w=inp_s_w, inp_s_b=inp_s_b, inp_g_w=inp_g_w, inp_g_b=inp_g_b,
                mamba_spectra=mamba_s, mamba_gaia=mamba_g,
                g2s_w=g2s_w, g2s_b=g2s_b, s2g_w=s2g_w, s2g_b=s2g_b,
                cross_s=cross_s, cross_g=cross_g,
                ln_g=jnp.ones((fusion_dim,), jnp.float32),
                ln_b=jnp.zeros((fusion_dim,), jnp.float32),
                cls_w=cls_w, cls_b=cls_b)


# ----------------------------------------------------------------------------
if __name__ == "__main__":
    cfg = dict(d_model_spectra=64, d_model_gaia=32, num_classes=10,
               input_dim_spectra=48, input_dim_gaia=16, n_layers=2,
               n_cross_attn_heads=8, d_state_spectra=16, d_state_gaia=8,
               d_conv=4, expand=2)

    params = init_params(jax.random.PRNGKey(42), cfg)
    prep, static = prepare_inference_params(params, cfg)   # one-time layout work

    key = jax.random.PRNGKey(0)
    kx, kg = jax.random.split(key)
    x_spectra = jax.random.normal(kx, (2, cfg["input_dim_spectra"]), jnp.float32)
    x_gaia = jax.random.normal(kg, (2, cfg["input_dim_gaia"]), jnp.float32)

    logits = forward(prep, x_spectra, x_gaia, static)
    logits = jax.block_until_ready(logits)
    assert logits.shape == (2, cfg["num_classes"])
    assert bool(jnp.all(jnp.isfinite(logits)))
    print("KERNEL_OK")
</pallas_src>

<mosaic_0001>
module attributes {stable_mosaic.version = 11 : i64} {
  func.func @_fused_forward_kernel(%arg0: memref<1x10xf32, #tpu.memory_space<vmem>>, %arg1: memref<32x10xf32, #tpu.memory_space<vmem>>, %arg2: memref<64x10xf32, #tpu.memory_space<vmem>>, %arg3: memref<1x64xf32, #tpu.memory_space<vmem>>, %arg4: memref<1x32xf32, #tpu.memory_space<vmem>>, %arg5: memref<1x32xf32, #tpu.memory_space<vmem>>, %arg6: memref<1x32xf32, #tpu.memory_space<vmem>>, %arg7: memref<1x32xf32, #tpu.memory_space<vmem>>, %arg8: memref<1x32xf32, #tpu.memory_space<vmem>>, %arg9: memref<1x32xf32, #tpu.memory_space<vmem>>, %arg10: memref<1x32xf32, #tpu.memory_space<vmem>>, %arg11: memref<32x64xf32, #tpu.memory_space<vmem>>, %arg12: memref<64x32xf32, #tpu.memory_space<vmem>>, %arg13: memref<32x32xf32, #tpu.memory_space<vmem>>, %arg14: memref<32x32xf32, #tpu.memory_space<vmem>>, %arg15: memref<1x128xf32, #tpu.memory_space<vmem>>, %arg16: memref<1x64xf32, #tpu.memory_space<vmem>>, %arg17: memref<1x64xf32, #tpu.memory_space<vmem>>, %arg18: memref<1x64xf32, #tpu.memory_space<vmem>>, %arg19: memref<1x64xf32, #tpu.memory_space<vmem>>, %arg20: memref<1x64xf32, #tpu.memory_space<vmem>>, %arg21: memref<1x64xf32, #tpu.memory_space<vmem>>, %arg22: memref<1x64xf32, #tpu.memory_space<vmem>>, %arg23: memref<64x128xf32, #tpu.memory_space<vmem>>, %arg24: memref<128x64xf32, #tpu.memory_space<vmem>>, %arg25: memref<64x64xf32, #tpu.memory_space<vmem>>, %arg26: memref<64x64xf32, #tpu.memory_space<vmem>>, %arg27: memref<1x64xf32, #tpu.memory_space<vmem>>, %arg28: memref<32x64xf32, #tpu.memory_space<vmem>>, %arg29: memref<1x32xf32, #tpu.memory_space<vmem>>, %arg30: memref<16x32xf32, #tpu.memory_space<vmem>>, %arg31: memref<1x64xf32, #tpu.memory_space<vmem>>, %arg32: memref<48x64xf32, #tpu.memory_space<vmem>>, %arg33: memref<1x32xf32, #tpu.memory_space<vmem>>, %arg34: memref<1x64xf32, #tpu.memory_space<vmem>>, %arg35: memref<1x32xf32, #tpu.memory_space<vmem>>, %arg36: memref<1x64xf32, #tpu.memory_space<vmem>>, %arg37: memref<2x1x1xf32, #tpu.memory_space<vmem>>, %arg38: memref<2x1x8xf32, #tpu.memory_space<vmem>>, %arg39: memref<2x1x8xf32, #tpu.memory_space<vmem>>, %arg40: memref<2x1x1xf32, #tpu.memory_space<vmem>>, %arg41: memref<2x1x32xf32, #tpu.memory_space<vmem>>, %arg42: memref<2x1x64xf32, #tpu.memory_space<vmem>>, %arg43: memref<2x1x64xf32, #tpu.memory_space<vmem>>, %arg44: memref<2x1x8xf32, #tpu.memory_space<vmem>>, %arg45: memref<2x1x8xf32, #tpu.memory_space<vmem>>, %arg46: memref<2x1x64xf32, #tpu.memory_space<vmem>>, %arg47: memref<2x1x8xf32, #tpu.memory_space<vmem>>, %arg48: memref<2x1x8xf32, #tpu.memory_space<vmem>>, %arg49: memref<2x1x64xf32, #tpu.memory_space<vmem>>, %arg50: memref<2x1x1xf32, #tpu.memory_space<vmem>>, %arg51: memref<2x1x64xf32, #tpu.memory_space<vmem>>, %arg52: memref<2x32x8xf32, #tpu.memory_space<vmem>>, %arg53: memref<2x32x8xf32, #tpu.memory_space<vmem>>, %arg54: memref<2x32x1xf32, #tpu.memory_space<vmem>>, %arg55: memref<2x64x32xf32, #tpu.memory_space<vmem>>, %arg56: memref<2x32x64xf32, #tpu.memory_space<vmem>>, %arg57: memref<2x32x64xf32, #tpu.memory_space<vmem>>, %arg58: memref<2x1x2xf32, #tpu.memory_space<vmem>>, %arg59: memref<2x1x16xf32, #tpu.memory_space<vmem>>, %arg60: memref<2x1x16xf32, #tpu.memory_space<vmem>>, %arg61: memref<2x1x2xf32, #tpu.memory_space<vmem>>, %arg62: memref<2x1x64xf32, #tpu.memory_space<vmem>>, %arg63: memref<2x1x128xf32, #tpu.memory_space<vmem>>, %arg64: memref<2x1x128xf32, #tpu.memory_space<vmem>>, %arg65: memref<2x1x16xf32, #tpu.memory_space<vmem>>, %arg66: memref<2x1x16xf32, #tpu.memory_space<vmem>>, %arg67: memref<2x1x128xf32, #tpu.memory_space<vmem>>, %arg68: memref<2x1x16xf32, #tpu.memory_space<vmem>>, %arg69: memref<2x1x16xf32, #tpu.memory_space<vmem>>, %arg70: memref<2x1x128xf32, #tpu.memory_space<vmem>>, %arg71: memref<2x1x2xf32, #tpu.memory_space<vmem>>, %arg72: memref<2x128xf32, #tpu.memory_space<vmem>>, %arg73: memref<2x1x128xf32, #tpu.memory_space<vmem>>, %arg74: memref<2x64x16xf32, #tpu.memory_space<vmem>>, %arg75: memref<2x64x16xf32, #tpu.memory_space<vmem>>, %arg76: memref<2x64x2xf32, #tpu.memory_space<vmem>>, %arg77: memref<2x128x64xf32, #tpu.memory_space<vmem>>, %arg78: memref<2x64x128xf32, #tpu.memory_space<vmem>>, %arg79: memref<2x64x128xf32, #tpu.memory_space<vmem>>, %arg80: memref<1x32xf32, #tpu.memory_space<vmem>>, %arg81: memref<64x32xf32, #tpu.memory_space<vmem>>, %arg82: memref<2x16xf32, #tpu.memory_space<vmem>>, %arg83: memref<2x48xf32, #tpu.memory_space<vmem>>, %arg84: memref<2x10xf32, #tpu.memory_space<vmem>>) attributes {dimension_semantics = [], scalar_prefetch = 0 : i64, scratch_operands = 0 : i64, tpu.core_type = #tpu.core_type<tc>} {
    %c0 = arith.constant 0 : index
    %c0_0 = arith.constant 0 : index
    %0 = vector.load %arg83[%c0, %c0_0] : memref<2x48xf32, #tpu.memory_space<vmem>>, vector<2x48xf32>
    %c0_1 = arith.constant 0 : index
    %c0_2 = arith.constant 0 : index
    %1 = vector.load %arg32[%c0_1, %c0_2] : memref<48x64xf32, #tpu.memory_space<vmem>>, vector<48x64xf32>
    %cst = arith.constant dense<0.000000e+00> : vector<2x64xf32>
    %2 = tpu.matmul %0, %1, %cst {dimension_numbers = #tpu.dot_dimension_numbers<[1], [0], [0], [1], [0, 0, 1, 1], [], []>} : vector<2x48xf32>, vector<48x64xf32>, vector<2x64xf32> -> vector<2x64xf32>
    %c0_3 = arith.constant 0 : index
    %c0_4 = arith.constant 0 : index
    %3 = vector.load %arg31[%c0_3, %c0_4] : memref<1x64xf32, #tpu.memory_space<vmem>>, vector<1x64xf32>
    %4 = vector.broadcast %3 : vector<1x64xf32> to vector<2x64xf32>
    %5 = arith.addf %2, %4 : vector<2x64xf32>
    %c0_5 = arith.constant 0 : index
    %c0_6 = arith.constant 0 : index
    %6 = vector.load %arg82[%c0_5, %c0_6] : memref<2x16xf32, #tpu.memory_space<vmem>>, vector<2x16xf32>
    %c0_7 = arith.constant 0 : index
    %c0_8 = arith.constant 0 : index
    %7 = vector.load %arg30[%c0_7, %c0_8] : memref<16x32xf32, #tpu.memory_space<vmem>>, vector<16x32xf32>
    %cst_9 = arith.constant dense<0.000000e+00> : vector<2x32xf32>
    %8 = tpu.matmul %6, %7, %cst_9 {dimension_numbers = #tpu.dot_dimension_numbers<[1], [0], [0], [1], [0, 0, 1, 1], [], []>} : vector<2x16xf32>, vector<16x32xf32>, vector<2x32xf32> -> vector<2x32xf32>
    %c0_10 = arith.constant 0 : index
    %c0_11 = arith.constant 0 : index
    %9 = vector.load %arg29[%c0_10, %c0_11] : memref<1x32xf32, #tpu.memory_space<vmem>>, vector<1x32xf32>
    %10 = vector.broadcast %9 : vector<1x32xf32> to vector<2x32xf32>
    %11 = arith.addf %8, %10 : vector<2x32xf32>
    %c0_12 = arith.constant 0 : index
    %c0_13 = arith.constant 0 : index
    %12 = vector.load %arg72[%c0_12, %c0_13] : memref<2x128xf32, #tpu.memory_space<vmem>>, vector<2x128xf32>
    %c0_14 = arith.constant 0 : index
    %c0_15 = arith.constant 0 : index
    %c0_16 = arith.constant 0 : index
    %13 = vector.load %arg79[%c0_14, %c0_15, %c0_16] : memref<2x64x128xf32, #tpu.memory_space<vmem>>, vector<1x64x128xf32>
    %14 = vector.shape_cast %13 : vector<1x64x128xf32> to vector<64x128xf32>
    %cst_17 = arith.constant dense<0.000000e+00> : vector<2x128xf32>
    %15 = tpu.matmul %5, %14, %cst_17 {dimension_numbers = #tpu.dot_dimension_numbers<[1], [0], [0], [1], [0, 0, 1, 1], [], []>} : vector<2x64xf32>, vector<64x128xf32>, vector<2x128xf32> -> vector<2x128xf32>
    %c0_18 = arith.constant 0 : index
    %c0_19 = arith.constant 0 : index
    %c0_20 = arith.constant 0 : index
    %16 = vector.load %arg64[%c0_18, %c0_19, %c0_20] : memref<2x1x128xf32, #tpu.memory_space<vmem>>, vector<1x1x128xf32>
    %17 = vector.shape_cast %16 : vector<1x1x128xf32> to vector<1x128xf32>
    %18 = vector.broadcast %17 : vector<1x128xf32> to vector<2x128xf32>
    %19 = arith.addf %15, %18 : vector<2x128xf32>
    %c0_21 = arith.constant 0 : index
    %c0_22 = arith.constant 0 : index
    %c0_23 = arith.constant 0 : index
    %20 = vector.load %arg78[%c0_21, %c0_22, %c0_23] : memref<2x64x128xf32, #tpu.memory_space<vmem>>, vector<1x64x128xf32>
    %21 = vector.shape_cast %20 : vector<1x64x128xf32> to vector<64x128xf32>
    %cst_24 = arith.constant dense<0.000000e+00> : vector<2x128xf32>
    %22 = tpu.matmul %5, %21, %cst_24 {dimension_numbers = #tpu.dot_dimension_numbers<[1], [0], [0], [1], [0, 0, 1, 1], [], []>} : vector<2x64xf32>, vector<64x128xf32>, vector<2x128xf32> -> vector<2x128xf32>
    %c0_25 = arith.constant 0 : index
    %c0_26 = arith.constant 0 : index
    %c0_27 = arith.constant 0 : index
    %23 = vector.load %arg63[%c0_25, %c0_26, %c0_27] : memref<2x1x128xf32, #tpu.memory_space<vmem>>, vector<1x1x128xf32>
    %24 = vector.shape_cast %23 : vector<1x1x128xf32> to vector<1x128xf32>
    %25 = vector.broadcast %24 : vector<1x128xf32> to vector<2x128xf32>
    %26 = arith.addf %22, %25 : vector<2x128xf32>
    %c0_28 = arith.constant 0 : index
    %c0_29 = arith.constant 0 : index
    %c0_30 = arith.constant 0 : index
    %27 = vector.load %arg74[%c0_28, %c0_29, %c0_30] : memref<2x64x16xf32, #tpu.memory_space<vmem>>, vector<1x64x16xf32>
    %28 = vector.shape_cast %27 : vector<1x64x16xf32> to vector<64x16xf32>
    %cst_31 = arith.constant dense<0.000000e+00> : vector<2x16xf32>
    %29 = tpu.matmul %5, %28, %cst_31 {dimension_numbers = #tpu.dot_dimension_numbers<[1], [0], [0], [1], [0, 0, 1, 1], [], []>} : vector<2x64xf32>, vector<64x16xf32>, vector<2x16xf32> -> vector<2x16xf32>
    %c0_32 = arith.constant 0 : index
    %c0_33 = arith.constant 0 : index
    %c0_34 = arith.constant 0 : index
    %30 = vector.load %arg59[%c0_32, %c0_33, %c0_34] : memref<2x1x16xf32, #tpu.memory_space<vmem>>, vector<1x1x16xf32>
    %31 = vector.shape_cast %30 : vector<1x1x16xf32> to vector<1x16xf32>
    %32 = vector.broadcast %31 : vector<1x16xf32> to vector<2x16xf32>
    %33 = arith.addf %29, %32 : vector<2x16xf32>
    %c0_35 = arith.constant 0 : index
    %c0_36 = arith.constant 0 : index
    %c0_37 = arith.constant 0 : index
    %34 = vector.load %arg75[%c0_35, %c0_36, %c0_37] : memref<2x64x16xf32, #tpu.memory_space<vmem>>, vector<1x64x16xf32>
    %35 = vector.shape_cast %34 : vector<1x64x16xf32> to vector<64x16xf32>
    %cst_38 = arith.constant dense<0.000000e+00> : vector<2x16xf32>
    %36 = tpu.matmul %5, %35, %cst_38 {dimension_numbers = #tpu.dot_dimension_numbers<[1], [0], [0], [1], [0, 0, 1, 1], [], []>} : vector<2x64xf32>, vector<64x16xf32>, vector<2x16xf32> -> vector<2x16xf32>
    %c0_39 = arith.constant 0 : index
    %c0_40 = arith.constant 0 : index
    %c0_41 = arith.constant 0 : index
    %37 = vector.load %arg60[%c0_39, %c0_40, %c0_41] : memref<2x1x16xf32, #tpu.memory_space<vmem>>, vector<1x1x16xf32>
    %38 = vector.shape_cast %37 : vector<1x1x16xf32> to vector<1x16xf32>
    %39 = vector.broadcast %38 : vector<1x16xf32> to vector<2x16xf32>
    %40 = arith.addf %36, %39 : vector<2x16xf32>
    %c0_42 = arith.constant 0 : index
    %c0_43 = arith.constant 0 : index
    %c0_44 = arith.constant 0 : index
    %41 = vector.load %arg76[%c0_42, %c0_43, %c0_44] : memref<2x64x2xf32, #tpu.memory_space<vmem>>, vector<1x64x2xf32>
    %42 = vector.shape_cast %41 : vector<1x64x2xf32> to vector<64x2xf32>
    %cst_45 = arith.constant dense<0.000000e+00> : vector<2x2xf32>
    %43 = tpu.matmul %5, %42, %cst_45 {dimension_numbers = #tpu.dot_dimension_numbers<[1], [0], [0], [1], [0, 0, 1, 1], [], []>} : vector<2x64xf32>, vector<64x2xf32>, vector<2x2xf32> -> vector<2x2xf32>
    %c0_46 = arith.constant 0 : index
    %c0_47 = arith.constant 0 : index
    %c0_48 = arith.constant 0 : index
    %44 = vector.load %arg61[%c0_46, %c0_47, %c0_48] : memref<2x1x2xf32, #tpu.memory_space<vmem>>, vector<1x1x2xf32>
    %45 = vector.shape_cast %44 : vector<1x1x2xf32> to vector<1x2xf32>
    %46 = vector.broadcast %45 : vector<1x2xf32> to vector<2x2xf32>
    %47 = arith.addf %43, %46 : vector<2x2xf32>
    %c0_49 = arith.constant 0 : index
    %c0_50 = arith.constant 0 : index
    %c0_51 = arith.constant 0 : index
    %48 = vector.load %arg71[%c0_49, %c0_50, %c0_51] : memref<2x1x2xf32, #tpu.memory_space<vmem>>, vector<1x1x2xf32>
    %49 = vector.shape_cast %48 : vector<1x1x2xf32> to vector<1x2xf32>
    %50 = vector.broadcast %49 : vector<1x2xf32> to vector<2x2xf32>
    %51 = arith.addf %47, %50 : vector<2x2xf32>
    %cst_52 = arith.constant 2.000000e+01 : f32
    %52 = vector.broadcast %cst_52 : f32 to vector<2x2xf32>
    %53 = arith.cmpf ogt, %51, %52 : vector<2x2xf32>
    %cst_53 = arith.constant 2.000000e+01 : f32
    %54 = vector.broadcast %cst_53 : f32 to vector<2x2xf32>
    %55 = arith.minimumf %51, %54 : vector<2x2xf32>
    %56 = math.exp %55 : vector<2x2xf32>
    %cst_54 = arith.constant 1.000000e+00 : f32
    %57 = vector.broadcast %cst_54 : f32 to vector<2x2xf32>
    %58 = arith.addf %57, %56 : vector<2x2xf32>
    %59 = math.log %58 : vector<2x2xf32>
    %60 = arith.select %53, %51, %59 : vector<2x2xi1>, vector<2x2xf32>
    %c0_55 = arith.constant 0 : index
    %c0_56 = arith.constant 0 : index
    %c0_57 = arith.constant 0 : index
    %61 = vector.load %arg70[%c0_55, %c0_56, %c0_57] : memref<2x1x128xf32, #tpu.memory_space<vmem>>, vector<1x1x128xf32>
    %62 = vector.shape_cast %61 : vector<1x1x128xf32> to vector<1x128xf32>
    %63 = vector.broadcast %62 : vector<1x128xf32> to vector<2x128xf32>
    %64 = arith.mulf %26, %63 : vector<2x128xf32>
    %c0_58 = arith.constant 0 : index
    %c0_59 = arith.constant 0 : index
    %c0_60 = arith.constant 0 : index
    %65 = vector.load %arg67[%c0_58, %c0_59, %c0_60] : memref<2x1x128xf32, #tpu.memory_space<vmem>>, vector<1x1x128xf32>
    %66 = vector.shape_cast %65 : vector<1x1x128xf32> to vector<1x128xf32>
    %67 = vector.broadcast %66 : vector<1x128xf32> to vector<2x128xf32>
    %68 = arith.addf %64, %67 : vector<2x128xf32>
    %69 = arith.negf %68 : vector<2x128xf32>
    %70 = math.exp %69 : vector<2x128xf32>
    %cst_61 = arith.constant 1.000000e+00 : f32
    %71 = vector.broadcast %cst_61 : f32 to vector<2x128xf32>
    %72 = arith.addf %71, %70 : vector<2x128xf32>
    %73 = arith.divf %71, %72 : vector<2x128xf32>
    %74 = arith.mulf %68, %73 : vector<2x128xf32>
    %c0_62 = arith.constant 0 : index
    %c0_63 = arith.constant 0 : index
    %c0_64 = arith.constant 0 : index
    %75 = vector.load %arg68[%c0_62, %c0_63, %c0_64] : memref<2x1x16xf32, #tpu.memory_space<vmem>>, vector<1x1x16xf32>
    %76 = vector.shape_cast %75 : vector<1x1x16xf32> to vector<1x16xf32>
    %77 = vector.broadcast %76 : vector<1x16xf32> to vector<2x16xf32>
    %78 = arith.mulf %33, %77 : vector<2x16xf32>
    %c0_65 = arith.constant 0 : index
    %c0_66 = arith.constant 0 : index
    %c0_67 = arith.constant 0 : index
    %79 = vector.load %arg65[%c0_65, %c0_66, %c0_67] : memref<2x1x16xf32, #tpu.memory_space<vmem>>, vector<1x1x16xf32>
    %80 = vector.shape_cast %79 : vector<1x1x16xf32> to vector<1x16xf32>
    %81 = vector.broadcast %80 : vector<1x16xf32> to vector<2x16xf32>
    %82 = arith.addf %78, %81 : vector<2x16xf32>
    %83 = arith.negf %82 : vector<2x16xf32>
    %84 = math.exp %83 : vector<2x16xf32>
    %cst_68 = arith.constant 1.000000e+00 : f32
    %85 = vector.broadcast %cst_68 : f32 to vector<2x16xf32>
    %86 = arith.addf %85, %84 : vector<2x16xf32>
    %87 = arith.divf %85, %86 : vector<2x16xf32>
    %88 = arith.mulf %82, %87 : vector<2x16xf32>
    %c0_69 = arith.constant 0 : index
    %c0_70 = arith.constant 0 : index
    %c0_71 = arith.constant 0 : index
    %89 = vector.load %arg69[%c0_69, %c0_70, %c0_71] : memref<2x1x16xf32, #tpu.memory_space<vmem>>, vector<1x1x16xf32>
    %90 = vector.shape_cast %89 : vector<1x1x16xf32> to vector<1x16xf32>
    %91 = vector.broadcast %90 : vector<1x16xf32> to vector<2x16xf32>
    %92 = arith.mulf %40, %91 : vector<2x16xf32>
    %c0_72 = arith.constant 0 : index
    %c0_73 = arith.constant 0 : index
    %c0_74 = arith.constant 0 : index
    %93 = vector.load %arg66[%c0_72, %c0_73, %c0_74] : memref<2x1x16xf32, #tpu.memory_space<vmem>>, vector<1x1x16xf32>
    %94 = vector.shape_cast %93 : vector<1x1x16xf32> to vector<1x16xf32>
    %95 = vector.broadcast %94 : vector<1x16xf32> to vector<2x16xf32>
    %96 = arith.addf %92, %95 : vector<2x16xf32>
    %97 = arith.negf %96 : vector<2x16xf32>
    %98 = math.exp %97 : vector<2x16xf32>
    %cst_75 = arith.constant 1.000000e+00 : f32
    %99 = vector.broadcast %cst_75 : f32 to vector<2x16xf32>
    %100 = arith.addf %99, %98 : vector<2x16xf32>
    %101 = arith.divf %99, %100 : vector<2x16xf32>
    %102 = arith.mulf %96, %101 : vector<2x16xf32>
    %103 = arith.mulf %88, %102 : vector<2x16xf32>
    %cst_76 = arith.constant dense<0.000000e+00> : vector<2xf32>
    %104 = vector.multi_reduction <add>, %103, %cst_76 [1] : vector<2x16xf32> to vector<2xf32>
    %105 = vector.shape_cast %104 : vector<2xf32> to vector<2x1xf32>
    %106 = vector.broadcast %105 : vector<2x1xf32> to vector<2x2xf32>
    %107 = arith.mulf %60, %106 : vector<2x2xf32>
    %c0_77 = arith.constant 0 : index
    %c0_78 = arith.constant 0 : index
    %c0_79 = arith.constant 0 : index
    %108 = vector.load %arg58[%c0_77, %c0_78, %c0_79] : memref<2x1x2xf32, #tpu.memory_space<vmem>>, vector<1x1x2xf32>
    %109 = vector.shape_cast %108 : vector<1x1x2xf32> to vector<1x2xf32>
    %110 = vector.broadcast %109 : vector<1x2xf32> to vector<2x2xf32>
    %111 = arith.addf %107, %110 : vector<2x2xf32>
    %cst_80 = arith.constant dense<0.000000e+00> : vector<2x128xf32>
    %112 = tpu.matmul %111, %12, %cst_80 {dimension_numbers = #tpu.dot_dimension_numbers<[1], [0], [0], [1], [0, 0, 1, 1], [], []>} : vector<2x2xf32>, vector<2x128xf32>, vector<2x128xf32> -> vector<2x128xf32>
    %113 = arith.mulf %112, %74 : vector<2x128xf32>
    %114 = arith.negf %19 : vector<2x128xf32>
    %115 = math.exp %114 : vector<2x128xf32>
    %cst_81 = arith.constant 1.000000e+00 : f32
    %116 = vector.broadcast %cst_81 : f32 to vector<2x128xf32>
    %117 = arith.addf %116, %115 : vector<2x128xf32>
    %118 = arith.divf %116, %117 : vector<2x128xf32>
    %119 = arith.mulf %19, %118 : vector<2x128xf32>
    %120 = arith.mulf %113, %119 : vector<2x128xf32>
    %121 = arith.mulf %120, %120 : vector<2x128xf32>
    %cst_82 = arith.constant dense<0.000000e+00> : vector<2xf32>
    %122 = vector.multi_reduction <add>, %121, %cst_82 [1] : vector<2x128xf32> to vector<2xf32>
    %123 = vector.shape_cast %122 : vector<2xf32> to vector<2x1xf32>
    %cst_83 = arith.constant 1.280000e+02 : f32
    %124 = vector.broadcast %cst_83 : f32 to vector<2x1xf32>
    %125 = arith.divf %123, %124 : vector<2x1xf32>
    %cst_84 = arith.constant 9.99999974E-6 : f32
    %126 = vector.broadcast %cst_84 : f32 to vector<2x1xf32>
    %127 = arith.addf %125, %126 : vector<2x1xf32>
    %128 = math.rsqrt %127 : vector<2x1xf32>
    %129 = vector.broadcast %128 : vector<2x1xf32> to vector<2x128xf32>
    %130 = arith.mulf %120, %129 : vector<2x128xf32>
    %c0_85 = arith.constant 0 : index
    %c0_86 = arith.constant 0 : index
    %c0_87 = arith.constant 0 : index
    %131 = vector.load %arg73[%c0_85, %c0_86, %c0_87] : memref<2x1x128xf32, #tpu.memory_space<vmem>>, vector<1x1x128xf32>
    %132 = vector.shape_cast %131 : vector<1x1x128xf32> to vector<1x128xf32>
    %133 = vector.broadcast %132 : vector<1x128xf32> to vector<2x128xf32>
    %134 = arith.mulf %130, %133 : vector<2x128xf32>
    %c0_88 = arith.constant 0 : index
    %c0_89 = arith.constant 0 : index
    %c0_90 = arith.constant 0 : index
    %135 = vector.load %arg77[%c0_88, %c0_89, %c0_90] : memref<2x128x64xf32, #tpu.memory_space<vmem>>, vector<1x128x64xf32>
    %136 = vector.shape_cast %135 : vector<1x128x64xf32> to vector<128x64xf32>
    %cst_91 = arith.constant dense<0.000000e+00> : vector<2x64xf32>
    %137 = tpu.matmul %134, %136, %cst_91 {dimension_numbers = #tpu.dot_dimension_numbers<[1], [0], [0], [1], [0, 0, 1, 1], [], []>} : vector<2x128xf32>, vector<128x64xf32>, vector<2x64xf32> -> vector<2x64xf32>
    %c0_92 = arith.constant 0 : index
    %c0_93 = arith.constant 0 : index
    %c0_94 = arith.constant 0 : index
    %138 = vector.load %arg62[%c0_92, %c0_93, %c0_94] : memref<2x1x64xf32, #tpu.memory_space<vmem>>, vector<1x1x64xf32>
    %139 = vector.shape_cast %138 : vector<1x1x64xf32> to vector<1x64xf32>
    %140 = vector.broadcast %139 : vector<1x64xf32> to vector<2x64xf32>
    %141 = arith.addf %137, %140 : vector<2x64xf32>
    %c1 = arith.constant 1 : index
    %c0_95 = arith.constant 0 : index
    %c0_96 = arith.constant 0 : index
    %142 = vector.load %arg79[%c1, %c0_95, %c0_96] : memref<2x64x128xf32, #tpu.memory_space<vmem>>, vector<1x64x128xf32>
    %143 = vector.shape_cast %142 : vector<1x64x128xf32> to vector<64x128xf32>
    %cst_97 = arith.constant dense<0.000000e+00> : vector<2x128xf32>
    %144 = tpu.matmul %141, %143, %cst_97 {dimension_numbers = #tpu.dot_dimension_numbers<[1], [0], [0], [1], [0, 0, 1, 1], [], []>} : vector<2x64xf32>, vector<64x128xf32>, vector<2x128xf32> -> vector<2x128xf32>
    %c1_98 = arith.constant 1 : index
    %c0_99 = arith.constant 0 : index
    %c0_100 = arith.constant 0 : index
    %145 = vector.load %arg64[%c1_98, %c0_99, %c0_100] : memref<2x1x128xf32, #tpu.memory_space<vmem>>, vector<1x1x128xf32>
    %146 = vector.shape_cast %145 : vector<1x1x128xf32> to vector<1x128xf32>
    %147 = vector.broadcast %146 : vector<1x128xf32> to vector<2x128xf32>
    %148 = arith.addf %144, %147 : vector<2x128xf32>
    %c1_101 = arith.constant 1 : index
    %c0_102 = arith.constant 0 : index
    %c0_103 = arith.constant 0 : index
    %149 = vector.load %arg78[%c1_101, %c0_102, %c0_103] : memref<2x64x128xf32, #tpu.memory_space<vmem>>, vector<1x64x128xf32>
    %150 = vector.shape_cast %149 : vector<1x64x128xf32> to vector<64x128xf32>
    %cst_104 = arith.constant dense<0.000000e+00> : vector<2x128xf32>
    %151 = tpu.matmul %141, %150, %cst_104 {dimension_numbers = #tpu.dot_dimension_numbers<[1], [0], [0], [1], [0, 0, 1, 1], [], []>} : vector<2x64xf32>, vector<64x128xf32>, vector<2x128xf32> -> vector<2x128xf32>
    %c1_105 = arith.constant 1 : index
    %c0_106 = arith.constant 0 : index
    %c0_107 = arith.constant 0 : index
    %152 = vector.load %arg63[%c1_105, %c0_106, %c0_107] : memref<2x1x128xf32, #tpu.memory_space<vmem>>, vector<1x1x128xf32>
    %153 = vector.shape_cast %152 : vector<1x1x128xf32> to vector<1x128xf32>
    %154 = vector.broadcast %153 : vector<1x128xf32> to vector<2x128xf32>
    %155 = arith.addf %151, %154 : vector<2x128xf32>
    %c1_108 = arith.constant 1 : index
    %c0_109 = arith.constant 0 : index
    %c0_110 = arith.constant 0 : index
    %156 = vector.load %arg74[%c1_108, %c0_109, %c0_110] : memref<2x64x16xf32, #tpu.memory_space<vmem>>, vector<1x64x16xf32>
    %157 = vector.shape_cast %156 : vector<1x64x16xf32> to vector<64x16xf32>
    %cst_111 = arith.constant dense<0.000000e+00> : vector<2x16xf32>
    %158 = tpu.matmul %141, %157, %cst_111 {dimension_numbers = #tpu.dot_dimension_numbers<[1], [0], [0], [1], [0, 0, 1, 1], [], []>} : vector<2x64xf32>, vector<64x16xf32>, vector<2x16xf32> -> vector<2x16xf32>
    %c1_112 = arith.constant 1 : index
    %c0_113 = arith.constant 0 : index
    %c0_114 = arith.constant 0 : index
    %159 = vector.load %arg59[%c1_112, %c0_113, %c0_114] : memref<2x1x16xf32, #tpu.memory_space<vmem>>, vector<1x1x16xf32>
    %160 = vector.shape_cast %159 : vector<1x1x16xf32> to vector<1x16xf32>
    %161 = vector.broadcast %160 : vector<1x16xf32> to vector<2x16xf32>
    %162 = arith.addf %158, %161 : vector<2x16xf32>
    %c1_115 = arith.constant 1 : index
    %c0_116 = arith.constant 0 : index
    %c0_117 = arith.constant 0 : index
    %163 = vector.load %arg75[%c1_115, %c0_116, %c0_117] : memref<2x64x16xf32, #tpu.memory_space<vmem>>, vector<1x64x16xf32>
    %164 = vector.shape_cast %163 : vector<1x64x16xf32> to vector<64x16xf32>
    %cst_118 = arith.constant dense<0.000000e+00> : vector<2x16xf32>
    %165 = tpu.matmul %141, %164, %cst_118 {dimension_numbers = #tpu.dot_dimension_numbers<[1], [0], [0], [1], [0, 0, 1, 1], [], []>} : vector<2x64xf32>, vector<64x16xf32>, vector<2x16xf32> -> vector<2x16xf32>
    %c1_119 = arith.constant 1 : index
    %c0_120 = arith.constant 0 : index
    %c0_121 = arith.constant 0 : index
    %166 = vector.load %arg60[%c1_119, %c0_120, %c0_121] : memref<2x1x16xf32, #tpu.memory_space<vmem>>, vector<1x1x16xf32>
    %167 = vector.shape_cast %166 : vector<1x1x16xf32> to vector<1x16xf32>
    %168 = vector.broadcast %167 : vector<1x16xf32> to vector<2x16xf32>
    %169 = arith.addf %165, %168 : vector<2x16xf32>
    %c1_122 = arith.constant 1 : index
    %c0_123 = arith.constant 0 : index
    %c0_124 = arith.constant 0 : index
    %170 = vector.load %arg76[%c1_122, %c0_123, %c0_124] : memref<2x64x2xf32, #tpu.memory_space<vmem>>, vector<1x64x2xf32>
    %171 = vector.shape_cast %170 : vector<1x64x2xf32> to vector<64x2xf32>
    %cst_125 = arith.constant dense<0.000000e+00> : vector<2x2xf32>
    %172 = tpu.matmul %141, %171, %cst_125 {dimension_numbers = #tpu.dot_dimension_numbers<[1], [0], [0], [1], [0, 0, 1, 1], [], []>} : vector<2x64xf32>, vector<64x2xf32>, vector<2x2xf32> -> vector<2x2xf32>
    %c1_126 = arith.constant 1 : index
    %c0_127 = arith.constant 0 : index
    %c0_128 = arith.constant 0 : index
    %173 = vector.load %arg61[%c1_126, %c0_127, %c0_128] : memref<2x1x2xf32, #tpu.memory_space<vmem>>, vector<1x1x2xf32>
    %174 = vector.shape_cast %173 : vector<1x1x2xf32> to vector<1x2xf32>
    %175 = vector.broadcast %174 : vector<1x2xf32> to vector<2x2xf32>
    %176 = arith.addf %172, %175 : vector<2x2xf32>
    %c1_129 = arith.constant 1 : index
    %c0_130 = arith.constant 0 : index
    %c0_131 = arith.constant 0 : index
    %177 = vector.load %arg71[%c1_129, %c0_130, %c0_131] : memref<2x1x2xf32, #tpu.memory_space<vmem>>, vector<1x1x2xf32>
    %178 = vector.shape_cast %177 : vector<1x1x2xf32> to vector<1x2xf32>
    %179 = vector.broadcast %178 : vector<1x2xf32> to vector<2x2xf32>
    %180 = arith.addf %176, %179 : vector<2x2xf32>
    %cst_132 = arith.constant 2.000000e+01 : f32
    %181 = vector.broadcast %cst_132 : f32 to vector<2x2xf32>
    %182 = arith.cmpf ogt, %180, %181 : vector<2x2xf32>
    %cst_133 = arith.constant 2.000000e+01 : f32
    %183 = vector.broadcast %cst_133 : f32 to vector<2x2xf32>
    %184 = arith.minimumf %180, %183 : vector<2x2xf32>
    %185 = math.exp %184 : vector<2x2xf32>
    %cst_134 = arith.constant 1.000000e+00 : f32
    %186 = vector.broadcast %cst_134 : f32 to vector<2x2xf32>
    %187 = arith.addf %186, %185 : vector<2x2xf32>
    %188 = math.log %187 : vector<2x2xf32>
    %189 = arith.select %182, %180, %188 : vector<2x2xi1>, vector<2x2xf32>
    %c1_135 = arith.constant 1 : index
    %c0_136 = arith.constant 0 : index
    %c0_137 = arith.constant 0 : index
    %190 = vector.load %arg70[%c1_135, %c0_136, %c0_137] : memref<2x1x128xf32, #tpu.memory_space<vmem>>, vector<1x1x128xf32>
    %191 = vector.shape_cast %190 : vector<1x1x128xf32> to vector<1x128xf32>
    %192 = vector.broadcast %191 : vector<1x128xf32> to vector<2x128xf32>
    %193 = arith.mulf %155, %192 : vector<2x128xf32>
    %c1_138 = arith.constant 1 : index
    %c0_139 = arith.constant 0 : index
    %c0_140 = arith.constant 0 : index
    %194 = vector.load %arg67[%c1_138, %c0_139, %c0_140] : memref<2x1x128xf32, #tpu.memory_space<vmem>>, vector<1x1x128xf32>
    %195 = vector.shape_cast %194 : vector<1x1x128xf32> to vector<1x128xf32>
    %196 = vector.broadcast %195 : vector<1x128xf32> to vector<2x128xf32>
    %197 = arith.addf %193, %196 : vector<2x128xf32>
    %198 = arith.negf %197 : vector<2x128xf32>
    %199 = math.exp %198 : vector<2x128xf32>
    %cst_141 = arith.constant 1.000000e+00 : f32
    %200 = vector.broadcast %cst_141 : f32 to vector<2x128xf32>
    %201 = arith.addf %200, %199 : vector<2x128xf32>
    %202 = arith.divf %200, %201 : vector<2x128xf32>
    %203 = arith.mulf %197, %202 : vector<2x128xf32>
    %c1_142 = arith.constant 1 : index
    %c0_143 = arith.constant 0 : index
    %c0_144 = arith.constant 0 : index
    %204 = vector.load %arg68[%c1_142, %c0_143, %c0_144] : memref<2x1x16xf32, #tpu.memory_space<vmem>>, vector<1x1x16xf32>
    %205 = vector.shape_cast %204 : vector<1x1x16xf32> to vector<1x16xf32>
    %206 = vector.broadcast %205 : vector<1x16xf32> to vector<2x16xf32>
    %207 = arith.mulf %162, %206 : vector<2x16xf32>
    %c1_145 = arith.constant 1 : index
    %c0_146 = arith.constant 0 : index
    %c0_147 = arith.constant 0 : index
    %208 = vector.load %arg65[%c1_145, %c0_146, %c0_147] : memref<2x1x16xf32, #tpu.memory_space<vmem>>, vector<1x1x16xf32>
    %209 = vector.shape_cast %208 : vector<1x1x16xf32> to vector<1x16xf32>
    %210 = vector.broadcast %209 : vector<1x16xf32> to vector<2x16xf32>
    %211 = arith.addf %207, %210 : vector<2x16xf32>
    %212 = arith.negf %211 : vector<2x16xf32>
    %213 = math.exp %212 : vector<2x16xf32>
    %cst_148 = arith.constant 1.000000e+00 : f32
    %214 = vector.broadcast %cst_148 : f32 to vector<2x16xf32>
    %215 = arith.addf %214, %213 : vector<2x16xf32>
    %216 = arith.divf %214, %215 : vector<2x16xf32>
    %217 = arith.mulf %211, %216 : vector<2x16xf32>
    %c1_149 = arith.constant 1 : index
    %c0_150 = arith.constant 0 : index
    %c0_151 = arith.constant 0 : index
    %218 = vector.load %arg69[%c1_149, %c0_150, %c0_151] : memref<2x1x16xf32, #tpu.memory_space<vmem>>, vector<1x1x16xf32>
    %219 = vector.shape_cast %218 : vector<1x1x16xf32> to vector<1x16xf32>
    %220 = vector.broadcast %219 : vector<1x16xf32> to vector<2x16xf32>
    %221 = arith.mulf %169, %220 : vector<2x16xf32>
    %c1_152 = arith.constant 1 : index
    %c0_153 = arith.constant 0 : index
    %c0_154 = arith.constant 0 : index
    %222 = vector.load %arg66[%c1_152, %c0_153, %c0_154] : memref<2x1x16xf32, #tpu.memory_space<vmem>>, vector<1x1x16xf32>
    %223 = vector.shape_cast %222 : vector<1x1x16xf32> to vector<1x16xf32>
    %224 = vector.broadcast %223 : vector<1x16xf32> to vector<2x16xf32>
    %225 = arith.addf %221, %224 : vector<2x16xf32>
    %226 = arith.negf %225 : vector<2x16xf32>
    %227 = math.exp %226 : vector<2x16xf32>
    %cst_155 = arith.constant 1.000000e+00 : f32
    %228 = vector.broadcast %cst_155 : f32 to vector<2x16xf32>
    %229 = arith.addf %228, %227 : vector<2x16xf32>
    %230 = arith.divf %228, %229 : vector<2x16xf32>
    %231 = arith.mulf %225, %230 : vector<2x16xf32>
    %232 = arith.mulf %217, %231 : vector<2x16xf32>
    %cst_156 = arith.constant dense<0.000000e+00> : vector<2xf32>
    %233 = vector.multi_reduction <add>, %232, %cst_156 [1] : vector<2x16xf32> to vector<2xf32>
    %234 = vector.shape_cast %233 : vector<2xf32> to vector<2x1xf32>
    %235 = vector.broadcast %234 : vector<2x1xf32> to vector<2x2xf32>
    %236 = arith.mulf %189, %235 : vector<2x2xf32>
    %c1_157 = arith.constant 1 : index
    %c0_158 = arith.constant 0 : index
    %c0_159 = arith.constant 0 : index
    %237 = vector.load %arg58[%c1_157, %c0_158, %c0_159] : memref<2x1x2xf32, #tpu.memory_space<vmem>>, vector<1x1x2xf32>
    %238 = vector.shape_cast %237 : vector<1x1x2xf32> to vector<1x2xf32>
    %239 = vector.broadcast %238 : vector<1x2xf32> to vector<2x2xf32>
    %240 = arith.addf %236, %239 : vector<2x2xf32>
    %cst_160 = arith.constant dense<0.000000e+00> : vector<2x128xf32>
    %241 = tpu.matmul %240, %12, %cst_160 {dimension_numbers = #tpu.dot_dimension_numbers<[1], [0], [0], [1], [0, 0, 1, 1], [], []>} : vector<2x2xf32>, vector<2x128xf32>, vector<2x128xf32> -> vector<2x128xf32>
    %242 = arith.mulf %241, %203 : vector<2x128xf32>
    %243 = arith.negf %148 : vector<2x128xf32>
    %244 = math.exp %243 : vector<2x128xf32>
    %cst_161 = arith.constant 1.000000e+00 : f32
    %245 = vector.broadcast %cst_161 : f32 to vector<2x128xf32>
    %246 = arith.addf %245, %244 : vector<2x128xf32>
    %247 = arith.divf %245, %246 : vector<2x128xf32>
    %248 = arith.mulf %148, %247 : vector<2x128xf32>
    %249 = arith.mulf %242, %248 : vector<2x128xf32>
    %250 = arith.mulf %249, %249 : vector<2x128xf32>
    %cst_162 = arith.constant dense<0.000000e+00> : vector<2xf32>
    %251 = vector.multi_reduction <add>, %250, %cst_162 [1] : vector<2x128xf32> to vector<2xf32>
    %252 = vector.shape_cast %251 : vector<2xf32> to vector<2x1xf32>
    %cst_163 = arith.constant 1.280000e+02 : f32
    %253 = vector.broadcast %cst_163 : f32 to vector<2x1xf32>
    %254 = arith.divf %252, %253 : vector<2x1xf32>
    %cst_164 = arith.constant 9.99999974E-6 : f32
    %255 = vector.broadcast %cst_164 : f32 to vector<2x1xf32>
    %256 = arith.addf %254, %255 : vector<2x1xf32>
    %257 = math.rsqrt %256 : vector<2x1xf32>
    %258 = vector.broadcast %257 : vector<2x1xf32> to vector<2x128xf32>
    %259 = arith.mulf %249, %258 : vector<2x128xf32>
    %c1_165 = arith.constant 1 : index
    %c0_166 = arith.constant 0 : index
    %c0_167 = arith.constant 0 : index
    %260 = vector.load %arg73[%c1_165, %c0_166, %c0_167] : memref<2x1x128xf32, #tpu.memory_space<vmem>>, vector<1x1x128xf32>
    %261 = vector.shape_cast %260 : vector<1x1x128xf32> to vector<1x128xf32>
    %262 = vector.broadcast %261 : vector<1x128xf32> to vector<2x128xf32>
    %263 = arith.mulf %259, %262 : vector<2x128xf32>
    %c1_168 = arith.constant 1 : index
    %c0_169 = arith.constant 0 : index
    %c0_170 = arith.constant 0 : index
    %264 = vector.load %arg77[%c1_168, %c0_169, %c0_170] : memref<2x128x64xf32, #tpu.memory_space<vmem>>, vector<1x128x64xf32>
    %265 = vector.shape_cast %264 : vector<1x128x64xf32> to vector<128x64xf32>
    %cst_171 = arith.constant dense<0.000000e+00> : vector<2x64xf32>
    %266 = tpu.matmul %263, %265, %cst_171 {dimension_numbers = #tpu.dot_dimension_numbers<[1], [0], [0], [1], [0, 0, 1, 1], [], []>} : vector<2x128xf32>, vector<128x64xf32>, vector<2x64xf32> -> vector<2x64xf32>
    %c1_172 = arith.constant 1 : index
    %c0_173 = arith.constant 0 : index
    %c0_174 = arith.constant 0 : index
    %267 = vector.load %arg62[%c1_172, %c0_173, %c0_174] : memref<2x1x64xf32, #tpu.memory_space<vmem>>, vector<1x1x64xf32>
    %268 = vector.shape_cast %267 : vector<1x1x64xf32> to vector<1x64xf32>
    %269 = vector.broadcast %268 : vector<1x64xf32> to vector<2x64xf32>
    %270 = arith.addf %266, %269 : vector<2x64xf32>
    %c0_175 = arith.constant 0 : index
    %c0_176 = arith.constant 0 : index
    %c0_177 = arith.constant 0 : index
    %271 = vector.load %arg57[%c0_175, %c0_176, %c0_177] : memref<2x32x64xf32, #tpu.memory_space<vmem>>, vector<1x32x64xf32>
    %272 = vector.shape_cast %271 : vector<1x32x64xf32> to vector<32x64xf32>
    %cst_178 = arith.constant dense<0.000000e+00> : vector<2x64xf32>
    %273 = tpu.matmul %11, %272, %cst_178 {dimension_numbers = #tpu.dot_dimension_numbers<[1], [0], [0], [1], [0, 0, 1, 1], [], []>} : vector<2x32xf32>, vector<32x64xf32>, vector<2x64xf32> -> vector<2x64xf32>
    %c0_179 = arith.constant 0 : index
    %c0_180 = arith.constant 0 : index
    %c0_181 = arith.constant 0 : index
    %274 = vector.load %arg43[%c0_179, %c0_180, %c0_181] : memref<2x1x64xf32, #tpu.memory_space<vmem>>, vector<1x1x64xf32>
    %275 = vector.shape_cast %274 : vector<1x1x64xf32> to vector<1x64xf32>
    %276 = vector.broadcast %275 : vector<1x64xf32> to vector<2x64xf32>
    %277 = arith.addf %273, %276 : vector<2x64xf32>
    %c0_182 = arith.constant 0 : index
    %c0_183 = arith.constant 0 : index
    %c0_184 = arith.constant 0 : index
    %278 = vector.load %arg56[%c0_182, %c0_183, %c0_184] : memref<2x32x64xf32, #tpu.memory_space<vmem>>, vector<1x32x64xf32>
    %279 = vector.shape_cast %278 : vector<1x32x64xf32> to vector<32x64xf32>
    %cst_185 = arith.constant dense<0.000000e+00> : vector<2x64xf32>
    %280 = tpu.matmul %11, %279, %cst_185 {dimension_numbers = #tpu.dot_dimension_numbers<[1], [0], [0], [1], [0, 0, 1, 1], [], []>} : vector<2x32xf32>, vector<32x64xf32>, vector<2x64xf32> -> vector<2x64xf32>
    %c0_186 = arith.constant 0 : index
    %c0_187 = arith.constant 0 : index
    %c0_188 = arith.constant 0 : index
    %281 = vector.load %arg42[%c0_186, %c0_187, %c0_188] : memref<2x1x64xf32, #tpu.memory_space<vmem>>, vector<1x1x64xf32>
    %282 = vector.shape_cast %281 : vector<1x1x64xf32> to vector<1x64xf32>
    %283 = vector.broadcast %282 : vector<1x64xf32> to vector<2x64xf32>
    %284 = arith.addf %280, %283 : vector<2x64xf32>
    %c0_189 = arith.constant 0 : index
    %c0_190 = arith.constant 0 : index
    %c0_191 = arith.constant 0 : index
    %285 = vector.load %arg52[%c0_189, %c0_190, %c0_191] : memref<2x32x8xf32, #tpu.memory_space<vmem>>, vector<1x32x8xf32>
    %286 = vector.shape_cast %285 : vector<1x32x8xf32> to vector<32x8xf32>
    %cst_192 = arith.constant dense<0.000000e+00> : vector<2x8xf32>
    %287 = tpu.matmul %11, %286, %cst_192 {dimension_numbers = #tpu.dot_dimension_numbers<[1], [0], [0], [1], [0, 0, 1, 1], [], []>} : vector<2x32xf32>, vector<32x8xf32>, vector<2x8xf32> -> vector<2x8xf32>
    %c0_193 = arith.constant 0 : index
    %c0_194 = arith.constant 0 : index
    %c0_195 = arith.constant 0 : index
    %288 = vector.load %arg38[%c0_193, %c0_194, %c0_195] : memref<2x1x8xf32, #tpu.memory_space<vmem>>, vector<1x1x8xf32>
    %289 = vector.shape_cast %288 : vector<1x1x8xf32> to vector<1x8xf32>
    %290 = vector.broadcast %289 : vector<1x8xf32> to vector<2x8xf32>
    %291 = arith.addf %287, %290 : vector<2x8xf32>
    %c0_196 = arith.constant 0 : index
    %c0_197 = arith.constant 0 : index
    %c0_198 = arith.constant 0 : index
    %292 = vector.load %arg53[%c0_196, %c0_197, %c0_198] : memref<2x32x8xf32, #tpu.memory_space<vmem>>, vector<1x32x8xf32>
    %293 = vector.shape_cast %292 : vector<1x32x8xf32> to vector<32x8xf32>
    %cst_199 = arith.constant dense<0.000000e+00> : vector<2x8xf32>
    %294 = tpu.matmul %11, %293, %cst_199 {dimension_numbers = #tpu.dot_dimension_numbers<[1], [0], [0], [1], [0, 0, 1, 1], [], []>} : vector<2x32xf32>, vector<32x8xf32>, vector<2x8xf32> -> vector<2x8xf32>
    %c0_200 = arith.constant 0 : index
    %c0_201 = arith.constant 0 : index
    %c0_202 = arith.constant 0 : index
    %295 = vector.load %arg39[%c0_200, %c0_201, %c0_202] : memref<2x1x8xf32, #tpu.memory_space<vmem>>, vector<1x1x8xf32>
    %296 = vector.shape_cast %295 : vector<1x1x8xf32> to vector<1x8xf32>
    %297 = vector.broadcast %296 : vector<1x8xf32> to vector<2x8xf32>
    %298 = arith.addf %294, %297 : vector<2x8xf32>
    %c0_203 = arith.constant 0 : index
    %c0_204 = arith.constant 0 : index
    %c0_205 = arith.constant 0 : index
    %299 = vector.load %arg54[%c0_203, %c0_204, %c0_205] : memref<2x32x1xf32, #tpu.memory_space<vmem>>, vector<1x32x1xf32>
    %300 = vector.shape_cast %299 : vector<1x32x1xf32> to vector<32x1xf32>
    %cst_206 = arith.constant dense<0.000000e+00> : vector<2x1xf32>
    %301 = tpu.matmul %11, %300, %cst_206 {dimension_numbers = #tpu.dot_dimension_numbers<[1], [0], [0], [1], [0, 0, 1, 1], [], []>} : vector<2x32xf32>, vector<32x1xf32>, vector<2x1xf32> -> vector<2x1xf32>
    %c0_207 = arith.constant 0 : index
    %c0_208 = arith.constant 0 : index
    %c0_209 = arith.constant 0 : index
    %302 = vector.load %arg40[%c0_207, %c0_208, %c0_209] : memref<2x1x1xf32, #tpu.memory_space<vmem>>, vector<1x1x1xf32>
    %303 = vector.shape_cast %302 : vector<1x1x1xf32> to vector<1x1xf32>
    %304 = vector.broadcast %303 : vector<1x1xf32> to vector<2x1xf32>
    %305 = arith.addf %301, %304 : vector<2x1xf32>
    %c0_210 = arith.constant 0 : index
    %c0_211 = arith.constant 0 : index
    %c0_212 = arith.constant 0 : index
    %306 = vector.load %arg50[%c0_210, %c0_211, %c0_212] : memref<2x1x1xf32, #tpu.memory_space<vmem>>, vector<1x1x1xf32>
    %307 = vector.shape_cast %306 : vector<1x1x1xf32> to vector<1x1xf32>
    %308 = vector.broadcast %307 : vector<1x1xf32> to vector<2x1xf32>
    %309 = arith.addf %305, %308 : vector<2x1xf32>
    %cst_213 = arith.constant 2.000000e+01 : f32
    %310 = vector.broadcast %cst_213 : f32 to vector<2x1xf32>
    %311 = arith.cmpf ogt, %309, %310 : vector<2x1xf32>
    %cst_214 = arith.constant 2.000000e+01 : f32
    %312 = vector.broadcast %cst_214 : f32 to vector<2x1xf32>
    %313 = arith.minimumf %309, %312 : vector<2x1xf32>
    %314 = math.exp %313 : vector<2x1xf32>
    %cst_215 = arith.constant 1.000000e+00 : f32
    %315 = vector.broadcast %cst_215 : f32 to vector<2x1xf32>
    %316 = arith.addf %315, %314 : vector<2x1xf32>
    %317 = math.log %316 : vector<2x1xf32>
    %318 = arith.select %311, %309, %317 : vector<2x1xi1>, vector<2x1xf32>
    %c0_216 = arith.constant 0 : index
    %c0_217 = arith.constant 0 : index
    %c0_218 = arith.constant 0 : index
    %319 = vector.load %arg49[%c0_216, %c0_217, %c0_218] : memref<2x1x64xf32, #tpu.memory_space<vmem>>, vector<1x1x64xf32>
    %320 = vector.shape_cast %319 : vector<1x1x64xf32> to vector<1x64xf32>
    %321 = vector.broadcast %320 : vector<1x64xf32> to vector<2x64xf32>
    %322 = arith.mulf %284, %321 : vector<2x64xf32>
    %c0_219 = arith.constant 0 : index
    %c0_220 = arith.constant 0 : index
    %c0_221 = arith.constant 0 : index
    %323 = vector.load %arg46[%c0_219, %c0_220, %c0_221] : memref<2x1x64xf32, #tpu.memory_space<vmem>>, vector<1x1x64xf32>
    %324 = vector.shape_cast %323 : vector<1x1x64xf32> to vector<1x64xf32>
    %325 = vector.broadcast %324 : vector<1x64xf32> to vector<2x64xf32>
    %326 = arith.addf %322, %325 : vector<2x64xf32>
    %327 = arith.negf %326 : vector<2x64xf32>
    %328 = math.exp %327 : vector<2x64xf32>
    %cst_222 = arith.constant 1.000000e+00 : f32
    %329 = vector.broadcast %cst_222 : f32 to vector<2x64xf32>
    %330 = arith.addf %329, %328 : vector<2x64xf32>
    %331 = arith.divf %329, %330 : vector<2x64xf32>
    %332 = arith.mulf %326, %331 : vector<2x64xf32>
    %c0_223 = arith.constant 0 : index
    %c0_224 = arith.constant 0 : index
    %c0_225 = arith.constant 0 : index
    %333 = vector.load %arg47[%c0_223, %c0_224, %c0_225] : memref<2x1x8xf32, #tpu.memory_space<vmem>>, vector<1x1x8xf32>
    %334 = vector.shape_cast %333 : vector<1x1x8xf32> to vector<1x8xf32>
    %335 = vector.broadcast %334 : vector<1x8xf32> to vector<2x8xf32>
    %336 = arith.mulf %291, %335 : vector<2x8xf32>
    %c0_226 = arith.constant 0 : index
    %c0_227 = arith.constant 0 : index
    %c0_228 = arith.constant 0 : index
    %337 = vector.load %arg44[%c0_226, %c0_227, %c0_228] : memref<2x1x8xf32, #tpu.memory_space<vmem>>, vector<1x1x8xf32>
    %338 = vector.shape_cast %337 : vector<1x1x8xf32> to vector<1x8xf32>
    %339 = vector.broadcast %338 : vector<1x8xf32> to vector<2x8xf32>
    %340 = arith.addf %336, %339 : vector<2x8xf32>
    %341 = arith.negf %340 : vector<2x8xf32>
    %342 = math.exp %341 : vector<2x8xf32>
    %cst_229 = arith.constant 1.000000e+00 : f32
    %343 = vector.broadcast %cst_229 : f32 to vector<2x8xf32>
    %344 = arith.addf %343, %342 : vector<2x8xf32>
    %345 = arith.divf %343, %344 : vector<2x8xf32>
    %346 = arith.mulf %340, %345 : vector<2x8xf32>
    %c0_230 = arith.constant 0 : index
    %c0_231 = arith.constant 0 : index
    %c0_232 = arith.constant 0 : index
    %347 = vector.load %arg48[%c0_230, %c0_231, %c0_232] : memref<2x1x8xf32, #tpu.memory_space<vmem>>, vector<1x1x8xf32>
    %348 = vector.shape_cast %347 : vector<1x1x8xf32> to vector<1x8xf32>
    %349 = vector.broadcast %348 : vector<1x8xf32> to vector<2x8xf32>
    %350 = arith.mulf %298, %349 : vector<2x8xf32>
    %c0_233 = arith.constant 0 : index
    %c0_234 = arith.constant 0 : index
    %c0_235 = arith.constant 0 : index
    %351 = vector.load %arg45[%c0_233, %c0_234, %c0_235] : memref<2x1x8xf32, #tpu.memory_space<vmem>>, vector<1x1x8xf32>
    %352 = vector.shape_cast %351 : vector<1x1x8xf32> to vector<1x8xf32>
    %353 = vector.broadcast %352 : vector<1x8xf32> to vector<2x8xf32>
    %354 = arith.addf %350, %353 : vector<2x8xf32>
    %355 = arith.negf %354 : vector<2x8xf32>
    %356 = math.exp %355 : vector<2x8xf32>
    %cst_236 = arith.constant 1.000000e+00 : f32
    %357 = vector.broadcast %cst_236 : f32 to vector<2x8xf32>
    %358 = arith.addf %357, %356 : vector<2x8xf32>
    %359 = arith.divf %357, %358 : vector<2x8xf32>
    %360 = arith.mulf %354, %359 : vector<2x8xf32>
    %361 = arith.mulf %346, %360 : vector<2x8xf32>
    %cst_237 = arith.constant dense<0.000000e+00> : vector<2xf32>
    %362 = vector.multi_reduction <add>, %361, %cst_237 [1] : vector<2x8xf32> to vector<2xf32>
    %363 = vector.shape_cast %362 : vector<2xf32> to vector<2x1xf32>
    %364 = arith.mulf %318, %363 : vector<2x1xf32>
    %c0_238 = arith.constant 0 : index
    %c0_239 = arith.constant 0 : index
    %c0_240 = arith.constant 0 : index
    %365 = vector.load %arg37[%c0_238, %c0_239, %c0_240] : memref<2x1x1xf32, #tpu.memory_space<vmem>>, vector<1x1x1xf32>
    %366 = vector.shape_cast %365 : vector<1x1x1xf32> to vector<1x1xf32>
    %367 = vector.broadcast %366 : vector<1x1xf32> to vector<2x1xf32>
    %368 = arith.addf %364, %367 : vector<2x1xf32>
    %369 = vector.broadcast %368 : vector<2x1xf32> to vector<2x64xf32>
    %370 = arith.mulf %369, %332 : vector<2x64xf32>
    %371 = arith.negf %277 : vector<2x64xf32>
    %372 = math.exp %371 : vector<2x64xf32>
    %cst_241 = arith.constant 1.000000e+00 : f32
    %373 = vector.broadcast %cst_241 : f32 to vector<2x64xf32>
    %374 = arith.addf %373, %372 : vector<2x64xf32>
    %375 = arith.divf %373, %374 : vector<2x64xf32>
    %376 = arith.mulf %277, %375 : vector<2x64xf32>
    %377 = arith.mulf %370, %376 : vector<2x64xf32>
    %378 = arith.mulf %377, %377 : vector<2x64xf32>
    %cst_242 = arith.constant dense<0.000000e+00> : vector<2xf32>
    %379 = vector.multi_reduction <add>, %378, %cst_242 [1] : vector<2x64xf32> to vector<2xf32>
    %380 = vector.shape_cast %379 : vector<2xf32> to vector<2x1xf32>
    %cst_243 = arith.constant 6.400000e+01 : f32
    %381 = vector.broadcast %cst_243 : f32 to vector<2x1xf32>
    %382 = arith.divf %380, %381 : vector<2x1xf32>
    %cst_244 = arith.constant 9.99999974E-6 : f32
    %383 = vector.broadcast %cst_244 : f32 to vector<2x1xf32>
    %384 = arith.addf %382, %383 : vector<2x1xf32>
    %385 = math.rsqrt %384 : vector<2x1xf32>
    %386 = vector.broadcast %385 : vector<2x1xf32> to vector<2x64xf32>
    %387 = arith.mulf %377, %386 : vector<2x64xf32>
    %c0_245 = arith.constant 0 : index
    %c0_246 = arith.constant 0 : index
    %c0_247 = arith.constant 0 : index
    %388 = vector.load %arg51[%c0_245, %c0_246, %c0_247] : memref<2x1x64xf32, #tpu.memory_space<vmem>>, vector<1x1x64xf32>
    %389 = vector.shape_cast %388 : vector<1x1x64xf32> to vector<1x64xf32>
    %390 = vector.broadcast %389 : vector<1x64xf32> to vector<2x64xf32>
    %391 = arith.mulf %387, %390 : vector<2x64xf32>
    %c0_248 = arith.constant 0 : index
    %c0_249 = arith.constant 0 : index
    %c0_250 = arith.constant 0 : index
    %392 = vector.load %arg55[%c0_248, %c0_249, %c0_250] : memref<2x64x32xf32, #tpu.memory_space<vmem>>, vector<1x64x32xf32>
    %393 = vector.shape_cast %392 : vector<1x64x32xf32> to vector<64x32xf32>
    %cst_251 = arith.constant dense<0.000000e+00> : vector<2x32xf32>
    %394 = tpu.matmul %391, %393, %cst_251 {dimension_numbers = #tpu.dot_dimension_numbers<[1], [0], [0], [1], [0, 0, 1, 1], [], []>} : vector<2x64xf32>, vector<64x32xf32>, vector<2x32xf32> -> vector<2x32xf32>
    %c0_252 = arith.constant 0 : index
    %c0_253 = arith.constant 0 : index
    %c0_254 = arith.constant 0 : index
    %395 = vector.load %arg41[%c0_252, %c0_253, %c0_254] : memref<2x1x32xf32, #tpu.memory_space<vmem>>, vector<1x1x32xf32>
    %396 = vector.shape_cast %395 : vector<1x1x32xf32> to vector<1x32xf32>
    %397 = vector.broadcast %396 : vector<1x32xf32> to vector<2x32xf32>
    %398 = arith.addf %394, %397 : vector<2x32xf32>
    %c1_255 = arith.constant 1 : index
    %c0_256 = arith.constant 0 : index
    %c0_257 = arith.constant 0 : index
    %399 = vector.load %arg57[%c1_255, %c0_256, %c0_257] : memref<2x32x64xf32, #tpu.memory_space<vmem>>, vector<1x32x64xf32>
    %400 = vector.shape_cast %399 : vector<1x32x64xf32> to vector<32x64xf32>
    %cst_258 = arith.constant dense<0.000000e+00> : vector<2x64xf32>
    %401 = tpu.matmul %398, %400, %cst_258 {dimension_numbers = #tpu.dot_dimension_numbers<[1], [0], [0], [1], [0, 0, 1, 1], [], []>} : vector<2x32xf32>, vector<32x64xf32>, vector<2x64xf32> -> vector<2x64xf32>
    %c1_259 = arith.constant 1 : index
    %c0_260 = arith.constant 0 : index
    %c0_261 = arith.constant 0 : index
    %402 = vector.load %arg43[%c1_259, %c0_260, %c0_261] : memref<2x1x64xf32, #tpu.memory_space<vmem>>, vector<1x1x64xf32>
    %403 = vector.shape_cast %402 : vector<1x1x64xf32> to vector<1x64xf32>
    %404 = vector.broadcast %403 : vector<1x64xf32> to vector<2x64xf32>
    %405 = arith.addf %401, %404 : vector<2x64xf32>
    %c1_262 = arith.constant 1 : index
    %c0_263 = arith.constant 0 : index
    %c0_264 = arith.constant 0 : index
    %406 = vector.load %arg56[%c1_262, %c0_263, %c0_264] : memref<2x32x64xf32, #tpu.memory_space<vmem>>, vector<1x32x64xf32>
    %407 = vector.shape_cast %406 : vector<1x32x64xf32> to vector<32x64xf32>
    %cst_265 = arith.constant dense<0.000000e+00> : vector<2x64xf32>
    %408 = tpu.matmul %398, %407, %cst_265 {dimension_numbers = #tpu.dot_dimension_numbers<[1], [0], [0], [1], [0, 0, 1, 1], [], []>} : vector<2x32xf32>, vector<32x64xf32>, vector<2x64xf32> -> vector<2x64xf32>
    %c1_266 = arith.constant 1 : index
    %c0_267 = arith.constant 0 : index
    %c0_268 = arith.constant 0 : index
    %409 = vector.load %arg42[%c1_266, %c0_267, %c0_268] : memref<2x1x64xf32, #tpu.memory_space<vmem>>, vector<1x1x64xf32>
    %410 = vector.shape_cast %409 : vector<1x1x64xf32> to vector<1x64xf32>
    %411 = vector.broadcast %410 : vector<1x64xf32> to vector<2x64xf32>
    %412 = arith.addf %408, %411 : vector<2x64xf32>
    %c1_269 = arith.constant 1 : index
    %c0_270 = arith.constant 0 : index
    %c0_271 = arith.constant 0 : index
    %413 = vector.load %arg52[%c1_269, %c0_270, %c0_271] : memref<2x32x8xf32, #tpu.memory_space<vmem>>, vector<1x32x8xf32>
    %414 = vector.shape_cast %413 : vector<1x32x8xf32> to vector<32x8xf32>
    %cst_272 = arith.constant dense<0.000000e+00> : vector<2x8xf32>
    %415 = tpu.matmul %398, %414, %cst_272 {dimension_numbers = #tpu.dot_dimension_numbers<[1], [0], [0], [1], [0, 0, 1, 1], [], []>} : vector<2x32xf32>, vector<32x8xf32>, vector<2x8xf32> -> vector<2x8xf32>
    %c1_273 = arith.constant 1 : index
    %c0_274 = arith.constant 0 : index
    %c0_275 = arith.constant 0 : index
    %416 = vector.load %arg38[%c1_273, %c0_274, %c0_275] : memref<2x1x8xf32, #tpu.memory_space<vmem>>, vector<1x1x8xf32>
    %417 = vector.shape_cast %416 : vector<1x1x8xf32> to vector<1x8xf32>
    %418 = vector.broadcast %417 : vector<1x8xf32> to vector<2x8xf32>
    %419 = arith.addf %415, %418 : vector<2x8xf32>
    %c1_276 = arith.constant 1 : index
    %c0_277 = arith.constant 0 : index
    %c0_278 = arith.constant 0 : index
    %420 = vector.load %arg53[%c1_276, %c0_277, %c0_278] : memref<2x32x8xf32, #tpu.memory_space<vmem>>, vector<1x32x8xf32>
    %421 = vector.shape_cast %420 : vector<1x32x8xf32> to vector<32x8xf32>
    %cst_279 = arith.constant dense<0.000000e+00> : vector<2x8xf32>
    %422 = tpu.matmul %398, %421, %cst_279 {dimension_numbers = #tpu.dot_dimension_numbers<[1], [0], [0], [1], [0, 0, 1, 1], [], []>} : vector<2x32xf32>, vector<32x8xf32>, vector<2x8xf32> -> vector<2x8xf32>
    %c1_280 = arith.constant 1 : index
    %c0_281 = arith.constant 0 : index
    %c0_282 = arith.constant 0 : index
    %423 = vector.load %arg39[%c1_280, %c0_281, %c0_282] : memref<2x1x8xf32, #tpu.memory_space<vmem>>, vector<1x1x8xf32>
    %424 = vector.shape_cast %423 : vector<1x1x8xf32> to vector<1x8xf32>
    %425 = vector.broadcast %424 : vector<1x8xf32> to vector<2x8xf32>
    %426 = arith.addf %422, %425 : vector<2x8xf32>
    %c1_283 = arith.constant 1 : index
    %c0_284 = arith.constant 0 : index
    %c0_285 = arith.constant 0 : index
    %427 = vector.load %arg54[%c1_283, %c0_284, %c0_285] : memref<2x32x1xf32, #tpu.memory_space<vmem>>, vector<1x32x1xf32>
    %428 = vector.shape_cast %427 : vector<1x32x1xf32> to vector<32x1xf32>
    %cst_286 = arith.constant dense<0.000000e+00> : vector<2x1xf32>
    %429 = tpu.matmul %398, %428, %cst_286 {dimension_numbers = #tpu.dot_dimension_numbers<[1], [0], [0], [1], [0, 0, 1, 1], [], []>} : vector<2x32xf32>, vector<32x1xf32>, vector<2x1xf32> -> vector<2x1xf32>
    %c1_287 = arith.constant 1 : index
    %c0_288 = arith.constant 0 : index
    %c0_289 = arith.constant 0 : index
    %430 = vector.load %arg40[%c1_287, %c0_288, %c0_289] : memref<2x1x1xf32, #tpu.memory_space<vmem>>, vector<1x1x1xf32>
    %431 = vector.shape_cast %430 : vector<1x1x1xf32> to vector<1x1xf32>
    %432 = vector.broadcast %431 : vector<1x1xf32> to vector<2x1xf32>
    %433 = arith.addf %429, %432 : vector<2x1xf32>
    %c1_290 = arith.constant 1 : index
    %c0_291 = arith.constant 0 : index
    %c0_292 = arith.constant 0 : index
    %434 = vector.load %arg50[%c1_290, %c0_291, %c0_292] : memref<2x1x1xf32, #tpu.memory_space<vmem>>, vector<1x1x1xf32>
    %435 = vector.shape_cast %434 : vector<1x1x1xf32> to vector<1x1xf32>
    %436 = vector.broadcast %435 : vector<1x1xf32> to vector<2x1xf32>
    %437 = arith.addf %433, %436 : vector<2x1xf32>
    %cst_293 = arith.constant 2.000000e+01 : f32
    %438 = vector.broadcast %cst_293 : f32 to vector<2x1xf32>
    %439 = arith.cmpf ogt, %437, %438 : vector<2x1xf32>
    %cst_294 = arith.constant 2.000000e+01 : f32
    %440 = vector.broadcast %cst_294 : f32 to vector<2x1xf32>
    %441 = arith.minimumf %437, %440 : vector<2x1xf32>
    %442 = math.exp %441 : vector<2x1xf32>
    %cst_295 = arith.constant 1.000000e+00 : f32
    %443 = vector.broadcast %cst_295 : f32 to vector<2x1xf32>
    %444 = arith.addf %443, %442 : vector<2x1xf32>
    %445 = math.log %444 : vector<2x1xf32>
    %446 = arith.select %439, %437, %445 : vector<2x1xi1>, vector<2x1xf32>
    %c1_296 = arith.constant 1 : index
    %c0_297 = arith.constant 0 : index
    %c0_298 = arith.constant 0 : index
    %447 = vector.load %arg49[%c1_296, %c0_297, %c0_298] : memref<2x1x64xf32, #tpu.memory_space<vmem>>, vector<1x1x64xf32>
    %448 = vector.shape_cast %447 : vector<1x1x64xf32> to vector<1x64xf32>
    %449 = vector.broadcast %448 : vector<1x64xf32> to vector<2x64xf32>
    %450 = arith.mulf %412, %449 : vector<2x64xf32>
    %c1_299 = arith.constant 1 : index
    %c0_300 = arith.constant 0 : index
    %c0_301 = arith.constant 0 : index
    %451 = vector.load %arg46[%c1_299, %c0_300, %c0_301] : memref<2x1x64xf32, #tpu.memory_space<vmem>>, vector<1x1x64xf32>
    %452 = vector.shape_cast %451 : vector<1x1x64xf32> to vector<1x64xf32>
    %453 = vector.broadcast %452 : vector<1x64xf32> to vector<2x64xf32>
    %454 = arith.addf %450, %453 : vector<2x64xf32>
    %455 = arith.negf %454 : vector<2x64xf32>
    %456 = math.exp %455 : vector<2x64xf32>
    %cst_302 = arith.constant 1.000000e+00 : f32
    %457 = vector.broadcast %cst_302 : f32 to vector<2x64xf32>
    %458 = arith.addf %457, %456 : vector<2x64xf32>
    %459 = arith.divf %457, %458 : vector<2x64xf32>
    %460 = arith.mulf %454, %459 : vector<2x64xf32>
    %c1_303 = arith.constant 1 : index
    %c0_304 = arith.constant 0 : index
    %c0_305 = arith.constant 0 : index
    %461 = vector.load %arg47[%c1_303, %c0_304, %c0_305] : memref<2x1x8xf32, #tpu.memory_space<vmem>>, vector<1x1x8xf32>
    %462 = vector.shape_cast %461 : vector<1x1x8xf32> to vector<1x8xf32>
    %463 = vector.broadcast %462 : vector<1x8xf32> to vector<2x8xf32>
    %464 = arith.mulf %419, %463 : vector<2x8xf32>
    %c1_306 = arith.constant 1 : index
    %c0_307 = arith.constant 0 : index
    %c0_308 = arith.constant 0 : index
    %465 = vector.load %arg44[%c1_306, %c0_307, %c0_308] : memref<2x1x8xf32, #tpu.memory_space<vmem>>, vector<1x1x8xf32>
    %466 = vector.shape_cast %465 : vector<1x1x8xf32> to vector<1x8xf32>
    %467 = vector.broadcast %466 : vector<1x8xf32> to vector<2x8xf32>
    %468 = arith.addf %464, %467 : vector<2x8xf32>
    %469 = arith.negf %468 : vector<2x8xf32>
    %470 = math.exp %469 : vector<2x8xf32>
    %cst_309 = arith.constant 1.000000e+00 : f32
    %471 = vector.broadcast %cst_309 : f32 to vector<2x8xf32>
    %472 = arith.addf %471, %470 : vector<2x8xf32>
    %473 = arith.divf %471, %472 : vector<2x8xf32>
    %474 = arith.mulf %468, %473 : vector<2x8xf32>
    %c1_310 = arith.constant 1 : index
    %c0_311 = arith.constant 0 : index
    %c0_312 = arith.constant 0 : index
    %475 = vector.load %arg48[%c1_310, %c0_311, %c0_312] : memref<2x1x8xf32, #tpu.memory_space<vmem>>, vector<1x1x8xf32>
    %476 = vector.shape_cast %475 : vector<1x1x8xf32> to vector<1x8xf32>
    %477 = vector.broadcast %476 : vector<1x8xf32> to vector<2x8xf32>
    %478 = arith.mulf %426, %477 : vector<2x8xf32>
    %c1_313 = arith.constant 1 : index
    %c0_314 = arith.constant 0 : index
    %c0_315 = arith.constant 0 : index
    %479 = vector.load %arg45[%c1_313, %c0_314, %c0_315] : memref<2x1x8xf32, #tpu.memory_space<vmem>>, vector<1x1x8xf32>
    %480 = vector.shape_cast %479 : vector<1x1x8xf32> to vector<1x8xf32>
    %481 = vector.broadcast %480 : vector<1x8xf32> to vector<2x8xf32>
    %482 = arith.addf %478, %481 : vector<2x8xf32>
    %483 = arith.negf %482 : vector<2x8xf32>
    %484 = math.exp %483 : vector<2x8xf32>
    %cst_316 = arith.constant 1.000000e+00 : f32
    %485 = vector.broadcast %cst_316 : f32 to vector<2x8xf32>
    %486 = arith.addf %485, %484 : vector<2x8xf32>
    %487 = arith.divf %485, %486 : vector<2x8xf32>
    %488 = arith.mulf %482, %487 : vector<2x8xf32>
    %489 = arith.mulf %474, %488 : vector<2x8xf32>
    %cst_317 = arith.constant dense<0.000000e+00> : vector<2xf32>
    %490 = vector.multi_reduction <add>, %489, %cst_317 [1] : vector<2x8xf32> to vector<2xf32>
    %491 = vector.shape_cast %490 : vector<2xf32> to vector<2x1xf32>
    %492 = arith.mulf %446, %491 : vector<2x1xf32>
    %c1_318 = arith.constant 1 : index
    %c0_319 = arith.constant 0 : index
    %c0_320 = arith.constant 0 : index
    %493 = vector.load %arg37[%c1_318, %c0_319, %c0_320] : memref<2x1x1xf32, #tpu.memory_space<vmem>>, vector<1x1x1xf32>
    %494 = vector.shape_cast %493 : vector<1x1x1xf32> to vector<1x1xf32>
    %495 = vector.broadcast %494 : vector<1x1xf32> to vector<2x1xf32>
    %496 = arith.addf %492, %495 : vector<2x1xf32>
    %497 = vector.broadcast %496 : vector<2x1xf32> to vector<2x64xf32>
    %498 = arith.mulf %497, %460 : vector<2x64xf32>
    %499 = arith.negf %405 : vector<2x64xf32>
    %500 = math.exp %499 : vector<2x64xf32>
    %cst_321 = arith.constant 1.000000e+00 : f32
    %501 = vector.broadcast %cst_321 : f32 to vector<2x64xf32>
    %502 = arith.addf %501, %500 : vector<2x64xf32>
    %503 = arith.divf %501, %502 : vector<2x64xf32>
    %504 = arith.mulf %405, %503 : vector<2x64xf32>
    %505 = arith.mulf %498, %504 : vector<2x64xf32>
    %506 = arith.mulf %505, %505 : vector<2x64xf32>
    %cst_322 = arith.constant dense<0.000000e+00> : vector<2xf32>
    %507 = vector.multi_reduction <add>, %506, %cst_322 [1] : vector<2x64xf32> to vector<2xf32>
    %508 = vector.shape_cast %507 : vector<2xf32> to vector<2x1xf32>
    %cst_323 = arith.constant 6.400000e+01 : f32
    %509 = vector.broadcast %cst_323 : f32 to vector<2x1xf32>
    %510 = arith.divf %508, %509 : vector<2x1xf32>
    %cst_324 = arith.constant 9.99999974E-6 : f32
    %511 = vector.broadcast %cst_324 : f32 to vector<2x1xf32>
    %512 = arith.addf %510, %511 : vector<2x1xf32>
    %513 = math.rsqrt %512 : vector<2x1xf32>
    %514 = vector.broadcast %513 : vector<2x1xf32> to vector<2x64xf32>
    %515 = arith.mulf %505, %514 : vector<2x64xf32>
    %c1_325 = arith.constant 1 : index
    %c0_326 = arith.constant 0 : index
    %c0_327 = arith.constant 0 : index
    %516 = vector.load %arg51[%c1_325, %c0_326, %c0_327] : memref<2x1x64xf32, #tpu.memory_space<vmem>>, vector<1x1x64xf32>
    %517 = vector.shape_cast %516 : vector<1x1x64xf32> to vector<1x64xf32>
    %518 = vector.broadcast %517 : vector<1x64xf32> to vector<2x64xf32>
    %519 = arith.mulf %515, %518 : vector<2x64xf32>
    %c1_328 = arith.constant 1 : index
    %c0_329 = arith.constant 0 : index
    %c0_330 = arith.constant 0 : index
    %520 = vector.load %arg55[%c1_328, %c0_329, %c0_330] : memref<2x64x32xf32, #tpu.memory_space<vmem>>, vector<1x64x32xf32>
    %521 = vector.shape_cast %520 : vector<1x64x32xf32> to vector<64x32xf32>
    %cst_331 = arith.constant dense<0.000000e+00> : vector<2x32xf32>
    %522 = tpu.matmul %519, %521, %cst_331 {dimension_numbers = #tpu.dot_dimension_numbers<[1], [0], [0], [1], [0, 0, 1, 1], [], []>} : vector<2x64xf32>, vector<64x32xf32>, vector<2x32xf32> -> vector<2x32xf32>
    %c1_332 = arith.constant 1 : index
    %c0_333 = arith.constant 0 : index
    %c0_334 = arith.constant 0 : index
    %523 = vector.load %arg41[%c1_332, %c0_333, %c0_334] : memref<2x1x32xf32, #tpu.memory_space<vmem>>, vector<1x1x32xf32>
    %524 = vector.shape_cast %523 : vector<1x1x32xf32> to vector<1x32xf32>
    %525 = vector.broadcast %524 : vector<1x32xf32> to vector<2x32xf32>
    %526 = arith.addf %522, %525 : vector<2x32xf32>
    %c0_335 = arith.constant 0 : index
    %c0_336 = arith.constant 0 : index
    %527 = vector.load %arg28[%c0_335, %c0_336] : memref<32x64xf32, #tpu.memory_space<vmem>>, vector<32x64xf32>
    %cst_337 = arith.constant dense<0.000000e+00> : vector<2x64xf32>
    %528 = tpu.matmul %526, %527, %cst_337 {dimension_numbers = #tpu.dot_dimension_numbers<[1], [0], [0], [1], [0, 0, 1, 1], [], []>} : vector<2x32xf32>, vector<32x64xf32>, vector<2x64xf32> -> vector<2x64xf32>
    %c0_338 = arith.constant 0 : index
    %c0_339 = arith.constant 0 : index
    %529 = vector.load %arg27[%c0_338, %c0_339] : memref<1x64xf32, #tpu.memory_space<vmem>>, vector<1x64xf32>
    %530 = vector.broadcast %529 : vector<1x64xf32> to vector<2x64xf32>
    %531 = arith.addf %528, %530 : vector<2x64xf32>
    %c0_340 = arith.constant 0 : index
    %c0_341 = arith.constant 0 : index
    %532 = vector.load %arg81[%c0_340, %c0_341] : memref<64x32xf32, #tpu.memory_space<vmem>>, vector<64x32xf32>
    %cst_342 = arith.constant dense<0.000000e+00> : vector<2x32xf32>
    %533 = tpu.matmul %270, %532, %cst_342 {dimension_numbers = #tpu.dot_dimension_numbers<[1], [0], [0], [1], [0, 0, 1, 1], [], []>} : vector<2x64xf32>, vector<64x32xf32>, vector<2x32xf32> -> vector<2x32xf32>
    %c0_343 = arith.constant 0 : index
    %c0_344 = arith.constant 0 : index
    %534 = vector.load %arg80[%c0_343, %c0_344] : memref<1x32xf32, #tpu.memory_space<vmem>>, vector<1x32xf32>
    %535 = vector.broadcast %534 : vector<1x32xf32> to vector<2x32xf32>
    %536 = arith.addf %533, %535 : vector<2x32xf32>
    %c0_345 = arith.constant 0 : index
    %c0_346 = arith.constant 0 : index
    %537 = vector.load %arg26[%c0_345, %c0_346] : memref<64x64xf32, #tpu.memory_space<vmem>>, vector<64x64xf32>
    %cst_347 = arith.constant dense<0.000000e+00> : vector<2x64xf32>
    %538 = tpu.matmul %531, %537, %cst_347 {dimension_numbers = #tpu.dot_dimension_numbers<[1], [0], [0], [1], [0, 0, 1, 1], [], []>} : vector<2x64xf32>, vector<64x64xf32>, vector<2x64xf32> -> vector<2x64xf32>
    %c0_348 = arith.constant 0 : index
    %c0_349 = arith.constant 0 : index
    %539 = vector.load %arg18[%c0_348, %c0_349] : memref<1x64xf32, #tpu.memory_space<vmem>>, vector<1x64xf32>
    %540 = vector.broadcast %539 : vector<1x64xf32> to vector<2x64xf32>
    %541 = arith.addf %538, %540 : vector<2x64xf32>
    %c0_350 = arith.constant 0 : index
    %c0_351 = arith.constant 0 : index
    %542 = vector.load %arg25[%c0_350, %c0_351] : memref<64x64xf32, #tpu.memory_space<vmem>>, vector<64x64xf32>
    %cst_352 = arith.constant dense<0.000000e+00> : vector<2x64xf32>
    %543 = tpu.matmul %541, %542, %cst_352 {dimension_numbers = #tpu.dot_dimension_numbers<[1], [0], [0], [1], [0, 0, 1, 1], [], []>} : vector<2x64xf32>, vector<64x64xf32>, vector<2x64xf32> -> vector<2x64xf32>
    %c0_353 = arith.constant 0 : index
    %c0_354 = arith.constant 0 : index
    %544 = vector.load %arg17[%c0_353, %c0_354] : memref<1x64xf32, #tpu.memory_space<vmem>>, vector<1x64xf32>
    %545 = vector.broadcast %544 : vector<1x64xf32> to vector<2x64xf32>
    %546 = arith.addf %543, %545 : vector<2x64xf32>
    %547 = arith.addf %270, %546 : vector<2x64xf32>
    %c0_355 = arith.constant 0 : index
    %c0_356 = arith.constant 0 : index
    %548 = vector.load %arg20[%c0_355, %c0_356] : memref<1x64xf32, #tpu.memory_space<vmem>>, vector<1x64xf32>
    %c0_357 = arith.constant 0 : index
    %c0_358 = arith.constant 0 : index
    %549 = vector.load %arg19[%c0_357, %c0_358] : memref<1x64xf32, #tpu.memory_space<vmem>>, vector<1x64xf32>
    %cst_359 = arith.constant dense<0.000000e+00> : vector<2xf32>
    %550 = vector.multi_reduction <add>, %547, %cst_359 [1] : vector<2x64xf32> to vector<2xf32>
    %551 = vector.shape_cast %550 : vector<2xf32> to vector<2x1xf32>
    %cst_360 = arith.constant 6.400000e+01 : f32
    %552 = vector.broadcast %cst_360 : f32 to vector<2x1xf32>
    %553 = arith.divf %551, %552 : vector<2x1xf32>
    %554 = vector.broadcast %553 : vector<2x1xf32> to vector<2x64xf32>
    %555 = arith.subf %547, %554 : vector<2x64xf32>
    %556 = arith.mulf %555, %555 : vector<2x64xf32>
    %cst_361 = arith.constant dense<0.000000e+00> : vector<2xf32>
    %557 = vector.multi_reduction <add>, %556, %cst_361 [1] : vector<2x64xf32> to vector<2xf32>
    %558 = vector.shape_cast %557 : vector<2xf32> to vector<2x1xf32>
    %cst_362 = arith.constant 6.400000e+01 : f32
    %559 = vector.broadcast %cst_362 : f32 to vector<2x1xf32>
    %560 = arith.divf %558, %559 : vector<2x1xf32>
    %cst_363 = arith.constant 9.99999974E-6 : f32
    %561 = vector.broadcast %cst_363 : f32 to vector<2x1xf32>
    %562 = arith.addf %560, %561 : vector<2x1xf32>
    %563 = math.rsqrt %562 : vector<2x1xf32>
    %564 = vector.broadcast %563 : vector<2x1xf32> to vector<2x64xf32>
    %565 = arith.mulf %555, %564 : vector<2x64xf32>
    %566 = vector.broadcast %548 : vector<1x64xf32> to vector<2x64xf32>
    %567 = arith.mulf %565, %566 : vector<2x64xf32>
    %568 = vector.broadcast %549 : vector<1x64xf32> to vector<2x64xf32>
    %569 = arith.addf %567, %568 : vector<2x64xf32>
    %c0_364 = arith.constant 0 : index
    %c0_365 = arith.constant 0 : index
    %570 = vector.load %arg23[%c0_364, %c0_365] : memref<64x128xf32, #tpu.memory_space<vmem>>, vector<64x128xf32>
    %cst_366 = arith.constant dense<0.000000e+00> : vector<2x128xf32>
    %571 = tpu.matmul %569, %570, %cst_366 {dimension_numbers = #tpu.dot_dimension_numbers<[1], [0], [0], [1], [0, 0, 1, 1], [], []>} : vector<2x64xf32>, vector<64x128xf32>, vector<2x128xf32> -> vector<2x128xf32>
    %c0_367 = arith.constant 0 : index
    %c0_368 = arith.constant 0 : index
    %572 = vector.load %arg15[%c0_367, %c0_368] : memref<1x128xf32, #tpu.memory_space<vmem>>, vector<1x128xf32>
    %573 = vector.broadcast %572 : vector<1x128xf32> to vector<2x128xf32>
    %574 = arith.addf %571, %573 : vector<2x128xf32>
    %cst_369 = arith.constant 0.000000e+00 : f32
    %575 = vector.broadcast %cst_369 : f32 to vector<2x128xf32>
    %576 = arith.maximumf %574, %575 : vector<2x128xf32>
    %c0_370 = arith.constant 0 : index
    %c0_371 = arith.constant 0 : index
    %577 = vector.load %arg24[%c0_370, %c0_371] : memref<128x64xf32, #tpu.memory_space<vmem>>, vector<128x64xf32>
    %cst_372 = arith.constant dense<0.000000e+00> : vector<2x64xf32>
    %578 = tpu.matmul %576, %577, %cst_372 {dimension_numbers = #tpu.dot_dimension_numbers<[1], [0], [0], [1], [0, 0, 1, 1], [], []>} : vector<2x128xf32>, vector<128x64xf32>, vector<2x64xf32> -> vector<2x64xf32>
    %c0_373 = arith.constant 0 : index
    %c0_374 = arith.constant 0 : index
    %579 = vector.load %arg16[%c0_373, %c0_374] : memref<1x64xf32, #tpu.memory_space<vmem>>, vector<1x64xf32>
    %580 = vector.broadcast %579 : vector<1x64xf32> to vector<2x64xf32>
    %581 = arith.addf %578, %580 : vector<2x64xf32>
    %582 = arith.addf %569, %581 : vector<2x64xf32>
    %c0_375 = arith.constant 0 : index
    %c0_376 = arith.constant 0 : index
    %583 = vector.load %arg22[%c0_375, %c0_376] : memref<1x64xf32, #tpu.memory_space<vmem>>, vector<1x64xf32>
    %c0_377 = arith.constant 0 : index
    %c0_378 = arith.constant 0 : index
    %584 = vector.load %arg21[%c0_377, %c0_378] : memref<1x64xf32, #tpu.memory_space<vmem>>, vector<1x64xf32>
    %cst_379 = arith.constant dense<0.000000e+00> : vector<2xf32>
    %585 = vector.multi_reduction <add>, %582, %cst_379 [1] : vector<2x64xf32> to vector<2xf32>
    %586 = vector.shape_cast %585 : vector<2xf32> to vector<2x1xf32>
    %cst_380 = arith.constant 6.400000e+01 : f32
    %587 = vector.broadcast %cst_380 : f32 to vector<2x1xf32>
    %588 = arith.divf %586, %587 : vector<2x1xf32>
    %589 = vector.broadcast %588 : vector<2x1xf32> to vector<2x64xf32>
    %590 = arith.subf %582, %589 : vector<2x64xf32>
    %591 = arith.mulf %590, %590 : vector<2x64xf32>
    %cst_381 = arith.constant dense<0.000000e+00> : vector<2xf32>
    %592 = vector.multi_reduction <add>, %591, %cst_381 [1] : vector<2x64xf32> to vector<2xf32>
    %593 = vector.shape_cast %592 : vector<2xf32> to vector<2x1xf32>
    %cst_382 = arith.constant 6.400000e+01 : f32
    %594 = vector.broadcast %cst_382 : f32 to vector<2x1xf32>
    %595 = arith.divf %593, %594 : vector<2x1xf32>
    %cst_383 = arith.constant 9.99999974E-6 : f32
    %596 = vector.broadcast %cst_383 : f32 to vector<2x1xf32>
    %597 = arith.addf %595, %596 : vector<2x1xf32>
    %598 = math.rsqrt %597 : vector<2x1xf32>
    %599 = vector.broadcast %598 : vector<2x1xf32> to vector<2x64xf32>
    %600 = arith.mulf %590, %599 : vector<2x64xf32>
    %601 = vector.broadcast %583 : vector<1x64xf32> to vector<2x64xf32>
    %602 = arith.mulf %600, %601 : vector<2x64xf32>
    %603 = vector.broadcast %584 : vector<1x64xf32> to vector<2x64xf32>
    %604 = arith.addf %602, %603 : vector<2x64xf32>
    %c0_384 = arith.constant 0 : index
    %c0_385 = arith.constant 0 : index
    %605 = vector.load %arg14[%c0_384, %c0_385] : memref<32x32xf32, #tpu.memory_space<vmem>>, vector<32x32xf32>
    %cst_386 = arith.constant dense<0.000000e+00> : vector<2x32xf32>
    %606 = tpu.matmul %536, %605, %cst_386 {dimension_numbers = #tpu.dot_dimension_numbers<[1], [0], [0], [1], [0, 0, 1, 1], [], []>} : vector<2x32xf32>, vector<32x32xf32>, vector<2x32xf32> -> vector<2x32xf32>
    %c0_387 = arith.constant 0 : index
    %c0_388 = arith.constant 0 : index
    %607 = vector.load %arg6[%c0_387, %c0_388] : memref<1x32xf32, #tpu.memory_space<vmem>>, vector<1x32xf32>
    %608 = vector.broadcast %607 : vector<1x32xf32> to vector<2x32xf32>
    %609 = arith.addf %606, %608 : vector<2x32xf32>
    %c0_389 = arith.constant 0 : index
    %c0_390 = arith.constant 0 : index
    %610 = vector.load %arg13[%c0_389, %c0_390] : memref<32x32xf32, #tpu.memory_space<vmem>>, vector<32x32xf32>
    %cst_391 = arith.constant dense<0.000000e+00> : vector<2x32xf32>
    %611 = tpu.matmul %609, %610, %cst_391 {dimension_numbers = #tpu.dot_dimension_numbers<[1], [0], [0], [1], [0, 0, 1, 1], [], []>} : vector<2x32xf32>, vector<32x32xf32>, vector<2x32xf32> -> vector<2x32xf32>
    %c0_392 = arith.constant 0 : index
    %c0_393 = arith.constant 0 : index
    %612 = vector.load %arg5[%c0_392, %c0_393] : memref<1x32xf32, #tpu.memory_space<vmem>>, vector<1x32xf32>
    %613 = vector.broadcast %612 : vector<1x32xf32> to vector<2x32xf32>
    %614 = arith.addf %611, %613 : vector<2x32xf32>
    %615 = arith.addf %526, %614 : vector<2x32xf32>
    %c0_394 = arith.constant 0 : index
    %c0_395 = arith.constant 0 : index
    %616 = vector.load %arg8[%c0_394, %c0_395] : memref<1x32xf32, #tpu.memory_space<vmem>>, vector<1x32xf32>
    %c0_396 = arith.constant 0 : index
    %c0_397 = arith.constant 0 : index
    %617 = vector.load %arg7[%c0_396, %c0_397] : memref<1x32xf32, #tpu.memory_space<vmem>>, vector<1x32xf32>
    %cst_398 = arith.constant dense<0.000000e+00> : vector<2xf32>
    %618 = vector.multi_reduction <add>, %615, %cst_398 [1] : vector<2x32xf32> to vector<2xf32>
    %619 = vector.shape_cast %618 : vector<2xf32> to vector<2x1xf32>
    %cst_399 = arith.constant 3.200000e+01 : f32
    %620 = vector.broadcast %cst_399 : f32 to vector<2x1xf32>
    %621 = arith.divf %619, %620 : vector<2x1xf32>
    %622 = vector.broadcast %621 : vector<2x1xf32> to vector<2x32xf32>
    %623 = arith.subf %615, %622 : vector<2x32xf32>
    %624 = arith.mulf %623, %623 : vector<2x32xf32>
    %cst_400 = arith.constant dense<0.000000e+00> : vector<2xf32>
    %625 = vector.multi_reduction <add>, %624, %cst_400 [1] : vector<2x32xf32> to vector<2xf32>
    %626 = vector.shape_cast %625 : vector<2xf32> to vector<2x1xf32>
    %cst_401 = arith.constant 3.200000e+01 : f32
    %627 = vector.broadcast %cst_401 : f32 to vector<2x1xf32>
    %628 = arith.divf %626, %627 : vector<2x1xf32>
    %cst_402 = arith.constant 9.99999974E-6 : f32
    %629 = vector.broadcast %cst_402 : f32 to vector<2x1xf32>
    %630 = arith.addf %628, %629 : vector<2x1xf32>
    %631 = math.rsqrt %630 : vector<2x1xf32>
    %632 = vector.broadcast %631 : vector<2x1xf32> to vector<2x32xf32>
    %633 = arith.mulf %623, %632 : vector<2x32xf32>
    %634 = vector.broadcast %616 : vector<1x32xf32> to vector<2x32xf32>
    %635 = arith.mulf %633, %634 : vector<2x32xf32>
    %636 = vector.broadcast %617 : vector<1x32xf32> to vector<2x32xf32>
    %637 = arith.addf %635, %636 : vector<2x32xf32>
    %c0_403 = arith.constant 0 : index
    %c0_404 = arith.constant 0 : index
    %638 = vector.load %arg11[%c0_403, %c0_404] : memref<32x64xf32, #tpu.memory_space<vmem>>, vector<32x64xf32>
    %cst_405 = arith.constant dense<0.000000e+00> : vector<2x64xf32>
    %639 = tpu.matmul %637, %638, %cst_405 {dimension_numbers = #tpu.dot_dimension_numbers<[1], [0], [0], [1], [0, 0, 1, 1], [], []>} : vector<2x32xf32>, vector<32x64xf32>, vector<2x64xf32> -> vector<2x64xf32>
    %c0_406 = arith.constant 0 : index
    %c0_407 = arith.constant 0 : index
    %640 = vector.load %arg3[%c0_406, %c0_407] : memref<1x64xf32, #tpu.memory_space<vmem>>, vector<1x64xf32>
    %641 = vector.broadcast %640 : vector<1x64xf32> to vector<2x64xf32>
    %642 = arith.addf %639, %641 : vector<2x64xf32>
    %cst_408 = arith.constant 0.000000e+00 : f32
    %643 = vector.broadcast %cst_408 : f32 to vector<2x64xf32>
    %644 = arith.maximumf %642, %643 : vector<2x64xf32>
    %c0_409 = arith.constant 0 : index
    %c0_410 = arith.constant 0 : index
    %645 = vector.load %arg12[%c0_409, %c0_410] : memref<64x32xf32, #tpu.memory_space<vmem>>, vector<64x32xf32>
    %cst_411 = arith.constant dense<0.000000e+00> : vector<2x32xf32>
    %646 = tpu.matmul %644, %645, %cst_411 {dimension_numbers = #tpu.dot_dimension_numbers<[1], [0], [0], [1], [0, 0, 1, 1], [], []>} : vector<2x64xf32>, vector<64x32xf32>, vector<2x32xf32> -> vector<2x32xf32>
    %c0_412 = arith.constant 0 : index
    %c0_413 = arith.constant 0 : index
    %647 = vector.load %arg4[%c0_412, %c0_413] : memref<1x32xf32, #tpu.memory_space<vmem>>, vector<1x32xf32>
    %648 = vector.broadcast %647 : vector<1x32xf32> to vector<2x32xf32>
    %649 = arith.addf %646, %648 : vector<2x32xf32>
    %650 = arith.addf %637, %649 : vector<2x32xf32>
    %c0_414 = arith.constant 0 : index
    %c0_415 = arith.constant 0 : index
    %651 = vector.load %arg10[%c0_414, %c0_415] : memref<1x32xf32, #tpu.memory_space<vmem>>, vector<1x32xf32>
    %c0_416 = arith.constant 0 : index
    %c0_417 = arith.constant 0 : index
    %652 = vector.load %arg9[%c0_416, %c0_417] : memref<1x32xf32, #tpu.memory_space<vmem>>, vector<1x32xf32>
    %cst_418 = arith.constant dense<0.000000e+00> : vector<2xf32>
    %653 = vector.multi_reduction <add>, %650, %cst_418 [1] : vector<2x32xf32> to vector<2xf32>
    %654 = vector.shape_cast %653 : vector<2xf32> to vector<2x1xf32>
    %cst_419 = arith.constant 3.200000e+01 : f32
    %655 = vector.broadcast %cst_419 : f32 to vector<2x1xf32>
    %656 = arith.divf %654, %655 : vector<2x1xf32>
    %657 = vector.broadcast %656 : vector<2x1xf32> to vector<2x32xf32>
    %658 = arith.subf %650, %657 : vector<2x32xf32>
    %659 = arith.mulf %658, %658 : vector<2x32xf32>
    %cst_420 = arith.constant dense<0.000000e+00> : vector<2xf32>
    %660 = vector.multi_reduction <add>, %659, %cst_420 [1] : vector<2x32xf32> to vector<2xf32>
    %661 = vector.shape_cast %660 : vector<2xf32> to vector<2x1xf32>
    %cst_421 = arith.constant 3.200000e+01 : f32
    %662 = vector.broadcast %cst_421 : f32 to vector<2x1xf32>
    %663 = arith.divf %661, %662 : vector<2x1xf32>
    %cst_422 = arith.constant 9.99999974E-6 : f32
    %664 = vector.broadcast %cst_422 : f32 to vector<2x1xf32>
    %665 = arith.addf %663, %664 : vector<2x1xf32>
    %666 = math.rsqrt %665 : vector<2x1xf32>
    %667 = vector.broadcast %666 : vector<2x1xf32> to vector<2x32xf32>
    %668 = arith.mulf %658, %667 : vector<2x32xf32>
    %669 = vector.broadcast %651 : vector<1x32xf32> to vector<2x32xf32>
    %670 = arith.mulf %668, %669 : vector<2x32xf32>
    %671 = vector.broadcast %652 : vector<1x32xf32> to vector<2x32xf32>
    %672 = arith.addf %670, %671 : vector<2x32xf32>
    %cst_423 = arith.constant dense<0.000000e+00> : vector<2xf32>
    %673 = vector.multi_reduction <add>, %604, %cst_423 [1] : vector<2x64xf32> to vector<2xf32>
    %674 = vector.shape_cast %673 : vector<2xf32> to vector<2x1xf32>
    %cst_424 = arith.constant dense<0.000000e+00> : vector<2xf32>
    %675 = vector.multi_reduction <add>, %672, %cst_424 [1] : vector<2x32xf32> to vector<2xf32>
    %676 = vector.shape_cast %675 : vector<2xf32> to vector<2x1xf32>
    %677 = arith.addf %674, %676 : vector<2x1xf32>
    %cst_425 = arith.constant 9.600000e+01 : f32
    %678 = vector.broadcast %cst_425 : f32 to vector<2x1xf32>
    %679 = arith.divf %677, %678 : vector<2x1xf32>
    %680 = vector.broadcast %679 : vector<2x1xf32> to vector<2x64xf32>
    %681 = arith.subf %604, %680 : vector<2x64xf32>
    %682 = vector.broadcast %679 : vector<2x1xf32> to vector<2x32xf32>
    %683 = arith.subf %672, %682 : vector<2x32xf32>
    %684 = arith.mulf %681, %681 : vector<2x64xf32>
    %cst_426 = arith.constant dense<0.000000e+00> : vector<2xf32>
    %685 = vector.multi_reduction <add>, %684, %cst_426 [1] : vector<2x64xf32> to vector<2xf32>
    %686 = vector.shape_cast %685 : vector<2xf32> to vector<2x1xf32>
    %687 = arith.mulf %683, %683 : vector<2x32xf32>
    %cst_427 = arith.constant dense<0.000000e+00> : vector<2xf32>
    %688 = vector.multi_reduction <add>, %687, %cst_427 [1] : vector<2x32xf32> to vector<2xf32>
    %689 = vector.shape_cast %688 : vector<2xf32> to vector<2x1xf32>
    %690 = arith.addf %686, %689 : vector<2x1xf32>
    %cst_428 = arith.constant 9.600000e+01 : f32
    %691 = vector.broadcast %cst_428 : f32 to vector<2x1xf32>
    %692 = arith.divf %690, %691 : vector<2x1xf32>
    %cst_429 = arith.constant 9.99999974E-6 : f32
    %693 = vector.broadcast %cst_429 : f32 to vector<2x1xf32>
    %694 = arith.addf %692, %693 : vector<2x1xf32>
    %695 = math.rsqrt %694 : vector<2x1xf32>
    %696 = vector.broadcast %695 : vector<2x1xf32> to vector<2x64xf32>
    %697 = arith.mulf %681, %696 : vector<2x64xf32>
    %c0_430 = arith.constant 0 : index
    %c0_431 = arith.constant 0 : index
    %698 = vector.load %arg36[%c0_430, %c0_431] : memref<1x64xf32, #tpu.memory_space<vmem>>, vector<1x64xf32>
    %699 = vector.broadcast %698 : vector<1x64xf32> to vector<2x64xf32>
    %700 = arith.mulf %697, %699 : vector<2x64xf32>
    %c0_432 = arith.constant 0 : index
    %c0_433 = arith.constant 0 : index
    %701 = vector.load %arg34[%c0_432, %c0_433] : memref<1x64xf32, #tpu.memory_space<vmem>>, vector<1x64xf32>
    %702 = vector.broadcast %701 : vector<1x64xf32> to vector<2x64xf32>
    %703 = arith.addf %700, %702 : vector<2x64xf32>
    %704 = vector.broadcast %695 : vector<2x1xf32> to vector<2x32xf32>
    %705 = arith.mulf %683, %704 : vector<2x32xf32>
    %c0_434 = arith.constant 0 : index
    %c0_435 = arith.constant 0 : index
    %706 = vector.load %arg35[%c0_434, %c0_435] : memref<1x32xf32, #tpu.memory_space<vmem>>, vector<1x32xf32>
    %707 = vector.broadcast %706 : vector<1x32xf32> to vector<2x32xf32>
    %708 = arith.mulf %705, %707 : vector<2x32xf32>
    %c0_436 = arith.constant 0 : index
    %c0_437 = arith.constant 0 : index
    %709 = vector.load %arg33[%c0_436, %c0_437] : memref<1x32xf32, #tpu.memory_space<vmem>>, vector<1x32xf32>
    %710 = vector.broadcast %709 : vector<1x32xf32> to vector<2x32xf32>
    %711 = arith.addf %708, %710 : vector<2x32xf32>
    %c0_438 = arith.constant 0 : index
    %c0_439 = arith.constant 0 : index
    %712 = vector.load %arg2[%c0_438, %c0_439] : memref<64x10xf32, #tpu.memory_space<vmem>>, vector<64x10xf32>
    %cst_440 = arith.constant dense<0.000000e+00> : vector<2x10xf32>
    %713 = tpu.matmul %703, %712, %cst_440 {dimension_numbers = #tpu.dot_dimension_numbers<[1], [0], [0], [1], [0, 0, 1, 1], [], []>} : vector<2x64xf32>, vector<64x10xf32>, vector<2x10xf32> -> vector<2x10xf32>
    %c0_441 = arith.constant 0 : index
    %c0_442 = arith.constant 0 : index
    %714 = vector.load %arg1[%c0_441, %c0_442] : memref<32x10xf32, #tpu.memory_space<vmem>>, vector<32x10xf32>
    %cst_443 = arith.constant dense<0.000000e+00> : vector<2x10xf32>
    %715 = tpu.matmul %711, %714, %cst_443 {dimension_numbers = #tpu.dot_dimension_numbers<[1], [0], [0], [1], [0, 0, 1, 1], [], []>} : vector<2x32xf32>, vector<32x10xf32>, vector<2x10xf32> -> vector<2x10xf32>
    %716 = arith.addf %713, %715 : vector<2x10xf32>
    %c0_444 = arith.constant 0 : index
    %c0_445 = arith.constant 0 : index
    %717 = vector.load %arg0[%c0_444, %c0_445] : memref<1x10xf32, #tpu.memory_space<vmem>>, vector<1x10xf32>
    %718 = vector.broadcast %717 : vector<1x10xf32> to vector<2x10xf32>
    %719 = arith.addf %716, %718 : vector<2x10xf32>
    %c0_446 = arith.constant 0 : index
    %c0_447 = arith.constant 0 : index
    %720 = vector.load %arg84[%c0_446, %c0_447] : memref<2x10xf32, #tpu.memory_space<vmem>>, vector<2x10xf32>
    tpu.vector_store %arg84[%c0_446, %c0_447], %719 {strides = array<i32>} : memref<2x10xf32, #tpu.memory_space<vmem>>, vector<2x10xf32>,
    return
  }
}

</mosaic_0001>

<llo_original>
// kernel: tpu_custom_call.1
$region0: #{tpu_custom_call.1}
  #allocation0 [shape = 'u32[]', space=smem, size = 0x4, offset = 0x4, fixed_abs, tag = 'smem constant byte address 0x4 - core index']
  #allocation1 [shape = 'u32[144,128]{1,0:T(1,128)}', space=vmem, size = 0x12000, scoped, tag = 'internal scratch']
  %s0 = inlined_call_operand.smem [shape: u32[85], index: -1, kind: input, shape index: {}]
  %s1 = sld [smem:[%s0]]
  %s2 = scalar_lea.smem %s0, 1
  %s3 = sld [smem:[%s2]]
  %s4 = scalar_lea.smem %s0, 2
  %s5 = sld [smem:[%s4]]
  %s6 = scalar_lea.smem %s0, 3
  %s7 = sld [smem:[%s6]]
  %s8 = scalar_lea.smem %s0, 4
  %s9 = sld [smem:[%s8]]
  %s10 = scalar_lea.smem %s0, 5
  %s11 = sld [smem:[%s10]]
  %s12 = scalar_lea.smem %s0, 6
  %s13 = sld [smem:[%s12]]
  %s14 = scalar_lea.smem %s0, 7
  %s15 = sld [smem:[%s14]]
  %s16 = scalar_lea.smem %s0, 8
  %s17 = sld [smem:[%s16]]
  %s18 = scalar_lea.smem %s0, 9
  %s19 = sld [smem:[%s18]]
  %s20 = scalar_lea.smem %s0, 10
  %s21 = sld [smem:[%s20]]
  %s22 = scalar_lea.smem %s0, 11
  %s23 = sld [smem:[%s22]]
  %s24 = scalar_lea.smem %s0, 12
  %s25 = sld [smem:[%s24]]
  %s26 = scalar_lea.smem %s0, 13
  %s27 = sld [smem:[%s26]]
  %s28 = scalar_lea.smem %s0, 14
  %s29 = sld [smem:[%s28]]
  %s30 = scalar_lea.smem %s0, 15
  %s31 = sld [smem:[%s30]]
  %s32 = scalar_lea.smem %s0, 16
  %s33 = sld [smem:[%s32]]
  %s34 = scalar_lea.smem %s0, 17
  %s35 = sld [smem:[%s34]]
  %s36 = scalar_lea.smem %s0, 18
  %s37 = sld [smem:[%s36]]
  %s38 = scalar_lea.smem %s0, 19
  %s39 = sld [smem:[%s38]]
  %s40 = scalar_lea.smem %s0, 20
  %s41 = sld [smem:[%s40]]
  %s42 = scalar_lea.smem %s0, 21
  %s43 = sld [smem:[%s42]]
  %s44 = scalar_lea.smem %s0, 22
  %s45 = sld [smem:[%s44]]
  %s46 = scalar_lea.smem %s0, 23
  %s47 = sld [smem:[%s46]]
  %s48 = scalar_lea.smem %s0, 24
  %s49 = sld [smem:[%s48]]
  %s50 = scalar_lea.smem %s0, 25
  %s51 = sld [smem:[%s50]]
  %s52 = scalar_lea.smem %s0, 26
  %s53 = sld [smem:[%s52]]
  %s54 = scalar_lea.smem %s0, 27
  %s55 = sld [smem:[%s54]]
  %s56 = scalar_lea.smem %s0, 28
  %s57 = sld [smem:[%s56]]
  %s58 = scalar_lea.smem %s0, 29
  %s59 = sld [smem:[%s58]]
  %s60 = scalar_lea.smem %s0, 30
  %s61 = sld [smem:[%s60]]
  %s62 = scalar_lea.smem %s0, 31
  %s63 = sld [smem:[%s62]]
  %s64 = scalar_lea.smem %s0, 32
  %s65 = sld [smem:[%s64]]
  %s66 = scalar_lea.smem %s0, 33
  %s67 = sld [smem:[%s66]]
  %s68 = scalar_lea.smem %s0, 34
  %s69 = sld [smem:[%s68]]
  %s70 = scalar_lea.smem %s0, 35
  %s71 = sld [smem:[%s70]]
  %s72 = scalar_lea.smem %s0, 36
  %s73 = sld [smem:[%s72]]
  %s74 = scalar_lea.smem %s0, 37
  %s75 = sld [smem:[%s74]]
  %s76 = scalar_lea.smem %s0, 38
  %s77 = sld [smem:[%s76]]
  %s78 = scalar_lea.smem %s0, 39
  %s79 = sld [smem:[%s78]]
  %s80 = scalar_lea.smem %s0, 40
  %s81 = sld [smem:[%s80]]
  %s82 = scalar_lea.smem %s0, 41
  %s83 = sld [smem:[%s82]]
  %s84 = scalar_lea.smem %s0, 42
  %s85 = sld [smem:[%s84]]
  %s86 = scalar_lea.smem %s0, 43
  %s87 = sld [smem:[%s86]]
  %s88 = scalar_lea.smem %s0, 44
  %s89 = sld [smem:[%s88]]
  %s90 = scalar_lea.smem %s0, 45
  %s91 = sld [smem:[%s90]]
  %s92 = scalar_lea.smem %s0, 46
  %s93 = sld [smem:[%s92]]
  %s94 = scalar_lea.smem %s0, 47
  %s95 = sld [smem:[%s94]]
  %s96 = scalar_lea.smem %s0, 48
  %s97 = sld [smem:[%s96]]
  %s98 = scalar_lea.smem %s0, 49
  %s99 = sld [smem:[%s98]]
  %s100 = scalar_lea.smem %s0, 50
  %s101 = sld [smem:[%s100]]
  %s102 = scalar_lea.smem %s0, 51
  %s103 = sld [smem:[%s102]]
  %s104 = scalar_lea.smem %s0, 52
  %s105 = sld [smem:[%s104]]
  %s106 = scalar_lea.smem %s0, 53
  %s107 = sld [smem:[%s106]]
  %s108 = scalar_lea.smem %s0, 54
  %s109 = sld [smem:[%s108]]
  %s110 = scalar_lea.smem %s0, 55
  %s111 = sld [smem:[%s110]]
  %s112 = scalar_lea.smem %s0, 56
  %s113 = sld [smem:[%s112]]
  %s114 = scalar_lea.smem %s0, 57
  %s115 = sld [smem:[%s114]]
  %s116 = scalar_lea.smem %s0, 58
  %s117 = sld [smem:[%s116]]
  %s118 = scalar_lea.smem %s0, 59
  %s119 = sld [smem:[%s118]]
  %s120 = scalar_lea.smem %s0, 60
  %s121 = sld [smem:[%s120]]
  %s122 = scalar_lea.smem %s0, 61
  %s123 = sld [smem:[%s122]]
  %s124 = scalar_lea.smem %s0, 62
  %s125 = sld [smem:[%s124]]
  %s126 = scalar_lea.smem %s0, 63
  %s127 = sld [smem:[%s126]]
  %s128 = scalar_lea.smem %s0, 64
  %s129 = sld [smem:[%s128]]
  %s130 = scalar_lea.smem %s0, 65
  %s131 = sld [smem:[%s130]]
  %s132 = scalar_lea.smem %s0, 66
  %s133 = sld [smem:[%s132]]
  %s134 = scalar_lea.smem %s0, 67
  %s135 = sld [smem:[%s134]]
  %s136 = scalar_lea.smem %s0, 68
  %s137 = sld [smem:[%s136]]
  %s138 = scalar_lea.smem %s0, 69
  %s139 = sld [smem:[%s138]]
  %s140 = scalar_lea.smem %s0, 70
  %s141 = sld [smem:[%s140]]
  %s142 = scalar_lea.smem %s0, 71
  %s143 = sld [smem:[%s142]]
  %s144 = scalar_lea.smem %s0, 72
  %s145 = sld [smem:[%s144]]
  %s146 = scalar_lea.smem %s0, 73
  %s147 = sld [smem:[%s146]]
  %s148 = scalar_lea.smem %s0, 74
  %s149 = sld [smem:[%s148]]
  %s150 = scalar_lea.smem %s0, 75
  %s151 = sld [smem:[%s150]]
  %s152 = scalar_lea.smem %s0, 76
  %s153 = sld [smem:[%s152]]
  %s154 = scalar_lea.smem %s0, 77
  %s155 = sld [smem:[%s154]]
  %s156 = scalar_lea.smem %s0, 78
  %s157 = sld [smem:[%s156]]
  %s158 = scalar_lea.smem %s0, 79
  %s159 = sld [smem:[%s158]]
  %s160 = scalar_lea.smem %s0, 80
  %s161 = sld [smem:[%s160]]
  %s162 = scalar_lea.smem %s0, 81
  %s163 = sld [smem:[%s162]]
  %s164 = scalar_lea.smem %s0, 82
  %s165 = sld [smem:[%s164]]
  %s166 = scalar_lea.smem %s0, 83
  %s167 = sld [smem:[%s166]]
  %s168 = scalar_lea.smem %s0, 84
  %s169 = sld [smem:[%s168]]
  %s170 = sld [smem:[#allocation0]]
  $region482: #{tpu_custom_call.1} parent=0
    _
  %s172 = ssub.s32 1, %s170
  %s173 = scalar_select 0, %s172, %s170
  $region1: #{tpu_custom_call.1} parent=0
    #allocation2 [shape = 'u8[512]{0}', space=vmem, size = 0x400, scoped, tag = 'input window, operand 0, single buffered']
    #allocation3 [shape = 's32[1]{0}', space=sflag, size = 0x4, scoped, tag = 'scoped memory for tpu_custom_call.1']
    #allocation4 [shape = 's32[1]{0}', space=sflag, size = 0x4, scoped, tag = 'scoped memory for tpu_custom_call.1']
    #allocation5 [shape = 'u8[512]{0}', space=vmem, size = 0x400, scoped, tag = 'input window, operand 3, single buffered']
    #allocation6 [shape = 's32[1]{0}', space=sflag, size = 0x4, scoped, tag = 'scoped memory for tpu_custom_call.1']
    #allocation7 [shape = 'u8[512]{0}', space=vmem, size = 0x400, scoped, tag = 'input window, operand 4, single buffered']
    #allocation8 [shape = 'u8[512]{0}', space=vmem, size = 0x400, scoped, tag = 'input window, operand 5, single buffered']
    #allocation9 [shape = 's32[1]{0}', space=sflag, size = 0x4, scoped, tag = 'scoped memory for tpu_custom_call.1']
    #allocation10 [shape = 'u8[512]{0}', space=vmem, size = 0x400, scoped, tag = 'input window, operand 6, single buffered']
    #allocation11 [shape = 'u8[512]{0}', space=vmem, size = 0x400, scoped, tag = 'input window, operand 7, single buffered']
    #allocation12 [shape = 's32[1]{0}', space=sflag, size = 0x4, scoped, tag = 'scoped memory for tpu_custom_call.1']
    #allocation13 [shape = 'u8[512]{0}', space=vmem, size = 0x400, scoped, tag = 'input window, operand 8, single buffered']
    #allocation14 [shape = 'u8[512]{0}', space=vmem, size = 0x400, scoped, tag = 'input window, operand 9, single buffered']
    #allocation15 [shape = 's32[1]{0}', space=sflag, size = 0x4, scoped, tag = 'scoped memory for tpu_custom_call.1']
    #allocation16 [shape = 'u8[512]{0}', space=vmem, size = 0x400, scoped, tag = 'input window, operand 10, single buffered']
    #allocation17 [shape = 'u8[512]{0}', space=vmem, size = 0x400, scoped, tag = 'input window, operand 15, single buffered']
    #allocation18 [shape = 's32[1]{0}', space=sflag, size = 0x4, scoped, tag = 'scoped memory for tpu_custom_call.1']
    #allocation19 [shape = 'u8[512]{0}', space=vmem, size = 0x400, scoped, tag = 'input window, operand 16, single buffered']
    #allocation20 [shape = 'u8[512]{0}', space=vmem, size = 0x400, scoped, tag = 'input window, operand 17, single buffered']
    #allocation21 [shape = 's32[1]{0}', space=sflag, size = 0x4, scoped, tag = 'scoped memory for tpu_custom_call.1']
    #allocation22 [shape = 'u8[512]{0}', space=vmem, size = 0x400, scoped, tag = 'input window, operand 18, single buffered']
    #allocation23 [shape = 'u8[512]{0}', space=vmem, size = 0x400, scoped, tag = 'input window, operand 19, single buffered']
    #allocation24 [shape = 's32[1]{0}', space=sflag, size = 0x4, scoped, tag = 'scoped memory for tpu_custom_call.1']
    #allocation25 [shape = 'u8[512]{0}', space=vmem, size = 0x400, scoped, tag = 'input window, operand 20, single buffered']
    #allocation26 [shape = 'u8[512]{0}', space=vmem, size = 0x400, scoped, tag = 'input window, operand 21, single buffered']
    #allocation27 [shape = 's32[1]{0}', space=sflag, size = 0x4, scoped, tag = 'scoped memory for tpu_custom_call.1']
    #allocation28 [shape = 'u8[512]{0}', space=vmem, size = 0x400, scoped, tag = 'input window, operand 22, single buffered']
    #allocation29 [shape = 'u8[512]{0}', space=vmem, size = 0x400, scoped, tag = 'input window, operand 27, single buffered']
    #allocation30 [shape = 's32[1]{0}', space=sflag, size = 0x4, scoped, tag = 'scoped memory for tpu_custom_call.1']
    #allocation31 [shape = 'u8[512]{0}', space=vmem, size = 0x400, scoped, tag = 'input window, operand 29, single buffered']
    #allocation32 [shape = 'u8[512]{0}', space=vmem, size = 0x400, scoped, tag = 'input window, operand 31, single buffered']
    #allocation33 [shape = 's32[1]{0}', space=sflag, size = 0x4, scoped, tag = 'scoped memory for tpu_custom_call.1']
    #allocation34 [shape = 'u8[512]{0}', space=vmem, size = 0x400, scoped, tag = 'input window, operand 33, single buffered']
    #allocation35 [shape = 'u8[512]{0}', space=vmem, size = 0x400, scoped, tag = 'input window, operand 34, single buffered']
    #allocation36 [shape = 's32[1]{0}', space=sflag, size = 0x4, scoped, tag = 'scoped memory for tpu_custom_call.1']
    #allocation37 [shape = 'u8[512]{0}', space=vmem, size = 0x400, scoped, tag = 'input window, operand 35, single buffered']
    #allocation38 [shape = 'u8[512]{0}', space=vmem, size = 0x400, scoped, tag = 'input window, operand 36, single buffered']
    #allocation39 [shape = 's32[1]{0}', space=sflag, size = 0x4, scoped, tag = 'scoped memory for tpu_custom_call.1']
    #allocation40 [shape = 'u8[1024]{0}', space=vmem, size = 0x400, scoped, tag = 'input window, operand 67, single buffered']
    #allocation41 [shape = 'u8[1024]{0}', space=vmem, size = 0x400, scoped, tag = 'input window, operand 68, single buffered']
    #allocation42 [shape = 's32[1]{0}', space=sflag, size = 0x4, scoped, tag = 'scoped memory for tpu_custom_call.1']
    #allocation43 [shape = 'u8[1024]{0}', space=vmem, size = 0x400, scoped, tag = 'input window, operand 69, single buffered']
    #allocation44 [shape = 'u8[1024]{0}', space=vmem, size = 0x400, scoped, tag = 'input window, operand 70, single buffered']
    #allocation45 [shape = 's32[1]{0}', space=sflag, size = 0x4, scoped, tag = 'scoped memory for tpu_custom_call.1']
    #allocation46 [shape = 'u8[1024]{0}', space=vmem, size = 0x400, scoped, tag = 'input window, operand 71, single buffered']
    #allocation47 [shape = 'u8[1024]{0}', space=vmem, size = 0x400, scoped, tag = 'input window, operand 72, single buffered']
    #allocation48 [shape = 's32[1]{0}', space=sflag, size = 0x4, scoped, tag = 'scoped memory for tpu_custom_call.1']
    #allocation49 [shape = 'u8[1024]{0}', space=vmem, size = 0x400, scoped, tag = 'input window, operand 73, single buffered']
    #allocation50 [shape = 'u8[512]{0}', space=vmem, size = 0x400, scoped, tag = 'input window, operand 80, single buffered']
    #allocation51 [shape = 's32[1]{0}', space=sflag, size = 0x4, scoped, tag = 'scoped memory for tpu_custom_call.1']
    #allocation52 [shape = 'u8[1024]{0}', space=vmem, size = 0x400, scoped, tag = 'input window, operand 82, single buffered']
    #allocation53 [shape = 'u8[1024]{0}', space=vmem, size = 0x400, scoped, tag = 'input window, operand 83, single buffered']
    #allocation54 [shape = 's32[1]{0}', space=sflag, size = 0x4, scoped, tag = 'scoped memory for tpu_custom_call.1']
    #allocation55 [shape = 'u8[1024]{0}', space=vmem, size = 0x400, scoped, tag = 'output window, operand 0, single buffered']
    %174 = vsyncpa [#allocation3], 0
    %175 = vsyncpa [#allocation6], 0
    %176 = vsyncpa [#allocation9], 0
    %177 = vsyncpa [#allocation12], 0
    %178 = vsyncpa [#allocation15], 0
    %179 = vsyncpa [#allocation18], 0
    %180 = vsyncpa [#allocation21], 0
    %181 = vsyncpa [#allocation24], 0
    %182 = vsyncpa [#allocation27], 0
    %183 = vsyncpa [#allocation30], 0
    %184 = vsyncpa [#allocation33], 0
    %185 = vsyncpa [#allocation36], 0
    %186 = vsyncpa [#allocation39], 0
    %187 = vsyncpa [#allocation42], 0
    %188 = vsyncpa [#allocation45], 0
    %189 = vsyncpa [#allocation48], 0
    %190 = vsyncpa [#allocation51], 0
    %191 = vsyncpa [#allocation54], 0
    %192 = vsyncpa [#allocation4], 0
    // Predicated region
    $region2: #{tpu_custom_call.1} parent=1 // pred_check
      _
    $region3: #{tpu_custom_call.1} parent=1 // pred_check_branch
      %194 = sbr.rel (0) target = $region5
    $region4: #{tpu_custom_call.1} parent=1 // pred_region
      %s196 = ssub.s32 16, 16
      %197 = vsyncadd [#allocation3], %s196
      %s199 = sshll.u32 [#allocation2], 4
      %s200 = int_to_ptr.vmem [resolvable:$true] %s199
      %202 = dma.hbm_to_vmem [thread:$0]  %s1, 16, %s200, [#allocation3]
    $region5: #{tpu_custom_call.1} parent=1 // pred_fallthru
      _
    // Predicated region
    $region6: #{tpu_custom_call.1} parent=1 // pred_check
      _
    $region7: #{tpu_custom_call.1} parent=1 // pred_check_branch
      %204 = sbr.rel (0) target = $region9
    $region8: #{tpu_custom_call.1} parent=1 // pred_region
      _
    $region9: #{tpu_custom_call.1} parent=1 // pred_fallthru
      _
    // Predicated region
    $region10: #{tpu_custom_call.1} parent=1 // pred_check
      _
    $region11: #{tpu_custom_call.1} parent=1 // pred_check_branch
      %206 = sbr.rel (0) target = $region13
    $region12: #{tpu_custom_call.1} parent=1 // pred_region
      _
    $region13: #{tpu_custom_call.1} parent=1 // pred_fallthru
      _
    // Predicated region
    $region14: #{tpu_custom_call.1} parent=1 // pred_check
      _
    $region15: #{tpu_custom_call.1} parent=1 // pred_check_branch
      %208 = sbr.rel (0) target = $region17
    $region16: #{tpu_custom_call.1} parent=1 // pred_region
      %s210 = ssub.s32 16, 16
      %211 = vsyncadd [#allocation6], %s210
      %s213 = sshll.u32 [#allocation5], 4
      %s214 = int_to_ptr.vmem [resolvable:$true] %s213
      %216 = dma.hbm_to_vmem [thread:$0]  %s7, 16, %s214, [#allocation6]
    $region17: #{tpu_custom_call.1} parent=1 // pred_fallthru
      _
    // Predicated region
    $region18: #{tpu_custom_call.1} parent=1 // pred_check
      _
    $region19: #{tpu_custom_call.1} parent=1 // pred_check_branch
      %218 = sbr.rel (0) target = $region21
    $region20: #{tpu_custom_call.1} parent=1 // pred_region
      %s220 = ssub.s32 16, 16
      %221 = vsyncadd [#allocation6], %s220
      %s223 = sshll.u32 [#allocation7], 4
      %s224 = int_to_ptr.vmem [resolvable:$true] %s223
      %226 = dma.hbm_to_vmem [thread:$0]  %s9, 16, %s224, [#allocation6]
    $region21: #{tpu_custom_call.1} parent=1 // pred_fallthru
      _
    // Predicated region
    $region22: #{tpu_custom_call.1} parent=1 // pred_check
      _
    $region23: #{tpu_custom_call.1} parent=1 // pred_check_branch
      %228 = sbr.rel (0) target = $region25
    $region24: #{tpu_custom_call.1} parent=1 // pred_region
      %s230 = ssub.s32 16, 16
      %231 = vsyncadd [#allocation9], %s230
      %s233 = sshll.u32 [#allocation8], 4
      %s234 = int_to_ptr.vmem [resolvable:$true] %s233
      %236 = dma.hbm_to_vmem [thread:$0]  %s11, 16, %s234, [#allocation9]
    $region25: #{tpu_custom_call.1} parent=1 // pred_fallthru
      _
    // Predicated region
    $region26: #{tpu_custom_call.1} parent=1 // pred_check
      _
    $region27: #{tpu_custom_call.1} parent=1 // pred_check_branch
      %238 = sbr.rel (0) target = $region29
    $region28: #{tpu_custom_call.1} parent=1 // pred_region
      %s240 = ssub.s32 16, 16
      %241 = vsyncadd [#allocation9], %s240
      %s243 = sshll.u32 [#allocation10], 4
      %s244 = int_to_ptr.vmem [resolvable:$true] %s243
      %246 = dma.hbm_to_vmem [thread:$0]  %s13, 16, %s244, [#allocation9]
    $region29: #{tpu_custom_call.1} parent=1 // pred_fallthru
      _
    // Predicated region
    $region30: #{tpu_custom_call.1} parent=1 // pred_check
      _
    $region31: #{tpu_custom_call.1} parent=1 // pred_check_branch
      %248 = sbr.rel (0) target = $region33
    $region32: #{tpu_custom_call.1} parent=1 // pred_region
      %s250 = ssub.s32 16, 16
      %251 = vsyncadd [#allocation12], %s250
      %s253 = sshll.u32 [#allocation11], 4
      %s254 = int_to_ptr.vmem [resolvable:$true] %s253
      %256 = dma.hbm_to_vmem [thread:$0]  %s15, 16, %s254, [#allocation12]
    $region33: #{tpu_custom_call.1} parent=1 // pred_fallthru
      _
    // Predicated region
    $region34: #{tpu_custom_call.1} parent=1 // pred_check
      _
    $region35: #{tpu_custom_call.1} parent=1 // pred_check_branch
      %258 = sbr.rel (0) target = $region37
    $region36: #{tpu_custom_call.1} parent=1 // pred_region
      %s260 = ssub.s32 16, 16
      %261 = vsyncadd [#allocation12], %s260
      %s263 = sshll.u32 [#allocation13], 4
      %s264 = int_to_ptr.vmem [resolvable:$true] %s263
      %266 = dma.hbm_to_vmem [thread:$0]  %s17, 16, %s264, [#allocation12]
    $region37: #{tpu_custom_call.1} parent=1 // pred_fallthru
      _
    // Predicated region
    $region38: #{tpu_custom_call.1} parent=1 // pred_check
      _
    $region39: #{tpu_custom_call.1} parent=1 // pred_check_branch
      %268 = sbr.rel (0) target = $region41
    $region40: #{tpu_custom_call.1} parent=1 // pred_region
      %s270 = ssub.s32 16, 16
      %271 = vsyncadd [#allocation15], %s270
      %s273 = sshll.u32 [#allocation14], 4
      %s274 = int_to_ptr.vmem [resolvable:$true] %s273
      %276 = dma.hbm_to_vmem [thread:$0]  %s19, 16, %s274, [#allocation15]
    $region41: #{tpu_custom_call.1} parent=1 // pred_fallthru
      _
    // Predicated region
    $region42: #{tpu_custom_call.1} parent=1 // pred_check
      _
    $region43: #{tpu_custom_call.1} parent=1 // pred_check_branch
      %278 = sbr.rel (0) target = $region45
    $region44: #{tpu_custom_call.1} parent=1 // pred_region
      %s280 = ssub.s32 16, 16
      %281 = vsyncadd [#allocation15], %s280
      %s283 = sshll.u32 [#allocation16], 4
      %s284 = int_to_ptr.vmem [resolvable:$true] %s283
      %286 = dma.hbm_to_vmem [thread:$0]  %s21, 16, %s284, [#allocation15]
    $region45: #{tpu_custom_call.1} parent=1 // pred_fallthru
      _
    // Predicated region
    $region46: #{tpu_custom_call.1} parent=1 // pred_check
      _
    $region47: #{tpu_custom_call.1} parent=1 // pred_check_branch
      %288 = sbr.rel (0) target = $region49
    $region48: #{tpu_custom_call.1} parent=1 // pred_region
      _
    $region49: #{tpu_custom_call.1} parent=1 // pred_fallthru
      _
    // Predicated region
    $region50: #{tpu_custom_call.1} parent=1 // pred_check
      _
    $region51: #{tpu_custom_call.1} parent=1 // pred_check_branch
      %290 = sbr.rel (0) target = $region53
    $region52: #{tpu_custom_call.1} parent=1 // pred_region
      _
    $region53: #{tpu_custom_call.1} parent=1 // pred_fallthru
      _
    // Predicated region
    $region54: #{tpu_custom_call.1} parent=1 // pred_check
      _
    $region55: #{tpu_custom_call.1} parent=1 // pred_check_branch
      %292 = sbr.rel (0) target = $region57
    $region56: #{tpu_custom_call.1} parent=1 // pred_region
      _
    $region57: #{tpu_custom_call.1} parent=1 // pred_fallthru
      _
    // Predicated region
    $region58: #{tpu_custom_call.1} parent=1 // pred_check
      _
    $region59: #{tpu_custom_call.1} parent=1 // pred_check_branch
      %294 = sbr.rel (0) target = $region61
    $region60: #{tpu_custom_call.1} parent=1 // pred_region
      _
    $region61: #{tpu_custom_call.1} parent=1 // pred_fallthru
      _
    // Predicated region
    $region62: #{tpu_custom_call.1} parent=1 // pred_check
      _
    $region63: #{tpu_custom_call.1} parent=1 // pred_check_branch
      %296 = sbr.rel (0) target = $region65
    $region64: #{tpu_custom_call.1} parent=1 // pred_region
      %s298 = ssub.s32 16, 16
      %299 = vsyncadd [#allocation18], %s298
      %s301 = sshll.u32 [#allocation17], 4
      %s302 = int_to_ptr.vmem [resolvable:$true] %s301
      %304 = dma.hbm_to_vmem [thread:$0]  %s31, 16, %s302, [#allocation18]
    $region65: #{tpu_custom_call.1} parent=1 // pred_fallthru
      _
    // Predicated region
    $region66: #{tpu_custom_call.1} parent=1 // pred_check
      _
    $region67: #{tpu_custom_call.1} parent=1 // pred_check_branch
      %306 = sbr.rel (0) target = $region69
    $region68: #{tpu_custom_call.1} parent=1 // pred_region
      %s308 = ssub.s32 16, 16
      %309 = vsyncadd [#allocation18], %s308
      %s311 = sshll.u32 [#allocation19], 4
      %s312 = int_to_ptr.vmem [resolvable:$true] %s311
      %314 = dma.hbm_to_vmem [thread:$0]  %s33, 16, %s312, [#allocation18]
    $region69: #{tpu_custom_call.1} parent=1 // pred_fallthru
      _
    // Predicated region
    $region70: #{tpu_custom_call.1} parent=1 // pred_check
      _
    $region71: #{tpu_custom_call.1} parent=1 // pred_check_branch
      %316 = sbr.rel (0) target = $region73
    $region72: #{tpu_custom_call.1} parent=1 // pred_region
      %s318 = ssub.s32 16, 16
      %319 = vsyncadd [#allocation21], %s318
      %s321 = sshll.u32 [#allocation20], 4
      %s322 = int_to_ptr.vmem [resolvable:$true] %s321
      %324 = dma.hbm_to_vmem [thread:$0]  %s35, 16, %s322, [#allocation21]
    $region73: #{tpu_custom_call.1} parent=1 // pred_fallthru
      _
    // Predicated region
    $region74: #{tpu_custom_call.1} parent=1 // pred_check
      _
    $region75: #{tpu_custom_call.1} parent=1 // pred_check_branch
      %326 = sbr.rel (0) target = $region77
    $region76: #{tpu_custom_call.1} parent=1 // pred_region
      %s328 = ssub.s32 16, 16
      %329 = vsyncadd [#allocation21], %s328
      %s331 = sshll.u32 [#allocation22], 4
      %s332 = int_to_ptr.vmem [resolvable:$true] %s331
      %334 = dma.hbm_to_vmem [thread:$0]  %s37, 16, %s332, [#allocation21]
    $region77: #{tpu_custom_call.1} parent=1 // pred_fallthru
      _
    // Predicated region
    $region78: #{tpu_custom_call.1} parent=1 // pred_check
      _
    $region79: #{tpu_custom_call.1} parent=1 // pred_check_branch
      %336 = sbr.rel (0) target = $region81
    $region80: #{tpu_custom_call.1} parent=1 // pred_region
      %s338 = ssub.s32 16, 16
      %339 = vsyncadd [#allocation24], %s338
      %s341 = sshll.u32 [#allocation23], 4
      %s342 = int_to_ptr.vmem [resolvable:$true] %s341
      %344 = dma.hbm_to_vmem [thread:$0]  %s39, 16, %s342, [#allocation24]
    $region81: #{tpu_custom_call.1} parent=1 // pred_fallthru
      _
    // Predicated region
    $region82: #{tpu_custom_call.1} parent=1 // pred_check
      _
    $region83: #{tpu_custom_call.1} parent=1 // pred_check_branch
      %346 = sbr.rel (0) target = $region85
    $region84: #{tpu_custom_call.1} parent=1 // pred_region
      %s348 = ssub.s32 16, 16
      %349 = vsyncadd [#allocation24], %s348
      %s351 = sshll.u32 [#allocation25], 4
      %s352 = int_to_ptr.vmem [resolvable:$true] %s351
      %354 = dma.hbm_to_vmem [thread:$0]  %s41, 16, %s352, [#allocation24]
    $region85: #{tpu_custom_call.1} parent=1 // pred_fallthru
      _
    // Predicated region
    $region86: #{tpu_custom_call.1} parent=1 // pred_check
      _
    $region87: #{tpu_custom_call.1} parent=1 // pred_check_branch
      %356 = sbr.rel (0) target = $region89
    $region88: #{tpu_custom_call.1} parent=1 // pred_region
      %s358 = ssub.s32 16, 16
      %359 = vsyncadd [#allocation27], %s358
      %s361 = sshll.u32 [#allocation26], 4
      %s362 = int_to_ptr.vmem [resolvable:$true] %s361
      %364 = dma.hbm_to_vmem [thread:$0]  %s43, 16, %s362, [#allocation27]
    $region89: #{tpu_custom_call.1} parent=1 // pred_fallthru
      _
    // Predicated region
    $region90: #{tpu_custom_call.1} parent=1 // pred_check
      _
    $region91: #{tpu_custom_call.1} parent=1 // pred_check_branch
      %366 = sbr.rel (0) target = $region93
    $region92: #{tpu_custom_call.1} parent=1 // pred_region
      %s368 = ssub.s32 16, 16
      %369 = vsyncadd [#allocation27], %s368
      %s371 = sshll.u32 [#allocation28], 4
      %s372 = int_to_ptr.vmem [resolvable:$true] %s371
      %374 = dma.hbm_to_vmem [thread:$0]  %s45, 16, %s372, [#allocation27]
    $region93: #{tpu_custom_call.1} parent=1 // pred_fallthru
      _
    // Predicated region
    $region94: #{tpu_custom_call.1} parent=1 // pred_check
      _
    $region95: #{tpu_custom_call.1} parent=1 // pred_check_branch
      %376 = sbr.rel (0) target = $region97
    $region96: #{tpu_custom_call.1} parent=1 // pred_region
      _
    $region97: #{tpu_custom_call.1} parent=1 // pred_fallthru
      _
    // Predicated region
    $region98: #{tpu_custom_call.1} parent=1 // pred_check
      _
    $region99: #{tpu_custom_call.1} parent=1 // pred_check_branch
      %378 = sbr.rel (0) target = $region101
    $region100: #{tpu_custom_call.1} parent=1 // pred_region
      _
    $region101: #{tpu_custom_call.1} parent=1 // pred_fallthru
      _
    // Predicated region
    $region102: #{tpu_custom_call.1} parent=1 // pred_check
      _
    $region103: #{tpu_custom_call.1} parent=1 // pred_check_branch
      %380 = sbr.rel (0) target = $region105
    $region104: #{tpu_custom_call.1} parent=1 // pred_region
      _
    $region105: #{tpu_custom_call.1} parent=1 // pred_fallthru
      _
    // Predicated region
    $region106: #{tpu_custom_call.1} parent=1 // pred_check
      _
    $region107: #{tpu_custom_call.1} parent=1 // pred_check_branch
      %382 = sbr.rel (0) target = $region109
    $region108: #{tpu_custom_call.1} parent=1 // pred_region
      _
    $region109: #{tpu_custom_call.1} parent=1 // pred_fallthru
      _
    // Predicated region
    $region110: #{tpu_custom_call.1} parent=1 // pred_check
      _
    $region111: #{tpu_custom_call.1} parent=1 // pred_check_branch
      %384 = sbr.rel (0) target = $region113
    $region112: #{tpu_custom_call.1} parent=1 // pred_region
      %s386 = ssub.s32 16, 16
      %387 = vsyncadd [#allocation30], %s386
      %s389 = sshll.u32 [#allocation29], 4
      %s390 = int_to_ptr.vmem [resolvable:$true] %s389
      %392 = dma.hbm_to_vmem [thread:$0]  %s55, 16, %s390, [#allocation30]
    $region113: #{tpu_custom_call.1} parent=1 // pred_fallthru
      _
    // Predicated region
    $region114: #{tpu_custom_call.1} parent=1 // pred_check
      _
    $region115: #{tpu_custom_call.1} parent=1 // pred_check_branch
      %394 = sbr.rel (0) target = $region117
    $region116: #{tpu_custom_call.1} parent=1 // pred_region
      _
    $region117: #{tpu_custom_call.1} parent=1 // pred_fallthru
      _
    // Predicated region
    $region118: #{tpu_custom_call.1} parent=1 // pred_check
      _
    $region119: #{tpu_custom_call.1} parent=1 // pred_check_branch
      %396 = sbr.rel (0) target = $region121
    $region120: #{tpu_custom_call.1} parent=1 // pred_region
      %s398 = ssub.s32 16, 16
      %399 = vsyncadd [#allocation30], %s398
      %s401 = sshll.u32 [#allocation31], 4
      %s402 = int_to_ptr.vmem [resolvable:$true] %s401
      %404 = dma.hbm_to_vmem [thread:$0]  %s59, 16, %s402, [#allocation30]
    $region121: #{tpu_custom_call.1} parent=1 // pred_fallthru
      _
    // Predicated region
    $region122: #{tpu_custom_call.1} parent=1 // pred_check
      _
    $region123: #{tpu_custom_call.1} parent=1 // pred_check_branch
      %406 = sbr.rel (0) target = $region125
    $region124: #{tpu_custom_call.1} parent=1 // pred_region
      _
    $region125: #{tpu_custom_call.1} parent=1 // pred_fallthru
      _
    // Predicated region
    $region126: #{tpu_custom_call.1} parent=1 // pred_check
      _
    $region127: #{tpu_custom_call.1} parent=1 // pred_check_branch
      %408 = sbr.rel (0) target = $region129
    $region128: #{tpu_custom_call.1} parent=1 // pred_region
      %s410 = ssub.s32 16, 16
      %411 = vsyncadd [#allocation33], %s410
      %s413 = sshll.u32 [#allocation32], 4
      %s414 = int_to_ptr.vmem [resolvable:$true] %s413
      %416 = dma.hbm_to_vmem [thread:$0]  %s63, 16, %s414, [#allocation33]
    $region129: #{tpu_custom_call.1} parent=1 // pred_fallthru
      _
    // Predicated region
    $region130: #{tpu_custom_call.1} parent=1 // pred_check
      _
    $region131: #{tpu_custom_call.1} parent=1 // pred_check_branch
      %418 = sbr.rel (0) target = $region133
    $region132: #{tpu_custom_call.1} parent=1 // pred_region
      _
    $region133: #{tpu_custom_call.1} parent=1 // pred_fallthru
      _
    // Predicated region
    $region134: #{tpu_custom_call.1} parent=1 // pred_check
      _
    $region135: #{tpu_custom_call.1} parent=1 // pred_check_branch
      %420 = sbr.rel (0) target = $region137
    $region136: #{tpu_custom_call.1} parent=1 // pred_region
      %s422 = ssub.s32 16, 16
      %423 = vsyncadd [#allocation33], %s422
      %s425 = sshll.u32 [#allocation34], 4
      %s426 = int_to_ptr.vmem [resolvable:$true] %s425
      %428 = dma.hbm_to_vmem [thread:$0]  %s67, 16, %s426, [#allocation33]
    $region137: #{tpu_custom_call.1} parent=1 // pred_fallthru
      _
    // Predicated region
    $region138: #{tpu_custom_call.1} parent=1 // pred_check
      _
    $region139: #{tpu_custom_call.1} parent=1 // pred_check_branch
      %430 = sbr.rel (0) target = $region141
    $region140: #{tpu_custom_call.1} parent=1 // pred_region
      %s432 = ssub.s32 16, 16
      %433 = vsyncadd [#allocation36], %s432
      %s435 = sshll.u32 [#allocation35], 4
      %s436 = int_to_ptr.vmem [resolvable:$true] %s435
      %438 = dma.hbm_to_vmem [thread:$0]  %s69, 16, %s436, [#allocation36]
    $region141: #{tpu_custom_call.1} parent=1 // pred_fallthru
      _
    // Predicated region
    $region142: #{tpu_custom_call.1} parent=1 // pred_check
      _
    $region143: #{tpu_custom_call.1} parent=1 // pred_check_branch
      %440 = sbr.rel (0) target = $region145
    $region144: #{tpu_custom_call.1} parent=1 // pred_region
      %s442 = ssub.s32 16, 16
      %443 = vsyncadd [#allocation36], %s442
      %s445 = sshll.u32 [#allocation37], 4
      %s446 = int_to_ptr.vmem [resolvable:$true] %s445
      %448 = dma.hbm_to_vmem [thread:$0]  %s71, 16, %s446, [#allocation36]
    $region145: #{tpu_custom_call.1} parent=1 // pred_fallthru
      _
    // Predicated region
    $region146: #{tpu_custom_call.1} parent=1 // pred_check
      _
    $region147: #{tpu_custom_call.1} parent=1 // pred_check_branch
      %450 = sbr.rel (0) target = $region149
    $region148: #{tpu_custom_call.1} parent=1 // pred_region
      %s452 = ssub.s32 16, 16
      %453 = vsyncadd [#allocation39], %s452
      %s455 = sshll.u32 [#allocation38], 4
      %s456 = int_to_ptr.vmem [resolvable:$true] %s455
      %458 = dma.hbm_to_vmem [thread:$0]  %s73, 16, %s456, [#allocation39]
    $region149: #{tpu_custom_call.1} parent=1 // pred_fallthru
      _
    // Predicated region
    $region150: #{tpu_custom_call.1} parent=1 // pred_check
      _
    $region151: #{tpu_custom_call.1} parent=1 // pred_check_branch
      %460 = sbr.rel (0) target = $region153
    $region152: #{tpu_custom_call.1} parent=1 // pred_region
      _
    $region153: #{tpu_custom_call.1} parent=1 // pred_fallthru
      _
    // Predicated region
    $region154: #{tpu_custom_call.1} parent=1 // pred_check
      _
    $region155: #{tpu_custom_call.1} parent=1 // pred_check_branch
      %462 = sbr.rel (0) target = $region157
    $region156: #{tpu_custom_call.1} parent=1 // pred_region
      _
    $region157: #{tpu_custom_call.1} parent=1 // pred_fallthru
      _
    // Predicated region
    $region158: #{tpu_custom_call.1} parent=1 // pred_check
      _
    $region159: #{tpu_custom_call.1} parent=1 // pred_check_branch
      %464 = sbr.rel (0) target = $region161
    $region160: #{tpu_custom_call.1} parent=1 // pred_region
      _
    $region161: #{tpu_custom_call.1} parent=1 // pred_fallthru
      _
    // Predicated region
    $region162: #{tpu_custom_call.1} parent=1 // pred_check
      _
    $region163: #{tpu_custom_call.1} parent=1 // pred_check_branch
      %466 = sbr.rel (0) target = $region165
    $region164: #{tpu_custom_call.1} parent=1 // pred_region
      _
    $region165: #{tpu_custom_call.1} parent=1 // pred_fallthru
      _
    // Predicated region
    $region166: #{tpu_custom_call.1} parent=1 // pred_check
      _
    $region167: #{tpu_custom_call.1} parent=1 // pred_check_branch
      %468 = sbr.rel (0) target = $region169
    $region168: #{tpu_custom_call.1} parent=1 // pred_region
      _
    $region169: #{tpu_custom_call.1} parent=1 // pred_fallthru
      _
    // Predicated region
    $region170: #{tpu_custom_call.1} parent=1 // pred_check
      _
    $region171: #{tpu_custom_call.1} parent=1 // pred_check_branch
      %470 = sbr.rel (0) target = $region173
    $region172: #{tpu_custom_call.1} parent=1 // pred_region
      _
    $region173: #{tpu_custom_call.1} parent=1 // pred_fallthru
      _
    // Predicated region
    $region174: #{tpu_custom_call.1} parent=1 // pred_check
      _
    $region175: #{tpu_custom_call.1} parent=1 // pred_check_branch
      %472 = sbr.rel (0) target = $region177
    $region176: #{tpu_custom_call.1} parent=1 // pred_region
      _
    $region177: #{tpu_custom_call.1} parent=1 // pred_fallthru
      _
    // Predicated region
    $region178: #{tpu_custom_call.1} parent=1 // pred_check
      _
    $region179: #{tpu_custom_call.1} parent=1 // pred_check_branch
      %474 = sbr.rel (0) target = $region181
    $region180: #{tpu_custom_call.1} parent=1 // pred_region
      _
    $region181: #{tpu_custom_call.1} parent=1 // pred_fallthru
      _
    // Predicated region
    $region182: #{tpu_custom_call.1} parent=1 // pred_check
      _
    $region183: #{tpu_custom_call.1} parent=1 // pred_check_branch
      %476 = sbr.rel (0) target = $region185
    $region184: #{tpu_custom_call.1} parent=1 // pred_region
      _
    $region185: #{tpu_custom_call.1} parent=1 // pred_fallthru
      _
    // Predicated region
    $region186: #{tpu_custom_call.1} parent=1 // pred_check
      _
    $region187: #{tpu_custom_call.1} parent=1 // pred_check_branch
      %478 = sbr.rel (0) target = $region189
    $region188: #{tpu_custom_call.1} parent=1 // pred_region
      _
    $region189: #{tpu_custom_call.1} parent=1 // pred_fallthru
      _
    // Predicated region
    $region190: #{tpu_custom_call.1} parent=1 // pred_check
      _
    $region191: #{tpu_custom_call.1} parent=1 // pred_check_branch
      %480 = sbr.rel (0) target = $region193
    $region192: #{tpu_custom_call.1} parent=1 // pred_region
      _
    $region193: #{tpu_custom_call.1} parent=1 // pred_fallthru
      _
    // Predicated region
    $region194: #{tpu_custom_call.1} parent=1 // pred_check
      _
    $region195: #{tpu_custom_call.1} parent=1 // pred_check_branch
      %482 = sbr.rel (0) target = $region197
    $region196: #{tpu_custom_call.1} parent=1 // pred_region
      _
    $region197: #{tpu_custom_call.1} parent=1 // pred_fallthru
      _
    // Predicated region
    $region198: #{tpu_custom_call.1} parent=1 // pred_check
      _
    $region199: #{tpu_custom_call.1} parent=1 // pred_check_branch
      %484 = sbr.rel (0) target = $region201
    $region200: #{tpu_custom_call.1} parent=1 // pred_region
      _
    $region201: #{tpu_custom_call.1} parent=1 // pred_fallthru
      _
    // Predicated region
    $region202: #{tpu_custom_call.1} parent=1 // pred_check
      _
    $region203: #{tpu_custom_call.1} parent=1 // pred_check_branch
      %486 = sbr.rel (0) target = $region205
    $region204: #{tpu_custom_call.1} parent=1 // pred_region
      _
    $region205: #{tpu_custom_call.1} parent=1 // pred_fallthru
      _
    // Predicated region
    $region206: #{tpu_custom_call.1} parent=1 // pred_check
      _
    $region207: #{tpu_custom_call.1} parent=1 // pred_check_branch
      %488 = sbr.rel (0) target = $region209
    $region208: #{tpu_custom_call.1} parent=1 // pred_region
      _
    $region209: #{tpu_custom_call.1} parent=1 // pred_fallthru
      _
    // Predicated region
    $region210: #{tpu_custom_call.1} parent=1 // pred_check
      _
    $region211: #{tpu_custom_call.1} parent=1 // pred_check_branch
      %490 = sbr.rel (0) target = $region213
    $region212: #{tpu_custom_call.1} parent=1 // pred_region
      _
    $region213: #{tpu_custom_call.1} parent=1 // pred_fallthru
      _
    // Predicated region
    $region214: #{tpu_custom_call.1} parent=1 // pred_check
      _
    $region215: #{tpu_custom_call.1} parent=1 // pred_check_branch
      %492 = sbr.rel (0) target = $region217
    $region216: #{tpu_custom_call.1} parent=1 // pred_region
      _
    $region217: #{tpu_custom_call.1} parent=1 // pred_fallthru
      _
    // Predicated region
    $region218: #{tpu_custom_call.1} parent=1 // pred_check
      _
    $region219: #{tpu_custom_call.1} parent=1 // pred_check_branch
      %494 = sbr.rel (0) target = $region221
    $region220: #{tpu_custom_call.1} parent=1 // pred_region
      _
    $region221: #{tpu_custom_call.1} parent=1 // pred_fallthru
      _
    // Predicated region
    $region222: #{tpu_custom_call.1} parent=1 // pred_check
      _
    $region223: #{tpu_custom_call.1} parent=1 // pred_check_branch
      %496 = sbr.rel (0) target = $region225
    $region224: #{tpu_custom_call.1} parent=1 // pred_region
      _
    $region225: #{tpu_custom_call.1} parent=1 // pred_fallthru
      _
    // Predicated region
    $region226: #{tpu_custom_call.1} parent=1 // pred_check
      _
    $region227: #{tpu_custom_call.1} parent=1 // pred_check_branch
      %498 = sbr.rel (0) target = $region229
    $region228: #{tpu_custom_call.1} parent=1 // pred_region
      _
    $region229: #{tpu_custom_call.1} parent=1 // pred_fallthru
      _
    // Predicated region
    $region230: #{tpu_custom_call.1} parent=1 // pred_check
      _
    $region231: #{tpu_custom_call.1} parent=1 // pred_check_branch
      %500 = sbr.rel (0) target = $region233
    $region232: #{tpu_custom_call.1} parent=1 // pred_region
      _
    $region233: #{tpu_custom_call.1} parent=1 // pred_fallthru
      _
    // Predicated region
    $region234: #{tpu_custom_call.1} parent=1 // pred_check
      _
    $region235: #{tpu_custom_call.1} parent=1 // pred_check_branch
      %502 = sbr.rel (0) target = $region237
    $region236: #{tpu_custom_call.1} parent=1 // pred_region
      _
    $region237: #{tpu_custom_call.1} parent=1 // pred_fallthru
      _
    // Predicated region
    $region238: #{tpu_custom_call.1} parent=1 // pred_check
      _
    $region239: #{tpu_custom_call.1} parent=1 // pred_check_branch
      %504 = sbr.rel (0) target = $region241
    $region240: #{tpu_custom_call.1} parent=1 // pred_region
      _
    $region241: #{tpu_custom_call.1} parent=1 // pred_fallthru
      _
    // Predicated region
    $region242: #{tpu_custom_call.1} parent=1 // pred_check
      _
    $region243: #{tpu_custom_call.1} parent=1 // pred_check_branch
      %506 = sbr.rel (0) target = $region245
    $region244: #{tpu_custom_call.1} parent=1 // pred_region
      _
    $region245: #{tpu_custom_call.1} parent=1 // pred_fallthru
      _
    // Predicated region
    $region246: #{tpu_custom_call.1} parent=1 // pred_check
      _
    $region247: #{tpu_custom_call.1} parent=1 // pred_check_branch
      %508 = sbr.rel (0) target = $region249
    $region248: #{tpu_custom_call.1} parent=1 // pred_region
      _
    $region249: #{tpu_custom_call.1} parent=1 // pred_fallthru
      _
    // Predicated region
    $region250: #{tpu_custom_call.1} parent=1 // pred_check
      _
    $region251: #{tpu_custom_call.1} parent=1 // pred_check_branch
      %510 = sbr.rel (0) target = $region253
    $region252: #{tpu_custom_call.1} parent=1 // pred_region
      _
    $region253: #{tpu_custom_call.1} parent=1 // pred_fallthru
      _
    // Predicated region
    $region254: #{tpu_custom_call.1} parent=1 // pred_check
      _
    $region255: #{tpu_custom_call.1} parent=1 // pred_check_branch
      %512 = sbr.rel (0) target = $region257
    $region256: #{tpu_custom_call.1} parent=1 // pred_region
      _
    $region257: #{tpu_custom_call.1} parent=1 // pred_fallthru
      _
    // Predicated region
    $region258: #{tpu_custom_call.1} parent=1 // pred_check
      _
    $region259: #{tpu_custom_call.1} parent=1 // pred_check_branch
      %514 = sbr.rel (0) target = $region261
    $region260: #{tpu_custom_call.1} parent=1 // pred_region
      _
    $region261: #{tpu_custom_call.1} parent=1 // pred_fallthru
      _
    // Predicated region
    $region262: #{tpu_custom_call.1} parent=1 // pred_check
      _
    $region263: #{tpu_custom_call.1} parent=1 // pred_check_branch
      %516 = sbr.rel (0) target = $region265
    $region264: #{tpu_custom_call.1} parent=1 // pred_region
      _
    $region265: #{tpu_custom_call.1} parent=1 // pred_fallthru
      _
    // Predicated region
    $region266: #{tpu_custom_call.1} parent=1 // pred_check
      _
    $region267: #{tpu_custom_call.1} parent=1 // pred_check_branch
      %518 = sbr.rel (0) target = $region269
    $region268: #{tpu_custom_call.1} parent=1 // pred_region
      _
    $region269: #{tpu_custom_call.1} parent=1 // pred_fallthru
      _
    // Predicated region
    $region270: #{tpu_custom_call.1} parent=1 // pred_check
      _
    $region271: #{tpu_custom_call.1} parent=1 // pred_check_branch
      %520 = sbr.rel (0) target = $region273
    $region272: #{tpu_custom_call.1} parent=1 // pred_region
      %s522 = ssub.s32 32, 32
      %523 = vsyncadd [#allocation39], %s522
      %s524 = sshll.u32 [#allocation40], 4
      %s525 = int_to_ptr.vmem [resolvable:$true] %s524
      %530 = dma.hbm_to_vmem [thread:$0]  %s135, 32, %s525, [#allocation39], 16, 16, 1
    $region273: #{tpu_custom_call.1} parent=1 // pred_fallthru
      _
    // Predicated region
    $region274: #{tpu_custom_call.1} parent=1 // pred_check
      _
    $region275: #{tpu_custom_call.1} parent=1 // pred_check_branch
      %532 = sbr.rel (0) target = $region277
    $region276: #{tpu_custom_call.1} parent=1 // pred_region
      %s534 = ssub.s32 32, 32
      %535 = vsyncadd [#allocation42], %s534
      %s536 = sshll.u32 [#allocation41], 4
      %s537 = int_to_ptr.vmem [resolvable:$true] %s536
      %542 = dma.hbm_to_vmem [thread:$0]  %s137, 32, %s537, [#allocation42], 16, 16, 1
    $region277: #{tpu_custom_call.1} parent=1 // pred_fallthru
      _
    // Predicated region
    $region278: #{tpu_custom_call.1} parent=1 // pred_check
      _
    $region279: #{tpu_custom_call.1} parent=1 // pred_check_branch
      %544 = sbr.rel (0) target = $region281
    $region280: #{tpu_custom_call.1} parent=1 // pred_region
      %s546 = ssub.s32 32, 32
      %547 = vsyncadd [#allocation42], %s546
      %s548 = sshll.u32 [#allocation43], 4
      %s549 = int_to_ptr.vmem [resolvable:$true] %s548
      %554 = dma.hbm_to_vmem [thread:$0]  %s139, 32, %s549, [#allocation42], 16, 16, 1
    $region281: #{tpu_custom_call.1} parent=1 // pred_fallthru
      _
    // Predicated region
    $region282: #{tpu_custom_call.1} parent=1 // pred_check
      _
    $region283: #{tpu_custom_call.1} parent=1 // pred_check_branch
      %556 = sbr.rel (0) target = $region285
    $region284: #{tpu_custom_call.1} parent=1 // pred_region
      %s558 = ssub.s32 32, 32
      %559 = vsyncadd [#allocation45], %s558
      %s560 = sshll.u32 [#allocation44], 4
      %s561 = int_to_ptr.vmem [resolvable:$true] %s560
      %566 = dma.hbm_to_vmem [thread:$0]  %s141, 32, %s561, [#allocation45], 16, 16, 1
    $region285: #{tpu_custom_call.1} parent=1 // pred_fallthru
      _
    // Predicated region
    $region286: #{tpu_custom_call.1} parent=1 // pred_check
      _
    $region287: #{tpu_custom_call.1} parent=1 // pred_check_branch
      %568 = sbr.rel (0) target = $region289
    $region288: #{tpu_custom_call.1} parent=1 // pred_region
      %s570 = ssub.s32 32, 32
      %571 = vsyncadd [#allocation45], %s570
      %s572 = sshll.u32 [#allocation46], 4
      %s573 = int_to_ptr.vmem [resolvable:$true] %s572
      %578 = dma.hbm_to_vmem [thread:$0]  %s143, 32, %s573, [#allocation45], 16, 16, 1
    $region289: #{tpu_custom_call.1} parent=1 // pred_fallthru
      _
    // Predicated region
    $region290: #{tpu_custom_call.1} parent=1 // pred_check
      _
    $region291: #{tpu_custom_call.1} parent=1 // pred_check_branch
      %580 = sbr.rel (0) target = $region293
    $region292: #{tpu_custom_call.1} parent=1 // pred_region
      %s582 = ssub.s32 32, 32
      %583 = vsyncadd [#allocation48], %s582
      %s585 = sshll.u32 [#allocation47], 4
      %s586 = int_to_ptr.vmem [resolvable:$true] %s585
      %588 = dma.hbm_to_vmem [thread:$0]  %s145, 32, %s586, [#allocation48]
    $region293: #{tpu_custom_call.1} parent=1 // pred_fallthru
      _
    // Predicated region
    $region294: #{tpu_custom_call.1} parent=1 // pred_check
      _
    $region295: #{tpu_custom_call.1} parent=1 // pred_check_branch
      %590 = sbr.rel (0) target = $region297
    $region296: #{tpu_custom_call.1} parent=1 // pred_region
      %s592 = ssub.s32 32, 32
      %593 = vsyncadd [#allocation48], %s592
      %s594 = sshll.u32 [#allocation49], 4
      %s595 = int_to_ptr.vmem [resolvable:$true] %s594
      %600 = dma.hbm_to_vmem [thread:$0]  %s147, 32, %s595, [#allocation48], 16, 16, 1
    $region297: #{tpu_custom_call.1} parent=1 // pred_fallthru
      _
    // Predicated region
    $region298: #{tpu_custom_call.1} parent=1 // pred_check
      _
    $region299: #{tpu_custom_call.1} parent=1 // pred_check_branch
      %602 = sbr.rel (0) target = $region301
    $region300: #{tpu_custom_call.1} parent=1 // pred_region
      _
    $region301: #{tpu_custom_call.1} parent=1 // pred_fallthru
      _
    // Predicated region
    $region302: #{tpu_custom_call.1} parent=1 // pred_check
      _
    $region303: #{tpu_custom_call.1} parent=1 // pred_check_branch
      %604 = sbr.rel (0) target = $region305
    $region304: #{tpu_custom_call.1} parent=1 // pred_region
      _
    $region305: #{tpu_custom_call.1} parent=1 // pred_fallthru
      _
    // Predicated region
    $region306: #{tpu_custom_call.1} parent=1 // pred_check
      _
    $region307: #{tpu_custom_call.1} parent=1 // pred_check_branch
      %606 = sbr.rel (0) target = $region309
    $region308: #{tpu_custom_call.1} parent=1 // pred_region
      _
    $region309: #{tpu_custom_call.1} parent=1 // pred_fallthru
      _
    // Predicated region
    $region310: #{tpu_custom_call.1} parent=1 // pred_check
      _
    $region311: #{tpu_custom_call.1} parent=1 // pred_check_branch
      %608 = sbr.rel (0) target = $region313
    $region312: #{tpu_custom_call.1} parent=1 // pred_region
      _
    $region313: #{tpu_custom_call.1} parent=1 // pred_fallthru
      _
    // Predicated region
    $region314: #{tpu_custom_call.1} parent=1 // pred_check
      _
    $region315: #{tpu_custom_call.1} parent=1 // pred_check_branch
      %610 = sbr.rel (0) target = $region317
    $region316: #{tpu_custom_call.1} parent=1 // pred_region
      _
    $region317: #{tpu_custom_call.1} parent=1 // pred_fallthru
      _
    // Predicated region
    $region318: #{tpu_custom_call.1} parent=1 // pred_check
      _
    $region319: #{tpu_custom_call.1} parent=1 // pred_check_branch
      %612 = sbr.rel (0) target = $region321
    $region320: #{tpu_custom_call.1} parent=1 // pred_region
      _
    $region321: #{tpu_custom_call.1} parent=1 // pred_fallthru
      _
    // Predicated region
    $region322: #{tpu_custom_call.1} parent=1 // pred_check
      _
    $region323: #{tpu_custom_call.1} parent=1 // pred_check_branch
      %614 = sbr.rel (0) target = $region325
    $region324: #{tpu_custom_call.1} parent=1 // pred_region
      %s616 = ssub.s32 16, 16
      %617 = vsyncadd [#allocation51], %s616
      %s619 = sshll.u32 [#allocation50], 4
      %s620 = int_to_ptr.vmem [resolvable:$true] %s619
      %622 = dma.hbm_to_vmem [thread:$0]  %s161, 16, %s620, [#allocation51]
    $region325: #{tpu_custom_call.1} parent=1 // pred_fallthru
      _
    // Predicated region
    $region326: #{tpu_custom_call.1} parent=1 // pred_check
      _
    $region327: #{tpu_custom_call.1} parent=1 // pred_check_branch
      %624 = sbr.rel (0) target = $region329
    $region328: #{tpu_custom_call.1} parent=1 // pred_region
      _
    $region329: #{tpu_custom_call.1} parent=1 // pred_fallthru
      _
    // Predicated region
    $region330: #{tpu_custom_call.1} parent=1 // pred_check
      _
    $region331: #{tpu_custom_call.1} parent=1 // pred_check_branch
      %626 = sbr.rel (0) target = $region333
    $region332: #{tpu_custom_call.1} parent=1 // pred_region
      %s628 = ssub.s32 32, 32
      %629 = vsyncadd [#allocation51], %s628
      %s631 = sshll.u32 [#allocation52], 4
      %s632 = int_to_ptr.vmem [resolvable:$true] %s631
      %634 = dma.hbm_to_vmem [thread:$0]  %s165, 32, %s632, [#allocation51]
    $region333: #{tpu_custom_call.1} parent=1 // pred_fallthru
      _
    // Predicated region
    $region334: #{tpu_custom_call.1} parent=1 // pred_check
      _
    $region335: #{tpu_custom_call.1} parent=1 // pred_check_branch
      %636 = sbr.rel (0) target = $region337
    $region336: #{tpu_custom_call.1} parent=1 // pred_region
      %s638 = ssub.s32 32, 32
      %639 = vsyncadd [#allocation54], %s638
      %s641 = sshll.u32 [#allocation53], 4
      %s642 = int_to_ptr.vmem [resolvable:$true] %s641
      %644 = dma.hbm_to_vmem [thread:$0]  %s167, 32, %s642, [#allocation54]
    $region337: #{tpu_custom_call.1} parent=1 // pred_fallthru
      _
    // Predicated region
    $region338: #{tpu_custom_call.1} parent=1 // pred_check
      _
    $region339: #{tpu_custom_call.1} parent=1 // pred_check_branch
      %646 = sbr.rel (0) target = $region341
    $region340: #{tpu_custom_call.1} parent=1 // pred_region
      %647 = dma.done [#allocation3], 16
    $region341: #{tpu_custom_call.1} parent=1 // pred_fallthru
      _
    // Predicated region
    $region342: #{tpu_custom_call.1} parent=1 // pred_check
      _
    $region343: #{tpu_custom_call.1} parent=1 // pred_check_branch
      %649 = sbr.rel (0) target = $region345
    $region344: #{tpu_custom_call.1} parent=1 // pred_region
      %650 = dma.done [#allocation6], 16
    $region345: #{tpu_custom_call.1} parent=1 // pred_fallthru
      _
    // Predicated region
    $region346: #{tpu_custom_call.1} parent=1 // pred_check
      _
    $region347: #{tpu_custom_call.1} parent=1 // pred_check_branch
      %652 = sbr.rel (0) target = $region349
    $region348: #{tpu_custom_call.1} parent=1 // pred_region
      %653 = dma.done [#allocation6], 16
    $region349: #{tpu_custom_call.1} parent=1 // pred_fallthru
      _
    // Predicated region
    $region350: #{tpu_custom_call.1} parent=1 // pred_check
      _
    $region351: #{tpu_custom_call.1} parent=1 // pred_check_branch
      %655 = sbr.rel (0) target = $region353
    $region352: #{tpu_custom_call.1} parent=1 // pred_region
      %656 = dma.done [#allocation9], 16
    $region353: #{tpu_custom_call.1} parent=1 // pred_fallthru
      _
    // Predicated region
    $region354: #{tpu_custom_call.1} parent=1 // pred_check
      _
    $region355: #{tpu_custom_call.1} parent=1 // pred_check_branch
      %658 = sbr.rel (0) target = $region357
    $region356: #{tpu_custom_call.1} parent=1 // pred_region
      %659 = dma.done [#allocation9], 16
    $region357: #{tpu_custom_call.1} parent=1 // pred_fallthru
      _
    // Predicated region
    $region358: #{tpu_custom_call.1} parent=1 // pred_check
      _
    $region359: #{tpu_custom_call.1} parent=1 // pred_check_branch
      %661 = sbr.rel (0) target = $region361
    $region360: #{tpu_custom_call.1} parent=1 // pred_region
      %662 = dma.done [#allocation12], 16
    $region361: #{tpu_custom_call.1} parent=1 // pred_fallthru
      _
    // Predicated region
    $region362: #{tpu_custom_call.1} parent=1 // pred_check
      _
    $region363: #{tpu_custom_call.1} parent=1 // pred_check_branch
      %664 = sbr.rel (0) target = $region365
    $region364: #{tpu_custom_call.1} parent=1 // pred_region
      %665 = dma.done [#allocation12], 16
    $region365: #{tpu_custom_call.1} parent=1 // pred_fallthru
      _
    // Predicated region
    $region366: #{tpu_custom_call.1} parent=1 // pred_check
      _
    $region367: #{tpu_custom_call.1} parent=1 // pred_check_branch
      %667 = sbr.rel (0) target = $region369
    $region368: #{tpu_custom_call.1} parent=1 // pred_region
      %668 = dma.done [#allocation15], 16
    $region369: #{tpu_custom_call.1} parent=1 // pred_fallthru
      _
    // Predicated region
    $region370: #{tpu_custom_call.1} parent=1 // pred_check
      _
    $region371: #{tpu_custom_call.1} parent=1 // pred_check_branch
      %670 = sbr.rel (0) target = $region373
    $region372: #{tpu_custom_call.1} parent=1 // pred_region
      %671 = dma.done [#allocation15], 16
    $region373: #{tpu_custom_call.1} parent=1 // pred_fallthru
      _
    // Predicated region
    $region374: #{tpu_custom_call.1} parent=1 // pred_check
      _
    $region375: #{tpu_custom_call.1} parent=1 // pred_check_branch
      %673 = sbr.rel (0) target = $region377
    $region376: #{tpu_custom_call.1} parent=1 // pred_region
      %674 = dma.done [#allocation18], 16
    $region377: #{tpu_custom_call.1} parent=1 // pred_fallthru
      _
    // Predicated region
    $region378: #{tpu_custom_call.1} parent=1 // pred_check
      _
    $region379: #{tpu_custom_call.1} parent=1 // pred_check_branch
      %676 = sbr.rel (0) target = $region381
    $region380: #{tpu_custom_call.1} parent=1 // pred_region
      %677 = dma.done [#allocation18], 16
    $region381: #{tpu_custom_call.1} parent=1 // pred_fallthru
      _
    // Predicated region
    $region382: #{tpu_custom_call.1} parent=1 // pred_check
      _
    $region383: #{tpu_custom_call.1} parent=1 // pred_check_branch
      %679 = sbr.rel (0) target = $region385
    $region384: #{tpu_custom_call.1} parent=1 // pred_region
      %680 = dma.done [#allocation21], 16
    $region385: #{tpu_custom_call.1} parent=1 // pred_fallthru
      _
    // Predicated region
    $region386: #{tpu_custom_call.1} parent=1 // pred_check
      _
    $region387: #{tpu_custom_call.1} parent=1 // pred_check_branch
      %682 = sbr.rel (0) target = $region389
    $region388: #{tpu_custom_call.1} parent=1 // pred_region
      %683 = dma.done [#allocation21], 16
    $region389: #{tpu_custom_call.1} parent=1 // pred_fallthru
      _
    // Predicated region
    $region390: #{tpu_custom_call.1} parent=1 // pred_check
      _
    $region391: #{tpu_custom_call.1} parent=1 // pred_check_branch
      %685 = sbr.rel (0) target = $region393
    $region392: #{tpu_custom_call.1} parent=1 // pred_region
      %686 = dma.done [#allocation24], 16
    $region393: #{tpu_custom_call.1} parent=1 // pred_fallthru
      _
    // Predicated region
    $region394: #{tpu_custom_call.1} parent=1 // pred_check
      _
    $region395: #{tpu_custom_call.1} parent=1 // pred_check_branch
      %688 = sbr.rel (0) target = $region397
    $region396: #{tpu_custom_call.1} parent=1 // pred_region
      %689 = dma.done [#allocation24], 16
    $region397: #{tpu_custom_call.1} parent=1 // pred_fallthru
      _
    // Predicated region
    $region398: #{tpu_custom_call.1} parent=1 // pred_check
      _
    $region399: #{tpu_custom_call.1} parent=1 // pred_check_branch
      %691 = sbr.rel (0) target = $region401
    $region400: #{tpu_custom_call.1} parent=1 // pred_region
      %692 = dma.done [#allocation27], 16
    $region401: #{tpu_custom_call.1} parent=1 // pred_fallthru
      _
    // Predicated region
    $region402: #{tpu_custom_call.1} parent=1 // pred_check
      _
    $region403: #{tpu_custom_call.1} parent=1 // pred_check_branch
      %694 = sbr.rel (0) target = $region405
    $region404: #{tpu_custom_call.1} parent=1 // pred_region
      %695 = dma.done [#allocation27], 16
    $region405: #{tpu_custom_call.1} parent=1 // pred_fallthru
      _
    // Predicated region
    $region406: #{tpu_custom_call.1} parent=1 // pred_check
      _
    $region407: #{tpu_custom_call.1} parent=1 // pred_check_branch
      %697 = sbr.rel (0) target = $region409
    $region408: #{tpu_custom_call.1} parent=1 // pred_region
      %698 = dma.done [#allocation30], 16
    $region409: #{tpu_custom_call.1} parent=1 // pred_fallthru
      _
    // Predicated region
    $region410: #{tpu_custom_call.1} parent=1 // pred_check
      _
    $region411: #{tpu_custom_call.1} parent=1 // pred_check_branch
      %700 = sbr.rel (0) target = $region413
    $region412: #{tpu_custom_call.1} parent=1 // pred_region
      %701 = dma.done [#allocation30], 16
    $region413: #{tpu_custom_call.1} parent=1 // pred_fallthru
      _
    // Predicated region
    $region414: #{tpu_custom_call.1} parent=1 // pred_check
      _
    $region415: #{tpu_custom_call.1} parent=1 // pred_check_branch
      %703 = sbr.rel (0) target = $region417
    $region416: #{tpu_custom_call.1} parent=1 // pred_region
      %704 = dma.done [#allocation33], 16
    $region417: #{tpu_custom_call.1} parent=1 // pred_fallthru
      _
    // Predicated region
    $region418: #{tpu_custom_call.1} parent=1 // pred_check
      _
    $region419: #{tpu_custom_call.1} parent=1 // pred_check_branch
      %706 = sbr.rel (0) target = $region421
    $region420: #{tpu_custom_call.1} parent=1 // pred_region
      %707 = dma.done [#allocation33], 16
    $region421: #{tpu_custom_call.1} parent=1 // pred_fallthru
      _
    // Predicated region
    $region422: #{tpu_custom_call.1} parent=1 // pred_check
      _
    $region423: #{tpu_custom_call.1} parent=1 // pred_check_branch
      %709 = sbr.rel (0) target = $region425
    $region424: #{tpu_custom_call.1} parent=1 // pred_region
      %710 = dma.done [#allocation36], 16
    $region425: #{tpu_custom_call.1} parent=1 // pred_fallthru
      _
    // Predicated region
    $region426: #{tpu_custom_call.1} parent=1 // pred_check
      _
    $region427: #{tpu_custom_call.1} parent=1 // pred_check_branch
      %712 = sbr.rel (0) target = $region429
    $region428: #{tpu_custom_call.1} parent=1 // pred_region
      %713 = dma.done [#allocation36], 16
    $region429: #{tpu_custom_call.1} parent=1 // pred_fallthru
      _
    // Predicated region
    $region430: #{tpu_custom_call.1} parent=1 // pred_check
      _
    $region431: #{tpu_custom_call.1} parent=1 // pred_check_branch
      %715 = sbr.rel (0) target = $region433
    $region432: #{tpu_custom_call.1} parent=1 // pred_region
      %716 = dma.done [#allocation39], 16
    $region433: #{tpu_custom_call.1} parent=1 // pred_fallthru
      _
    // Predicated region
    $region434: #{tpu_custom_call.1} parent=1 // pred_check
      _
    $region435: #{tpu_custom_call.1} parent=1 // pred_check_branch
      %718 = sbr.rel (0) target = $region437
    $region436: #{tpu_custom_call.1} parent=1 // pred_region
      %719 = dma.done [#allocation39], 32
    $region437: #{tpu_custom_call.1} parent=1 // pred_fallthru
      _
    // Predicated region
    $region438: #{tpu_custom_call.1} parent=1 // pred_check
      _
    $region439: #{tpu_custom_call.1} parent=1 // pred_check_branch
      %721 = sbr.rel (0) target = $region441
    $region440: #{tpu_custom_call.1} parent=1 // pred_region
      %722 = dma.done [#allocation42], 32
    $region441: #{tpu_custom_call.1} parent=1 // pred_fallthru
      _
    // Predicated region
    $region442: #{tpu_custom_call.1} parent=1 // pred_check
      _
    $region443: #{tpu_custom_call.1} parent=1 // pred_check_branch
      %724 = sbr.rel (0) target = $region445
    $region444: #{tpu_custom_call.1} parent=1 // pred_region
      %725 = dma.done [#allocation42], 32
    $region445: #{tpu_custom_call.1} parent=1 // pred_fallthru
      _
    // Predicated region
    $region446: #{tpu_custom_call.1} parent=1 // pred_check
      _
    $region447: #{tpu_custom_call.1} parent=1 // pred_check_branch
      %727 = sbr.rel (0) target = $region449
    $region448: #{tpu_custom_call.1} parent=1 // pred_region
      %728 = dma.done [#allocation45], 32
    $region449: #{tpu_custom_call.1} parent=1 // pred_fallthru
      _
    // Predicated region
    $region450: #{tpu_custom_call.1} parent=1 // pred_check
      _
    $region451: #{tpu_custom_call.1} parent=1 // pred_check_branch
      %730 = sbr.rel (0) target = $region453
    $region452: #{tpu_custom_call.1} parent=1 // pred_region
      %731 = dma.done [#allocation45], 32
    $region453: #{tpu_custom_call.1} parent=1 // pred_fallthru
      _
    // Predicated region
    $region454: #{tpu_custom_call.1} parent=1 // pred_check
      _
    $region455: #{tpu_custom_call.1} parent=1 // pred_check_branch
      %733 = sbr.rel (0) target = $region457
    $region456: #{tpu_custom_call.1} parent=1 // pred_region
      %734 = dma.done [#allocation48], 32
    $region457: #{tpu_custom_call.1} parent=1 // pred_fallthru
      _
    // Predicated region
    $region458: #{tpu_custom_call.1} parent=1 // pred_check
      _
    $region459: #{tpu_custom_call.1} parent=1 // pred_check_branch
      %736 = sbr.rel (0) target = $region461
    $region460: #{tpu_custom_call.1} parent=1 // pred_region
      %737 = dma.done [#allocation48], 32
    $region461: #{tpu_custom_call.1} parent=1 // pred_fallthru
      _
    // Predicated region
    $region462: #{tpu_custom_call.1} parent=1 // pred_check
      _
    $region463: #{tpu_custom_call.1} parent=1 // pred_check_branch
      %739 = sbr.rel (0) target = $region465
    $region464: #{tpu_custom_call.1} parent=1 // pred_region
      %740 = dma.done [#allocation51], 16
    $region465: #{tpu_custom_call.1} parent=1 // pred_fallthru
      _
    // Predicated region
    $region466: #{tpu_custom_call.1} parent=1 // pred_check
      _
    $region467: #{tpu_custom_call.1} parent=1 // pred_check_branch
      %742 = sbr.rel (0) target = $region469
    $region468: #{tpu_custom_call.1} parent=1 // pred_region
      %743 = dma.done [#allocation51], 32
    $region469: #{tpu_custom_call.1} parent=1 // pred_fallthru
      _
    // Predicated region
    $region470: #{tpu_custom_call.1} parent=1 // pred_check
      _
    $region471: #{tpu_custom_call.1} parent=1 // pred_check_branch
      %745 = sbr.rel (0) target = $region473
    $region472: #{tpu_custom_call.1} parent=1 // pred_region
      %746 = dma.done [#allocation54], 32
    $region473: #{tpu_custom_call.1} parent=1 // pred_fallthru
      _
    %v747 = vld [vmem:[#allocation53] sm:$0x3]
    %v748 = vld [vmem:[%s65] sm:$0xff]
    %v749 = vld [vmem:[%s65 + $0x8] sm:$0xff]
    %v750 = vld [vmem:[%s65 + $0x10] sm:$0xff]
    %v751 = vld [vmem:[%s65 + $0x18] sm:$0xff]
    %v752 = vld [vmem:[%s65 + $0x20] sm:$0xff]
    %v753 = vld [vmem:[%s65 + $0x28] sm:$0xff]
    %v754 = vld [vmem:[#allocation32] sm:$0x1]
    %v756 = vlaneseq
    %v757 = vshrl.u32 %v756, 7
    %v758 = vsub.s32 0, %v757
    %v759 = vrot.slane %v754, %v758
    %vm761 = vcmask 392192
    %v763 = vsel %vm761, %v747, 0
    %765 = vmatprep.subr.mxu0 0.0
    %766 = vmatpush1.msra.mxu0 %v748
    %767 = vmatprep.subr.mxu0 0.0
    %768 = vmatpush1.msra.mxu0 %v749
    %769 = vmatprep.subr.mxu0 0.0
    %770 = vmatpush1.msra.mxu0 %v750
    %771 = vmatprep.subr.mxu0 0.0
    %772 = vmatpush1.msra.mxu0 %v751
    %773 = vmatprep.subr.mxu0 0.0
    %774 = vmatpush1.msra.mxu0 %v752
    %775 = vmatprep.subr.mxu0 0.0
    %776 = vmatpush1.msra.mxu0 %v753
    %777 = vmatprep.subr.mxu0 0.0
    %778 = vmatpush1.msra.mxu0 0.0
    %779 = vmatprep.subr.mxu0 0.0
    %780 = vmatpush1.msra.mxu0 0.0
    %781 = vmatprep.subr.mxu0 0.0
    %782 = vmatpush1.msra.mxu0 0.0
    %783 = vmatprep.subr.mxu0 0.0
    %784 = vmatpush1.msra.mxu0 0.0
    %785 = vmatprep.subr.mxu0 0.0
    %786 = vmatpush1.msra.mxu0 0.0
    %787 = vmatprep.subr.mxu0 0.0
    %788 = vmatpush1.msra.mxu0 0.0
    %789 = vmatprep.subr.mxu0 0.0
    %790 = vmatpush1.msra.mxu0 0.0
    %791 = vmatprep.subr.mxu0 0.0
    %792 = vmatpush1.msra.mxu0 0.0
    %793 = vmatprep.subr.mxu0 0.0
    %794 = vmatpush1.msra.mxu0 0.0
    %795 = vmatprep.subr.mxu0 0.0
    %796 = vmatpush1.msra.mxu0 0.0
    %797 = vmatprep.subr.mxu0 0.0
    %798 = vmatpush1.msra.mxu0 0.0
    %799 = vmatprep.subr.mxu0 0.0
    %800 = vmatpush1.msra.mxu0 0.0
    %801 = vmatprep.subr.mxu0 0.0
    %802 = vmatpush1.msra.mxu0 0.0
    %803 = vmatprep.subr.mxu0 0.0
    %804 = vmatpush1.msra.mxu0 0.0
    %805 = vmatprep.subr.mxu0 0.0
    %806 = vmatpush1.msra.mxu0 0.0
    %807 = vmatprep.subr.mxu0 0.0
    %808 = vmatpush1.msra.mxu0 0.0
    %809 = vmatprep.subr.mxu0 0.0
    %810 = vmatpush1.msra.mxu0 0.0
    %811 = vmatprep.subr.mxu0 0.0
    %812 = vmatpush1.msra.mxu0 0.0
    %813 = vmatprep.subr.mxu0 0.0
    %814 = vmatpush1.msra.mxu0 0.0
    %815 = vmatprep.subr.mxu0 0.0
    %816 = vmatpush1.msra.mxu0 0.0
    %817 = vmatprep.subr.mxu0 0.0
    %818 = vmatpush1.msra.mxu0 0.0
    %819 = vmatprep.subr.mxu0 0.0
    %820 = vmatpush1.msra.mxu0 0.0
    %821 = vmatprep.subr.mxu0 0.0
    %822 = vmatpush1.msra.mxu0 0.0
    %823 = vmatprep.subr.mxu0 0.0
    %824 = vmatpush1.msra.mxu0 0.0
    %825 = vmatprep.subr.mxu0 0.0
    %826 = vmatpush1.msra.mxu0 0.0
    %827 = vmatprep.subr.mxu0 0.0
    %828 = vmatpush1.msra.mxu0 0.0
    %829 = vmatprep.mubr.f32.mxu0 0.0
    %830 = vmatmul.mubr.f32.gmra.mrb[0].mxu0 %v763
    %v831 = vpop.f32.mrb[0].mxu0
    %v832 = vadd.f32 %v759, %v831
    %v833 = vpop.f32.mrb[0].mxu0
    %834 = vdwg.mxu0
    %v835 = vld [vmem:[#allocation52] sm:$0x3]
    %v836 = vld [vmem:[%s61] sm:$0xff]
    %v837 = vld [vmem:[%s61 + $0x8] sm:$0xff]
    %v838 = vld [vmem:[#allocation31] sm:$0x1]
    %v840 = vlaneseq
    %v841 = vshrl.u32 %v840, 7
    %v842 = vsub.s32 0, %v841
    %v843 = vrot.slane %v838, %v842
    %vm845 = vcmask 130048
    %v847 = vsel %vm845, %v835, 0
    %849 = vmatprep.subr.mxu0 0.0
    %850 = vmatpush1.msra.mxu0 %v836
    %851 = vmatprep.subr.mxu0 0.0
    %852 = vmatpush1.msra.mxu0 %v837
    %853 = vmatprep.subr.mxu0 0.0
    %854 = vmatpush1.msra.mxu0 0.0
    %855 = vmatprep.subr.mxu0 0.0
    %856 = vmatpush1.msra.mxu0 0.0
    %857 = vmatprep.subr.mxu0 0.0
    %858 = vmatpush1.msra.mxu0 0.0
    %859 = vmatprep.subr.mxu0 0.0
    %860 = vmatpush1.msra.mxu0 0.0
    %861 = vmatprep.subr.mxu0 0.0
    %862 = vmatpush1.msra.mxu0 0.0
    %863 = vmatprep.subr.mxu0 0.0
    %864 = vmatpush1.msra.mxu0 0.0
    %865 = vmatprep.subr.mxu0 0.0
    %866 = vmatpush1.msra.mxu0 0.0
    %867 = vmatprep.subr.mxu0 0.0
    %868 = vmatpush1.msra.mxu0 0.0
    %869 = vmatprep.subr.mxu0 0.0
    %870 = vmatpush1.msra.mxu0 0.0
    %871 = vmatprep.subr.mxu0 0.0
    %872 = vmatpush1.msra.mxu0 0.0
    %873 = vmatprep.subr.mxu0 0.0
    %874 = vmatpush1.msra.mxu0 0.0
    %875 = vmatprep.subr.mxu0 0.0
    %876 = vmatpush1.msra.mxu0 0.0
    %877 = vmatprep.subr.mxu0 0.0
    %878 = vmatpush1.msra.mxu0 0.0
    %879 = vmatprep.subr.mxu0 0.0
    %880 = vmatpush1.msra.mxu0 0.0
    %881 = vmatprep.subr.mxu0 0.0
    %882 = vmatpush1.msra.mxu0 0.0
    %883 = vmatprep.subr.mxu0 0.0
    %884 = vmatpush1.msra.mxu0 0.0
    %885 = vmatprep.subr.mxu0 0.0
    %886 = vmatpush1.msra.mxu0 0.0
    %887 = vmatprep.subr.mxu0 0.0
    %888 = vmatpush1.msra.mxu0 0.0
    %889 = vmatprep.subr.mxu0 0.0
    %890 = vmatpush1.msra.mxu0 0.0
    %891 = vmatprep.subr.mxu0 0.0
    %892 = vmatpush1.msra.mxu0 0.0
    %893 = vmatprep.subr.mxu0 0.0
    %894 = vmatpush1.msra.mxu0 0.0
    %895 = vmatprep.subr.mxu0 0.0
    %896 = vmatpush1.msra.mxu0 0.0
    %897 = vmatprep.subr.mxu0 0.0
    %898 = vmatpush1.msra.mxu0 0.0
    %899 = vmatprep.subr.mxu0 0.0
    %900 = vmatpush1.msra.mxu0 0.0
    %901 = vmatprep.subr.mxu0 0.0
    %902 = vmatpush1.msra.mxu0 0.0
    %903 = vmatprep.subr.mxu0 0.0
    %904 = vmatpush1.msra.mxu0 0.0
    %905 = vmatprep.subr.mxu0 0.0
    %906 = vmatpush1.msra.mxu0 0.0
    %907 = vmatprep.subr.mxu0 0.0
    %908 = vmatpush1.msra.mxu0 0.0
    %909 = vmatprep.subr.mxu0 0.0
    %910 = vmatpush1.msra.mxu0 0.0
    %911 = vmatprep.subr.mxu0 0.0
    %912 = vmatpush1.msra.mxu0 0.0
    %913 = vmatprep.mubr.f32.mxu0 0.0
    %914 = vmatmul.mubr.f32.gmra.mrb[0].mxu0 %v847
    %v915 = vpop.f32.mrb[0].mxu0
    %v916 = vadd.f32 %v843, %v915
    %v917 = vpop.f32.mrb[0].mxu0
    %918 = vdwg.mxu0
    %v919 = vld [vmem:[#allocation47] sm:$0x3]
    %v920 = vld [vmem:[%s159] sm:$0xff]
    %v921 = vld [vmem:[%s159 + $0x8] sm:$0xff]
    %v922 = vld [vmem:[%s159 + $0x10] sm:$0xff]
    %v923 = vld [vmem:[%s159 + $0x18] sm:$0xff]
    %v924 = vld [vmem:[%s159 + $0x20] sm:$0xff]
    %v925 = vld [vmem:[%s159 + $0x28] sm:$0xff]
    %v926 = vld [vmem:[%s159 + $0x30] sm:$0xff]
    %v927 = vld [vmem:[%s159 + $0x38] sm:$0xff]
    %v928 = vld [vmem:[%s129] sm:$0x1]
    %v930 = vlaneseq
    %v931 = vshrl.u32 %v930, 7
    %v932 = vsub.s32 0, %v931
    %v933 = vrot.slane %v928, %v932
    %vm935 = vcmask 523264
    %v937 = vsel %vm935, %v832, 0
    %939 = vmatprep.subr.mxu0 0.0
    %940 = vmatpush1.msra.mxu0 %v920
    %941 = vmatprep.subr.mxu0 0.0
    %942 = vmatpush1.msra.mxu0 %v921
    %943 = vmatprep.subr.mxu0 0.0
    %944 = vmatpush1.msra.mxu0 %v922
    %945 = vmatprep.subr.mxu0 0.0
    %946 = vmatpush1.msra.mxu0 %v923
    %947 = vmatprep.subr.mxu0 0.0
    %948 = vmatpush1.msra.mxu0 %v924
    %949 = vmatprep.subr.mxu0 0.0
    %950 = vmatpush1.msra.mxu0 %v925
    %951 = vmatprep.subr.mxu0 0.0
    %952 = vmatpush1.msra.mxu0 %v926
    %953 = vmatprep.subr.mxu0 0.0
    %954 = vmatpush1.msra.mxu0 %v927
    %955 = vmatprep.subr.mxu0 0.0
    %956 = vmatpush1.msra.mxu0 0.0
    %957 = vmatprep.subr.mxu0 0.0
    %958 = vmatpush1.msra.mxu0 0.0
    %959 = vmatprep.subr.mxu0 0.0
    %960 = vmatpush1.msra.mxu0 0.0
    %961 = vmatprep.subr.mxu0 0.0
    %962 = vmatpush1.msra.mxu0 0.0
    %963 = vmatprep.subr.mxu0 0.0
    %964 = vmatpush1.msra.mxu0 0.0
    %965 = vmatprep.subr.mxu0 0.0
    %966 = vmatpush1.msra.mxu0 0.0
    %967 = vmatprep.subr.mxu0 0.0
    %968 = vmatpush1.msra.mxu0 0.0
    %969 = vmatprep.subr.mxu0 0.0
    %970 = vmatpush1.msra.mxu0 0.0
    %971 = vmatprep.subr.mxu0 0.0
    %972 = vmatpush1.msra.mxu0 0.0
    %973 = vmatprep.subr.mxu0 0.0
    %974 = vmatpush1.msra.mxu0 0.0
    %975 = vmatprep.subr.mxu0 0.0
    %976 = vmatpush1.msra.mxu0 0.0
    %977 = vmatprep.subr.mxu0 0.0
    %978 = vmatpush1.msra.mxu0 0.0
    %979 = vmatprep.subr.mxu0 0.0
    %980 = vmatpush1.msra.mxu0 0.0
    %981 = vmatprep.subr.mxu0 0.0
    %982 = vmatpush1.msra.mxu0 0.0
    %983 = vmatprep.subr.mxu0 0.0
    %984 = vmatpush1.msra.mxu0 0.0
    %985 = vmatprep.subr.mxu0 0.0
    %986 = vmatpush1.msra.mxu0 0.0
    %987 = vmatprep.subr.mxu0 0.0
    %988 = vmatpush1.msra.mxu0 0.0
    %989 = vmatprep.subr.mxu0 0.0
    %990 = vmatpush1.msra.mxu0 0.0
    %991 = vmatprep.subr.mxu0 0.0
    %992 = vmatpush1.msra.mxu0 0.0
    %993 = vmatprep.subr.mxu0 0.0
    %994 = vmatpush1.msra.mxu0 0.0
    %995 = vmatprep.subr.mxu0 0.0
    %996 = vmatpush1.msra.mxu0 0.0
    %997 = vmatprep.subr.mxu0 0.0
    %998 = vmatpush1.msra.mxu0 0.0
    %999 = vmatprep.subr.mxu0 0.0
    %1000 = vmatpush1.msra.mxu0 0.0
    %1001 = vmatprep.subr.mxu0 0.0
    %1002 = vmatpush1.msra.mxu0 0.0
    %1003 = vmatprep.mubr.f32.mxu0 0.0
    %1004 = vmatmul.mubr.f32.gmra.mrb[0].mxu0 %v937
    %v1005 = vpop.f32.mrb[0].mxu0
    %v1006 = vadd.f32 %v933, %v1005
    %v1007 = vpop.f32.mrb[0].mxu0
    %1008 = vdwg.mxu0
    %v1009 = vld [vmem:[%s157] sm:$0xff]
    %v1010 = vld [vmem:[%s157 + $0x8] sm:$0xff]
    %v1011 = vld [vmem:[%s157 + $0x10] sm:$0xff]
    %v1012 = vld [vmem:[%s157 + $0x18] sm:$0xff]
    %v1013 = vld [vmem:[%s157 + $0x20] sm:$0xff]
    %v1014 = vld [vmem:[%s157 + $0x28] sm:$0xff]
    %v1015 = vld [vmem:[%s157 + $0x30] sm:$0xff]
    %v1016 = vld [vmem:[%s157 + $0x38] sm:$0xff]
    %v1017 = vld [vmem:[%s127] sm:$0x1]
    %v1019 = vlaneseq
    %v1020 = vshrl.u32 %v1019, 7
    %v1021 = vsub.s32 0, %v1020
    %v1022 = vrot.slane %v1017, %v1021
    %1024 = vmatprep.subr.mxu0 0.0
    %1025 = vmatpush1.msra.mxu0 %v1009
    %1026 = vmatprep.subr.mxu0 0.0
    %1027 = vmatpush1.msra.mxu0 %v1010
    %1028 = vmatprep.subr.mxu0 0.0
    %1029 = vmatpush1.msra.mxu0 %v1011
    %1030 = vmatprep.subr.mxu0 0.0
    %1031 = vmatpush1.msra.mxu0 %v1012
    %1032 = vmatprep.subr.mxu0 0.0
    %1033 = vmatpush1.msra.mxu0 %v1013
    %1034 = vmatprep.subr.mxu0 0.0
    %1035 = vmatpush1.msra.mxu0 %v1014
    %1036 = vmatprep.subr.mxu0 0.0
    %1037 = vmatpush1.msra.mxu0 %v1015
    %1038 = vmatprep.subr.mxu0 0.0
    %1039 = vmatpush1.msra.mxu0 %v1016
    %1040 = vmatprep.subr.mxu0 0.0
    %1041 = vmatpush1.msra.mxu0 0.0
    %1042 = vmatprep.subr.mxu0 0.0
    %1043 = vmatpush1.msra.mxu0 0.0
    %1044 = vmatprep.subr.mxu0 0.0
    %1045 = vmatpush1.msra.mxu0 0.0
    %1046 = vmatprep.subr.mxu0 0.0
    %1047 = vmatpush1.msra.mxu0 0.0
    %1048 = vmatprep.subr.mxu0 0.0
    %1049 = vmatpush1.msra.mxu0 0.0
    %1050 = vmatprep.subr.mxu0 0.0
    %1051 = vmatpush1.msra.mxu0 0.0
    %1052 = vmatprep.subr.mxu0 0.0
    %1053 = vmatpush1.msra.mxu0 0.0
    %1054 = vmatprep.subr.mxu0 0.0
    %1055 = vmatpush1.msra.mxu0 0.0
    %1056 = vmatprep.subr.mxu0 0.0
    %1057 = vmatpush1.msra.mxu0 0.0
    %1058 = vmatprep.subr.mxu0 0.0
    %1059 = vmatpush1.msra.mxu0 0.0
    %1060 = vmatprep.subr.mxu0 0.0
    %1061 = vmatpush1.msra.mxu0 0.0
    %1062 = vmatprep.subr.mxu0 0.0
    %1063 = vmatpush1.msra.mxu0 0.0
    %1064 = vmatprep.subr.mxu0 0.0
    %1065 = vmatpush1.msra.mxu0 0.0
    %1066 = vmatprep.subr.mxu0 0.0
    %1067 = vmatpush1.msra.mxu0 0.0
    %1068 = vmatprep.subr.mxu0 0.0
    %1069 = vmatpush1.msra.mxu0 0.0
    %1070 = vmatprep.subr.mxu0 0.0
    %1071 = vmatpush1.msra.mxu0 0.0
    %1072 = vmatprep.subr.mxu0 0.0
    %1073 = vmatpush1.msra.mxu0 0.0
    %1074 = vmatprep.subr.mxu0 0.0
    %1075 = vmatpush1.msra.mxu0 0.0
    %1076 = vmatprep.subr.mxu0 0.0
    %1077 = vmatpush1.msra.mxu0 0.0
    %1078 = vmatprep.subr.mxu0 0.0
    %1079 = vmatpush1.msra.mxu0 0.0
    %1080 = vmatprep.subr.mxu0 0.0
    %1081 = vmatpush1.msra.mxu0 0.0
    %1082 = vmatprep.subr.mxu0 0.0
    %1083 = vmatpush1.msra.mxu0 0.0
    %1084 = vmatprep.subr.mxu0 0.0
    %1085 = vmatpush1.msra.mxu0 0.0
    %1086 = vmatprep.subr.mxu0 0.0
    %1087 = vmatpush1.msra.mxu0 0.0
    %1088 = vmatprep.mubr.f32.mxu0 0.0
    %1089 = vmatmul.mubr.f32.gmra.mrb[0].mxu0 %v937
    %v1090 = vpop.f32.mrb[0].mxu0
    %v1091 = vadd.f32 %v1022, %v1090
    %v1092 = vpop.f32.mrb[0].mxu0
    %1093 = vdwg.mxu0
    %v1094 = vld [vmem:[%s149] sm:$0xff]
    %v1095 = vld [vmem:[%s149 + $0x8] sm:$0xff]
    %v1096 = vld [vmem:[%s149 + $0x10] sm:$0xff]
    %v1097 = vld [vmem:[%s149 + $0x18] sm:$0xff]
    %v1098 = vld [vmem:[%s149 + $0x20] sm:$0xff]
    %v1099 = vld [vmem:[%s149 + $0x28] sm:$0xff]
    %v1100 = vld [vmem:[%s149 + $0x30] sm:$0xff]
    %v1101 = vld [vmem:[%s149 + $0x38] sm:$0xff]
    %v1102 = vld [vmem:[%s119] sm:$0x1]
    %v1104 = vlaneseq
    %v1105 = vshrl.u32 %v1104, 7
    %v1106 = vsub.s32 0, %v1105
    %v1107 = vrot.slane %v1102, %v1106
    %1109 = vmatprep.subr.mxu0 0.0
    %1110 = vmatpush1.msra.mxu0 %v1094
    %1111 = vmatprep.subr.mxu0 0.0
    %1112 = vmatpush1.msra.mxu0 %v1095
    %1113 = vmatprep.subr.mxu0 0.0
    %1114 = vmatpush1.msra.mxu0 %v1096
    %1115 = vmatprep.subr.mxu0 0.0
    %1116 = vmatpush1.msra.mxu0 %v1097
    %1117 = vmatprep.subr.mxu0 0.0
    %1118 = vmatpush1.msra.mxu0 %v1098
    %1119 = vmatprep.subr.mxu0 0.0
    %1120 = vmatpush1.msra.mxu0 %v1099
    %1121 = vmatprep.subr.mxu0 0.0
    %1122 = vmatpush1.msra.mxu0 %v1100
    %1123 = vmatprep.subr.mxu0 0.0
    %1124 = vmatpush1.msra.mxu0 %v1101
    %1125 = vmatprep.subr.mxu0 0.0
    %1126 = vmatpush1.msra.mxu0 0.0
    %1127 = vmatprep.subr.mxu0 0.0
    %1128 = vmatpush1.msra.mxu0 0.0
    %1129 = vmatprep.subr.mxu0 0.0
    %1130 = vmatpush1.msra.mxu0 0.0
    %1131 = vmatprep.subr.mxu0 0.0
    %1132 = vmatpush1.msra.mxu0 0.0
    %1133 = vmatprep.subr.mxu0 0.0
    %1134 = vmatpush1.msra.mxu0 0.0
    %1135 = vmatprep.subr.mxu0 0.0
    %1136 = vmatpush1.msra.mxu0 0.0
    %1137 = vmatprep.subr.mxu0 0.0
    %1138 = vmatpush1.msra.mxu0 0.0
    %1139 = vmatprep.subr.mxu0 0.0
    %1140 = vmatpush1.msra.mxu0 0.0
    %1141 = vmatprep.subr.mxu0 0.0
    %1142 = vmatpush1.msra.mxu0 0.0
    %1143 = vmatprep.subr.mxu0 0.0
    %1144 = vmatpush1.msra.mxu0 0.0
    %1145 = vmatprep.subr.mxu0 0.0
    %1146 = vmatpush1.msra.mxu0 0.0
    %1147 = vmatprep.subr.mxu0 0.0
    %1148 = vmatpush1.msra.mxu0 0.0
    %1149 = vmatprep.subr.mxu0 0.0
    %1150 = vmatpush1.msra.mxu0 0.0
    %1151 = vmatprep.subr.mxu0 0.0
    %1152 = vmatpush1.msra.mxu0 0.0
    %1153 = vmatprep.subr.mxu0 0.0
    %1154 = vmatpush1.msra.mxu0 0.0
    %1155 = vmatprep.subr.mxu0 0.0
    %1156 = vmatpush1.msra.mxu0 0.0
    %1157 = vmatprep.subr.mxu0 0.0
    %1158 = vmatpush1.msra.mxu0 0.0
    %1159 = vmatprep.subr.mxu0 0.0
    %1160 = vmatpush1.msra.mxu0 0.0
    %1161 = vmatprep.subr.mxu0 0.0
    %1162 = vmatpush1.msra.mxu0 0.0
    %1163 = vmatprep.subr.mxu0 0.0
    %1164 = vmatpush1.msra.mxu0 0.0
    %1165 = vmatprep.subr.mxu0 0.0
    %1166 = vmatpush1.msra.mxu0 0.0
    %1167 = vmatprep.subr.mxu0 0.0
    %1168 = vmatpush1.msra.mxu0 0.0
    %1169 = vmatprep.subr.mxu0 0.0
    %1170 = vmatpush1.msra.mxu0 0.0
    %1171 = vmatprep.subr.mxu0 0.0
    %1172 = vmatpush1.msra.mxu0 0.0
    %1173 = vmatprep.mubr.f32.mxu0 0.0
    %1174 = vmatmul.mubr.f32.gmra.mrb[0].mxu0 %v937
    %v1175 = vpop.f32.mrb[0].mxu0
    %v1176 = vadd.f32 %v1107, %v1175
    %v1177 = vpop.f32.mrb[0].mxu0
    %1178 = vdwg.mxu0
    %v1179 = vld [vmem:[%s151] sm:$0xff]
    %v1180 = vld [vmem:[%s151 + $0x8] sm:$0xff]
    %v1181 = vld [vmem:[%s151 + $0x10] sm:$0xff]
    %v1182 = vld [vmem:[%s151 + $0x18] sm:$0xff]
    %v1183 = vld [vmem:[%s151 + $0x20] sm:$0xff]
    %v1184 = vld [vmem:[%s151 + $0x28] sm:$0xff]
    %v1185 = vld [vmem:[%s151 + $0x30] sm:$0xff]
    %v1186 = vld [vmem:[%s151 + $0x38] sm:$0xff]
    %v1187 = vld [vmem:[%s121] sm:$0x1]
    %v1189 = vlaneseq
    %v1190 = vshrl.u32 %v1189, 7
    %v1191 = vsub.s32 0, %v1190
    %v1192 = vrot.slane %v1187, %v1191
    %1194 = vmatprep.subr.mxu0 0.0
    %1195 = vmatpush1.msra.mxu0 %v1179
    %1196 = vmatprep.subr.mxu0 0.0
    %1197 = vmatpush1.msra.mxu0 %v1180
    %1198 = vmatprep.subr.mxu0 0.0
    %1199 = vmatpush1.msra.mxu0 %v1181
    %1200 = vmatprep.subr.mxu0 0.0
    %1201 = vmatpush1.msra.mxu0 %v1182
    %1202 = vmatprep.subr.mxu0 0.0
    %1203 = vmatpush1.msra.mxu0 %v1183
    %1204 = vmatprep.subr.mxu0 0.0
    %1205 = vmatpush1.msra.mxu0 %v1184
    %1206 = vmatprep.subr.mxu0 0.0
    %1207 = vmatpush1.msra.mxu0 %v1185
    %1208 = vmatprep.subr.mxu0 0.0
    %1209 = vmatpush1.msra.mxu0 %v1186
    %1210 = vmatprep.subr.mxu0 0.0
    %1211 = vmatpush1.msra.mxu0 0.0
    %1212 = vmatprep.subr.mxu0 0.0
    %1213 = vmatpush1.msra.mxu0 0.0
    %1214 = vmatprep.subr.mxu0 0.0
    %1215 = vmatpush1.msra.mxu0 0.0
    %1216 = vmatprep.subr.mxu0 0.0
    %1217 = vmatpush1.msra.mxu0 0.0
    %1218 = vmatprep.subr.mxu0 0.0
    %1219 = vmatpush1.msra.mxu0 0.0
    %1220 = vmatprep.subr.mxu0 0.0
    %1221 = vmatpush1.msra.mxu0 0.0
    %1222 = vmatprep.subr.mxu0 0.0
    %1223 = vmatpush1.msra.mxu0 0.0
    %1224 = vmatprep.subr.mxu0 0.0
    %1225 = vmatpush1.msra.mxu0 0.0
    %1226 = vmatprep.subr.mxu0 0.0
    %1227 = vmatpush1.msra.mxu0 0.0
    %1228 = vmatprep.subr.mxu0 0.0
    %1229 = vmatpush1.msra.mxu0 0.0
    %1230 = vmatprep.subr.mxu0 0.0
    %1231 = vmatpush1.msra.mxu0 0.0
    %1232 = vmatprep.subr.mxu0 0.0
    %1233 = vmatpush1.msra.mxu0 0.0
    %1234 = vmatprep.subr.mxu0 0.0
    %1235 = vmatpush1.msra.mxu0 0.0
    %1236 = vmatprep.subr.mxu0 0.0
    %1237 = vmatpush1.msra.mxu0 0.0
    %1238 = vmatprep.subr.mxu0 0.0
    %1239 = vmatpush1.msra.mxu0 0.0
    %1240 = vmatprep.subr.mxu0 0.0
    %1241 = vmatpush1.msra.mxu0 0.0
    %1242 = vmatprep.subr.mxu0 0.0
    %1243 = vmatpush1.msra.mxu0 0.0
    %1244 = vmatprep.subr.mxu0 0.0
    %1245 = vmatpush1.msra.mxu0 0.0
    %1246 = vmatprep.subr.mxu0 0.0
    %1247 = vmatpush1.msra.mxu0 0.0
    %1248 = vmatprep.subr.mxu0 0.0
    %1249 = vmatpush1.msra.mxu0 0.0
    %1250 = vmatprep.subr.mxu0 0.0
    %1251 = vmatpush1.msra.mxu0 0.0
    %1252 = vmatprep.subr.mxu0 0.0
    %1253 = vmatpush1.msra.mxu0 0.0
    %1254 = vmatprep.subr.mxu0 0.0
    %1255 = vmatpush1.msra.mxu0 0.0
    %1256 = vmatprep.subr.mxu0 0.0
    %1257 = vmatpush1.msra.mxu0 0.0
    %1258 = vmatprep.mubr.f32.mxu0 0.0
    %1259 = vmatmul.mubr.f32.gmra.mrb[0].mxu0 %v937
    %v1260 = vpop.f32.mrb[0].mxu0
    %v1261 = vadd.f32 %v1192, %v1260
    %v1262 = vpop.f32.mrb[0].mxu0
    %1263 = vdwg.mxu0
    %v1264 = vld [vmem:[%s153] sm:$0xff]
    %v1265 = vld [vmem:[%s153 + $0x8] sm:$0xff]
    %v1266 = vld [vmem:[%s153 + $0x10] sm:$0xff]
    %v1267 = vld [vmem:[%s153 + $0x18] sm:$0xff]
    %v1268 = vld [vmem:[%s153 + $0x20] sm:$0xff]
    %v1269 = vld [vmem:[%s153 + $0x28] sm:$0xff]
    %v1270 = vld [vmem:[%s153 + $0x30] sm:$0xff]
    %v1271 = vld [vmem:[%s153 + $0x38] sm:$0xff]
    %v1272 = vld [vmem:[%s123] sm:$0x1]
    %v1274 = vlaneseq
    %v1275 = vshrl.u32 %v1274, 7
    %v1276 = vsub.s32 0, %v1275
    %v1277 = vrot.slane %v1272, %v1276
    %1279 = vmatprep.subr.mxu0 0.0
    %1280 = vmatpush1.msra.mxu0 %v1264
    %1281 = vmatprep.subr.mxu0 0.0
    %1282 = vmatpush1.msra.mxu0 %v1265
    %1283 = vmatprep.subr.mxu0 0.0
    %1284 = vmatpush1.msra.mxu0 %v1266
    %1285 = vmatprep.subr.mxu0 0.0
    %1286 = vmatpush1.msra.mxu0 %v1267
    %1287 = vmatprep.subr.mxu0 0.0
    %1288 = vmatpush1.msra.mxu0 %v1268
    %1289 = vmatprep.subr.mxu0 0.0
    %1290 = vmatpush1.msra.mxu0 %v1269
    %1291 = vmatprep.subr.mxu0 0.0
    %1292 = vmatpush1.msra.mxu0 %v1270
    %1293 = vmatprep.subr.mxu0 0.0
    %1294 = vmatpush1.msra.mxu0 %v1271
    %1295 = vmatprep.subr.mxu0 0.0
    %1296 = vmatpush1.msra.mxu0 0.0
    %1297 = vmatprep.subr.mxu0 0.0
    %1298 = vmatpush1.msra.mxu0 0.0
    %1299 = vmatprep.subr.mxu0 0.0
    %1300 = vmatpush1.msra.mxu0 0.0
    %1301 = vmatprep.subr.mxu0 0.0
    %1302 = vmatpush1.msra.mxu0 0.0
    %1303 = vmatprep.subr.mxu0 0.0
    %1304 = vmatpush1.msra.mxu0 0.0
    %1305 = vmatprep.subr.mxu0 0.0
    %1306 = vmatpush1.msra.mxu0 0.0
    %1307 = vmatprep.subr.mxu0 0.0
    %1308 = vmatpush1.msra.mxu0 0.0
    %1309 = vmatprep.subr.mxu0 0.0
    %1310 = vmatpush1.msra.mxu0 0.0
    %1311 = vmatprep.subr.mxu0 0.0
    %1312 = vmatpush1.msra.mxu0 0.0
    %1313 = vmatprep.subr.mxu0 0.0
    %1314 = vmatpush1.msra.mxu0 0.0
    %1315 = vmatprep.subr.mxu0 0.0
    %1316 = vmatpush1.msra.mxu0 0.0
    %1317 = vmatprep.subr.mxu0 0.0
    %1318 = vmatpush1.msra.mxu0 0.0
    %1319 = vmatprep.subr.mxu0 0.0
    %1320 = vmatpush1.msra.mxu0 0.0
    %1321 = vmatprep.subr.mxu0 0.0
    %1322 = vmatpush1.msra.mxu0 0.0
    %1323 = vmatprep.subr.mxu0 0.0
    %1324 = vmatpush1.msra.mxu0 0.0
    %1325 = vmatprep.subr.mxu0 0.0
    %1326 = vmatpush1.msra.mxu0 0.0
    %1327 = vmatprep.subr.mxu0 0.0
    %1328 = vmatpush1.msra.mxu0 0.0
    %1329 = vmatprep.subr.mxu0 0.0
    %1330 = vmatpush1.msra.mxu0 0.0
    %1331 = vmatprep.subr.mxu0 0.0
    %1332 = vmatpush1.msra.mxu0 0.0
    %1333 = vmatprep.subr.mxu0 0.0
    %1334 = vmatpush1.msra.mxu0 0.0
    %1335 = vmatprep.subr.mxu0 0.0
    %1336 = vmatpush1.msra.mxu0 0.0
    %1337 = vmatprep.subr.mxu0 0.0
    %1338 = vmatpush1.msra.mxu0 0.0
    %1339 = vmatprep.subr.mxu0 0.0
    %1340 = vmatpush1.msra.mxu0 0.0
    %1341 = vmatprep.subr.mxu0 0.0
    %1342 = vmatpush1.msra.mxu0 0.0
    %1343 = vmatprep.mubr.f32.mxu0 0.0
    %1344 = vmatmul.mubr.f32.gmra.mrb[0].mxu0 %v937
    %v1345 = vpop.f32.mrb[0].mxu0
    %v1346 = vadd.f32 %v1277, %v1345
    %v1347 = vpop.f32.mrb[0].mxu0
    %1348 = vdwg.mxu0
    %v1349 = vld [vmem:[#allocation46] sm:$0x1]
    %v1351 = vlaneseq
    %v1352 = vshrl.u32 %v1351, 7
    %v1353 = vsub.s32 0, %v1352
    %v1354 = vrot.slane %v1349, %v1353
    %v1356 = vadd.f32 %v1346, %v1354
    %vm1357 = vcmp.gt.f32.partialorder %v1356, 20.0
    %v1358 = vmin.f32 %v1356, 20.0
    %v1359 = vmul.f32 %v1358, 1.442695
    %v1360 = vpow.pop %v1359
    %v1361 = vadd.f32 %v1360, 1.0
    %v1362 = vlog2.pop %v1361
    %v1363 = vmul.f32 %v1362, 0.6931472
    %v1364 = vsel %vm1357, %v1356, %v1363
    %v1365 = vld [vmem:[#allocation44] sm:$0x1]
    %v1367 = vlaneseq
    %v1368 = vshrl.u32 %v1367, 7
    %v1369 = vsub.s32 0, %v1368
    %v1370 = vrot.slane %v1365, %v1369
    %v1372 = vmul.f32 %v1091, %v1370
    %v1373 = vld [vmem:[#allocation40] sm:$0x1]
    %v1375 = vlaneseq
    %v1376 = vshrl.u32 %v1375, 7
    %v1377 = vsub.s32 0, %v1376
    %v1378 = vrot.slane %v1373, %v1377
    %v1380 = vadd.f32 %v1372, %v1378
    %v1381 = vxor.u32 %v1380, 2147483648
    %v1382 = vmul.f32 %v1381, 1.442695
    %v1383 = vpow.pop %v1382
    %v1384 = vadd.f32 %v1383, 1.0
    %v1385 = vrcp.pop %v1384
    %v1386 = vmul.f32 1.0, %v1385
    %v1387 = vmul.f32 %v1380, %v1386
    %v1388 = vld [vmem:[#allocation41] sm:$0x1]
    %v1390 = vlaneseq
    %v1391 = vshrl.u32 %v1390, 7
    %v1392 = vsub.s32 0, %v1391
    %v1393 = vrot.slane %v1388, %v1392
    %v1395 = vmul.f32 %v1176, %v1393
    %v1396 = vld [vmem:[%s131] sm:$0x1]
    %v1398 = vlaneseq
    %v1399 = vshrl.u32 %v1398, 7
    %v1400 = vsub.s32 0, %v1399
    %v1401 = vrot.slane %v1396, %v1400
    %v1403 = vadd.f32 %v1395, %v1401
    %v1404 = vxor.u32 %v1403, 2147483648
    %v1405 = vmul.f32 %v1404, 1.442695
    %v1406 = vpow.pop %v1405
    %v1407 = vadd.f32 %v1406, 1.0
    %v1408 = vrcp.pop %v1407
    %v1409 = vmul.f32 1.0, %v1408
    %v1410 = vmul.f32 %v1403, %v1409
    %v1411 = vld [vmem:[#allocation43] sm:$0x1]
    %v1413 = vlaneseq
    %v1414 = vshrl.u32 %v1413, 7
    %v1415 = vsub.s32 0, %v1414
    %v1416 = vrot.slane %v1411, %v1415
    %v1418 = vmul.f32 %v1261, %v1416
    %v1419 = vld [vmem:[%s133] sm:$0x1]
    %v1421 = vlaneseq
    %v1422 = vshrl.u32 %v1421, 7
    %v1423 = vsub.s32 0, %v1422
    %v1424 = vrot.slane %v1419, %v1423
    %v1426 = vadd.f32 %v1418, %v1424
    %v1427 = vxor.u32 %v1426, 2147483648
    %v1428 = vmul.f32 %v1427, 1.442695
    %v1429 = vpow.pop %v1428
    %v1430 = vadd.f32 %v1429, 1.0
    %v1431 = vrcp.pop %v1430
    %v1432 = vmul.f32 1.0, %v1431
    %v1433 = vmul.f32 %v1426, %v1432
    %v1434 = vmul.f32 %v1410, %v1433
    %vm1435 = vcmask 123904
    %v1436 = vsel %vm1435, %v1434, 0.0
    %1437 = vadd.xlane.f32.xlu0 %v1436
    %v1438 = vpop.xlane.xlu0 %1437
    %v1439 = vmul.f32 %v1364, %v1438
    %v1440 = vld [vmem:[%s117] sm:$0x1]
    %v1442 = vlaneseq
    %v1443 = vshrl.u32 %v1442, 7
    %v1444 = vsub.s32 0, %v1443
    %v1445 = vrot.slane %v1440, %v1444
    %v1447 = vadd.f32 %v1439, %v1445
    %vm1448 = vcmask 15360
    %v1450 = vsel %vm1448, %v1447, 0
    %vm1452 = vcmask 1041408
    %v1454 = vsel %vm1452, %v919, 0
    %1456 = vmatprep.subr.mxu0 0.0
    %1457 = vmatpush1.msra.mxu0 %v1454
    %1458 = vmatprep.subr.mxu0 0.0
    %1459 = vmatpush1.msra.mxu0 0.0
    %1460 = vmatprep.subr.mxu0 0.0
    %1461 = vmatpush1.msra.mxu0 0.0
    %1462 = vmatprep.subr.mxu0 0.0
    %1463 = vmatpush1.msra.mxu0 0.0
    %1464 = vmatprep.subr.mxu0 0.0
    %1465 = vmatpush1.msra.mxu0 0.0
    %1466 = vmatprep.subr.mxu0 0.0
    %1467 = vmatpush1.msra.mxu0 0.0
    %1468 = vmatprep.subr.mxu0 0.0
    %1469 = vmatpush1.msra.mxu0 0.0
    %1470 = vmatprep.subr.mxu0 0.0
    %1471 = vmatpush1.msra.mxu0 0.0
    %1472 = vmatprep.subr.mxu0 0.0
    %1473 = vmatpush1.msra.mxu0 0.0
    %1474 = vmatprep.subr.mxu0 0.0
    %1475 = vmatpush1.msra.mxu0 0.0
    %1476 = vmatprep.subr.mxu0 0.0
    %1477 = vmatpush1.msra.mxu0 0.0
    %1478 = vmatprep.subr.mxu0 0.0
    %1479 = vmatpush1.msra.mxu0 0.0
    %1480 = vmatprep.subr.mxu0 0.0
    %1481 = vmatpush1.msra.mxu0 0.0
    %1482 = vmatprep.subr.mxu0 0.0
    %1483 = vmatpush1.msra.mxu0 0.0
    %1484 = vmatprep.subr.mxu0 0.0
    %1485 = vmatpush1.msra.mxu0 0.0
    %1486 = vmatprep.subr.mxu0 0.0
    %1487 = vmatpush1.msra.mxu0 0.0
    %1488 = vmatprep.subr.mxu0 0.0
    %1489 = vmatpush1.msra.mxu0 0.0
    %1490 = vmatprep.subr.mxu0 0.0
    %1491 = vmatpush1.msra.mxu0 0.0
    %1492 = vmatprep.subr.mxu0 0.0
    %1493 = vmatpush1.msra.mxu0 0.0
    %1494 = vmatprep.subr.mxu0 0.0
    %1495 = vmatpush1.msra.mxu0 0.0
    %1496 = vmatprep.subr.mxu0 0.0
    %1497 = vmatpush1.msra.mxu0 0.0
    %1498 = vmatprep.subr.mxu0 0.0
    %1499 = vmatpush1.msra.mxu0 0.0
    %1500 = vmatprep.subr.mxu0 0.0
    %1501 = vmatpush1.msra.mxu0 0.0
    %1502 = vmatprep.subr.mxu0 0.0
    %1503 = vmatpush1.msra.mxu0 0.0
    %1504 = vmatprep.subr.mxu0 0.0
    %1505 = vmatpush1.msra.mxu0 0.0
    %1506 = vmatprep.subr.mxu0 0.0
    %1507 = vmatpush1.msra.mxu0 0.0
    %1508 = vmatprep.subr.mxu0 0.0
    %1509 = vmatpush1.msra.mxu0 0.0
    %1510 = vmatprep.subr.mxu0 0.0
    %1511 = vmatpush1.msra.mxu0 0.0
    %1512 = vmatprep.subr.mxu0 0.0
    %1513 = vmatpush1.msra.mxu0 0.0
    %1514 = vmatprep.subr.mxu0 0.0
    %1515 = vmatpush1.msra.mxu0 0.0
    %1516 = vmatprep.subr.mxu0 0.0
    %1517 = vmatpush1.msra.mxu0 0.0
    %1518 = vmatprep.subr.mxu0 0.0
    %1519 = vmatpush1.msra.mxu0 0.0
    %1520 = vmatprep.mubr.f32.mxu0 0.0
    %1521 = vmatmul.mubr.f32.gmra.mrb[0].mxu0 %v1450
    %v1522 = vpop.f32.mrb[0].mxu0
    %v1523 = vadd.f32 0.0, %v1522
    %v1524 = vpop.f32.mrb[0].mxu0
    %1525 = vdwg.mxu0
    %v1526 = vmul.f32 %v1523, %v1387
    %v1527 = vxor.u32 %v1006, 2147483648
    %v1528 = vmul.f32 %v1527, 1.442695
    %v1529 = vpow.pop %v1528
    %v1530 = vadd.f32 %v1529, 1.0
    %v1531 = vrcp.pop %v1530
    %v1532 = vmul.f32 1.0, %v1531
    %v1533 = vmul.f32 %v1006, %v1532
    %v1534 = vmul.f32 %v1526, %v1533
    %v1535 = vmul.f32 %v1534, %v1534
    %v1536 = vsel %vm1452, %v1535, 0.0
    %1537 = vadd.xlane.f32.xlu0 %v1536
    %v1538 = vpop.xlane.xlu0 %1537
    %v1539 = vrcp.pop 128.0
    %v1540 = vmul.f32 %v1538, %v1539
    %v1541 = vadd.f32 %v1540, 1e-05
    %v1542 = vrsqrt.pop %v1541
    %v1543 = vmul.f32 %v1534, %v1542
    %v1544 = vld [vmem:[#allocation49] sm:$0x1]
    %v1546 = vlaneseq
    %v1547 = vshrl.u32 %v1546, 7
    %v1548 = vsub.s32 0, %v1547
    %v1549 = vrot.slane %v1544, %v1548
    %v1551 = vmul.f32 %v1543, %v1549
    %v1552 = vld [vmem:[%s155] sm:$0xff]
    %v1553 = vld [vmem:[%s155 + $0x8] sm:$0xff]
    %v1554 = vld [vmem:[%s155 + $0x10] sm:$0xff]
    %v1555 = vld [vmem:[%s155 + $0x18] sm:$0xff]
    %v1556 = vld [vmem:[%s155 + $0x20] sm:$0xff]
    %v1557 = vld [vmem:[%s155 + $0x28] sm:$0xff]
    %v1558 = vld [vmem:[%s155 + $0x30] sm:$0xff]
    %v1559 = vld [vmem:[%s155 + $0x38] sm:$0xff]
    %v1560 = vld [vmem:[%s155 + $0x40] sm:$0xff]
    %v1561 = vld [vmem:[%s155 + $0x48] sm:$0xff]
    %v1562 = vld [vmem:[%s155 + $0x50] sm:$0xff]
    %v1563 = vld [vmem:[%s155 + $0x58] sm:$0xff]
    %v1564 = vld [vmem:[%s155 + $0x60] sm:$0xff]
    %v1565 = vld [vmem:[%s155 + $0x68] sm:$0xff]
    %v1566 = vld [vmem:[%s155 + $0x70] sm:$0xff]
    %v1567 = vld [vmem:[%s155 + $0x78] sm:$0xff]
    %v1568 = vld [vmem:[%s125] sm:$0x1]
    %v1570 = vlaneseq
    %v1571 = vshrl.u32 %v1570, 7
    %v1572 = vsub.s32 0, %v1571
    %v1573 = vrot.slane %v1568, %v1572
    %1575 = vmatprep.subr.mxu0 0.0
    %1576 = vmatpush1.msra.mxu0 %v1552
    %1577 = vmatprep.subr.mxu0 0.0
    %1578 = vmatpush1.msra.mxu0 %v1553
    %1579 = vmatprep.subr.mxu0 0.0
    %1580 = vmatpush1.msra.mxu0 %v1554
    %1581 = vmatprep.subr.mxu0 0.0
    %1582 = vmatpush1.msra.mxu0 %v1555
    %1583 = vmatprep.subr.mxu0 0.0
    %1584 = vmatpush1.msra.mxu0 %v1556
    %1585 = vmatprep.subr.mxu0 0.0
    %1586 = vmatpush1.msra.mxu0 %v1557
    %1587 = vmatprep.subr.mxu0 0.0
    %1588 = vmatpush1.msra.mxu0 %v1558
    %1589 = vmatprep.subr.mxu0 0.0
    %1590 = vmatpush1.msra.mxu0 %v1559
    %1591 = vmatprep.subr.mxu0 0.0
    %1592 = vmatpush1.msra.mxu0 %v1560
    %1593 = vmatprep.subr.mxu0 0.0
    %1594 = vmatpush1.msra.mxu0 %v1561
    %1595 = vmatprep.subr.mxu0 0.0
    %1596 = vmatpush1.msra.mxu0 %v1562
    %1597 = vmatprep.subr.mxu0 0.0
    %1598 = vmatpush1.msra.mxu0 %v1563
    %1599 = vmatprep.subr.mxu0 0.0
    %1600 = vmatpush1.msra.mxu0 %v1564
    %1601 = vmatprep.subr.mxu0 0.0
    %1602 = vmatpush1.msra.mxu0 %v1565
    %1603 = vmatprep.subr.mxu0 0.0
    %1604 = vmatpush1.msra.mxu0 %v1566
    %1605 = vmatprep.subr.mxu0 0.0
    %1606 = vmatpush1.msra.mxu0 %v1567
    %1607 = vmatprep.subr.mxu0 0.0
    %1608 = vmatpush1.msra.mxu0 0.0
    %1609 = vmatprep.subr.mxu0 0.0
    %1610 = vmatpush1.msra.mxu0 0.0
    %1611 = vmatprep.subr.mxu0 0.0
    %1612 = vmatpush1.msra.mxu0 0.0
    %1613 = vmatprep.subr.mxu0 0.0
    %1614 = vmatpush1.msra.mxu0 0.0
    %1615 = vmatprep.subr.mxu0 0.0
    %1616 = vmatpush1.msra.mxu0 0.0
    %1617 = vmatprep.subr.mxu0 0.0
    %1618 = vmatpush1.msra.mxu0 0.0
    %1619 = vmatprep.subr.mxu0 0.0
    %1620 = vmatpush1.msra.mxu0 0.0
    %1621 = vmatprep.subr.mxu0 0.0
    %1622 = vmatpush1.msra.mxu0 0.0
    %1623 = vmatprep.subr.mxu0 0.0
    %1624 = vmatpush1.msra.mxu0 0.0
    %1625 = vmatprep.subr.mxu0 0.0
    %1626 = vmatpush1.msra.mxu0 0.0
    %1627 = vmatprep.subr.mxu0 0.0
    %1628 = vmatpush1.msra.mxu0 0.0
    %1629 = vmatprep.subr.mxu0 0.0
    %1630 = vmatpush1.msra.mxu0 0.0
    %1631 = vmatprep.subr.mxu0 0.0
    %1632 = vmatpush1.msra.mxu0 0.0
    %1633 = vmatprep.subr.mxu0 0.0
    %1634 = vmatpush1.msra.mxu0 0.0
    %1635 = vmatprep.subr.mxu0 0.0
    %1636 = vmatpush1.msra.mxu0 0.0
    %1637 = vmatprep.subr.mxu0 0.0
    %1638 = vmatpush1.msra.mxu0 0.0
    %1639 = vmatprep.mubr.f32.mxu0 0.0
    %1640 = vmatmul.mubr.f32.gmra.mrb[0].mxu0 %v1551
    %v1641 = vpop.f32.mrb[0].mxu0
    %v1642 = vadd.f32 %v1573, %v1641
    %v1643 = vpop.f32.mrb[0].mxu0
    %1644 = vdwg.mxu0
    %s1645 = scalar_lea.vmem %s159, 64
    %v1646 = vld [vmem:[%s1645] sm:$0xff]
    %v1647 = vld [vmem:[%s1645 + $0x8] sm:$0xff]
    %v1648 = vld [vmem:[%s1645 + $0x10] sm:$0xff]
    %v1649 = vld [vmem:[%s1645 + $0x18] sm:$0xff]
    %v1650 = vld [vmem:[%s1645 + $0x20] sm:$0xff]
    %v1651 = vld [vmem:[%s1645 + $0x28] sm:$0xff]
    %v1652 = vld [vmem:[%s1645 + $0x30] sm:$0xff]
    %v1653 = vld [vmem:[%s1645 + $0x38] sm:$0xff]
    %s1654 = scalar_lea.vmem %s129, 1
    %v1655 = vld [vmem:[%s1654] sm:$0x1]
    %v1657 = vlaneseq
    %v1658 = vshrl.u32 %v1657, 7
    %v1659 = vsub.s32 0, %v1658
    %v1660 = vrot.slane %v1655, %v1659
    %v1663 = vsel %vm935, %v1642, 0
    %1665 = vmatprep.subr.mxu0 0.0
    %1666 = vmatpush1.msra.mxu0 %v1646
    %1667 = vmatprep.subr.mxu0 0.0
    %1668 = vmatpush1.msra.mxu0 %v1647
    %1669 = vmatprep.subr.mxu0 0.0
    %1670 = vmatpush1.msra.mxu0 %v1648
    %1671 = vmatprep.subr.mxu0 0.0
    %1672 = vmatpush1.msra.mxu0 %v1649
    %1673 = vmatprep.subr.mxu0 0.0
    %1674 = vmatpush1.msra.mxu0 %v1650
    %1675 = vmatprep.subr.mxu0 0.0
    %1676 = vmatpush1.msra.mxu0 %v1651
    %1677 = vmatprep.subr.mxu0 0.0
    %1678 = vmatpush1.msra.mxu0 %v1652
    %1679 = vmatprep.subr.mxu0 0.0
    %1680 = vmatpush1.msra.mxu0 %v1653
    %1681 = vmatprep.subr.mxu0 0.0
    %1682 = vmatpush1.msra.mxu0 0.0
    %1683 = vmatprep.subr.mxu0 0.0
    %1684 = vmatpush1.msra.mxu0 0.0
    %1685 = vmatprep.subr.mxu0 0.0
    %1686 = vmatpush1.msra.mxu0 0.0
    %1687 = vmatprep.subr.mxu0 0.0
    %1688 = vmatpush1.msra.mxu0 0.0
    %1689 = vmatprep.subr.mxu0 0.0
    %1690 = vmatpush1.msra.mxu0 0.0
    %1691 = vmatprep.subr.mxu0 0.0
    %1692 = vmatpush1.msra.mxu0 0.0
    %1693 = vmatprep.subr.mxu0 0.0
    %1694 = vmatpush1.msra.mxu0 0.0
    %1695 = vmatprep.subr.mxu0 0.0
    %1696 = vmatpush1.msra.mxu0 0.0
    %1697 = vmatprep.subr.mxu0 0.0
    %1698 = vmatpush1.msra.mxu0 0.0
    %1699 = vmatprep.subr.mxu0 0.0
    %1700 = vmatpush1.msra.mxu0 0.0
    %1701 = vmatprep.subr.mxu0 0.0
    %1702 = vmatpush1.msra.mxu0 0.0
    %1703 = vmatprep.subr.mxu0 0.0
    %1704 = vmatpush1.msra.mxu0 0.0
    %1705 = vmatprep.subr.mxu0 0.0
    %1706 = vmatpush1.msra.mxu0 0.0
    %1707 = vmatprep.subr.mxu0 0.0
    %1708 = vmatpush1.msra.mxu0 0.0
    %1709 = vmatprep.subr.mxu0 0.0
    %1710 = vmatpush1.msra.mxu0 0.0
    %1711 = vmatprep.subr.mxu0 0.0
    %1712 = vmatpush1.msra.mxu0 0.0
    %1713 = vmatprep.subr.mxu0 0.0
    %1714 = vmatpush1.msra.mxu0 0.0
    %1715 = vmatprep.subr.mxu0 0.0
    %1716 = vmatpush1.msra.mxu0 0.0
    %1717 = vmatprep.subr.mxu0 0.0
    %1718 = vmatpush1.msra.mxu0 0.0
    %1719 = vmatprep.subr.mxu0 0.0
    %1720 = vmatpush1.msra.mxu0 0.0
    %1721 = vmatprep.subr.mxu0 0.0
    %1722 = vmatpush1.msra.mxu0 0.0
    %1723 = vmatprep.subr.mxu0 0.0
    %1724 = vmatpush1.msra.mxu0 0.0
    %1725 = vmatprep.subr.mxu0 0.0
    %1726 = vmatpush1.msra.mxu0 0.0
    %1727 = vmatprep.subr.mxu0 0.0
    %1728 = vmatpush1.msra.mxu0 0.0
    %1729 = vmatprep.mubr.f32.mxu0 0.0
    %1730 = vmatmul.mubr.f32.gmra.mrb[0].mxu0 %v1663
    %v1731 = vpop.f32.mrb[0].mxu0
    %v1732 = vadd.f32 %v1660, %v1731
    %v1733 = vpop.f32.mrb[0].mxu0
    %1734 = vdwg.mxu0
    %s1735 = scalar_lea.vmem %s157, 64
    %v1736 = vld [vmem:[%s1735] sm:$0xff]
    %v1737 = vld [vmem:[%s1735 + $0x8] sm:$0xff]
    %v1738 = vld [vmem:[%s1735 + $0x10] sm:$0xff]
    %v1739 = vld [vmem:[%s1735 + $0x18] sm:$0xff]
    %v1740 = vld [vmem:[%s1735 + $0x20] sm:$0xff]
    %v1741 = vld [vmem:[%s1735 + $0x28] sm:$0xff]
    %v1742 = vld [vmem:[%s1735 + $0x30] sm:$0xff]
    %v1743 = vld [vmem:[%s1735 + $0x38] sm:$0xff]
    %s1744 = scalar_lea.vmem %s127, 1
    %v1745 = vld [vmem:[%s1744] sm:$0x1]
    %v1747 = vlaneseq
    %v1748 = vshrl.u32 %v1747, 7
    %v1749 = vsub.s32 0, %v1748
    %v1750 = vrot.slane %v1745, %v1749
    %1752 = vmatprep.subr.mxu0 0.0
    %1753 = vmatpush1.msra.mxu0 %v1736
    %1754 = vmatprep.subr.mxu0 0.0
    %1755 = vmatpush1.msra.mxu0 %v1737
    %1756 = vmatprep.subr.mxu0 0.0
    %1757 = vmatpush1.msra.mxu0 %v1738
    %1758 = vmatprep.subr.mxu0 0.0
    %1759 = vmatpush1.msra.mxu0 %v1739
    %1760 = vmatprep.subr.mxu0 0.0
    %1761 = vmatpush1.msra.mxu0 %v1740
    %1762 = vmatprep.subr.mxu0 0.0
    %1763 = vmatpush1.msra.mxu0 %v1741
    %1764 = vmatprep.subr.mxu0 0.0
    %1765 = vmatpush1.msra.mxu0 %v1742
    %1766 = vmatprep.subr.mxu0 0.0
    %1767 = vmatpush1.msra.mxu0 %v1743
    %1768 = vmatprep.subr.mxu0 0.0
    %1769 = vmatpush1.msra.mxu0 0.0
    %1770 = vmatprep.subr.mxu0 0.0
    %1771 = vmatpush1.msra.mxu0 0.0
    %1772 = vmatprep.subr.mxu0 0.0
    %1773 = vmatpush1.msra.mxu0 0.0
    %1774 = vmatprep.subr.mxu0 0.0
    %1775 = vmatpush1.msra.mxu0 0.0
    %1776 = vmatprep.subr.mxu0 0.0
    %1777 = vmatpush1.msra.mxu0 0.0
    %1778 = vmatprep.subr.mxu0 0.0
    %1779 = vmatpush1.msra.mxu0 0.0
    %1780 = vmatprep.subr.mxu0 0.0
    %1781 = vmatpush1.msra.mxu0 0.0
    %1782 = vmatprep.subr.mxu0 0.0
    %1783 = vmatpush1.msra.mxu0 0.0
    %1784 = vmatprep.subr.mxu0 0.0
    %1785 = vmatpush1.msra.mxu0 0.0
    %1786 = vmatprep.subr.mxu0 0.0
    %1787 = vmatpush1.msra.mxu0 0.0
    %1788 = vmatprep.subr.mxu0 0.0
    %1789 = vmatpush1.msra.mxu0 0.0
    %1790 = vmatprep.subr.mxu0 0.0
    %1791 = vmatpush1.msra.mxu0 0.0
    %1792 = vmatprep.subr.mxu0 0.0
    %1793 = vmatpush1.msra.mxu0 0.0
    %1794 = vmatprep.subr.mxu0 0.0
    %1795 = vmatpush1.msra.mxu0 0.0
    %1796 = vmatprep.subr.mxu0 0.0
    %1797 = vmatpush1.msra.mxu0 0.0
    %1798 = vmatprep.subr.mxu0 0.0
    %1799 = vmatpush1.msra.mxu0 0.0
    %1800 = vmatprep.subr.mxu0 0.0
    %1801 = vmatpush1.msra.mxu0 0.0
    %1802 = vmatprep.subr.mxu0 0.0
    %1803 = vmatpush1.msra.mxu0 0.0
    %1804 = vmatprep.subr.mxu0 0.0
    %1805 = vmatpush1.msra.mxu0 0.0
    %1806 = vmatprep.subr.mxu0 0.0
    %1807 = vmatpush1.msra.mxu0 0.0
    %1808 = vmatprep.subr.mxu0 0.0
    %1809 = vmatpush1.msra.mxu0 0.0
    %1810 = vmatprep.subr.mxu0 0.0
    %1811 = vmatpush1.msra.mxu0 0.0
    %1812 = vmatprep.subr.mxu0 0.0
    %1813 = vmatpush1.msra.mxu0 0.0
    %1814 = vmatprep.subr.mxu0 0.0
    %1815 = vmatpush1.msra.mxu0 0.0
    %1816 = vmatprep.mubr.f32.mxu0 0.0
    %1817 = vmatmul.mubr.f32.gmra.mrb[0].mxu0 %v1663
    %v1818 = vpop.f32.mrb[0].mxu0
    %v1819 = vadd.f32 %v1750, %v1818
    %v1820 = vpop.f32.mrb[0].mxu0
    %1821 = vdwg.mxu0
    %s1822 = scalar_lea.vmem %s149, 64
    %v1823 = vld [vmem:[%s1822] sm:$0xff]
    %v1824 = vld [vmem:[%s1822 + $0x8] sm:$0xff]
    %v1825 = vld [vmem:[%s1822 + $0x10] sm:$0xff]
    %v1826 = vld [vmem:[%s1822 + $0x18] sm:$0xff]
    %v1827 = vld [vmem:[%s1822 + $0x20] sm:$0xff]
    %v1828 = vld [vmem:[%s1822 + $0x28] sm:$0xff]
    %v1829 = vld [vmem:[%s1822 + $0x30] sm:$0xff]
    %v1830 = vld [vmem:[%s1822 + $0x38] sm:$0xff]
    %s1831 = scalar_lea.vmem %s119, 1
    %v1832 = vld [vmem:[%s1831] sm:$0x1]
    %v1834 = vlaneseq
    %v1835 = vshrl.u32 %v1834, 7
    %v1836 = vsub.s32 0, %v1835
    %v1837 = vrot.slane %v1832, %v1836
    %1839 = vmatprep.subr.mxu0 0.0
    %1840 = vmatpush1.msra.mxu0 %v1823
    %1841 = vmatprep.subr.mxu0 0.0
    %1842 = vmatpush1.msra.mxu0 %v1824
    %1843 = vmatprep.subr.mxu0 0.0
    %1844 = vmatpush1.msra.mxu0 %v1825
    %1845 = vmatprep.subr.mxu0 0.0
    %1846 = vmatpush1.msra.mxu0 %v1826
    %1847 = vmatprep.subr.mxu0 0.0
    %1848 = vmatpush1.msra.mxu0 %v1827
    %1849 = vmatprep.subr.mxu0 0.0
    %1850 = vmatpush1.msra.mxu0 %v1828
    %1851 = vmatprep.subr.mxu0 0.0
    %1852 = vmatpush1.msra.mxu0 %v1829
    %1853 = vmatprep.subr.mxu0 0.0
    %1854 = vmatpush1.msra.mxu0 %v1830
    %1855 = vmatprep.subr.mxu0 0.0
    %1856 = vmatpush1.msra.mxu0 0.0
    %1857 = vmatprep.subr.mxu0 0.0
    %1858 = vmatpush1.msra.mxu0 0.0
    %1859 = vmatprep.subr.mxu0 0.0
    %1860 = vmatpush1.msra.mxu0 0.0
    %1861 = vmatprep.subr.mxu0 0.0
    %1862 = vmatpush1.msra.mxu0 0.0
    %1863 = vmatprep.subr.mxu0 0.0
    %1864 = vmatpush1.msra.mxu0 0.0
    %1865 = vmatprep.subr.mxu0 0.0
    %1866 = vmatpush1.msra.mxu0 0.0
    %1867 = vmatprep.subr.mxu0 0.0
    %1868 = vmatpush1.msra.mxu0 0.0
    %1869 = vmatprep.subr.mxu0 0.0
    %1870 = vmatpush1.msra.mxu0 0.0
    %1871 = vmatprep.subr.mxu0 0.0
    %1872 = vmatpush1.msra.mxu0 0.0
    %1873 = vmatprep.subr.mxu0 0.0
    %1874 = vmatpush1.msra.mxu0 0.0
    %1875 = vmatprep.subr.mxu0 0.0
    %1876 = vmatpush1.msra.mxu0 0.0
    %1877 = vmatprep.subr.mxu0 0.0
    %1878 = vmatpush1.msra.mxu0 0.0
    %1879 = vmatprep.subr.mxu0 0.0
    %1880 = vmatpush1.msra.mxu0 0.0
    %1881 = vmatprep.subr.mxu0 0.0
    %1882 = vmatpush1.msra.mxu0 0.0
    %1883 = vmatprep.subr.mxu0 0.0
    %1884 = vmatpush1.msra.mxu0 0.0
    %1885 = vmatprep.subr.mxu0 0.0
    %1886 = vmatpush1.msra.mxu0 0.0
    %1887 = vmatprep.subr.mxu0 0.0
    %1888 = vmatpush1.msra.mxu0 0.0
    %1889 = vmatprep.subr.mxu0 0.0
    %1890 = vmatpush1.msra.mxu0 0.0
    %1891 = vmatprep.subr.mxu0 0.0
    %1892 = vmatpush1.msra.mxu0 0.0
    %1893 = vmatprep.subr.mxu0 0.0
    %1894 = vmatpush1.msra.mxu0 0.0
    %1895 = vmatprep.subr.mxu0 0.0
    %1896 = vmatpush1.msra.mxu0 0.0
    %1897 = vmatprep.subr.mxu0 0.0
    %1898 = vmatpush1.msra.mxu0 0.0
    %1899 = vmatprep.subr.mxu0 0.0
    %1900 = vmatpush1.msra.mxu0 0.0
    %1901 = vmatprep.subr.mxu0 0.0
    %1902 = vmatpush1.msra.mxu0 0.0
    %1903 = vmatprep.mubr.f32.mxu0 0.0
    %1904 = vmatmul.mubr.f32.gmra.mrb[0].mxu0 %v1663
    %v1905 = vpop.f32.mrb[0].mxu0
    %v1906 = vadd.f32 %v1837, %v1905
    %v1907 = vpop.f32.mrb[0].mxu0
    %1908 = vdwg.mxu0
    %s1909 = scalar_lea.vmem %s151, 64
    %v1910 = vld [vmem:[%s1909] sm:$0xff]
    %v1911 = vld [vmem:[%s1909 + $0x8] sm:$0xff]
    %v1912 = vld [vmem:[%s1909 + $0x10] sm:$0xff]
    %v1913 = vld [vmem:[%s1909 + $0x18] sm:$0xff]
    %v1914 = vld [vmem:[%s1909 + $0x20] sm:$0xff]
    %v1915 = vld [vmem:[%s1909 + $0x28] sm:$0xff]
    %v1916 = vld [vmem:[%s1909 + $0x30] sm:$0xff]
    %v1917 = vld [vmem:[%s1909 + $0x38] sm:$0xff]
    %s1918 = scalar_lea.vmem %s121, 1
    %v1919 = vld [vmem:[%s1918] sm:$0x1]
    %v1921 = vlaneseq
    %v1922 = vshrl.u32 %v1921, 7
    %v1923 = vsub.s32 0, %v1922
    %v1924 = vrot.slane %v1919, %v1923
    %1926 = vmatprep.subr.mxu0 0.0
    %1927 = vmatpush1.msra.mxu0 %v1910
    %1928 = vmatprep.subr.mxu0 0.0
    %1929 = vmatpush1.msra.mxu0 %v1911
    %1930 = vmatprep.subr.mxu0 0.0
    %1931 = vmatpush1.msra.mxu0 %v1912
    %1932 = vmatprep.subr.mxu0 0.0
    %1933 = vmatpush1.msra.mxu0 %v1913
    %1934 = vmatprep.subr.mxu0 0.0
    %1935 = vmatpush1.msra.mxu0 %v1914
    %1936 = vmatprep.subr.mxu0 0.0
    %1937 = vmatpush1.msra.mxu0 %v1915
    %1938 = vmatprep.subr.mxu0 0.0
    %1939 = vmatpush1.msra.mxu0 %v1916
    %1940 = vmatprep.subr.mxu0 0.0
    %1941 = vmatpush1.msra.mxu0 %v1917
    %1942 = vmatprep.subr.mxu0 0.0
    %1943 = vmatpush1.msra.mxu0 0.0
    %1944 = vmatprep.subr.mxu0 0.0
    %1945 = vmatpush1.msra.mxu0 0.0
    %1946 = vmatprep.subr.mxu0 0.0
    %1947 = vmatpush1.msra.mxu0 0.0
    %1948 = vmatprep.subr.mxu0 0.0
    %1949 = vmatpush1.msra.mxu0 0.0
    %1950 = vmatprep.subr.mxu0 0.0
    %1951 = vmatpush1.msra.mxu0 0.0
    %1952 = vmatprep.subr.mxu0 0.0
    %1953 = vmatpush1.msra.mxu0 0.0
    %1954 = vmatprep.subr.mxu0 0.0
    %1955 = vmatpush1.msra.mxu0 0.0
    %1956 = vmatprep.subr.mxu0 0.0
    %1957 = vmatpush1.msra.mxu0 0.0
    %1958 = vmatprep.subr.mxu0 0.0
    %1959 = vmatpush1.msra.mxu0 0.0
    %1960 = vmatprep.subr.mxu0 0.0
    %1961 = vmatpush1.msra.mxu0 0.0
    %1962 = vmatprep.subr.mxu0 0.0
    %1963 = vmatpush1.msra.mxu0 0.0
    %1964 = vmatprep.subr.mxu0 0.0
    %1965 = vmatpush1.msra.mxu0 0.0
    %1966 = vmatprep.subr.mxu0 0.0
    %1967 = vmatpush1.msra.mxu0 0.0
    %1968 = vmatprep.subr.mxu0 0.0
    %1969 = vmatpush1.msra.mxu0 0.0
    %1970 = vmatprep.subr.mxu0 0.0
    %1971 = vmatpush1.msra.mxu0 0.0
    %1972 = vmatprep.subr.mxu0 0.0
    %1973 = vmatpush1.msra.mxu0 0.0
    %1974 = vmatprep.subr.mxu0 0.0
    %1975 = vmatpush1.msra.mxu0 0.0
    %1976 = vmatprep.subr.mxu0 0.0
    %1977 = vmatpush1.msra.mxu0 0.0
    %1978 = vmatprep.subr.mxu0 0.0
    %1979 = vmatpush1.msra.mxu0 0.0
    %1980 = vmatprep.subr.mxu0 0.0
    %1981 = vmatpush1.msra.mxu0 0.0
    %1982 = vmatprep.subr.mxu0 0.0
    %1983 = vmatpush1.msra.mxu0 0.0
    %1984 = vmatprep.subr.mxu0 0.0
    %1985 = vmatpush1.msra.mxu0 0.0
    %1986 = vmatprep.subr.mxu0 0.0
    %1987 = vmatpush1.msra.mxu0 0.0
    %1988 = vmatprep.subr.mxu0 0.0
    %1989 = vmatpush1.msra.mxu0 0.0
    %1990 = vmatprep.mubr.f32.mxu0 0.0
    %1991 = vmatmul.mubr.f32.gmra.mrb[0].mxu0 %v1663
    %v1992 = vpop.f32.mrb[0].mxu0
    %v1993 = vadd.f32 %v1924, %v1992
    %v1994 = vpop.f32.mrb[0].mxu0
    %1995 = vdwg.mxu0
    %s1996 = scalar_lea.vmem %s153, 64
    %v1997 = vld [vmem:[%s1996] sm:$0xff]
    %v1998 = vld [vmem:[%s1996 + $0x8] sm:$0xff]
    %v1999 = vld [vmem:[%s1996 + $0x10] sm:$0xff]
    %v2000 = vld [vmem:[%s1996 + $0x18] sm:$0xff]
    %v2001 = vld [vmem:[%s1996 + $0x20] sm:$0xff]
    %v2002 = vld [vmem:[%s1996 + $0x28] sm:$0xff]
    %v2003 = vld [vmem:[%s1996 + $0x30] sm:$0xff]
    %v2004 = vld [vmem:[%s1996 + $0x38] sm:$0xff]
    %s2005 = scalar_lea.vmem %s123, 1
    %v2006 = vld [vmem:[%s2005] sm:$0x1]
    %v2008 = vlaneseq
    %v2009 = vshrl.u32 %v2008, 7
    %v2010 = vsub.s32 0, %v2009
    %v2011 = vrot.slane %v2006, %v2010
    %2013 = vmatprep.subr.mxu0 0.0
    %2014 = vmatpush1.msra.mxu0 %v1997
    %2015 = vmatprep.subr.mxu0 0.0
    %2016 = vmatpush1.msra.mxu0 %v1998
    %2017 = vmatprep.subr.mxu0 0.0
    %2018 = vmatpush1.msra.mxu0 %v1999
    %2019 = vmatprep.subr.mxu0 0.0
    %2020 = vmatpush1.msra.mxu0 %v2000
    %2021 = vmatprep.subr.mxu0 0.0
    %2022 = vmatpush1.msra.mxu0 %v2001
    %2023 = vmatprep.subr.mxu0 0.0
    %2024 = vmatpush1.msra.mxu0 %v2002
    %2025 = vmatprep.subr.mxu0 0.0
    %2026 = vmatpush1.msra.mxu0 %v2003
    %2027 = vmatprep.subr.mxu0 0.0
    %2028 = vmatpush1.msra.mxu0 %v2004
    %2029 = vmatprep.subr.mxu0 0.0
    %2030 = vmatpush1.msra.mxu0 0.0
    %2031 = vmatprep.subr.mxu0 0.0
    %2032 = vmatpush1.msra.mxu0 0.0
    %2033 = vmatprep.subr.mxu0 0.0
    %2034 = vmatpush1.msra.mxu0 0.0
    %2035 = vmatprep.subr.mxu0 0.0
    %2036 = vmatpush1.msra.mxu0 0.0
    %2037 = vmatprep.subr.mxu0 0.0
    %2038 = vmatpush1.msra.mxu0 0.0
    %2039 = vmatprep.subr.mxu0 0.0
    %2040 = vmatpush1.msra.mxu0 0.0
    %2041 = vmatprep.subr.mxu0 0.0
    %2042 = vmatpush1.msra.mxu0 0.0
    %2043 = vmatprep.subr.mxu0 0.0
    %2044 = vmatpush1.msra.mxu0 0.0
    %2045 = vmatprep.subr.mxu0 0.0
    %2046 = vmatpush1.msra.mxu0 0.0
    %2047 = vmatprep.subr.mxu0 0.0
    %2048 = vmatpush1.msra.mxu0 0.0
    %2049 = vmatprep.subr.mxu0 0.0
    %2050 = vmatpush1.msra.mxu0 0.0
    %2051 = vmatprep.subr.mxu0 0.0
    %2052 = vmatpush1.msra.mxu0 0.0
    %2053 = vmatprep.subr.mxu0 0.0
    %2054 = vmatpush1.msra.mxu0 0.0
    %2055 = vmatprep.subr.mxu0 0.0
    %2056 = vmatpush1.msra.mxu0 0.0
    %2057 = vmatprep.subr.mxu0 0.0
    %2058 = vmatpush1.msra.mxu0 0.0
    %2059 = vmatprep.subr.mxu0 0.0
    %2060 = vmatpush1.msra.mxu0 0.0
    %2061 = vmatprep.subr.mxu0 0.0
    %2062 = vmatpush1.msra.mxu0 0.0
    %2063 = vmatprep.subr.mxu0 0.0
    %2064 = vmatpush1.msra.mxu0 0.0
    %2065 = vmatprep.subr.mxu0 0.0
    %2066 = vmatpush1.msra.mxu0 0.0
    %2067 = vmatprep.subr.mxu0 0.0
    %2068 = vmatpush1.msra.mxu0 0.0
    %2069 = vmatprep.subr.mxu0 0.0
    %2070 = vmatpush1.msra.mxu0 0.0
    %2071 = vmatprep.subr.mxu0 0.0
    %2072 = vmatpush1.msra.mxu0 0.0
    %2073 = vmatprep.subr.mxu0 0.0
    %2074 = vmatpush1.msra.mxu0 0.0
    %2075 = vmatprep.subr.mxu0 0.0
    %2076 = vmatpush1.msra.mxu0 0.0
    %2077 = vmatprep.mubr.f32.mxu0 0.0
    %2078 = vmatmul.mubr.f32.gmra.mrb[0].mxu0 %v1663
    %v2079 = vpop.f32.mrb[0].mxu0
    %v2080 = vadd.f32 %v2011, %v2079
    %v2081 = vpop.f32.mrb[0].mxu0
    %2082 = vdwg.mxu0
    %s2083 = scalar_lea.vmem [#allocation46], 1
    %v2084 = vld [vmem:[%s2083] sm:$0x1]
    %v2086 = vlaneseq
    %v2087 = vshrl.u32 %v2086, 7
    %v2088 = vsub.s32 0, %v2087
    %v2089 = vrot.slane %v2084, %v2088
    %v2091 = vadd.f32 %v2080, %v2089
    %vm2092 = vcmp.gt.f32.partialorder %v2091, 20.0
    %v2093 = vmin.f32 %v2091, 20.0
    %v2094 = vmul.f32 %v2093, 1.442695
    %v2095 = vpow.pop %v2094
    %v2096 = vadd.f32 %v2095, 1.0
    %v2097 = vlog2.pop %v2096
    %v2098 = vmul.f32 %v2097, 0.6931472
    %v2099 = vsel %vm2092, %v2091, %v2098
    %s2100 = scalar_lea.vmem [#allocation44], 1
    %v2101 = vld [vmem:[%s2100] sm:$0x1]
    %v2103 = vlaneseq
    %v2104 = vshrl.u32 %v2103, 7
    %v2105 = vsub.s32 0, %v2104
    %v2106 = vrot.slane %v2101, %v2105
    %v2108 = vmul.f32 %v1819, %v2106
    %s2109 = scalar_lea.vmem [#allocation40], 1
    %v2110 = vld [vmem:[%s2109] sm:$0x1]
    %v2112 = vlaneseq
    %v2113 = vshrl.u32 %v2112, 7
    %v2114 = vsub.s32 0, %v2113
    %v2115 = vrot.slane %v2110, %v2114
    %v2117 = vadd.f32 %v2108, %v2115
    %v2118 = vxor.u32 %v2117, 2147483648
    %v2119 = vmul.f32 %v2118, 1.442695
    %v2120 = vpow.pop %v2119
    %v2121 = vadd.f32 %v2120, 1.0
    %v2122 = vrcp.pop %v2121
    %v2123 = vmul.f32 1.0, %v2122
    %v2124 = vmul.f32 %v2117, %v2123
    %s2125 = scalar_lea.vmem [#allocation41], 1
    %v2126 = vld [vmem:[%s2125] sm:$0x1]
    %v2128 = vlaneseq
    %v2129 = vshrl.u32 %v2128, 7
    %v2130 = vsub.s32 0, %v2129
    %v2131 = vrot.slane %v2126, %v2130
    %v2133 = vmul.f32 %v1906, %v2131
    %s2134 = scalar_lea.vmem %s131, 1
    %v2135 = vld [vmem:[%s2134] sm:$0x1]
    %v2137 = vlaneseq
    %v2138 = vshrl.u32 %v2137, 7
    %v2139 = vsub.s32 0, %v2138
    %v2140 = vrot.slane %v2135, %v2139
    %v2142 = vadd.f32 %v2133, %v2140
    %v2143 = vxor.u32 %v2142, 2147483648
    %v2144 = vmul.f32 %v2143, 1.442695
    %v2145 = vpow.pop %v2144
    %v2146 = vadd.f32 %v2145, 1.0
    %v2147 = vrcp.pop %v2146
    %v2148 = vmul.f32 1.0, %v2147
    %v2149 = vmul.f32 %v2142, %v2148
    %s2150 = scalar_lea.vmem [#allocation43], 1
    %v2151 = vld [vmem:[%s2150] sm:$0x1]
    %v2153 = vlaneseq
    %v2154 = vshrl.u32 %v2153, 7
    %v2155 = vsub.s32 0, %v2154
    %v2156 = vrot.slane %v2151, %v2155
    %v2158 = vmul.f32 %v1993, %v2156
    %s2159 = scalar_lea.vmem %s133, 1
    %v2160 = vld [vmem:[%s2159] sm:$0x1]
    %v2162 = vlaneseq
    %v2163 = vshrl.u32 %v2162, 7
    %v2164 = vsub.s32 0, %v2163
    %v2165 = vrot.slane %v2160, %v2164
    %v2167 = vadd.f32 %v2158, %v2165
    %v2168 = vxor.u32 %v2167, 2147483648
    %v2169 = vmul.f32 %v2168, 1.442695
    %v2170 = vpow.pop %v2169
    %v2171 = vadd.f32 %v2170, 1.0
    %v2172 = vrcp.pop %v2171
    %v2173 = vmul.f32 1.0, %v2172
    %v2174 = vmul.f32 %v2167, %v2173
    %v2175 = vmul.f32 %v2149, %v2174
    %v2176 = vsel %vm1435, %v2175, 0.0
    %2177 = vadd.xlane.f32.xlu0 %v2176
    %v2178 = vpop.xlane.xlu0 %2177
    %v2179 = vmul.f32 %v2099, %v2178
    %s2180 = scalar_lea.vmem %s117, 1
    %v2181 = vld [vmem:[%s2180] sm:$0x1]
    %v2183 = vlaneseq
    %v2184 = vshrl.u32 %v2183, 7
    %v2185 = vsub.s32 0, %v2184
    %v2186 = vrot.slane %v2181, %v2185
    %v2188 = vadd.f32 %v2179, %v2186
    %v2190 = vsel %vm1448, %v2188, 0
    %2192 = vmatprep.subr.mxu0 0.0
    %2193 = vmatpush1.msra.mxu0 %v1454
    %2194 = vmatprep.subr.mxu0 0.0
    %2195 = vmatpush1.msra.mxu0 0.0
    %2196 = vmatprep.subr.mxu0 0.0
    %2197 = vmatpush1.msra.mxu0 0.0
    %2198 = vmatprep.subr.mxu0 0.0
    %2199 = vmatpush1.msra.mxu0 0.0
    %2200 = vmatprep.subr.mxu0 0.0
    %2201 = vmatpush1.msra.mxu0 0.0
    %2202 = vmatprep.subr.mxu0 0.0
    %2203 = vmatpush1.msra.mxu0 0.0
    %2204 = vmatprep.subr.mxu0 0.0
    %2205 = vmatpush1.msra.mxu0 0.0
    %2206 = vmatprep.subr.mxu0 0.0
    %2207 = vmatpush1.msra.mxu0 0.0
    %2208 = vmatprep.subr.mxu0 0.0
    %2209 = vmatpush1.msra.mxu0 0.0
    %2210 = vmatprep.subr.mxu0 0.0
    %2211 = vmatpush1.msra.mxu0 0.0
    %2212 = vmatprep.subr.mxu0 0.0
    %2213 = vmatpush1.msra.mxu0 0.0
    %2214 = vmatprep.subr.mxu0 0.0
    %2215 = vmatpush1.msra.mxu0 0.0
    %2216 = vmatprep.subr.mxu0 0.0
    %2217 = vmatpush1.msra.mxu0 0.0
    %2218 = vmatprep.subr.mxu0 0.0
    %2219 = vmatpush1.msra.mxu0 0.0
    %2220 = vmatprep.subr.mxu0 0.0
    %2221 = vmatpush1.msra.mxu0 0.0
    %2222 = vmatprep.subr.mxu0 0.0
    %2223 = vmatpush1.msra.mxu0 0.0
    %2224 = vmatprep.subr.mxu0 0.0
    %2225 = vmatpush1.msra.mxu0 0.0
    %2226 = vmatprep.subr.mxu0 0.0
    %2227 = vmatpush1.msra.mxu0 0.0
    %2228 = vmatprep.subr.mxu0 0.0
    %2229 = vmatpush1.msra.mxu0 0.0
    %2230 = vmatprep.subr.mxu0 0.0
    %2231 = vmatpush1.msra.mxu0 0.0
    %2232 = vmatprep.subr.mxu0 0.0
    %2233 = vmatpush1.msra.mxu0 0.0
    %2234 = vmatprep.subr.mxu0 0.0
    %2235 = vmatpush1.msra.mxu0 0.0
    %2236 = vmatprep.subr.mxu0 0.0
    %2237 = vmatpush1.msra.mxu0 0.0
    %2238 = vmatprep.subr.mxu0 0.0
    %2239 = vmatpush1.msra.mxu0 0.0
    %2240 = vmatprep.subr.mxu0 0.0
    %2241 = vmatpush1.msra.mxu0 0.0
    %2242 = vmatprep.subr.mxu0 0.0
    %2243 = vmatpush1.msra.mxu0 0.0
    %2244 = vmatprep.subr.mxu0 0.0
    %2245 = vmatpush1.msra.mxu0 0.0
    %2246 = vmatprep.subr.mxu0 0.0
    %2247 = vmatpush1.msra.mxu0 0.0
    %2248 = vmatprep.subr.mxu0 0.0
    %2249 = vmatpush1.msra.mxu0 0.0
    %2250 = vmatprep.subr.mxu0 0.0
    %2251 = vmatpush1.msra.mxu0 0.0
    %2252 = vmatprep.subr.mxu0 0.0
    %2253 = vmatpush1.msra.mxu0 0.0
    %2254 = vmatprep.subr.mxu0 0.0
    %2255 = vmatpush1.msra.mxu0 0.0
    %2256 = vmatprep.mubr.f32.mxu0 0.0
    %2257 = vmatmul.mubr.f32.gmra.mrb[0].mxu0 %v2190
    %v2258 = vpop.f32.mrb[0].mxu0
    %v2259 = vadd.f32 0.0, %v2258
    %v2260 = vpop.f32.mrb[0].mxu0
    %2261 = vdwg.mxu0
    %v2262 = vmul.f32 %v2259, %v2124
    %v2263 = vxor.u32 %v1732, 2147483648
    %v2264 = vmul.f32 %v2263, 1.442695
    %v2265 = vpow.pop %v2264
    %v2266 = vadd.f32 %v2265, 1.0
    %v2267 = vrcp.pop %v2266
    %v2268 = vmul.f32 1.0, %v2267
    %v2269 = vmul.f32 %v1732, %v2268
    %v2270 = vmul.f32 %v2262, %v2269
    %v2271 = vmul.f32 %v2270, %v2270
    %v2272 = vsel %vm1452, %v2271, 0.0
    %2273 = vadd.xlane.f32.xlu0 %v2272
    %v2274 = vpop.xlane.xlu0 %2273
    %v2275 = vmul.f32 %v2274, %v1539
    %v2276 = vadd.f32 %v2275, 1e-05
    %v2277 = vrsqrt.pop %v2276
    %v2278 = vmul.f32 %v2270, %v2277
    %s2279 = scalar_lea.vmem [#allocation49], 1
    %v2280 = vld [vmem:[%s2279] sm:$0x1]
    %v2282 = vlaneseq
    %v2283 = vshrl.u32 %v2282, 7
    %v2284 = vsub.s32 0, %v2283
    %v2285 = vrot.slane %v2280, %v2284
    %v2287 = vmul.f32 %v2278, %v2285
    %s2288 = scalar_lea.vmem %s155, 128
    %v2289 = vld [vmem:[%s2288] sm:$0xff]
    %v2290 = vld [vmem:[%s2288 + $0x8] sm:$0xff]
    %v2291 = vld [vmem:[%s2288 + $0x10] sm:$0xff]
    %v2292 = vld [vmem:[%s2288 + $0x18] sm:$0xff]
    %v2293 = vld [vmem:[%s2288 + $0x20] sm:$0xff]
    %v2294 = vld [vmem:[%s2288 + $0x28] sm:$0xff]
    %v2295 = vld [vmem:[%s2288 + $0x30] sm:$0xff]
    %v2296 = vld [vmem:[%s2288 + $0x38] sm:$0xff]
    %v2297 = vld [vmem:[%s2288 + $0x40] sm:$0xff]
    %v2298 = vld [vmem:[%s2288 + $0x48] sm:$0xff]
    %v2299 = vld [vmem:[%s2288 + $0x50] sm:$0xff]
    %v2300 = vld [vmem:[%s2288 + $0x58] sm:$0xff]
    %v2301 = vld [vmem:[%s2288 + $0x60] sm:$0xff]
    %v2302 = vld [vmem:[%s2288 + $0x68] sm:$0xff]
    %v2303 = vld [vmem:[%s2288 + $0x70] sm:$0xff]
    %v2304 = vld [vmem:[%s2288 + $0x78] sm:$0xff]
    %s2305 = scalar_lea.vmem %s125, 1
    %v2306 = vld [vmem:[%s2305] sm:$0x1]
    %v2308 = vlaneseq
    %v2309 = vshrl.u32 %v2308, 7
    %v2310 = vsub.s32 0, %v2309
    %v2311 = vrot.slane %v2306, %v2310
    %2313 = vmatprep.subr.mxu0 0.0
    %2314 = vmatpush1.msra.mxu0 %v2289
    %2315 = vmatprep.subr.mxu0 0.0
    %2316 = vmatpush1.msra.mxu0 %v2290
    %2317 = vmatprep.subr.mxu0 0.0
    %2318 = vmatpush1.msra.mxu0 %v2291
    %2319 = vmatprep.subr.mxu0 0.0
    %2320 = vmatpush1.msra.mxu0 %v2292
    %2321 = vmatprep.subr.mxu0 0.0
    %2322 = vmatpush1.msra.mxu0 %v2293
    %2323 = vmatprep.subr.mxu0 0.0
    %2324 = vmatpush1.msra.mxu0 %v2294
    %2325 = vmatprep.subr.mxu0 0.0
    %2326 = vmatpush1.msra.mxu0 %v2295
    %2327 = vmatprep.subr.mxu0 0.0
    %2328 = vmatpush1.msra.mxu0 %v2296
    %2329 = vmatprep.subr.mxu0 0.0
    %2330 = vmatpush1.msra.mxu0 %v2297
    %2331 = vmatprep.subr.mxu0 0.0
    %2332 = vmatpush1.msra.mxu0 %v2298
    %2333 = vmatprep.subr.mxu0 0.0
    %2334 = vmatpush1.msra.mxu0 %v2299
    %2335 = vmatprep.subr.mxu0 0.0
    %2336 = vmatpush1.msra.mxu0 %v2300
    %2337 = vmatprep.subr.mxu0 0.0
    %2338 = vmatpush1.msra.mxu0 %v2301
    %2339 = vmatprep.subr.mxu0 0.0
    %2340 = vmatpush1.msra.mxu0 %v2302
    %2341 = vmatprep.subr.mxu0 0.0
    %2342 = vmatpush1.msra.mxu0 %v2303
    %2343 = vmatprep.subr.mxu0 0.0
    %2344 = vmatpush1.msra.mxu0 %v2304
    %2345 = vmatprep.subr.mxu0 0.0
    %2346 = vmatpush1.msra.mxu0 0.0
    %2347 = vmatprep.subr.mxu0 0.0
    %2348 = vmatpush1.msra.mxu0 0.0
    %2349 = vmatprep.subr.mxu0 0.0
    %2350 = vmatpush1.msra.mxu0 0.0
    %2351 = vmatprep.subr.mxu0 0.0
    %2352 = vmatpush1.msra.mxu0 0.0
    %2353 = vmatprep.subr.mxu0 0.0
    %2354 = vmatpush1.msra.mxu0 0.0
    %2355 = vmatprep.subr.mxu0 0.0
    %2356 = vmatpush1.msra.mxu0 0.0
    %2357 = vmatprep.subr.mxu0 0.0
    %2358 = vmatpush1.msra.mxu0 0.0
    %2359 = vmatprep.subr.mxu0 0.0
    %2360 = vmatpush1.msra.mxu0 0.0
    %2361 = vmatprep.subr.mxu0 0.0
    %2362 = vmatpush1.msra.mxu0 0.0
    %2363 = vmatprep.subr.mxu0 0.0
    %2364 = vmatpush1.msra.mxu0 0.0
    %2365 = vmatprep.subr.mxu0 0.0
    %2366 = vmatpush1.msra.mxu0 0.0
    %2367 = vmatprep.subr.mxu0 0.0
    %2368 = vmatpush1.msra.mxu0 0.0
    %2369 = vmatprep.subr.mxu0 0.0
    %2370 = vmatpush1.msra.mxu0 0.0
    %2371 = vmatprep.subr.mxu0 0.0
    %2372 = vmatpush1.msra.mxu0 0.0
    %2373 = vmatprep.subr.mxu0 0.0
    %2374 = vmatpush1.msra.mxu0 0.0
    %2375 = vmatprep.subr.mxu0 0.0
    %2376 = vmatpush1.msra.mxu0 0.0
    %2377 = vmatprep.mubr.f32.mxu0 0.0
    %2378 = vmatmul.mubr.f32.gmra.mrb[0].mxu0 %v2287
    %v2379 = vpop.f32.mrb[0].mxu0
    %v2380 = vadd.f32 %v2311, %v2379
    %v2381 = vpop.f32.mrb[0].mxu0
    %2382 = vdwg.mxu0
    %v2383 = vld [vmem:[%s115] sm:$0xff]
    %v2384 = vld [vmem:[%s115 + $0x8] sm:$0xff]
    %v2385 = vld [vmem:[%s115 + $0x10] sm:$0xff]
    %v2386 = vld [vmem:[%s115 + $0x18] sm:$0xff]
    %v2387 = vld [vmem:[%s87] sm:$0x1]
    %v2389 = vlaneseq
    %v2390 = vshrl.u32 %v2389, 7
    %v2391 = vsub.s32 0, %v2390
    %v2392 = vrot.slane %v2387, %v2391
    %vm2394 = vcmask 261120
    %v2396 = vsel %vm2394, %v916, 0
    %2398 = vmatprep.subr.mxu0 0.0
    %2399 = vmatpush1.msra.mxu0 %v2383
    %2400 = vmatprep.subr.mxu0 0.0
    %2401 = vmatpush1.msra.mxu0 %v2384
    %2402 = vmatprep.subr.mxu0 0.0
    %2403 = vmatpush1.msra.mxu0 %v2385
    %2404 = vmatprep.subr.mxu0 0.0
    %2405 = vmatpush1.msra.mxu0 %v2386
    %2406 = vmatprep.subr.mxu0 0.0
    %2407 = vmatpush1.msra.mxu0 0.0
    %2408 = vmatprep.subr.mxu0 0.0
    %2409 = vmatpush1.msra.mxu0 0.0
    %2410 = vmatprep.subr.mxu0 0.0
    %2411 = vmatpush1.msra.mxu0 0.0
    %2412 = vmatprep.subr.mxu0 0.0
    %2413 = vmatpush1.msra.mxu0 0.0
    %2414 = vmatprep.subr.mxu0 0.0
    %2415 = vmatpush1.msra.mxu0 0.0
    %2416 = vmatprep.subr.mxu0 0.0
    %2417 = vmatpush1.msra.mxu0 0.0
    %2418 = vmatprep.subr.mxu0 0.0
    %2419 = vmatpush1.msra.mxu0 0.0
    %2420 = vmatprep.subr.mxu0 0.0
    %2421 = vmatpush1.msra.mxu0 0.0
    %2422 = vmatprep.subr.mxu0 0.0
    %2423 = vmatpush1.msra.mxu0 0.0
    %2424 = vmatprep.subr.mxu0 0.0
    %2425 = vmatpush1.msra.mxu0 0.0
    %2426 = vmatprep.subr.mxu0 0.0
    %2427 = vmatpush1.msra.mxu0 0.0
    %2428 = vmatprep.subr.mxu0 0.0
    %2429 = vmatpush1.msra.mxu0 0.0
    %2430 = vmatprep.subr.mxu0 0.0
    %2431 = vmatpush1.msra.mxu0 0.0
    %2432 = vmatprep.subr.mxu0 0.0
    %2433 = vmatpush1.msra.mxu0 0.0
    %2434 = vmatprep.subr.mxu0 0.0
    %2435 = vmatpush1.msra.mxu0 0.0
    %2436 = vmatprep.subr.mxu0 0.0
    %2437 = vmatpush1.msra.mxu0 0.0
    %2438 = vmatprep.subr.mxu0 0.0
    %2439 = vmatpush1.msra.mxu0 0.0
    %2440 = vmatprep.subr.mxu0 0.0
    %2441 = vmatpush1.msra.mxu0 0.0
    %2442 = vmatprep.subr.mxu0 0.0
    %2443 = vmatpush1.msra.mxu0 0.0
    %2444 = vmatprep.subr.mxu0 0.0
    %2445 = vmatpush1.msra.mxu0 0.0
    %2446 = vmatprep.subr.mxu0 0.0
    %2447 = vmatpush1.msra.mxu0 0.0
    %2448 = vmatprep.subr.mxu0 0.0
    %2449 = vmatpush1.msra.mxu0 0.0
    %2450 = vmatprep.subr.mxu0 0.0
    %2451 = vmatpush1.msra.mxu0 0.0
    %2452 = vmatprep.subr.mxu0 0.0
    %2453 = vmatpush1.msra.mxu0 0.0
    %2454 = vmatprep.subr.mxu0 0.0
    %2455 = vmatpush1.msra.mxu0 0.0
    %2456 = vmatprep.subr.mxu0 0.0
    %2457 = vmatpush1.msra.mxu0 0.0
    %2458 = vmatprep.subr.mxu0 0.0
    %2459 = vmatpush1.msra.mxu0 0.0
    %2460 = vmatprep.subr.mxu0 0.0
    %2461 = vmatpush1.msra.mxu0 0.0
    %2462 = vmatprep.mubr.f32.mxu0 0.0
    %2463 = vmatmul.mubr.f32.gmra.mrb[0].mxu0 %v2396
    %v2464 = vpop.f32.mrb[0].mxu0
    %v2465 = vadd.f32 %v2392, %v2464
    %v2466 = vpop.f32.mrb[0].mxu0
    %2467 = vdwg.mxu0
    %v2468 = vld [vmem:[%s113] sm:$0xff]
    %v2469 = vld [vmem:[%s113 + $0x8] sm:$0xff]
    %v2470 = vld [vmem:[%s113 + $0x10] sm:$0xff]
    %v2471 = vld [vmem:[%s113 + $0x18] sm:$0xff]
    %v2472 = vld [vmem:[%s85] sm:$0x1]
    %v2474 = vlaneseq
    %v2475 = vshrl.u32 %v2474, 7
    %v2476 = vsub.s32 0, %v2475
    %v2477 = vrot.slane %v2472, %v2476
    %2479 = vmatprep.subr.mxu0 0.0
    %2480 = vmatpush1.msra.mxu0 %v2468
    %2481 = vmatprep.subr.mxu0 0.0
    %2482 = vmatpush1.msra.mxu0 %v2469
    %2483 = vmatprep.subr.mxu0 0.0
    %2484 = vmatpush1.msra.mxu0 %v2470
    %2485 = vmatprep.subr.mxu0 0.0
    %2486 = vmatpush1.msra.mxu0 %v2471
    %2487 = vmatprep.subr.mxu0 0.0
    %2488 = vmatpush1.msra.mxu0 0.0
    %2489 = vmatprep.subr.mxu0 0.0
    %2490 = vmatpush1.msra.mxu0 0.0
    %2491 = vmatprep.subr.mxu0 0.0
    %2492 = vmatpush1.msra.mxu0 0.0
    %2493 = vmatprep.subr.mxu0 0.0
    %2494 = vmatpush1.msra.mxu0 0.0
    %2495 = vmatprep.subr.mxu0 0.0
    %2496 = vmatpush1.msra.mxu0 0.0
    %2497 = vmatprep.subr.mxu0 0.0
    %2498 = vmatpush1.msra.mxu0 0.0
    %2499 = vmatprep.subr.mxu0 0.0
    %2500 = vmatpush1.msra.mxu0 0.0
    %2501 = vmatprep.subr.mxu0 0.0
    %2502 = vmatpush1.msra.mxu0 0.0
    %2503 = vmatprep.subr.mxu0 0.0
    %2504 = vmatpush1.msra.mxu0 0.0
    %2505 = vmatprep.subr.mxu0 0.0
    %2506 = vmatpush1.msra.mxu0 0.0
    %2507 = vmatprep.subr.mxu0 0.0
    %2508 = vmatpush1.msra.mxu0 0.0
    %2509 = vmatprep.subr.mxu0 0.0
    %2510 = vmatpush1.msra.mxu0 0.0
    %2511 = vmatprep.subr.mxu0 0.0
    %2512 = vmatpush1.msra.mxu0 0.0
    %2513 = vmatprep.subr.mxu0 0.0
    %2514 = vmatpush1.msra.mxu0 0.0
    %2515 = vmatprep.subr.mxu0 0.0
    %2516 = vmatpush1.msra.mxu0 0.0
    %2517 = vmatprep.subr.mxu0 0.0
    %2518 = vmatpush1.msra.mxu0 0.0
    %2519 = vmatprep.subr.mxu0 0.0
    %2520 = vmatpush1.msra.mxu0 0.0
    %2521 = vmatprep.subr.mxu0 0.0
    %2522 = vmatpush1.msra.mxu0 0.0
    %2523 = vmatprep.subr.mxu0 0.0
    %2524 = vmatpush1.msra.mxu0 0.0
    %2525 = vmatprep.subr.mxu0 0.0
    %2526 = vmatpush1.msra.mxu0 0.0
    %2527 = vmatprep.subr.mxu0 0.0
    %2528 = vmatpush1.msra.mxu0 0.0
    %2529 = vmatprep.subr.mxu0 0.0
    %2530 = vmatpush1.msra.mxu0 0.0
    %2531 = vmatprep.subr.mxu0 0.0
    %2532 = vmatpush1.msra.mxu0 0.0
    %2533 = vmatprep.subr.mxu0 0.0
    %2534 = vmatpush1.msra.mxu0 0.0
    %2535 = vmatprep.subr.mxu0 0.0
    %2536 = vmatpush1.msra.mxu0 0.0
    %2537 = vmatprep.subr.mxu0 0.0
    %2538 = vmatpush1.msra.mxu0 0.0
    %2539 = vmatprep.subr.mxu0 0.0
    %2540 = vmatpush1.msra.mxu0 0.0
    %2541 = vmatprep.subr.mxu0 0.0
    %2542 = vmatpush1.msra.mxu0 0.0
    %2543 = vmatprep.mubr.f32.mxu0 0.0
    %2544 = vmatmul.mubr.f32.gmra.mrb[0].mxu0 %v2396
    %v2545 = vpop.f32.mrb[0].mxu0
    %v2546 = vadd.f32 %v2477, %v2545
    %v2547 = vpop.f32.mrb[0].mxu0
    %2548 = vdwg.mxu0
    %v2549 = vld [vmem:[%s105] sm:$0xff]
    %v2550 = vld [vmem:[%s105 + $0x8] sm:$0xff]
    %v2551 = vld [vmem:[%s105 + $0x10] sm:$0xff]
    %v2552 = vld [vmem:[%s105 + $0x18] sm:$0xff]
    %v2553 = vld [vmem:[%s77] sm:$0x1]
    %v2555 = vlaneseq
    %v2556 = vshrl.u32 %v2555, 7
    %v2557 = vsub.s32 0, %v2556
    %v2558 = vrot.slane %v2553, %v2557
    %2560 = vmatprep.subr.mxu0 0.0
    %2561 = vmatpush1.msra.mxu0 %v2549
    %2562 = vmatprep.subr.mxu0 0.0
    %2563 = vmatpush1.msra.mxu0 %v2550
    %2564 = vmatprep.subr.mxu0 0.0
    %2565 = vmatpush1.msra.mxu0 %v2551
    %2566 = vmatprep.subr.mxu0 0.0
    %2567 = vmatpush1.msra.mxu0 %v2552
    %2568 = vmatprep.subr.mxu0 0.0
    %2569 = vmatpush1.msra.mxu0 0.0
    %2570 = vmatprep.subr.mxu0 0.0
    %2571 = vmatpush1.msra.mxu0 0.0
    %2572 = vmatprep.subr.mxu0 0.0
    %2573 = vmatpush1.msra.mxu0 0.0
    %2574 = vmatprep.subr.mxu0 0.0
    %2575 = vmatpush1.msra.mxu0 0.0
    %2576 = vmatprep.subr.mxu0 0.0
    %2577 = vmatpush1.msra.mxu0 0.0
    %2578 = vmatprep.subr.mxu0 0.0
    %2579 = vmatpush1.msra.mxu0 0.0
    %2580 = vmatprep.subr.mxu0 0.0
    %2581 = vmatpush1.msra.mxu0 0.0
    %2582 = vmatprep.subr.mxu0 0.0
    %2583 = vmatpush1.msra.mxu0 0.0
    %2584 = vmatprep.subr.mxu0 0.0
    %2585 = vmatpush1.msra.mxu0 0.0
    %2586 = vmatprep.subr.mxu0 0.0
    %2587 = vmatpush1.msra.mxu0 0.0
    %2588 = vmatprep.subr.mxu0 0.0
    %2589 = vmatpush1.msra.mxu0 0.0
    %2590 = vmatprep.subr.mxu0 0.0
    %2591 = vmatpush1.msra.mxu0 0.0
    %2592 = vmatprep.subr.mxu0 0.0
    %2593 = vmatpush1.msra.mxu0 0.0
    %2594 = vmatprep.subr.mxu0 0.0
    %2595 = vmatpush1.msra.mxu0 0.0
    %2596 = vmatprep.subr.mxu0 0.0
    %2597 = vmatpush1.msra.mxu0 0.0
    %2598 = vmatprep.subr.mxu0 0.0
    %2599 = vmatpush1.msra.mxu0 0.0
    %2600 = vmatprep.subr.mxu0 0.0
    %2601 = vmatpush1.msra.mxu0 0.0
    %2602 = vmatprep.subr.mxu0 0.0
    %2603 = vmatpush1.msra.mxu0 0.0
    %2604 = vmatprep.subr.mxu0 0.0
    %2605 = vmatpush1.msra.mxu0 0.0
    %2606 = vmatprep.subr.mxu0 0.0
    %2607 = vmatpush1.msra.mxu0 0.0
    %2608 = vmatprep.subr.mxu0 0.0
    %2609 = vmatpush1.msra.mxu0 0.0
    %2610 = vmatprep.subr.mxu0 0.0
    %2611 = vmatpush1.msra.mxu0 0.0
    %2612 = vmatprep.subr.mxu0 0.0
    %2613 = vmatpush1.msra.mxu0 0.0
    %2614 = vmatprep.subr.mxu0 0.0
    %2615 = vmatpush1.msra.mxu0 0.0
    %2616 = vmatprep.subr.mxu0 0.0
    %2617 = vmatpush1.msra.mxu0 0.0
    %2618 = vmatprep.subr.mxu0 0.0
    %2619 = vmatpush1.msra.mxu0 0.0
    %2620 = vmatprep.subr.mxu0 0.0
    %2621 = vmatpush1.msra.mxu0 0.0
    %2622 = vmatprep.subr.mxu0 0.0
    %2623 = vmatpush1.msra.mxu0 0.0
    %2624 = vmatprep.mubr.f32.mxu0 0.0
    %2625 = vmatmul.mubr.f32.gmra.mrb[0].mxu0 %v2396
    %v2626 = vpop.f32.mrb[0].mxu0
    %v2627 = vadd.f32 %v2558, %v2626
    %v2628 = vpop.f32.mrb[0].mxu0
    %2629 = vdwg.mxu0
    %v2630 = vld [vmem:[%s107] sm:$0xff]
    %v2631 = vld [vmem:[%s107 + $0x8] sm:$0xff]
    %v2632 = vld [vmem:[%s107 + $0x10] sm:$0xff]
    %v2633 = vld [vmem:[%s107 + $0x18] sm:$0xff]
    %v2634 = vld [vmem:[%s79] sm:$0x1]
    %v2636 = vlaneseq
    %v2637 = vshrl.u32 %v2636, 7
    %v2638 = vsub.s32 0, %v2637
    %v2639 = vrot.slane %v2634, %v2638
    %2641 = vmatprep.subr.mxu0 0.0
    %2642 = vmatpush1.msra.mxu0 %v2630
    %2643 = vmatprep.subr.mxu0 0.0
    %2644 = vmatpush1.msra.mxu0 %v2631
    %2645 = vmatprep.subr.mxu0 0.0
    %2646 = vmatpush1.msra.mxu0 %v2632
    %2647 = vmatprep.subr.mxu0 0.0
    %2648 = vmatpush1.msra.mxu0 %v2633
    %2649 = vmatprep.subr.mxu0 0.0
    %2650 = vmatpush1.msra.mxu0 0.0
    %2651 = vmatprep.subr.mxu0 0.0
    %2652 = vmatpush1.msra.mxu0 0.0
    %2653 = vmatprep.subr.mxu0 0.0
    %2654 = vmatpush1.msra.mxu0 0.0
    %2655 = vmatprep.subr.mxu0 0.0
    %2656 = vmatpush1.msra.mxu0 0.0
    %2657 = vmatprep.subr.mxu0 0.0
    %2658 = vmatpush1.msra.mxu0 0.0
    %2659 = vmatprep.subr.mxu0 0.0
    %2660 = vmatpush1.msra.mxu0 0.0
    %2661 = vmatprep.subr.mxu0 0.0
    %2662 = vmatpush1.msra.mxu0 0.0
    %2663 = vmatprep.subr.mxu0 0.0
    %2664 = vmatpush1.msra.mxu0 0.0
    %2665 = vmatprep.subr.mxu0 0.0
    %2666 = vmatpush1.msra.mxu0 0.0
    %2667 = vmatprep.subr.mxu0 0.0
    %2668 = vmatpush1.msra.mxu0 0.0
    %2669 = vmatprep.subr.mxu0 0.0
    %2670 = vmatpush1.msra.mxu0 0.0
    %2671 = vmatprep.subr.mxu0 0.0
    %2672 = vmatpush1.msra.mxu0 0.0
    %2673 = vmatprep.subr.mxu0 0.0
    %2674 = vmatpush1.msra.mxu0 0.0
    %2675 = vmatprep.subr.mxu0 0.0
    %2676 = vmatpush1.msra.mxu0 0.0
    %2677 = vmatprep.subr.mxu0 0.0
    %2678 = vmatpush1.msra.mxu0 0.0
    %2679 = vmatprep.subr.mxu0 0.0
    %2680 = vmatpush1.msra.mxu0 0.0
    %2681 = vmatprep.subr.mxu0 0.0
    %2682 = vmatpush1.msra.mxu0 0.0
    %2683 = vmatprep.subr.mxu0 0.0
    %2684 = vmatpush1.msra.mxu0 0.0
    %2685 = vmatprep.subr.mxu0 0.0
    %2686 = vmatpush1.msra.mxu0 0.0
    %2687 = vmatprep.subr.mxu0 0.0
    %2688 = vmatpush1.msra.mxu0 0.0
    %2689 = vmatprep.subr.mxu0 0.0
    %2690 = vmatpush1.msra.mxu0 0.0
    %2691 = vmatprep.subr.mxu0 0.0
    %2692 = vmatpush1.msra.mxu0 0.0
    %2693 = vmatprep.subr.mxu0 0.0
    %2694 = vmatpush1.msra.mxu0 0.0
    %2695 = vmatprep.subr.mxu0 0.0
    %2696 = vmatpush1.msra.mxu0 0.0
    %2697 = vmatprep.subr.mxu0 0.0
    %2698 = vmatpush1.msra.mxu0 0.0
    %2699 = vmatprep.subr.mxu0 0.0
    %2700 = vmatpush1.msra.mxu0 0.0
    %2701 = vmatprep.subr.mxu0 0.0
    %2702 = vmatpush1.msra.mxu0 0.0
    %2703 = vmatprep.subr.mxu0 0.0
    %2704 = vmatpush1.msra.mxu0 0.0
    %2705 = vmatprep.mubr.f32.mxu0 0.0
    %2706 = vmatmul.mubr.f32.gmra.mrb[0].mxu0 %v2396
    %v2707 = vpop.f32.mrb[0].mxu0
    %v2708 = vadd.f32 %v2639, %v2707
    %v2709 = vpop.f32.mrb[0].mxu0
    %2710 = vdwg.mxu0
    %v2711 = vld [vmem:[%s109] sm:$0xff]
    %v2712 = vld [vmem:[%s109 + $0x8] sm:$0xff]
    %v2713 = vld [vmem:[%s109 + $0x10] sm:$0xff]
    %v2714 = vld [vmem:[%s109 + $0x18] sm:$0xff]
    %v2715 = vld [vmem:[%s81] sm:$0x1]
    %v2717 = vlaneseq
    %v2718 = vshrl.u32 %v2717, 7
    %v2719 = vsub.s32 0, %v2718
    %v2720 = vrot.slane %v2715, %v2719
    %2722 = vmatprep.subr.mxu0 0.0
    %2723 = vmatpush1.msra.mxu0 %v2711
    %2724 = vmatprep.subr.mxu0 0.0
    %2725 = vmatpush1.msra.mxu0 %v2712
    %2726 = vmatprep.subr.mxu0 0.0
    %2727 = vmatpush1.msra.mxu0 %v2713
    %2728 = vmatprep.subr.mxu0 0.0
    %2729 = vmatpush1.msra.mxu0 %v2714
    %2730 = vmatprep.subr.mxu0 0.0
    %2731 = vmatpush1.msra.mxu0 0.0
    %2732 = vmatprep.subr.mxu0 0.0
    %2733 = vmatpush1.msra.mxu0 0.0
    %2734 = vmatprep.subr.mxu0 0.0
    %2735 = vmatpush1.msra.mxu0 0.0
    %2736 = vmatprep.subr.mxu0 0.0
    %2737 = vmatpush1.msra.mxu0 0.0
    %2738 = vmatprep.subr.mxu0 0.0
    %2739 = vmatpush1.msra.mxu0 0.0
    %2740 = vmatprep.subr.mxu0 0.0
    %2741 = vmatpush1.msra.mxu0 0.0
    %2742 = vmatprep.subr.mxu0 0.0
    %2743 = vmatpush1.msra.mxu0 0.0
    %2744 = vmatprep.subr.mxu0 0.0
    %2745 = vmatpush1.msra.mxu0 0.0
    %2746 = vmatprep.subr.mxu0 0.0
    %2747 = vmatpush1.msra.mxu0 0.0
    %2748 = vmatprep.subr.mxu0 0.0
    %2749 = vmatpush1.msra.mxu0 0.0
    %2750 = vmatprep.subr.mxu0 0.0
    %2751 = vmatpush1.msra.mxu0 0.0
    %2752 = vmatprep.subr.mxu0 0.0
    %2753 = vmatpush1.msra.mxu0 0.0
    %2754 = vmatprep.subr.mxu0 0.0
    %2755 = vmatpush1.msra.mxu0 0.0
    %2756 = vmatprep.subr.mxu0 0.0
    %2757 = vmatpush1.msra.mxu0 0.0
    %2758 = vmatprep.subr.mxu0 0.0
    %2759 = vmatpush1.msra.mxu0 0.0
    %2760 = vmatprep.subr.mxu0 0.0
    %2761 = vmatpush1.msra.mxu0 0.0
    %2762 = vmatprep.subr.mxu0 0.0
    %2763 = vmatpush1.msra.mxu0 0.0
    %2764 = vmatprep.subr.mxu0 0.0
    %2765 = vmatpush1.msra.mxu0 0.0
    %2766 = vmatprep.subr.mxu0 0.0
    %2767 = vmatpush1.msra.mxu0 0.0
    %2768 = vmatprep.subr.mxu0 0.0
    %2769 = vmatpush1.msra.mxu0 0.0
    %2770 = vmatprep.subr.mxu0 0.0
    %2771 = vmatpush1.msra.mxu0 0.0
    %2772 = vmatprep.subr.mxu0 0.0
    %2773 = vmatpush1.msra.mxu0 0.0
    %2774 = vmatprep.subr.mxu0 0.0
    %2775 = vmatpush1.msra.mxu0 0.0
    %2776 = vmatprep.subr.mxu0 0.0
    %2777 = vmatpush1.msra.mxu0 0.0
    %2778 = vmatprep.subr.mxu0 0.0
    %2779 = vmatpush1.msra.mxu0 0.0
    %2780 = vmatprep.subr.mxu0 0.0
    %2781 = vmatpush1.msra.mxu0 0.0
    %2782 = vmatprep.subr.mxu0 0.0
    %2783 = vmatpush1.msra.mxu0 0.0
    %2784 = vmatprep.subr.mxu0 0.0
    %2785 = vmatpush1.msra.mxu0 0.0
    %2786 = vmatprep.mubr.f32.mxu0 0.0
    %2787 = vmatmul.mubr.f32.gmra.mrb[0].mxu0 %v2396
    %v2788 = vpop.f32.mrb[0].mxu0
    %v2789 = vadd.f32 %v2720, %v2788
    %v2790 = vpop.f32.mrb[0].mxu0
    %2791 = vdwg.mxu0
    %v2792 = vld [vmem:[%s101] sm:$0x1]
    %v2794 = vlaneseq
    %v2795 = vshrl.u32 %v2794, 7
    %v2796 = vsub.s32 0, %v2795
    %v2797 = vrot.slane %v2792, %v2796
    %v2799 = vadd.f32 %v2789, %v2797
    %vm2800 = vcmp.gt.f32.partialorder %v2799, 20.0
    %v2801 = vmin.f32 %v2799, 20.0
    %v2802 = vmul.f32 %v2801, 1.442695
    %v2803 = vpow.pop %v2802
    %v2804 = vadd.f32 %v2803, 1.0
    %v2805 = vlog2.pop %v2804
    %v2806 = vmul.f32 %v2805, 0.6931472
    %v2807 = vsel %vm2800, %v2799, %v2806
    %v2808 = vld [vmem:[%s99] sm:$0x1]
    %v2810 = vlaneseq
    %v2811 = vshrl.u32 %v2810, 7
    %v2812 = vsub.s32 0, %v2811
    %v2813 = vrot.slane %v2808, %v2812
    %v2815 = vmul.f32 %v2546, %v2813
    %v2816 = vld [vmem:[%s93] sm:$0x1]
    %v2818 = vlaneseq
    %v2819 = vshrl.u32 %v2818, 7
    %v2820 = vsub.s32 0, %v2819
    %v2821 = vrot.slane %v2816, %v2820
    %v2823 = vadd.f32 %v2815, %v2821
    %v2824 = vxor.u32 %v2823, 2147483648
    %v2825 = vmul.f32 %v2824, 1.442695
    %v2826 = vpow.pop %v2825
    %v2827 = vadd.f32 %v2826, 1.0
    %v2828 = vrcp.pop %v2827
    %v2829 = vmul.f32 1.0, %v2828
    %v2830 = vmul.f32 %v2823, %v2829
    %v2831 = vld [vmem:[%s95] sm:$0x1]
    %v2833 = vlaneseq
    %v2834 = vshrl.u32 %v2833, 7
    %v2835 = vsub.s32 0, %v2834
    %v2836 = vrot.slane %v2831, %v2835
    %v2838 = vmul.f32 %v2627, %v2836
    %v2839 = vld [vmem:[%s89] sm:$0x1]
    %v2841 = vlaneseq
    %v2842 = vshrl.u32 %v2841, 7
    %v2843 = vsub.s32 0, %v2842
    %v2844 = vrot.slane %v2839, %v2843
    %v2846 = vadd.f32 %v2838, %v2844
    %v2847 = vxor.u32 %v2846, 2147483648
    %v2848 = vmul.f32 %v2847, 1.442695
    %v2849 = vpow.pop %v2848
    %v2850 = vadd.f32 %v2849, 1.0
    %v2851 = vrcp.pop %v2850
    %v2852 = vmul.f32 1.0, %v2851
    %v2853 = vmul.f32 %v2846, %v2852
    %v2854 = vld [vmem:[%s97] sm:$0x1]
    %v2856 = vlaneseq
    %v2857 = vshrl.u32 %v2856, 7
    %v2858 = vsub.s32 0, %v2857
    %v2859 = vrot.slane %v2854, %v2858
    %v2861 = vmul.f32 %v2708, %v2859
    %v2862 = vld [vmem:[%s91] sm:$0x1]
    %v2864 = vlaneseq
    %v2865 = vshrl.u32 %v2864, 7
    %v2866 = vsub.s32 0, %v2865
    %v2867 = vrot.slane %v2862, %v2866
    %v2869 = vadd.f32 %v2861, %v2867
    %v2870 = vxor.u32 %v2869, 2147483648
    %v2871 = vmul.f32 %v2870, 1.442695
    %v2872 = vpow.pop %v2871
    %v2873 = vadd.f32 %v2872, 1.0
    %v2874 = vrcp.pop %v2873
    %v2875 = vmul.f32 1.0, %v2874
    %v2876 = vmul.f32 %v2869, %v2875
    %v2877 = vmul.f32 %v2853, %v2876
    %vm2878 = vcmask 58368
    %v2879 = vsel %vm2878, %v2877, 0.0
    %2880 = vadd.xlane.f32.xlu0 %v2879
    %v2881 = vpop.xlane.xlu0 %2880
    %v2882 = vmul.f32 %v2807, %v2881
    %v2883 = vld [vmem:[%s75] sm:$0x1]
    %v2885 = vlaneseq
    %v2886 = vshrl.u32 %v2885, 7
    %v2887 = vsub.s32 0, %v2886
    %v2888 = vrot.slane %v2883, %v2887
    %v2890 = vadd.f32 %v2882, %v2888
    %2892 = vset.pattern.permute.xlu0 0
    %2893 = vperm.xlu0 %2892, %v2890
    %v2894 = vpop.permute.xlu0 %2893
    %v2896 = vmul.f32 %v2894, %v2830
    %v2897 = vxor.u32 %v2465, 2147483648
    %v2898 = vmul.f32 %v2897, 1.442695
    %v2899 = vpow.pop %v2898
    %v2900 = vadd.f32 %v2899, 1.0
    %v2901 = vrcp.pop %v2900
    %v2902 = vmul.f32 1.0, %v2901
    %v2903 = vmul.f32 %v2465, %v2902
    %v2904 = vmul.f32 %v2896, %v2903
    %v2905 = vmul.f32 %v2904, %v2904
    %vm2906 = vcmask 517120
    %v2907 = vsel %vm2906, %v2905, 0.0
    %2908 = vadd.xlane.f32.xlu0 %v2907
    %v2909 = vpop.xlane.xlu0 %2908
    %v2910 = vrcp.pop 64.0
    %v2911 = vmul.f32 %v2909, %v2910
    %v2912 = vadd.f32 %v2911, 1e-05
    %v2913 = vrsqrt.pop %v2912
    %v2914 = vmul.f32 %v2904, %v2913
    %v2915 = vld [vmem:[%s103] sm:$0x1]
    %v2917 = vlaneseq
    %v2918 = vshrl.u32 %v2917, 7
    %v2919 = vsub.s32 0, %v2918
    %v2920 = vrot.slane %v2915, %v2919
    %v2922 = vmul.f32 %v2914, %v2920
    %v2923 = vld [vmem:[%s111] sm:$0xff]
    %v2924 = vld [vmem:[%s111 + $0x8] sm:$0xff]
    %v2925 = vld [vmem:[%s111 + $0x10] sm:$0xff]
    %v2926 = vld [vmem:[%s111 + $0x18] sm:$0xff]
    %v2927 = vld [vmem:[%s111 + $0x20] sm:$0xff]
    %v2928 = vld [vmem:[%s111 + $0x28] sm:$0xff]
    %v2929 = vld [vmem:[%s111 + $0x30] sm:$0xff]
    %v2930 = vld [vmem:[%s111 + $0x38] sm:$0xff]
    %v2931 = vld [vmem:[%s83] sm:$0x1]
    %v2933 = vlaneseq
    %v2934 = vshrl.u32 %v2933, 7
    %v2935 = vsub.s32 0, %v2934
    %v2936 = vrot.slane %v2931, %v2935
    %v2939 = vsel %vm935, %v2922, 0
    %2941 = vmatprep.subr.mxu0 0.0
    %2942 = vmatpush1.msra.mxu0 %v2923
    %2943 = vmatprep.subr.mxu0 0.0
    %2944 = vmatpush1.msra.mxu0 %v2924
    %2945 = vmatprep.subr.mxu0 0.0
    %2946 = vmatpush1.msra.mxu0 %v2925
    %2947 = vmatprep.subr.mxu0 0.0
    %2948 = vmatpush1.msra.mxu0 %v2926
    %2949 = vmatprep.subr.mxu0 0.0
    %2950 = vmatpush1.msra.mxu0 %v2927
    %2951 = vmatprep.subr.mxu0 0.0
    %2952 = vmatpush1.msra.mxu0 %v2928
    %2953 = vmatprep.subr.mxu0 0.0
    %2954 = vmatpush1.msra.mxu0 %v2929
    %2955 = vmatprep.subr.mxu0 0.0
    %2956 = vmatpush1.msra.mxu0 %v2930
    %2957 = vmatprep.subr.mxu0 0.0
    %2958 = vmatpush1.msra.mxu0 0.0
    %2959 = vmatprep.subr.mxu0 0.0
    %2960 = vmatpush1.msra.mxu0 0.0
    %2961 = vmatprep.subr.mxu0 0.0
    %2962 = vmatpush1.msra.mxu0 0.0
    %2963 = vmatprep.subr.mxu0 0.0
    %2964 = vmatpush1.msra.mxu0 0.0
    %2965 = vmatprep.subr.mxu0 0.0
    %2966 = vmatpush1.msra.mxu0 0.0
    %2967 = vmatprep.subr.mxu0 0.0
    %2968 = vmatpush1.msra.mxu0 0.0
    %2969 = vmatprep.subr.mxu0 0.0
    %2970 = vmatpush1.msra.mxu0 0.0
    %2971 = vmatprep.subr.mxu0 0.0
    %2972 = vmatpush1.msra.mxu0 0.0
    %2973 = vmatprep.subr.mxu0 0.0
    %2974 = vmatpush1.msra.mxu0 0.0
    %2975 = vmatprep.subr.mxu0 0.0
    %2976 = vmatpush1.msra.mxu0 0.0
    %2977 = vmatprep.subr.mxu0 0.0
    %2978 = vmatpush1.msra.mxu0 0.0
    %2979 = vmatprep.subr.mxu0 0.0
    %2980 = vmatpush1.msra.mxu0 0.0
    %2981 = vmatprep.subr.mxu0 0.0
    %2982 = vmatpush1.msra.mxu0 0.0
    %2983 = vmatprep.subr.mxu0 0.0
    %2984 = vmatpush1.msra.mxu0 0.0
    %2985 = vmatprep.subr.mxu0 0.0
    %2986 = vmatpush1.msra.mxu0 0.0
    %2987 = vmatprep.subr.mxu0 0.0
    %2988 = vmatpush1.msra.mxu0 0.0
    %2989 = vmatprep.subr.mxu0 0.0
    %2990 = vmatpush1.msra.mxu0 0.0
    %2991 = vmatprep.subr.mxu0 0.0
    %2992 = vmatpush1.msra.mxu0 0.0
    %2993 = vmatprep.subr.mxu0 0.0
    %2994 = vmatpush1.msra.mxu0 0.0
    %2995 = vmatprep.subr.mxu0 0.0
    %2996 = vmatpush1.msra.mxu0 0.0
    %2997 = vmatprep.subr.mxu0 0.0
    %2998 = vmatpush1.msra.mxu0 0.0
    %2999 = vmatprep.subr.mxu0 0.0
    %3000 = vmatpush1.msra.mxu0 0.0
    %3001 = vmatprep.subr.mxu0 0.0
    %3002 = vmatpush1.msra.mxu0 0.0
    %3003 = vmatprep.subr.mxu0 0.0
    %3004 = vmatpush1.msra.mxu0 0.0
    %3005 = vmatprep.mubr.f32.mxu0 0.0
    %3006 = vmatmul.mubr.f32.gmra.mrb[0].mxu0 %v2939
    %v3007 = vpop.f32.mrb[0].mxu0
    %v3008 = vadd.f32 %v2936, %v3007
    %v3009 = vpop.f32.mrb[0].mxu0
    %3010 = vdwg.mxu0
    %s3011 = scalar_lea.vmem %s115, 32
    %v3012 = vld [vmem:[%s3011] sm:$0xff]
    %v3013 = vld [vmem:[%s3011 + $0x8] sm:$0xff]
    %v3014 = vld [vmem:[%s3011 + $0x10] sm:$0xff]
    %v3015 = vld [vmem:[%s3011 + $0x18] sm:$0xff]
    %s3016 = scalar_lea.vmem %s87, 1
    %v3017 = vld [vmem:[%s3016] sm:$0x1]
    %v3019 = vlaneseq
    %v3020 = vshrl.u32 %v3019, 7
    %v3021 = vsub.s32 0, %v3020
    %v3022 = vrot.slane %v3017, %v3021
    %v3025 = vsel %vm2394, %v3008, 0
    %3027 = vmatprep.subr.mxu0 0.0
    %3028 = vmatpush1.msra.mxu0 %v3012
    %3029 = vmatprep.subr.mxu0 0.0
    %3030 = vmatpush1.msra.mxu0 %v3013
    %3031 = vmatprep.subr.mxu0 0.0
    %3032 = vmatpush1.msra.mxu0 %v3014
    %3033 = vmatprep.subr.mxu0 0.0
    %3034 = vmatpush1.msra.mxu0 %v3015
    %3035 = vmatprep.subr.mxu0 0.0
    %3036 = vmatpush1.msra.mxu0 0.0
    %3037 = vmatprep.subr.mxu0 0.0
    %3038 = vmatpush1.msra.mxu0 0.0
    %3039 = vmatprep.subr.mxu0 0.0
    %3040 = vmatpush1.msra.mxu0 0.0
    %3041 = vmatprep.subr.mxu0 0.0
    %3042 = vmatpush1.msra.mxu0 0.0
    %3043 = vmatprep.subr.mxu0 0.0
    %3044 = vmatpush1.msra.mxu0 0.0
    %3045 = vmatprep.subr.mxu0 0.0
    %3046 = vmatpush1.msra.mxu0 0.0
    %3047 = vmatprep.subr.mxu0 0.0
    %3048 = vmatpush1.msra.mxu0 0.0
    %3049 = vmatprep.subr.mxu0 0.0
    %3050 = vmatpush1.msra.mxu0 0.0
    %3051 = vmatprep.subr.mxu0 0.0
    %3052 = vmatpush1.msra.mxu0 0.0
    %3053 = vmatprep.subr.mxu0 0.0
    %3054 = vmatpush1.msra.mxu0 0.0
    %3055 = vmatprep.subr.mxu0 0.0
    %3056 = vmatpush1.msra.mxu0 0.0
    %3057 = vmatprep.subr.mxu0 0.0
    %3058 = vmatpush1.msra.mxu0 0.0
    %3059 = vmatprep.subr.mxu0 0.0
    %3060 = vmatpush1.msra.mxu0 0.0
    %3061 = vmatprep.subr.mxu0 0.0
    %3062 = vmatpush1.msra.mxu0 0.0
    %3063 = vmatprep.subr.mxu0 0.0
    %3064 = vmatpush1.msra.mxu0 0.0
    %3065 = vmatprep.subr.mxu0 0.0
    %3066 = vmatpush1.msra.mxu0 0.0
    %3067 = vmatprep.subr.mxu0 0.0
    %3068 = vmatpush1.msra.mxu0 0.0
    %3069 = vmatprep.subr.mxu0 0.0
    %3070 = vmatpush1.msra.mxu0 0.0
    %3071 = vmatprep.subr.mxu0 0.0
    %3072 = vmatpush1.msra.mxu0 0.0
    %3073 = vmatprep.subr.mxu0 0.0
    %3074 = vmatpush1.msra.mxu0 0.0
    %3075 = vmatprep.subr.mxu0 0.0
    %3076 = vmatpush1.msra.mxu0 0.0
    %3077 = vmatprep.subr.mxu0 0.0
    %3078 = vmatpush1.msra.mxu0 0.0
    %3079 = vmatprep.subr.mxu0 0.0
    %3080 = vmatpush1.msra.mxu0 0.0
    %3081 = vmatprep.subr.mxu0 0.0
    %3082 = vmatpush1.msra.mxu0 0.0
    %3083 = vmatprep.subr.mxu0 0.0
    %3084 = vmatpush1.msra.mxu0 0.0
    %3085 = vmatprep.subr.mxu0 0.0
    %3086 = vmatpush1.msra.mxu0 0.0
    %3087 = vmatprep.subr.mxu0 0.0
    %3088 = vmatpush1.msra.mxu0 0.0
    %3089 = vmatprep.subr.mxu0 0.0
    %3090 = vmatpush1.msra.mxu0 0.0
    %3091 = vmatprep.mubr.f32.mxu0 0.0
    %3092 = vmatmul.mubr.f32.gmra.mrb[0].mxu0 %v3025
    %v3093 = vpop.f32.mrb[0].mxu0
    %v3094 = vadd.f32 %v3022, %v3093
    %v3095 = vpop.f32.mrb[0].mxu0
    %3096 = vdwg.mxu0
    %s3097 = scalar_lea.vmem %s113, 32
    %v3098 = vld [vmem:[%s3097] sm:$0xff]
    %v3099 = vld [vmem:[%s3097 + $0x8] sm:$0xff]
    %v3100 = vld [vmem:[%s3097 + $0x10] sm:$0xff]
    %v3101 = vld [vmem:[%s3097 + $0x18] sm:$0xff]
    %s3102 = scalar_lea.vmem %s85, 1
    %v3103 = vld [vmem:[%s3102] sm:$0x1]
    %v3105 = vlaneseq
    %v3106 = vshrl.u32 %v3105, 7
    %v3107 = vsub.s32 0, %v3106
    %v3108 = vrot.slane %v3103, %v3107
    %3110 = vmatprep.subr.mxu0 0.0
    %3111 = vmatpush1.msra.mxu0 %v3098
    %3112 = vmatprep.subr.mxu0 0.0
    %3113 = vmatpush1.msra.mxu0 %v3099
    %3114 = vmatprep.subr.mxu0 0.0
    %3115 = vmatpush1.msra.mxu0 %v3100
    %3116 = vmatprep.subr.mxu0 0.0
    %3117 = vmatpush1.msra.mxu0 %v3101
    %3118 = vmatprep.subr.mxu0 0.0
    %3119 = vmatpush1.msra.mxu0 0.0
    %3120 = vmatprep.subr.mxu0 0.0
    %3121 = vmatpush1.msra.mxu0 0.0
    %3122 = vmatprep.subr.mxu0 0.0
    %3123 = vmatpush1.msra.mxu0 0.0
    %3124 = vmatprep.subr.mxu0 0.0
    %3125 = vmatpush1.msra.mxu0 0.0
    %3126 = vmatprep.subr.mxu0 0.0
    %3127 = vmatpush1.msra.mxu0 0.0
    %3128 = vmatprep.subr.mxu0 0.0
    %3129 = vmatpush1.msra.mxu0 0.0
    %3130 = vmatprep.subr.mxu0 0.0
    %3131 = vmatpush1.msra.mxu0 0.0
    %3132 = vmatprep.subr.mxu0 0.0
    %3133 = vmatpush1.msra.mxu0 0.0
    %3134 = vmatprep.subr.mxu0 0.0
    %3135 = vmatpush1.msra.mxu0 0.0
    %3136 = vmatprep.subr.mxu0 0.0
    %3137 = vmatpush1.msra.mxu0 0.0
    %3138 = vmatprep.subr.mxu0 0.0
    %3139 = vmatpush1.msra.mxu0 0.0
    %3140 = vmatprep.subr.mxu0 0.0
    %3141 = vmatpush1.msra.mxu0 0.0
    %3142 = vmatprep.subr.mxu0 0.0
    %3143 = vmatpush1.msra.mxu0 0.0
    %3144 = vmatprep.subr.mxu0 0.0
    %3145 = vmatpush1.msra.mxu0 0.0
    %3146 = vmatprep.subr.mxu0 0.0
    %3147 = vmatpush1.msra.mxu0 0.0
    %3148 = vmatprep.subr.mxu0 0.0
    %3149 = vmatpush1.msra.mxu0 0.0
    %3150 = vmatprep.subr.mxu0 0.0
    %3151 = vmatpush1.msra.mxu0 0.0
    %3152 = vmatprep.subr.mxu0 0.0
    %3153 = vmatpush1.msra.mxu0 0.0
    %3154 = vmatprep.subr.mxu0 0.0
    %3155 = vmatpush1.msra.mxu0 0.0
    %3156 = vmatprep.subr.mxu0 0.0
    %3157 = vmatpush1.msra.mxu0 0.0
    %3158 = vmatprep.subr.mxu0 0.0
    %3159 = vmatpush1.msra.mxu0 0.0
    %3160 = vmatprep.subr.mxu0 0.0
    %3161 = vmatpush1.msra.mxu0 0.0
    %3162 = vmatprep.subr.mxu0 0.0
    %3163 = vmatpush1.msra.mxu0 0.0
    %3164 = vmatprep.subr.mxu0 0.0
    %3165 = vmatpush1.msra.mxu0 0.0
    %3166 = vmatprep.subr.mxu0 0.0
    %3167 = vmatpush1.msra.mxu0 0.0
    %3168 = vmatprep.subr.mxu0 0.0
    %3169 = vmatpush1.msra.mxu0 0.0
    %3170 = vmatprep.subr.mxu0 0.0
    %3171 = vmatpush1.msra.mxu0 0.0
    %3172 = vmatprep.subr.mxu0 0.0
    %3173 = vmatpush1.msra.mxu0 0.0
    %3174 = vmatprep.mubr.f32.mxu0 0.0
    %3175 = vmatmul.mubr.f32.gmra.mrb[0].mxu0 %v3025
    %v3176 = vpop.f32.mrb[0].mxu0
    %v3177 = vadd.f32 %v3108, %v3176
    %v3178 = vpop.f32.mrb[0].mxu0
    %3179 = vdwg.mxu0
    %s3180 = scalar_lea.vmem %s105, 32
    %v3181 = vld [vmem:[%s3180] sm:$0xff]
    %v3182 = vld [vmem:[%s3180 + $0x8] sm:$0xff]
    %v3183 = vld [vmem:[%s3180 + $0x10] sm:$0xff]
    %v3184 = vld [vmem:[%s3180 + $0x18] sm:$0xff]
    %s3185 = scalar_lea.vmem %s77, 1
    %v3186 = vld [vmem:[%s3185] sm:$0x1]
    %v3188 = vlaneseq
    %v3189 = vshrl.u32 %v3188, 7
    %v3190 = vsub.s32 0, %v3189
    %v3191 = vrot.slane %v3186, %v3190
    %3193 = vmatprep.subr.mxu0 0.0
    %3194 = vmatpush1.msra.mxu0 %v3181
    %3195 = vmatprep.subr.mxu0 0.0
    %3196 = vmatpush1.msra.mxu0 %v3182
    %3197 = vmatprep.subr.mxu0 0.0
    %3198 = vmatpush1.msra.mxu0 %v3183
    %3199 = vmatprep.subr.mxu0 0.0
    %3200 = vmatpush1.msra.mxu0 %v3184
    %3201 = vmatprep.subr.mxu0 0.0
    %3202 = vmatpush1.msra.mxu0 0.0
    %3203 = vmatprep.subr.mxu0 0.0
    %3204 = vmatpush1.msra.mxu0 0.0
    %3205 = vmatprep.subr.mxu0 0.0
    %3206 = vmatpush1.msra.mxu0 0.0
    %3207 = vmatprep.subr.mxu0 0.0
    %3208 = vmatpush1.msra.mxu0 0.0
    %3209 = vmatprep.subr.mxu0 0.0
    %3210 = vmatpush1.msra.mxu0 0.0
    %3211 = vmatprep.subr.mxu0 0.0
    %3212 = vmatpush1.msra.mxu0 0.0
    %3213 = vmatprep.subr.mxu0 0.0
    %3214 = vmatpush1.msra.mxu0 0.0
    %3215 = vmatprep.subr.mxu0 0.0
    %3216 = vmatpush1.msra.mxu0 0.0
    %3217 = vmatprep.subr.mxu0 0.0
    %3218 = vmatpush1.msra.mxu0 0.0
    %3219 = vmatprep.subr.mxu0 0.0
    %3220 = vmatpush1.msra.mxu0 0.0
    %3221 = vmatprep.subr.mxu0 0.0
    %3222 = vmatpush1.msra.mxu0 0.0
    %3223 = vmatprep.subr.mxu0 0.0
    %3224 = vmatpush1.msra.mxu0 0.0
    %3225 = vmatprep.subr.mxu0 0.0
    %3226 = vmatpush1.msra.mxu0 0.0
    %3227 = vmatprep.subr.mxu0 0.0
    %3228 = vmatpush1.msra.mxu0 0.0
    %3229 = vmatprep.subr.mxu0 0.0
    %3230 = vmatpush1.msra.mxu0 0.0
    %3231 = vmatprep.subr.mxu0 0.0
    %3232 = vmatpush1.msra.mxu0 0.0
    %3233 = vmatprep.subr.mxu0 0.0
    %3234 = vmatpush1.msra.mxu0 0.0
    %3235 = vmatprep.subr.mxu0 0.0
    %3236 = vmatpush1.msra.mxu0 0.0
    %3237 = vmatprep.subr.mxu0 0.0
    %3238 = vmatpush1.msra.mxu0 0.0
    %3239 = vmatprep.subr.mxu0 0.0
    %3240 = vmatpush1.msra.mxu0 0.0
    %3241 = vmatprep.subr.mxu0 0.0
    %3242 = vmatpush1.msra.mxu0 0.0
    %3243 = vmatprep.subr.mxu0 0.0
    %3244 = vmatpush1.msra.mxu0 0.0
    %3245 = vmatprep.subr.mxu0 0.0
    %3246 = vmatpush1.msra.mxu0 0.0
    %3247 = vmatprep.subr.mxu0 0.0
    %3248 = vmatpush1.msra.mxu0 0.0
    %3249 = vmatprep.subr.mxu0 0.0
    %3250 = vmatpush1.msra.mxu0 0.0
    %3251 = vmatprep.subr.mxu0 0.0
    %3252 = vmatpush1.msra.mxu0 0.0
    %3253 = vmatprep.subr.mxu0 0.0
    %3254 = vmatpush1.msra.mxu0 0.0
    %3255 = vmatprep.subr.mxu0 0.0
    %3256 = vmatpush1.msra.mxu0 0.0
    %3257 = vmatprep.mubr.f32.mxu0 0.0
    %3258 = vmatmul.mubr.f32.gmra.mrb[0].mxu0 %v3025
    %v3259 = vpop.f32.mrb[0].mxu0
    %v3260 = vadd.f32 %v3191, %v3259
    %v3261 = vpop.f32.mrb[0].mxu0
    %3262 = vdwg.mxu0
    %s3263 = scalar_lea.vmem %s107, 32
    %v3264 = vld [vmem:[%s3263] sm:$0xff]
    %v3265 = vld [vmem:[%s3263 + $0x8] sm:$0xff]
    %v3266 = vld [vmem:[%s3263 + $0x10] sm:$0xff]
    %v3267 = vld [vmem:[%s3263 + $0x18] sm:$0xff]
    %s3268 = scalar_lea.vmem %s79, 1
    %v3269 = vld [vmem:[%s3268] sm:$0x1]
    %v3271 = vlaneseq
    %v3272 = vshrl.u32 %v3271, 7
    %v3273 = vsub.s32 0, %v3272
    %v3274 = vrot.slane %v3269, %v3273
    %3276 = vmatprep.subr.mxu0 0.0
    %3277 = vmatpush1.msra.mxu0 %v3264
    %3278 = vmatprep.subr.mxu0 0.0
    %3279 = vmatpush1.msra.mxu0 %v3265
    %3280 = vmatprep.subr.mxu0 0.0
    %3281 = vmatpush1.msra.mxu0 %v3266
    %3282 = vmatprep.subr.mxu0 0.0
    %3283 = vmatpush1.msra.mxu0 %v3267
    %3284 = vmatprep.subr.mxu0 0.0
    %3285 = vmatpush1.msra.mxu0 0.0
    %3286 = vmatprep.subr.mxu0 0.0
    %3287 = vmatpush1.msra.mxu0 0.0
    %3288 = vmatprep.subr.mxu0 0.0
    %3289 = vmatpush1.msra.mxu0 0.0
    %3290 = vmatprep.subr.mxu0 0.0
    %3291 = vmatpush1.msra.mxu0 0.0
    %3292 = vmatprep.subr.mxu0 0.0
    %3293 = vmatpush1.msra.mxu0 0.0
    %3294 = vmatprep.subr.mxu0 0.0
    %3295 = vmatpush1.msra.mxu0 0.0
    %3296 = vmatprep.subr.mxu0 0.0
    %3297 = vmatpush1.msra.mxu0 0.0
    %3298 = vmatprep.subr.mxu0 0.0
    %3299 = vmatpush1.msra.mxu0 0.0
    %3300 = vmatprep.subr.mxu0 0.0
    %3301 = vmatpush1.msra.mxu0 0.0
    %3302 = vmatprep.subr.mxu0 0.0
    %3303 = vmatpush1.msra.mxu0 0.0
    %3304 = vmatprep.subr.mxu0 0.0
    %3305 = vmatpush1.msra.mxu0 0.0
    %3306 = vmatprep.subr.mxu0 0.0
    %3307 = vmatpush1.msra.mxu0 0.0
    %3308 = vmatprep.subr.mxu0 0.0
    %3309 = vmatpush1.msra.mxu0 0.0
    %3310 = vmatprep.subr.mxu0 0.0
    %3311 = vmatpush1.msra.mxu0 0.0
    %3312 = vmatprep.subr.mxu0 0.0
    %3313 = vmatpush1.msra.mxu0 0.0
    %3314 = vmatprep.subr.mxu0 0.0
    %3315 = vmatpush1.msra.mxu0 0.0
    %3316 = vmatprep.subr.mxu0 0.0
    %3317 = vmatpush1.msra.mxu0 0.0
    %3318 = vmatprep.subr.mxu0 0.0
    %3319 = vmatpush1.msra.mxu0 0.0
    %3320 = vmatprep.subr.mxu0 0.0
    %3321 = vmatpush1.msra.mxu0 0.0
    %3322 = vmatprep.subr.mxu0 0.0
    %3323 = vmatpush1.msra.mxu0 0.0
    %3324 = vmatprep.subr.mxu0 0.0
    %3325 = vmatpush1.msra.mxu0 0.0
    %3326 = vmatprep.subr.mxu0 0.0
    %3327 = vmatpush1.msra.mxu0 0.0
    %3328 = vmatprep.subr.mxu0 0.0
    %3329 = vmatpush1.msra.mxu0 0.0
    %3330 = vmatprep.subr.mxu0 0.0
    %3331 = vmatpush1.msra.mxu0 0.0
    %3332 = vmatprep.subr.mxu0 0.0
    %3333 = vmatpush1.msra.mxu0 0.0
    %3334 = vmatprep.subr.mxu0 0.0
    %3335 = vmatpush1.msra.mxu0 0.0
    %3336 = vmatprep.subr.mxu0 0.0
    %3337 = vmatpush1.msra.mxu0 0.0
    %3338 = vmatprep.subr.mxu0 0.0
    %3339 = vmatpush1.msra.mxu0 0.0
    %3340 = vmatprep.mubr.f32.mxu0 0.0
    %3341 = vmatmul.mubr.f32.gmra.mrb[0].mxu0 %v3025
    %v3342 = vpop.f32.mrb[0].mxu0
    %v3343 = vadd.f32 %v3274, %v3342
    %v3344 = vpop.f32.mrb[0].mxu0
    %3345 = vdwg.mxu0
    %s3346 = scalar_lea.vmem %s109, 32
    %v3347 = vld [vmem:[%s3346] sm:$0xff]
    %v3348 = vld [vmem:[%s3346 + $0x8] sm:$0xff]
    %v3349 = vld [vmem:[%s3346 + $0x10] sm:$0xff]
    %v3350 = vld [vmem:[%s3346 + $0x18] sm:$0xff]
    %s3351 = scalar_lea.vmem %s81, 1
    %v3352 = vld [vmem:[%s3351] sm:$0x1]
    %v3354 = vlaneseq
    %v3355 = vshrl.u32 %v3354, 7
    %v3356 = vsub.s32 0, %v3355
    %v3357 = vrot.slane %v3352, %v3356
    %3359 = vmatprep.subr.mxu0 0.0
    %3360 = vmatpush1.msra.mxu0 %v3347
    %3361 = vmatprep.subr.mxu0 0.0
    %3362 = vmatpush1.msra.mxu0 %v3348
    %3363 = vmatprep.subr.mxu0 0.0
    %3364 = vmatpush1.msra.mxu0 %v3349
    %3365 = vmatprep.subr.mxu0 0.0
    %3366 = vmatpush1.msra.mxu0 %v3350
    %3367 = vmatprep.subr.mxu0 0.0
    %3368 = vmatpush1.msra.mxu0 0.0
    %3369 = vmatprep.subr.mxu0 0.0
    %3370 = vmatpush1.msra.mxu0 0.0
    %3371 = vmatprep.subr.mxu0 0.0
    %3372 = vmatpush1.msra.mxu0 0.0
    %3373 = vmatprep.subr.mxu0 0.0
    %3374 = vmatpush1.msra.mxu0 0.0
    %3375 = vmatprep.subr.mxu0 0.0
    %3376 = vmatpush1.msra.mxu0 0.0
    %3377 = vmatprep.subr.mxu0 0.0
    %3378 = vmatpush1.msra.mxu0 0.0
    %3379 = vmatprep.subr.mxu0 0.0
    %3380 = vmatpush1.msra.mxu0 0.0
    %3381 = vmatprep.subr.mxu0 0.0
    %3382 = vmatpush1.msra.mxu0 0.0
    %3383 = vmatprep.subr.mxu0 0.0
    %3384 = vmatpush1.msra.mxu0 0.0
    %3385 = vmatprep.subr.mxu0 0.0
    %3386 = vmatpush1.msra.mxu0 0.0
    %3387 = vmatprep.subr.mxu0 0.0
    %3388 = vmatpush1.msra.mxu0 0.0
    %3389 = vmatprep.subr.mxu0 0.0
    %3390 = vmatpush1.msra.mxu0 0.0
    %3391 = vmatprep.subr.mxu0 0.0
    %3392 = vmatpush1.msra.mxu0 0.0
    %3393 = vmatprep.subr.mxu0 0.0
    %3394 = vmatpush1.msra.mxu0 0.0
    %3395 = vmatprep.subr.mxu0 0.0
    %3396 = vmatpush1.msra.mxu0 0.0
    %3397 = vmatprep.subr.mxu0 0.0
    %3398 = vmatpush1.msra.mxu0 0.0
    %3399 = vmatprep.subr.mxu0 0.0
    %3400 = vmatpush1.msra.mxu0 0.0
    %3401 = vmatprep.subr.mxu0 0.0
    %3402 = vmatpush1.msra.mxu0 0.0
    %3403 = vmatprep.subr.mxu0 0.0
    %3404 = vmatpush1.msra.mxu0 0.0
    %3405 = vmatprep.subr.mxu0 0.0
    %3406 = vmatpush1.msra.mxu0 0.0
    %3407 = vmatprep.subr.mxu0 0.0
    %3408 = vmatpush1.msra.mxu0 0.0
    %3409 = vmatprep.subr.mxu0 0.0
    %3410 = vmatpush1.msra.mxu0 0.0
    %3411 = vmatprep.subr.mxu0 0.0
    %3412 = vmatpush1.msra.mxu0 0.0
    %3413 = vmatprep.subr.mxu0 0.0
    %3414 = vmatpush1.msra.mxu0 0.0
    %3415 = vmatprep.subr.mxu0 0.0
    %3416 = vmatpush1.msra.mxu0 0.0
    %3417 = vmatprep.subr.mxu0 0.0
    %3418 = vmatpush1.msra.mxu0 0.0
    %3419 = vmatprep.subr.mxu0 0.0
    %3420 = vmatpush1.msra.mxu0 0.0
    %3421 = vmatprep.subr.mxu0 0.0
    %3422 = vmatpush1.msra.mxu0 0.0
    %3423 = vmatprep.mubr.f32.mxu0 0.0
    %3424 = vmatmul.mubr.f32.gmra.mrb[0].mxu0 %v3025
    %v3425 = vpop.f32.mrb[0].mxu0
    %v3426 = vadd.f32 %v3357, %v3425
    %v3427 = vpop.f32.mrb[0].mxu0
    %3428 = vdwg.mxu0
    %s3429 = scalar_lea.vmem %s101, 1
    %v3430 = vld [vmem:[%s3429] sm:$0x1]
    %v3432 = vlaneseq
    %v3433 = vshrl.u32 %v3432, 7
    %v3434 = vsub.s32 0, %v3433
    %v3435 = vrot.slane %v3430, %v3434
    %v3437 = vadd.f32 %v3426, %v3435
    %vm3438 = vcmp.gt.f32.partialorder %v3437, 20.0
    %v3439 = vmin.f32 %v3437, 20.0
    %v3440 = vmul.f32 %v3439, 1.442695
    %v3441 = vpow.pop %v3440
    %v3442 = vadd.f32 %v3441, 1.0
    %v3443 = vlog2.pop %v3442
    %v3444 = vmul.f32 %v3443, 0.6931472
    %v3445 = vsel %vm3438, %v3437, %v3444
    %s3446 = scalar_lea.vmem %s99, 1
    %v3447 = vld [vmem:[%s3446] sm:$0x1]
    %v3449 = vlaneseq
    %v3450 = vshrl.u32 %v3449, 7
    %v3451 = vsub.s32 0, %v3450
    %v3452 = vrot.slane %v3447, %v3451
    %v3454 = vmul.f32 %v3177, %v3452
    %s3455 = scalar_lea.vmem %s93, 1
    %v3456 = vld [vmem:[%s3455] sm:$0x1]
    %v3458 = vlaneseq
    %v3459 = vshrl.u32 %v3458, 7
    %v3460 = vsub.s32 0, %v3459
    %v3461 = vrot.slane %v3456, %v3460
    %v3463 = vadd.f32 %v3454, %v3461
    %v3464 = vxor.u32 %v3463, 2147483648
    %v3465 = vmul.f32 %v3464, 1.442695
    %v3466 = vpow.pop %v3465
    %v3467 = vadd.f32 %v3466, 1.0
    %v3468 = vrcp.pop %v3467
    %v3469 = vmul.f32 1.0, %v3468
    %v3470 = vmul.f32 %v3463, %v3469
    %s3471 = scalar_lea.vmem %s95, 1
    %v3472 = vld [vmem:[%s3471] sm:$0x1]
    %v3474 = vlaneseq
    %v3475 = vshrl.u32 %v3474, 7
    %v3476 = vsub.s32 0, %v3475
    %v3477 = vrot.slane %v3472, %v3476
    %v3479 = vmul.f32 %v3260, %v3477
    %s3480 = scalar_lea.vmem %s89, 1
    %v3481 = vld [vmem:[%s3480] sm:$0x1]
    %v3483 = vlaneseq
    %v3484 = vshrl.u32 %v3483, 7
    %v3485 = vsub.s32 0, %v3484
    %v3486 = vrot.slane %v3481, %v3485
    %v3488 = vadd.f32 %v3479, %v3486
    %v3489 = vxor.u32 %v3488, 2147483648
    %v3490 = vmul.f32 %v3489, 1.442695
    %v3491 = vpow.pop %v3490
    %v3492 = vadd.f32 %v3491, 1.0
    %v3493 = vrcp.pop %v3492
    %v3494 = vmul.f32 1.0, %v3493
    %v3495 = vmul.f32 %v3488, %v3494
    %s3496 = scalar_lea.vmem %s97, 1
    %v3497 = vld [vmem:[%s3496] sm:$0x1]
    %v3499 = vlaneseq
    %v3500 = vshrl.u32 %v3499, 7
    %v3501 = vsub.s32 0, %v3500
    %v3502 = vrot.slane %v3497, %v3501
    %v3504 = vmul.f32 %v3343, %v3502
    %s3505 = scalar_lea.vmem %s91, 1
    %v3506 = vld [vmem:[%s3505] sm:$0x1]
    %v3508 = vlaneseq
    %v3509 = vshrl.u32 %v3508, 7
    %v3510 = vsub.s32 0, %v3509
    %v3511 = vrot.slane %v3506, %v3510
    %v3513 = vadd.f32 %v3504, %v3511
    %v3514 = vxor.u32 %v3513, 2147483648
    %v3515 = vmul.f32 %v3514, 1.442695
    %v3516 = vpow.pop %v3515
    %v3517 = vadd.f32 %v3516, 1.0
    %v3518 = vrcp.pop %v3517
    %v3519 = vmul.f32 1.0, %v3518
    %v3520 = vmul.f32 %v3513, %v3519
    %v3521 = vmul.f32 %v3495, %v3520
    %v3522 = vsel %vm2878, %v3521, 0.0
    %3523 = vadd.xlane.f32.xlu0 %v3522
    %v3524 = vpop.xlane.xlu0 %3523
    %v3525 = vmul.f32 %v3445, %v3524
    %s3526 = scalar_lea.vmem %s75, 1
    %v3527 = vld [vmem:[%s3526] sm:$0x1]
    %v3529 = vlaneseq
    %v3530 = vshrl.u32 %v3529, 7
    %v3531 = vsub.s32 0, %v3530
    %v3532 = vrot.slane %v3527, %v3531
    %v3534 = vadd.f32 %v3525, %v3532
    %3536 = vset.pattern.permute.xlu0 0
    %3537 = vperm.xlu0 %3536, %v3534
    %v3538 = vpop.permute.xlu0 %3537
    %v3540 = vmul.f32 %v3538, %v3470
    %v3541 = vxor.u32 %v3094, 2147483648
    %v3542 = vmul.f32 %v3541, 1.442695
    %v3543 = vpow.pop %v3542
    %v3544 = vadd.f32 %v3543, 1.0
    %v3545 = vrcp.pop %v3544
    %v3546 = vmul.f32 1.0, %v3545
    %v3547 = vmul.f32 %v3094, %v3546
    %v3548 = vmul.f32 %v3540, %v3547
    %v3549 = vmul.f32 %v3548, %v3548
    %v3550 = vsel %vm2906, %v3549, 0.0
    %3551 = vadd.xlane.f32.xlu0 %v3550
    %v3552 = vpop.xlane.xlu0 %3551
    %v3553 = vmul.f32 %v3552, %v2910
    %v3554 = vadd.f32 %v3553, 1e-05
    %v3555 = vrsqrt.pop %v3554
    %v3556 = vmul.f32 %v3548, %v3555
    %s3557 = scalar_lea.vmem %s103, 1
    %v3558 = vld [vmem:[%s3557] sm:$0x1]
    %v3560 = vlaneseq
    %v3561 = vshrl.u32 %v3560, 7
    %v3562 = vsub.s32 0, %v3561
    %v3563 = vrot.slane %v3558, %v3562
    %v3565 = vmul.f32 %v3556, %v3563
    %s3566 = scalar_lea.vmem %s111, 64
    %v3567 = vld [vmem:[%s3566] sm:$0xff]
    %v3568 = vld [vmem:[%s3566 + $0x8] sm:$0xff]
    %v3569 = vld [vmem:[%s3566 + $0x10] sm:$0xff]
    %v3570 = vld [vmem:[%s3566 + $0x18] sm:$0xff]
    %v3571 = vld [vmem:[%s3566 + $0x20] sm:$0xff]
    %v3572 = vld [vmem:[%s3566 + $0x28] sm:$0xff]
    %v3573 = vld [vmem:[%s3566 + $0x30] sm:$0xff]
    %v3574 = vld [vmem:[%s3566 + $0x38] sm:$0xff]
    %s3575 = scalar_lea.vmem %s83, 1
    %v3576 = vld [vmem:[%s3575] sm:$0x1]
    %v3578 = vlaneseq
    %v3579 = vshrl.u32 %v3578, 7
    %v3580 = vsub.s32 0, %v3579
    %v3581 = vrot.slane %v3576, %v3580
    %v3584 = vsel %vm935, %v3565, 0
    %3586 = vmatprep.subr.mxu0 0.0
    %3587 = vmatpush1.msra.mxu0 %v3567
    %3588 = vmatprep.subr.mxu0 0.0
    %3589 = vmatpush1.msra.mxu0 %v3568
    %3590 = vmatprep.subr.mxu0 0.0
    %3591 = vmatpush1.msra.mxu0 %v3569
    %3592 = vmatprep.subr.mxu0 0.0
    %3593 = vmatpush1.msra.mxu0 %v3570
    %3594 = vmatprep.subr.mxu0 0.0
    %3595 = vmatpush1.msra.mxu0 %v3571
    %3596 = vmatprep.subr.mxu0 0.0
    %3597 = vmatpush1.msra.mxu0 %v3572
    %3598 = vmatprep.subr.mxu0 0.0
    %3599 = vmatpush1.msra.mxu0 %v3573
    %3600 = vmatprep.subr.mxu0 0.0
    %3601 = vmatpush1.msra.mxu0 %v3574
    %3602 = vmatprep.subr.mxu0 0.0
    %3603 = vmatpush1.msra.mxu0 0.0
    %3604 = vmatprep.subr.mxu0 0.0
    %3605 = vmatpush1.msra.mxu0 0.0
    %3606 = vmatprep.subr.mxu0 0.0
    %3607 = vmatpush1.msra.mxu0 0.0
    %3608 = vmatprep.subr.mxu0 0.0
    %3609 = vmatpush1.msra.mxu0 0.0
    %3610 = vmatprep.subr.mxu0 0.0
    %3611 = vmatpush1.msra.mxu0 0.0
    %3612 = vmatprep.subr.mxu0 0.0
    %3613 = vmatpush1.msra.mxu0 0.0
    %3614 = vmatprep.subr.mxu0 0.0
    %3615 = vmatpush1.msra.mxu0 0.0
    %3616 = vmatprep.subr.mxu0 0.0
    %3617 = vmatpush1.msra.mxu0 0.0
    %3618 = vmatprep.subr.mxu0 0.0
    %3619 = vmatpush1.msra.mxu0 0.0
    %3620 = vmatprep.subr.mxu0 0.0
    %3621 = vmatpush1.msra.mxu0 0.0
    %3622 = vmatprep.subr.mxu0 0.0
    %3623 = vmatpush1.msra.mxu0 0.0
    %3624 = vmatprep.subr.mxu0 0.0
    %3625 = vmatpush1.msra.mxu0 0.0
    %3626 = vmatprep.subr.mxu0 0.0
    %3627 = vmatpush1.msra.mxu0 0.0
    %3628 = vmatprep.subr.mxu0 0.0
    %3629 = vmatpush1.msra.mxu0 0.0
    %3630 = vmatprep.subr.mxu0 0.0
    %3631 = vmatpush1.msra.mxu0 0.0
    %3632 = vmatprep.subr.mxu0 0.0
    %3633 = vmatpush1.msra.mxu0 0.0
    %3634 = vmatprep.subr.mxu0 0.0
    %3635 = vmatpush1.msra.mxu0 0.0
    %3636 = vmatprep.subr.mxu0 0.0
    %3637 = vmatpush1.msra.mxu0 0.0
    %3638 = vmatprep.subr.mxu0 0.0
    %3639 = vmatpush1.msra.mxu0 0.0
    %3640 = vmatprep.subr.mxu0 0.0
    %3641 = vmatpush1.msra.mxu0 0.0
    %3642 = vmatprep.subr.mxu0 0.0
    %3643 = vmatpush1.msra.mxu0 0.0
    %3644 = vmatprep.subr.mxu0 0.0
    %3645 = vmatpush1.msra.mxu0 0.0
    %3646 = vmatprep.subr.mxu0 0.0
    %3647 = vmatpush1.msra.mxu0 0.0
    %3648 = vmatprep.subr.mxu0 0.0
    %3649 = vmatpush1.msra.mxu0 0.0
    %3650 = vmatprep.mubr.f32.mxu0 0.0
    %3651 = vmatmul.mubr.f32.gmra.mrb[0].mxu0 %v3584
    %v3652 = vpop.f32.mrb[0].mxu0
    %v3653 = vadd.f32 %v3581, %v3652
    %v3654 = vpop.f32.mrb[0].mxu0
    %3655 = vdwg.mxu0
    %v3656 = vld [vmem:[%s57] sm:$0xff]
    %v3657 = vld [vmem:[%s57 + $0x8] sm:$0xff]
    %v3658 = vld [vmem:[%s57 + $0x10] sm:$0xff]
    %v3659 = vld [vmem:[%s57 + $0x18] sm:$0xff]
    %v3660 = vld [vmem:[#allocation29] sm:$0x1]
    %v3662 = vlaneseq
    %v3663 = vshrl.u32 %v3662, 7
    %v3664 = vsub.s32 0, %v3663
    %v3665 = vrot.slane %v3660, %v3664
    %v3668 = vsel %vm2394, %v3653, 0
    %3670 = vmatprep.subr.mxu0 0.0
    %3671 = vmatpush1.msra.mxu0 %v3656
    %3672 = vmatprep.subr.mxu0 0.0
    %3673 = vmatpush1.msra.mxu0 %v3657
    %3674 = vmatprep.subr.mxu0 0.0
    %3675 = vmatpush1.msra.mxu0 %v3658
    %3676 = vmatprep.subr.mxu0 0.0
    %3677 = vmatpush1.msra.mxu0 %v3659
    %3678 = vmatprep.subr.mxu0 0.0
    %3679 = vmatpush1.msra.mxu0 0.0
    %3680 = vmatprep.subr.mxu0 0.0
    %3681 = vmatpush1.msra.mxu0 0.0
    %3682 = vmatprep.subr.mxu0 0.0
    %3683 = vmatpush1.msra.mxu0 0.0
    %3684 = vmatprep.subr.mxu0 0.0
    %3685 = vmatpush1.msra.mxu0 0.0
    %3686 = vmatprep.subr.mxu0 0.0
    %3687 = vmatpush1.msra.mxu0 0.0
    %3688 = vmatprep.subr.mxu0 0.0
    %3689 = vmatpush1.msra.mxu0 0.0
    %3690 = vmatprep.subr.mxu0 0.0
    %3691 = vmatpush1.msra.mxu0 0.0
    %3692 = vmatprep.subr.mxu0 0.0
    %3693 = vmatpush1.msra.mxu0 0.0
    %3694 = vmatprep.subr.mxu0 0.0
    %3695 = vmatpush1.msra.mxu0 0.0
    %3696 = vmatprep.subr.mxu0 0.0
    %3697 = vmatpush1.msra.mxu0 0.0
    %3698 = vmatprep.subr.mxu0 0.0
    %3699 = vmatpush1.msra.mxu0 0.0
    %3700 = vmatprep.subr.mxu0 0.0
    %3701 = vmatpush1.msra.mxu0 0.0
    %3702 = vmatprep.subr.mxu0 0.0
    %3703 = vmatpush1.msra.mxu0 0.0
    %3704 = vmatprep.subr.mxu0 0.0
    %3705 = vmatpush1.msra.mxu0 0.0
    %3706 = vmatprep.subr.mxu0 0.0
    %3707 = vmatpush1.msra.mxu0 0.0
    %3708 = vmatprep.subr.mxu0 0.0
    %3709 = vmatpush1.msra.mxu0 0.0
    %3710 = vmatprep.subr.mxu0 0.0
    %3711 = vmatpush1.msra.mxu0 0.0
    %3712 = vmatprep.subr.mxu0 0.0
    %3713 = vmatpush1.msra.mxu0 0.0
    %3714 = vmatprep.subr.mxu0 0.0
    %3715 = vmatpush1.msra.mxu0 0.0
    %3716 = vmatprep.subr.mxu0 0.0
    %3717 = vmatpush1.msra.mxu0 0.0
    %3718 = vmatprep.subr.mxu0 0.0
    %3719 = vmatpush1.msra.mxu0 0.0
    %3720 = vmatprep.subr.mxu0 0.0
    %3721 = vmatpush1.msra.mxu0 0.0
    %3722 = vmatprep.subr.mxu0 0.0
    %3723 = vmatpush1.msra.mxu0 0.0
    %3724 = vmatprep.subr.mxu0 0.0
    %3725 = vmatpush1.msra.mxu0 0.0
    %3726 = vmatprep.subr.mxu0 0.0
    %3727 = vmatpush1.msra.mxu0 0.0
    %3728 = vmatprep.subr.mxu0 0.0
    %3729 = vmatpush1.msra.mxu0 0.0
    %3730 = vmatprep.subr.mxu0 0.0
    %3731 = vmatpush1.msra.mxu0 0.0
    %3732 = vmatprep.subr.mxu0 0.0
    %3733 = vmatpush1.msra.mxu0 0.0
    %3734 = vmatprep.mubr.f32.mxu0 0.0
    %3735 = vmatmul.mubr.f32.gmra.mrb[0].mxu0 %v3668
    %v3736 = vpop.f32.mrb[0].mxu0
    %v3737 = vadd.f32 %v3665, %v3736
    %v3738 = vpop.f32.mrb[0].mxu0
    %3739 = vdwg.mxu0
    %v3740 = vld [vmem:[%s163] sm:$0xff]
    %v3741 = vld [vmem:[%s163 + $0x8] sm:$0xff]
    %v3742 = vld [vmem:[%s163 + $0x10] sm:$0xff]
    %v3743 = vld [vmem:[%s163 + $0x18] sm:$0xff]
    %v3744 = vld [vmem:[%s163 + $0x20] sm:$0xff]
    %v3745 = vld [vmem:[%s163 + $0x28] sm:$0xff]
    %v3746 = vld [vmem:[%s163 + $0x30] sm:$0xff]
    %v3747 = vld [vmem:[%s163 + $0x38] sm:$0xff]
    %v3748 = vld [vmem:[#allocation50] sm:$0x1]
    %v3750 = vlaneseq
    %v3751 = vshrl.u32 %v3750, 7
    %v3752 = vsub.s32 0, %v3751
    %v3753 = vrot.slane %v3748, %v3752
    %v3756 = vsel %vm935, %v2380, 0
    %3758 = vmatprep.subr.mxu0 0.0
    %3759 = vmatpush1.msra.mxu0 %v3740
    %3760 = vmatprep.subr.mxu0 0.0
    %3761 = vmatpush1.msra.mxu0 %v3741
    %3762 = vmatprep.subr.mxu0 0.0
    %3763 = vmatpush1.msra.mxu0 %v3742
    %3764 = vmatprep.subr.mxu0 0.0
    %3765 = vmatpush1.msra.mxu0 %v3743
    %3766 = vmatprep.subr.mxu0 0.0
    %3767 = vmatpush1.msra.mxu0 %v3744
    %3768 = vmatprep.subr.mxu0 0.0
    %3769 = vmatpush1.msra.mxu0 %v3745
    %3770 = vmatprep.subr.mxu0 0.0
    %3771 = vmatpush1.msra.mxu0 %v3746
    %3772 = vmatprep.subr.mxu0 0.0
    %3773 = vmatpush1.msra.mxu0 %v3747
    %3774 = vmatprep.subr.mxu0 0.0
    %3775 = vmatpush1.msra.mxu0 0.0
    %3776 = vmatprep.subr.mxu0 0.0
    %3777 = vmatpush1.msra.mxu0 0.0
    %3778 = vmatprep.subr.mxu0 0.0
    %3779 = vmatpush1.msra.mxu0 0.0
    %3780 = vmatprep.subr.mxu0 0.0
    %3781 = vmatpush1.msra.mxu0 0.0
    %3782 = vmatprep.subr.mxu0 0.0
    %3783 = vmatpush1.msra.mxu0 0.0
    %3784 = vmatprep.subr.mxu0 0.0
    %3785 = vmatpush1.msra.mxu0 0.0
    %3786 = vmatprep.subr.mxu0 0.0
    %3787 = vmatpush1.msra.mxu0 0.0
    %3788 = vmatprep.subr.mxu0 0.0
    %3789 = vmatpush1.msra.mxu0 0.0
    %3790 = vmatprep.subr.mxu0 0.0
    %3791 = vmatpush1.msra.mxu0 0.0
    %3792 = vmatprep.subr.mxu0 0.0
    %3793 = vmatpush1.msra.mxu0 0.0
    %3794 = vmatprep.subr.mxu0 0.0
    %3795 = vmatpush1.msra.mxu0 0.0
    %3796 = vmatprep.subr.mxu0 0.0
    %3797 = vmatpush1.msra.mxu0 0.0
    %3798 = vmatprep.subr.mxu0 0.0
    %3799 = vmatpush1.msra.mxu0 0.0
    %3800 = vmatprep.subr.mxu0 0.0
    %3801 = vmatpush1.msra.mxu0 0.0
    %3802 = vmatprep.subr.mxu0 0.0
    %3803 = vmatpush1.msra.mxu0 0.0
    %3804 = vmatprep.subr.mxu0 0.0
    %3805 = vmatpush1.msra.mxu0 0.0
    %3806 = vmatprep.subr.mxu0 0.0
    %3807 = vmatpush1.msra.mxu0 0.0
    %3808 = vmatprep.subr.mxu0 0.0
    %3809 = vmatpush1.msra.mxu0 0.0
    %3810 = vmatprep.subr.mxu0 0.0
    %3811 = vmatpush1.msra.mxu0 0.0
    %3812 = vmatprep.subr.mxu0 0.0
    %3813 = vmatpush1.msra.mxu0 0.0
    %3814 = vmatprep.subr.mxu0 0.0
    %3815 = vmatpush1.msra.mxu0 0.0
    %3816 = vmatprep.subr.mxu0 0.0
    %3817 = vmatpush1.msra.mxu0 0.0
    %3818 = vmatprep.subr.mxu0 0.0
    %3819 = vmatpush1.msra.mxu0 0.0
    %3820 = vmatprep.subr.mxu0 0.0
    %3821 = vmatpush1.msra.mxu0 0.0
    %3822 = vmatprep.mubr.f32.mxu0 0.0
    %3823 = vmatmul.mubr.f32.gmra.mrb[0].mxu0 %v3756
    %v3824 = vpop.f32.mrb[0].mxu0
    %v3825 = vadd.f32 %v3753, %v3824
    %v3826 = vpop.f32.mrb[0].mxu0
    %3827 = vdwg.mxu0
    %v3828 = vld [vmem:[%s53] sm:$0xff]
    %v3829 = vld [vmem:[%s53 + $0x8] sm:$0xff]
    %v3830 = vld [vmem:[%s53 + $0x10] sm:$0xff]
    %v3831 = vld [vmem:[%s53 + $0x18] sm:$0xff]
    %v3832 = vld [vmem:[%s53 + $0x20] sm:$0xff]
    %v3833 = vld [vmem:[%s53 + $0x28] sm:$0xff]
    %v3834 = vld [vmem:[%s53 + $0x30] sm:$0xff]
    %v3835 = vld [vmem:[%s53 + $0x38] sm:$0xff]
    %v3836 = vld [vmem:[#allocation22] sm:$0x1]
    %v3838 = vlaneseq
    %v3839 = vshrl.u32 %v3838, 7
    %v3840 = vsub.s32 0, %v3839
    %v3841 = vrot.slane %v3836, %v3840
    %v3844 = vsel %vm935, %v3737, 0
    %3846 = vmatprep.subr.mxu0 0.0
    %3847 = vmatpush1.msra.mxu0 %v3828
    %3848 = vmatprep.subr.mxu0 0.0
    %3849 = vmatpush1.msra.mxu0 %v3829
    %3850 = vmatprep.subr.mxu0 0.0
    %3851 = vmatpush1.msra.mxu0 %v3830
    %3852 = vmatprep.subr.mxu0 0.0
    %3853 = vmatpush1.msra.mxu0 %v3831
    %3854 = vmatprep.subr.mxu0 0.0
    %3855 = vmatpush1.msra.mxu0 %v3832
    %3856 = vmatprep.subr.mxu0 0.0
    %3857 = vmatpush1.msra.mxu0 %v3833
    %3858 = vmatprep.subr.mxu0 0.0
    %3859 = vmatpush1.msra.mxu0 %v3834
    %3860 = vmatprep.subr.mxu0 0.0
    %3861 = vmatpush1.msra.mxu0 %v3835
    %3862 = vmatprep.subr.mxu0 0.0
    %3863 = vmatpush1.msra.mxu0 0.0
    %3864 = vmatprep.subr.mxu0 0.0
    %3865 = vmatpush1.msra.mxu0 0.0
    %3866 = vmatprep.subr.mxu0 0.0
    %3867 = vmatpush1.msra.mxu0 0.0
    %3868 = vmatprep.subr.mxu0 0.0
    %3869 = vmatpush1.msra.mxu0 0.0
    %3870 = vmatprep.subr.mxu0 0.0
    %3871 = vmatpush1.msra.mxu0 0.0
    %3872 = vmatprep.subr.mxu0 0.0
    %3873 = vmatpush1.msra.mxu0 0.0
    %3874 = vmatprep.subr.mxu0 0.0
    %3875 = vmatpush1.msra.mxu0 0.0
    %3876 = vmatprep.subr.mxu0 0.0
    %3877 = vmatpush1.msra.mxu0 0.0
    %3878 = vmatprep.subr.mxu0 0.0
    %3879 = vmatpush1.msra.mxu0 0.0
    %3880 = vmatprep.subr.mxu0 0.0
    %3881 = vmatpush1.msra.mxu0 0.0
    %3882 = vmatprep.subr.mxu0 0.0
    %3883 = vmatpush1.msra.mxu0 0.0
    %3884 = vmatprep.subr.mxu0 0.0
    %3885 = vmatpush1.msra.mxu0 0.0
    %3886 = vmatprep.subr.mxu0 0.0
    %3887 = vmatpush1.msra.mxu0 0.0
    %3888 = vmatprep.subr.mxu0 0.0
    %3889 = vmatpush1.msra.mxu0 0.0
    %3890 = vmatprep.subr.mxu0 0.0
    %3891 = vmatpush1.msra.mxu0 0.0
    %3892 = vmatprep.subr.mxu0 0.0
    %3893 = vmatpush1.msra.mxu0 0.0
    %3894 = vmatprep.subr.mxu0 0.0
    %3895 = vmatpush1.msra.mxu0 0.0
    %3896 = vmatprep.subr.mxu0 0.0
    %3897 = vmatpush1.msra.mxu0 0.0
    %3898 = vmatprep.subr.mxu0 0.0
    %3899 = vmatpush1.msra.mxu0 0.0
    %3900 = vmatprep.subr.mxu0 0.0
    %3901 = vmatpush1.msra.mxu0 0.0
    %3902 = vmatprep.subr.mxu0 0.0
    %3903 = vmatpush1.msra.mxu0 0.0
    %3904 = vmatprep.subr.mxu0 0.0
    %3905 = vmatpush1.msra.mxu0 0.0
    %3906 = vmatprep.subr.mxu0 0.0
    %3907 = vmatpush1.msra.mxu0 0.0
    %3908 = vmatprep.subr.mxu0 0.0
    %3909 = vmatpush1.msra.mxu0 0.0
    %3910 = vmatprep.mubr.f32.mxu0 0.0
    %3911 = vmatmul.mubr.f32.gmra.mrb[0].mxu0 %v3844
    %v3912 = vpop.f32.mrb[0].mxu0
    %v3913 = vadd.f32 %v3841, %v3912
    %v3914 = vpop.f32.mrb[0].mxu0
    %3915 = vdwg.mxu0
    %v3916 = vld [vmem:[%s51] sm:$0xff]
    %v3917 = vld [vmem:[%s51 + $0x8] sm:$0xff]
    %v3918 = vld [vmem:[%s51 + $0x10] sm:$0xff]
    %v3919 = vld [vmem:[%s51 + $0x18] sm:$0xff]
    %v3920 = vld [vmem:[%s51 + $0x20] sm:$0xff]
    %v3921 = vld [vmem:[%s51 + $0x28] sm:$0xff]
    %v3922 = vld [vmem:[%s51 + $0x30] sm:$0xff]
    %v3923 = vld [vmem:[%s51 + $0x38] sm:$0xff]
    %v3924 = vld [vmem:[#allocation20] sm:$0x1]
    %v3926 = vlaneseq
    %v3927 = vshrl.u32 %v3926, 7
    %v3928 = vsub.s32 0, %v3927
    %v3929 = vrot.slane %v3924, %v3928
    %v3932 = vsel %vm935, %v3913, 0
    %3934 = vmatprep.subr.mxu0 0.0
    %3935 = vmatpush1.msra.mxu0 %v3916
    %3936 = vmatprep.subr.mxu0 0.0
    %3937 = vmatpush1.msra.mxu0 %v3917
    %3938 = vmatprep.subr.mxu0 0.0
    %3939 = vmatpush1.msra.mxu0 %v3918
    %3940 = vmatprep.subr.mxu0 0.0
    %3941 = vmatpush1.msra.mxu0 %v3919
    %3942 = vmatprep.subr.mxu0 0.0
    %3943 = vmatpush1.msra.mxu0 %v3920
    %3944 = vmatprep.subr.mxu0 0.0
    %3945 = vmatpush1.msra.mxu0 %v3921
    %3946 = vmatprep.subr.mxu0 0.0
    %3947 = vmatpush1.msra.mxu0 %v3922
    %3948 = vmatprep.subr.mxu0 0.0
    %3949 = vmatpush1.msra.mxu0 %v3923
    %3950 = vmatprep.subr.mxu0 0.0
    %3951 = vmatpush1.msra.mxu0 0.0
    %3952 = vmatprep.subr.mxu0 0.0
    %3953 = vmatpush1.msra.mxu0 0.0
    %3954 = vmatprep.subr.mxu0 0.0
    %3955 = vmatpush1.msra.mxu0 0.0
    %3956 = vmatprep.subr.mxu0 0.0
    %3957 = vmatpush1.msra.mxu0 0.0
    %3958 = vmatprep.subr.mxu0 0.0
    %3959 = vmatpush1.msra.mxu0 0.0
    %3960 = vmatprep.subr.mxu0 0.0
    %3961 = vmatpush1.msra.mxu0 0.0
    %3962 = vmatprep.subr.mxu0 0.0
    %3963 = vmatpush1.msra.mxu0 0.0
    %3964 = vmatprep.subr.mxu0 0.0
    %3965 = vmatpush1.msra.mxu0 0.0
    %3966 = vmatprep.subr.mxu0 0.0
    %3967 = vmatpush1.msra.mxu0 0.0
    %3968 = vmatprep.subr.mxu0 0.0
    %3969 = vmatpush1.msra.mxu0 0.0
    %3970 = vmatprep.subr.mxu0 0.0
    %3971 = vmatpush1.msra.mxu0 0.0
    %3972 = vmatprep.subr.mxu0 0.0
    %3973 = vmatpush1.msra.mxu0 0.0
    %3974 = vmatprep.subr.mxu0 0.0
    %3975 = vmatpush1.msra.mxu0 0.0
    %3976 = vmatprep.subr.mxu0 0.0
    %3977 = vmatpush1.msra.mxu0 0.0
    %3978 = vmatprep.subr.mxu0 0.0
    %3979 = vmatpush1.msra.mxu0 0.0
    %3980 = vmatprep.subr.mxu0 0.0
    %3981 = vmatpush1.msra.mxu0 0.0
    %3982 = vmatprep.subr.mxu0 0.0
    %3983 = vmatpush1.msra.mxu0 0.0
    %3984 = vmatprep.subr.mxu0 0.0
    %3985 = vmatpush1.msra.mxu0 0.0
    %3986 = vmatprep.subr.mxu0 0.0
    %3987 = vmatpush1.msra.mxu0 0.0
    %3988 = vmatprep.subr.mxu0 0.0
    %3989 = vmatpush1.msra.mxu0 0.0
    %3990 = vmatprep.subr.mxu0 0.0
    %3991 = vmatpush1.msra.mxu0 0.0
    %3992 = vmatprep.subr.mxu0 0.0
    %3993 = vmatpush1.msra.mxu0 0.0
    %3994 = vmatprep.subr.mxu0 0.0
    %3995 = vmatpush1.msra.mxu0 0.0
    %3996 = vmatprep.subr.mxu0 0.0
    %3997 = vmatpush1.msra.mxu0 0.0
    %3998 = vmatprep.mubr.f32.mxu0 0.0
    %3999 = vmatmul.mubr.f32.gmra.mrb[0].mxu0 %v3932
    %v4000 = vpop.f32.mrb[0].mxu0
    %v4001 = vadd.f32 %v3929, %v4000
    %v4002 = vpop.f32.mrb[0].mxu0
    %4003 = vdwg.mxu0
    %v4004 = vadd.f32 %v2380, %v4001
    %v4005 = vld [vmem:[#allocation25] sm:$0x1]
    %v4006 = vld [vmem:[#allocation23] sm:$0x1]
    %v4007 = vsel %vm2906, %v4004, 0.0
    %4008 = vadd.xlane.f32.xlu0 %v4007
    %v4009 = vpop.xlane.xlu0 %4008
    %v4010 = vmul.f32 %v4009, %v2910
    %v4011 = vsub.f32 %v4004, %v4010
    %v4012 = vmul.f32 %v4011, %v4011
    %v4013 = vsel %vm2906, %v4012, 0.0
    %4014 = vadd.xlane.f32.xlu0 %v4013
    %v4015 = vpop.xlane.xlu0 %4014
    %v4016 = vmul.f32 %v4015, %v2910
    %v4017 = vadd.f32 %v4016, 1e-05
    %v4018 = vrsqrt.pop %v4017
    %v4019 = vmul.f32 %v4011, %v4018
    %v4021 = vlaneseq
    %v4022 = vshrl.u32 %v4021, 7
    %v4023 = vsub.s32 0, %v4022
    %v4024 = vrot.slane %v4005, %v4023
    %v4026 = vmul.f32 %v4019, %v4024
    %v4028 = vlaneseq
    %v4029 = vshrl.u32 %v4028, 7
    %v4030 = vsub.s32 0, %v4029
    %v4031 = vrot.slane %v4006, %v4030
    %v4033 = vadd.f32 %v4026, %v4031
    %v4034 = vld [vmem:[%s47] sm:$0xff]
    %v4035 = vld [vmem:[%s47 + $0x8] sm:$0xff]
    %v4036 = vld [vmem:[%s47 + $0x10] sm:$0xff]
    %v4037 = vld [vmem:[%s47 + $0x18] sm:$0xff]
    %v4038 = vld [vmem:[%s47 + $0x20] sm:$0xff]
    %v4039 = vld [vmem:[%s47 + $0x28] sm:$0xff]
    %v4040 = vld [vmem:[%s47 + $0x30] sm:$0xff]
    %v4041 = vld [vmem:[%s47 + $0x38] sm:$0xff]
    %v4042 = vld [vmem:[#allocation17] sm:$0x1]
    %v4044 = vlaneseq
    %v4045 = vshrl.u32 %v4044, 7
    %v4046 = vsub.s32 0, %v4045
    %v4047 = vrot.slane %v4042, %v4046
    %v4050 = vsel %vm935, %v4033, 0
    %4052 = vmatprep.subr.mxu0 0.0
    %4053 = vmatpush1.msra.mxu0 %v4034
    %4054 = vmatprep.subr.mxu0 0.0
    %4055 = vmatpush1.msra.mxu0 %v4035
    %4056 = vmatprep.subr.mxu0 0.0
    %4057 = vmatpush1.msra.mxu0 %v4036
    %4058 = vmatprep.subr.mxu0 0.0
    %4059 = vmatpush1.msra.mxu0 %v4037
    %4060 = vmatprep.subr.mxu0 0.0
    %4061 = vmatpush1.msra.mxu0 %v4038
    %4062 = vmatprep.subr.mxu0 0.0
    %4063 = vmatpush1.msra.mxu0 %v4039
    %4064 = vmatprep.subr.mxu0 0.0
    %4065 = vmatpush1.msra.mxu0 %v4040
    %4066 = vmatprep.subr.mxu0 0.0
    %4067 = vmatpush1.msra.mxu0 %v4041
    %4068 = vmatprep.subr.mxu0 0.0
    %4069 = vmatpush1.msra.mxu0 0.0
    %4070 = vmatprep.subr.mxu0 0.0
    %4071 = vmatpush1.msra.mxu0 0.0
    %4072 = vmatprep.subr.mxu0 0.0
    %4073 = vmatpush1.msra.mxu0 0.0
    %4074 = vmatprep.subr.mxu0 0.0
    %4075 = vmatpush1.msra.mxu0 0.0
    %4076 = vmatprep.subr.mxu0 0.0
    %4077 = vmatpush1.msra.mxu0 0.0
    %4078 = vmatprep.subr.mxu0 0.0
    %4079 = vmatpush1.msra.mxu0 0.0
    %4080 = vmatprep.subr.mxu0 0.0
    %4081 = vmatpush1.msra.mxu0 0.0
    %4082 = vmatprep.subr.mxu0 0.0
    %4083 = vmatpush1.msra.mxu0 0.0
    %4084 = vmatprep.subr.mxu0 0.0
    %4085 = vmatpush1.msra.mxu0 0.0
    %4086 = vmatprep.subr.mxu0 0.0
    %4087 = vmatpush1.msra.mxu0 0.0
    %4088 = vmatprep.subr.mxu0 0.0
    %4089 = vmatpush1.msra.mxu0 0.0
    %4090 = vmatprep.subr.mxu0 0.0
    %4091 = vmatpush1.msra.mxu0 0.0
    %4092 = vmatprep.subr.mxu0 0.0
    %4093 = vmatpush1.msra.mxu0 0.0
    %4094 = vmatprep.subr.mxu0 0.0
    %4095 = vmatpush1.msra.mxu0 0.0
    %4096 = vmatprep.subr.mxu0 0.0
    %4097 = vmatpush1.msra.mxu0 0.0
    %4098 = vmatprep.subr.mxu0 0.0
    %4099 = vmatpush1.msra.mxu0 0.0
    %4100 = vmatprep.subr.mxu0 0.0
    %4101 = vmatpush1.msra.mxu0 0.0
    %4102 = vmatprep.subr.mxu0 0.0
    %4103 = vmatpush1.msra.mxu0 0.0
    %4104 = vmatprep.subr.mxu0 0.0
    %4105 = vmatpush1.msra.mxu0 0.0
    %4106 = vmatprep.subr.mxu0 0.0
    %4107 = vmatpush1.msra.mxu0 0.0
    %4108 = vmatprep.subr.mxu0 0.0
    %4109 = vmatpush1.msra.mxu0 0.0
    %4110 = vmatprep.subr.mxu0 0.0
    %4111 = vmatpush1.msra.mxu0 0.0
    %4112 = vmatprep.subr.mxu0 0.0
    %4113 = vmatpush1.msra.mxu0 0.0
    %4114 = vmatprep.subr.mxu0 0.0
    %4115 = vmatpush1.msra.mxu0 0.0
    %4116 = vmatprep.mubr.f32.mxu0 0.0
    %4117 = vmatmul.mubr.f32.gmra.mrb[0].mxu0 %v4050
    %v4118 = vpop.f32.mrb[0].mxu0
    %v4119 = vadd.f32 %v4047, %v4118
    %v4120 = vpop.f32.mrb[0].mxu0
    %4121 = vdwg.mxu0
    %v4122 = vmax.f32 %v4119, 0.0
    %v4123 = vld [vmem:[%s49] sm:$0xff]
    %v4124 = vld [vmem:[%s49 + $0x8] sm:$0xff]
    %v4125 = vld [vmem:[%s49 + $0x10] sm:$0xff]
    %v4126 = vld [vmem:[%s49 + $0x18] sm:$0xff]
    %v4127 = vld [vmem:[%s49 + $0x20] sm:$0xff]
    %v4128 = vld [vmem:[%s49 + $0x28] sm:$0xff]
    %v4129 = vld [vmem:[%s49 + $0x30] sm:$0xff]
    %v4130 = vld [vmem:[%s49 + $0x38] sm:$0xff]
    %v4131 = vld [vmem:[%s49 + $0x40] sm:$0xff]
    %v4132 = vld [vmem:[%s49 + $0x48] sm:$0xff]
    %v4133 = vld [vmem:[%s49 + $0x50] sm:$0xff]
    %v4134 = vld [vmem:[%s49 + $0x58] sm:$0xff]
    %v4135 = vld [vmem:[%s49 + $0x60] sm:$0xff]
    %v4136 = vld [vmem:[%s49 + $0x68] sm:$0xff]
    %v4137 = vld [vmem:[%s49 + $0x70] sm:$0xff]
    %v4138 = vld [vmem:[%s49 + $0x78] sm:$0xff]
    %v4139 = vld [vmem:[#allocation19] sm:$0x1]
    %v4141 = vlaneseq
    %v4142 = vshrl.u32 %v4141, 7
    %v4143 = vsub.s32 0, %v4142
    %v4144 = vrot.slane %v4139, %v4143
    %4146 = vmatprep.subr.mxu0 0.0
    %4147 = vmatpush1.msra.mxu0 %v4123
    %4148 = vmatprep.subr.mxu0 0.0
    %4149 = vmatpush1.msra.mxu0 %v4124
    %4150 = vmatprep.subr.mxu0 0.0
    %4151 = vmatpush1.msra.mxu0 %v4125
    %4152 = vmatprep.subr.mxu0 0.0
    %4153 = vmatpush1.msra.mxu0 %v4126
    %4154 = vmatprep.subr.mxu0 0.0
    %4155 = vmatpush1.msra.mxu0 %v4127
    %4156 = vmatprep.subr.mxu0 0.0
    %4157 = vmatpush1.msra.mxu0 %v4128
    %4158 = vmatprep.subr.mxu0 0.0
    %4159 = vmatpush1.msra.mxu0 %v4129
    %4160 = vmatprep.subr.mxu0 0.0
    %4161 = vmatpush1.msra.mxu0 %v4130
    %4162 = vmatprep.subr.mxu0 0.0
    %4163 = vmatpush1.msra.mxu0 %v4131
    %4164 = vmatprep.subr.mxu0 0.0
    %4165 = vmatpush1.msra.mxu0 %v4132
    %4166 = vmatprep.subr.mxu0 0.0
    %4167 = vmatpush1.msra.mxu0 %v4133
    %4168 = vmatprep.subr.mxu0 0.0
    %4169 = vmatpush1.msra.mxu0 %v4134
    %4170 = vmatprep.subr.mxu0 0.0
    %4171 = vmatpush1.msra.mxu0 %v4135
    %4172 = vmatprep.subr.mxu0 0.0
    %4173 = vmatpush1.msra.mxu0 %v4136
    %4174 = vmatprep.subr.mxu0 0.0
    %4175 = vmatpush1.msra.mxu0 %v4137
    %4176 = vmatprep.subr.mxu0 0.0
    %4177 = vmatpush1.msra.mxu0 %v4138
    %4178 = vmatprep.subr.mxu0 0.0
    %4179 = vmatpush1.msra.mxu0 0.0
    %4180 = vmatprep.subr.mxu0 0.0
    %4181 = vmatpush1.msra.mxu0 0.0
    %4182 = vmatprep.subr.mxu0 0.0
    %4183 = vmatpush1.msra.mxu0 0.0
    %4184 = vmatprep.subr.mxu0 0.0
    %4185 = vmatpush1.msra.mxu0 0.0
    %4186 = vmatprep.subr.mxu0 0.0
    %4187 = vmatpush1.msra.mxu0 0.0
    %4188 = vmatprep.subr.mxu0 0.0
    %4189 = vmatpush1.msra.mxu0 0.0
    %4190 = vmatprep.subr.mxu0 0.0
    %4191 = vmatpush1.msra.mxu0 0.0
    %4192 = vmatprep.subr.mxu0 0.0
    %4193 = vmatpush1.msra.mxu0 0.0
    %4194 = vmatprep.subr.mxu0 0.0
    %4195 = vmatpush1.msra.mxu0 0.0
    %4196 = vmatprep.subr.mxu0 0.0
    %4197 = vmatpush1.msra.mxu0 0.0
    %4198 = vmatprep.subr.mxu0 0.0
    %4199 = vmatpush1.msra.mxu0 0.0
    %4200 = vmatprep.subr.mxu0 0.0
    %4201 = vmatpush1.msra.mxu0 0.0
    %4202 = vmatprep.subr.mxu0 0.0
    %4203 = vmatpush1.msra.mxu0 0.0
    %4204 = vmatprep.subr.mxu0 0.0
    %4205 = vmatpush1.msra.mxu0 0.0
    %4206 = vmatprep.subr.mxu0 0.0
    %4207 = vmatpush1.msra.mxu0 0.0
    %4208 = vmatprep.subr.mxu0 0.0
    %4209 = vmatpush1.msra.mxu0 0.0
    %4210 = vmatprep.mubr.f32.mxu0 0.0
    %4211 = vmatmul.mubr.f32.gmra.mrb[0].mxu0 %v4122
    %v4212 = vpop.f32.mrb[0].mxu0
    %v4213 = vadd.f32 %v4144, %v4212
    %v4214 = vpop.f32.mrb[0].mxu0
    %4215 = vdwg.mxu0
    %v4216 = vadd.f32 %v4033, %v4213
    %v4217 = vld [vmem:[#allocation28] sm:$0x1]
    %v4218 = vld [vmem:[#allocation26] sm:$0x1]
    %v4219 = vsel %vm2906, %v4216, 0.0
    %4220 = vadd.xlane.f32.xlu0 %v4219
    %v4221 = vpop.xlane.xlu0 %4220
    %v4222 = vmul.f32 %v4221, %v2910
    %v4223 = vsub.f32 %v4216, %v4222
    %v4224 = vmul.f32 %v4223, %v4223
    %v4225 = vsel %vm2906, %v4224, 0.0
    %4226 = vadd.xlane.f32.xlu0 %v4225
    %v4227 = vpop.xlane.xlu0 %4226
    %v4228 = vmul.f32 %v4227, %v2910
    %v4229 = vadd.f32 %v4228, 1e-05
    %v4230 = vrsqrt.pop %v4229
    %v4231 = vmul.f32 %v4223, %v4230
    %v4233 = vlaneseq
    %v4234 = vshrl.u32 %v4233, 7
    %v4235 = vsub.s32 0, %v4234
    %v4236 = vrot.slane %v4217, %v4235
    %v4238 = vmul.f32 %v4231, %v4236
    %v4240 = vlaneseq
    %v4241 = vshrl.u32 %v4240, 7
    %v4242 = vsub.s32 0, %v4241
    %v4243 = vrot.slane %v4218, %v4242
    %v4245 = vadd.f32 %v4238, %v4243
    %v4246 = vld [vmem:[%s29] sm:$0xff]
    %v4247 = vld [vmem:[%s29 + $0x8] sm:$0xff]
    %v4248 = vld [vmem:[%s29 + $0x10] sm:$0xff]
    %v4249 = vld [vmem:[%s29 + $0x18] sm:$0xff]
    %v4250 = vld [vmem:[#allocation10] sm:$0x1]
    %v4252 = vlaneseq
    %v4253 = vshrl.u32 %v4252, 7
    %v4254 = vsub.s32 0, %v4253
    %v4255 = vrot.slane %v4250, %v4254
    %v4258 = vsel %vm2394, %v3825, 0
    %4260 = vmatprep.subr.mxu0 0.0
    %4261 = vmatpush1.msra.mxu0 %v4246
    %4262 = vmatprep.subr.mxu0 0.0
    %4263 = vmatpush1.msra.mxu0 %v4247
    %4264 = vmatprep.subr.mxu0 0.0
    %4265 = vmatpush1.msra.mxu0 %v4248
    %4266 = vmatprep.subr.mxu0 0.0
    %4267 = vmatpush1.msra.mxu0 %v4249
    %4268 = vmatprep.subr.mxu0 0.0
    %4269 = vmatpush1.msra.mxu0 0.0
    %4270 = vmatprep.subr.mxu0 0.0
    %4271 = vmatpush1.msra.mxu0 0.0
    %4272 = vmatprep.subr.mxu0 0.0
    %4273 = vmatpush1.msra.mxu0 0.0
    %4274 = vmatprep.subr.mxu0 0.0
    %4275 = vmatpush1.msra.mxu0 0.0
    %4276 = vmatprep.subr.mxu0 0.0
    %4277 = vmatpush1.msra.mxu0 0.0
    %4278 = vmatprep.subr.mxu0 0.0
    %4279 = vmatpush1.msra.mxu0 0.0
    %4280 = vmatprep.subr.mxu0 0.0
    %4281 = vmatpush1.msra.mxu0 0.0
    %4282 = vmatprep.subr.mxu0 0.0
    %4283 = vmatpush1.msra.mxu0 0.0
    %4284 = vmatprep.subr.mxu0 0.0
    %4285 = vmatpush1.msra.mxu0 0.0
    %4286 = vmatprep.subr.mxu0 0.0
    %4287 = vmatpush1.msra.mxu0 0.0
    %4288 = vmatprep.subr.mxu0 0.0
    %4289 = vmatpush1.msra.mxu0 0.0
    %4290 = vmatprep.subr.mxu0 0.0
    %4291 = vmatpush1.msra.mxu0 0.0
    %4292 = vmatprep.subr.mxu0 0.0
    %4293 = vmatpush1.msra.mxu0 0.0
    %4294 = vmatprep.subr.mxu0 0.0
    %4295 = vmatpush1.msra.mxu0 0.0
    %4296 = vmatprep.subr.mxu0 0.0
    %4297 = vmatpush1.msra.mxu0 0.0
    %4298 = vmatprep.subr.mxu0 0.0
    %4299 = vmatpush1.msra.mxu0 0.0
    %4300 = vmatprep.subr.mxu0 0.0
    %4301 = vmatpush1.msra.mxu0 0.0
    %4302 = vmatprep.subr.mxu0 0.0
    %4303 = vmatpush1.msra.mxu0 0.0
    %4304 = vmatprep.subr.mxu0 0.0
    %4305 = vmatpush1.msra.mxu0 0.0
    %4306 = vmatprep.subr.mxu0 0.0
    %4307 = vmatpush1.msra.mxu0 0.0
    %4308 = vmatprep.subr.mxu0 0.0
    %4309 = vmatpush1.msra.mxu0 0.0
    %4310 = vmatprep.subr.mxu0 0.0
    %4311 = vmatpush1.msra.mxu0 0.0
    %4312 = vmatprep.subr.mxu0 0.0
    %4313 = vmatpush1.msra.mxu0 0.0
    %4314 = vmatprep.subr.mxu0 0.0
    %4315 = vmatpush1.msra.mxu0 0.0
    %4316 = vmatprep.subr.mxu0 0.0
    %4317 = vmatpush1.msra.mxu0 0.0
    %4318 = vmatprep.subr.mxu0 0.0
    %4319 = vmatpush1.msra.mxu0 0.0
    %4320 = vmatprep.subr.mxu0 0.0
    %4321 = vmatpush1.msra.mxu0 0.0
    %4322 = vmatprep.subr.mxu0 0.0
    %4323 = vmatpush1.msra.mxu0 0.0
    %4324 = vmatprep.mubr.f32.mxu0 0.0
    %4325 = vmatmul.mubr.f32.gmra.mrb[0].mxu0 %v4258
    %v4326 = vpop.f32.mrb[0].mxu0
    %v4327 = vadd.f32 %v4255, %v4326
    %v4328 = vpop.f32.mrb[0].mxu0
    %4329 = vdwg.mxu0
    %v4330 = vld [vmem:[%s27] sm:$0xff]
    %v4331 = vld [vmem:[%s27 + $0x8] sm:$0xff]
    %v4332 = vld [vmem:[%s27 + $0x10] sm:$0xff]
    %v4333 = vld [vmem:[%s27 + $0x18] sm:$0xff]
    %v4334 = vld [vmem:[#allocation8] sm:$0x1]
    %v4336 = vlaneseq
    %v4337 = vshrl.u32 %v4336, 7
    %v4338 = vsub.s32 0, %v4337
    %v4339 = vrot.slane %v4334, %v4338
    %v4342 = vsel %vm2394, %v4327, 0
    %4344 = vmatprep.subr.mxu0 0.0
    %4345 = vmatpush1.msra.mxu0 %v4330
    %4346 = vmatprep.subr.mxu0 0.0
    %4347 = vmatpush1.msra.mxu0 %v4331
    %4348 = vmatprep.subr.mxu0 0.0
    %4349 = vmatpush1.msra.mxu0 %v4332
    %4350 = vmatprep.subr.mxu0 0.0
    %4351 = vmatpush1.msra.mxu0 %v4333
    %4352 = vmatprep.subr.mxu0 0.0
    %4353 = vmatpush1.msra.mxu0 0.0
    %4354 = vmatprep.subr.mxu0 0.0
    %4355 = vmatpush1.msra.mxu0 0.0
    %4356 = vmatprep.subr.mxu0 0.0
    %4357 = vmatpush1.msra.mxu0 0.0
    %4358 = vmatprep.subr.mxu0 0.0
    %4359 = vmatpush1.msra.mxu0 0.0
    %4360 = vmatprep.subr.mxu0 0.0
    %4361 = vmatpush1.msra.mxu0 0.0
    %4362 = vmatprep.subr.mxu0 0.0
    %4363 = vmatpush1.msra.mxu0 0.0
    %4364 = vmatprep.subr.mxu0 0.0
    %4365 = vmatpush1.msra.mxu0 0.0
    %4366 = vmatprep.subr.mxu0 0.0
    %4367 = vmatpush1.msra.mxu0 0.0
    %4368 = vmatprep.subr.mxu0 0.0
    %4369 = vmatpush1.msra.mxu0 0.0
    %4370 = vmatprep.subr.mxu0 0.0
    %4371 = vmatpush1.msra.mxu0 0.0
    %4372 = vmatprep.subr.mxu0 0.0
    %4373 = vmatpush1.msra.mxu0 0.0
    %4374 = vmatprep.subr.mxu0 0.0
    %4375 = vmatpush1.msra.mxu0 0.0
    %4376 = vmatprep.subr.mxu0 0.0
    %4377 = vmatpush1.msra.mxu0 0.0
    %4378 = vmatprep.subr.mxu0 0.0
    %4379 = vmatpush1.msra.mxu0 0.0
    %4380 = vmatprep.subr.mxu0 0.0
    %4381 = vmatpush1.msra.mxu0 0.0
    %4382 = vmatprep.subr.mxu0 0.0
    %4383 = vmatpush1.msra.mxu0 0.0
    %4384 = vmatprep.subr.mxu0 0.0
    %4385 = vmatpush1.msra.mxu0 0.0
    %4386 = vmatprep.subr.mxu0 0.0
    %4387 = vmatpush1.msra.mxu0 0.0
    %4388 = vmatprep.subr.mxu0 0.0
    %4389 = vmatpush1.msra.mxu0 0.0
    %4390 = vmatprep.subr.mxu0 0.0
    %4391 = vmatpush1.msra.mxu0 0.0
    %4392 = vmatprep.subr.mxu0 0.0
    %4393 = vmatpush1.msra.mxu0 0.0
    %4394 = vmatprep.subr.mxu0 0.0
    %4395 = vmatpush1.msra.mxu0 0.0
    %4396 = vmatprep.subr.mxu0 0.0
    %4397 = vmatpush1.msra.mxu0 0.0
    %4398 = vmatprep.subr.mxu0 0.0
    %4399 = vmatpush1.msra.mxu0 0.0
    %4400 = vmatprep.subr.mxu0 0.0
    %4401 = vmatpush1.msra.mxu0 0.0
    %4402 = vmatprep.subr.mxu0 0.0
    %4403 = vmatpush1.msra.mxu0 0.0
    %4404 = vmatprep.subr.mxu0 0.0
    %4405 = vmatpush1.msra.mxu0 0.0
    %4406 = vmatprep.subr.mxu0 0.0
    %4407 = vmatpush1.msra.mxu0 0.0
    %4408 = vmatprep.mubr.f32.mxu0 0.0
    %4409 = vmatmul.mubr.f32.gmra.mrb[0].mxu0 %v4342
    %v4410 = vpop.f32.mrb[0].mxu0
    %v4411 = vadd.f32 %v4339, %v4410
    %v4412 = vpop.f32.mrb[0].mxu0
    %4413 = vdwg.mxu0
    %v4414 = vadd.f32 %v3653, %v4411
    %v4415 = vld [vmem:[#allocation13] sm:$0x1]
    %v4416 = vld [vmem:[#allocation11] sm:$0x1]
    %vm4417 = vcmask 254976
    %v4418 = vsel %vm4417, %v4414, 0.0
    %4419 = vadd.xlane.f32.xlu0 %v4418
    %v4420 = vpop.xlane.xlu0 %4419
    %v4421 = vrcp.pop 32.0
    %v4422 = vmul.f32 %v4420, %v4421
    %v4423 = vsub.f32 %v4414, %v4422
    %v4424 = vmul.f32 %v4423, %v4423
    %v4425 = vsel %vm4417, %v4424, 0.0
    %4426 = vadd.xlane.f32.xlu0 %v4425
    %v4427 = vpop.xlane.xlu0 %4426
    %v4428 = vmul.f32 %v4427, %v4421
    %v4429 = vadd.f32 %v4428, 1e-05
    %v4430 = vrsqrt.pop %v4429
    %v4431 = vmul.f32 %v4423, %v4430
    %v4433 = vlaneseq
    %v4434 = vshrl.u32 %v4433, 7
    %v4435 = vsub.s32 0, %v4434
    %v4436 = vrot.slane %v4415, %v4435
    %v4438 = vmul.f32 %v4431, %v4436
    %v4440 = vlaneseq
    %v4441 = vshrl.u32 %v4440, 7
    %v4442 = vsub.s32 0, %v4441
    %v4443 = vrot.slane %v4416, %v4442
    %v4445 = vadd.f32 %v4438, %v4443
    %v4446 = vld [vmem:[%s23] sm:$0xff]
    %v4447 = vld [vmem:[%s23 + $0x8] sm:$0xff]
    %v4448 = vld [vmem:[%s23 + $0x10] sm:$0xff]
    %v4449 = vld [vmem:[%s23 + $0x18] sm:$0xff]
    %v4450 = vld [vmem:[#allocation5] sm:$0x1]
    %v4452 = vlaneseq
    %v4453 = vshrl.u32 %v4452, 7
    %v4454 = vsub.s32 0, %v4453
    %v4455 = vrot.slane %v4450, %v4454
    %v4458 = vsel %vm2394, %v4445, 0
    %4460 = vmatprep.subr.mxu0 0.0
    %4461 = vmatpush1.msra.mxu0 %v4446
    %4462 = vmatprep.subr.mxu0 0.0
    %4463 = vmatpush1.msra.mxu0 %v4447
    %4464 = vmatprep.subr.mxu0 0.0
    %4465 = vmatpush1.msra.mxu0 %v4448
    %4466 = vmatprep.subr.mxu0 0.0
    %4467 = vmatpush1.msra.mxu0 %v4449
    %4468 = vmatprep.subr.mxu0 0.0
    %4469 = vmatpush1.msra.mxu0 0.0
    %4470 = vmatprep.subr.mxu0 0.0
    %4471 = vmatpush1.msra.mxu0 0.0
    %4472 = vmatprep.subr.mxu0 0.0
    %4473 = vmatpush1.msra.mxu0 0.0
    %4474 = vmatprep.subr.mxu0 0.0
    %4475 = vmatpush1.msra.mxu0 0.0
    %4476 = vmatprep.subr.mxu0 0.0
    %4477 = vmatpush1.msra.mxu0 0.0
    %4478 = vmatprep.subr.mxu0 0.0
    %4479 = vmatpush1.msra.mxu0 0.0
    %4480 = vmatprep.subr.mxu0 0.0
    %4481 = vmatpush1.msra.mxu0 0.0
    %4482 = vmatprep.subr.mxu0 0.0
    %4483 = vmatpush1.msra.mxu0 0.0
    %4484 = vmatprep.subr.mxu0 0.0
    %4485 = vmatpush1.msra.mxu0 0.0
    %4486 = vmatprep.subr.mxu0 0.0
    %4487 = vmatpush1.msra.mxu0 0.0
    %4488 = vmatprep.subr.mxu0 0.0
    %4489 = vmatpush1.msra.mxu0 0.0
    %4490 = vmatprep.subr.mxu0 0.0
    %4491 = vmatpush1.msra.mxu0 0.0
    %4492 = vmatprep.subr.mxu0 0.0
    %4493 = vmatpush1.msra.mxu0 0.0
    %4494 = vmatprep.subr.mxu0 0.0
    %4495 = vmatpush1.msra.mxu0 0.0
    %4496 = vmatprep.subr.mxu0 0.0
    %4497 = vmatpush1.msra.mxu0 0.0
    %4498 = vmatprep.subr.mxu0 0.0
    %4499 = vmatpush1.msra.mxu0 0.0
    %4500 = vmatprep.subr.mxu0 0.0
    %4501 = vmatpush1.msra.mxu0 0.0
    %4502 = vmatprep.subr.mxu0 0.0
    %4503 = vmatpush1.msra.mxu0 0.0
    %4504 = vmatprep.subr.mxu0 0.0
    %4505 = vmatpush1.msra.mxu0 0.0
    %4506 = vmatprep.subr.mxu0 0.0
    %4507 = vmatpush1.msra.mxu0 0.0
    %4508 = vmatprep.subr.mxu0 0.0
    %4509 = vmatpush1.msra.mxu0 0.0
    %4510 = vmatprep.subr.mxu0 0.0
    %4511 = vmatpush1.msra.mxu0 0.0
    %4512 = vmatprep.subr.mxu0 0.0
    %4513 = vmatpush1.msra.mxu0 0.0
    %4514 = vmatprep.subr.mxu0 0.0
    %4515 = vmatpush1.msra.mxu0 0.0
    %4516 = vmatprep.subr.mxu0 0.0
    %4517 = vmatpush1.msra.mxu0 0.0
    %4518 = vmatprep.subr.mxu0 0.0
    %4519 = vmatpush1.msra.mxu0 0.0
    %4520 = vmatprep.subr.mxu0 0.0
    %4521 = vmatpush1.msra.mxu0 0.0
    %4522 = vmatprep.subr.mxu0 0.0
    %4523 = vmatpush1.msra.mxu0 0.0
    %4524 = vmatprep.mubr.f32.mxu0 0.0
    %4525 = vmatmul.mubr.f32.gmra.mrb[0].mxu0 %v4458
    %v4526 = vpop.f32.mrb[0].mxu0
    %v4527 = vadd.f32 %v4455, %v4526
    %v4528 = vpop.f32.mrb[0].mxu0
    %4529 = vdwg.mxu0
    %v4530 = vmax.f32 %v4527, 0.0
    %v4531 = vld [vmem:[%s25] sm:$0xff]
    %v4532 = vld [vmem:[%s25 + $0x8] sm:$0xff]
    %v4533 = vld [vmem:[%s25 + $0x10] sm:$0xff]
    %v4534 = vld [vmem:[%s25 + $0x18] sm:$0xff]
    %v4535 = vld [vmem:[%s25 + $0x20] sm:$0xff]
    %v4536 = vld [vmem:[%s25 + $0x28] sm:$0xff]
    %v4537 = vld [vmem:[%s25 + $0x30] sm:$0xff]
    %v4538 = vld [vmem:[%s25 + $0x38] sm:$0xff]
    %v4539 = vld [vmem:[#allocation7] sm:$0x1]
    %v4541 = vlaneseq
    %v4542 = vshrl.u32 %v4541, 7
    %v4543 = vsub.s32 0, %v4542
    %v4544 = vrot.slane %v4539, %v4543
    %v4547 = vsel %vm935, %v4530, 0
    %4549 = vmatprep.subr.mxu0 0.0
    %4550 = vmatpush1.msra.mxu0 %v4531
    %4551 = vmatprep.subr.mxu0 0.0
    %4552 = vmatpush1.msra.mxu0 %v4532
    %4553 = vmatprep.subr.mxu0 0.0
    %4554 = vmatpush1.msra.mxu0 %v4533
    %4555 = vmatprep.subr.mxu0 0.0
    %4556 = vmatpush1.msra.mxu0 %v4534
    %4557 = vmatprep.subr.mxu0 0.0
    %4558 = vmatpush1.msra.mxu0 %v4535
    %4559 = vmatprep.subr.mxu0 0.0
    %4560 = vmatpush1.msra.mxu0 %v4536
    %4561 = vmatprep.subr.mxu0 0.0
    %4562 = vmatpush1.msra.mxu0 %v4537
    %4563 = vmatprep.subr.mxu0 0.0
    %4564 = vmatpush1.msra.mxu0 %v4538
    %4565 = vmatprep.subr.mxu0 0.0
    %4566 = vmatpush1.msra.mxu0 0.0
    %4567 = vmatprep.subr.mxu0 0.0
    %4568 = vmatpush1.msra.mxu0 0.0
    %4569 = vmatprep.subr.mxu0 0.0
    %4570 = vmatpush1.msra.mxu0 0.0
    %4571 = vmatprep.subr.mxu0 0.0
    %4572 = vmatpush1.msra.mxu0 0.0
    %4573 = vmatprep.subr.mxu0 0.0
    %4574 = vmatpush1.msra.mxu0 0.0
    %4575 = vmatprep.subr.mxu0 0.0
    %4576 = vmatpush1.msra.mxu0 0.0
    %4577 = vmatprep.subr.mxu0 0.0
    %4578 = vmatpush1.msra.mxu0 0.0
    %4579 = vmatprep.subr.mxu0 0.0
    %4580 = vmatpush1.msra.mxu0 0.0
    %4581 = vmatprep.subr.mxu0 0.0
    %4582 = vmatpush1.msra.mxu0 0.0
    %4583 = vmatprep.subr.mxu0 0.0
    %4584 = vmatpush1.msra.mxu0 0.0
    %4585 = vmatprep.subr.mxu0 0.0
    %4586 = vmatpush1.msra.mxu0 0.0
    %4587 = vmatprep.subr.mxu0 0.0
    %4588 = vmatpush1.msra.mxu0 0.0
    %4589 = vmatprep.subr.mxu0 0.0
    %4590 = vmatpush1.msra.mxu0 0.0
    %4591 = vmatprep.subr.mxu0 0.0
    %4592 = vmatpush1.msra.mxu0 0.0
    %4593 = vmatprep.subr.mxu0 0.0
    %4594 = vmatpush1.msra.mxu0 0.0
    %4595 = vmatprep.subr.mxu0 0.0
    %4596 = vmatpush1.msra.mxu0 0.0
    %4597 = vmatprep.subr.mxu0 0.0
    %4598 = vmatpush1.msra.mxu0 0.0
    %4599 = vmatprep.subr.mxu0 0.0
    %4600 = vmatpush1.msra.mxu0 0.0
    %4601 = vmatprep.subr.mxu0 0.0
    %4602 = vmatpush1.msra.mxu0 0.0
    %4603 = vmatprep.subr.mxu0 0.0
    %4604 = vmatpush1.msra.mxu0 0.0
    %4605 = vmatprep.subr.mxu0 0.0
    %4606 = vmatpush1.msra.mxu0 0.0
    %4607 = vmatprep.subr.mxu0 0.0
    %4608 = vmatpush1.msra.mxu0 0.0
    %4609 = vmatprep.subr.mxu0 0.0
    %4610 = vmatpush1.msra.mxu0 0.0
    %4611 = vmatprep.subr.mxu0 0.0
    %4612 = vmatpush1.msra.mxu0 0.0
    %4613 = vmatprep.mubr.f32.mxu0 0.0
    %4614 = vmatmul.mubr.f32.gmra.mrb[0].mxu0 %v4547
    %v4615 = vpop.f32.mrb[0].mxu0
    %v4616 = vadd.f32 %v4544, %v4615
    %v4617 = vpop.f32.mrb[0].mxu0
    %4618 = vdwg.mxu0
    %v4619 = vadd.f32 %v4445, %v4616
    %v4620 = vld [vmem:[#allocation16] sm:$0x1]
    %v4621 = vld [vmem:[#allocation14] sm:$0x1]
    %v4622 = vsel %vm4417, %v4619, 0.0
    %4623 = vadd.xlane.f32.xlu0 %v4622
    %v4624 = vpop.xlane.xlu0 %4623
    %v4625 = vmul.f32 %v4624, %v4421
    %v4626 = vsub.f32 %v4619, %v4625
    %v4627 = vmul.f32 %v4626, %v4626
    %v4628 = vsel %vm4417, %v4627, 0.0
    %4629 = vadd.xlane.f32.xlu0 %v4628
    %v4630 = vpop.xlane.xlu0 %4629
    %v4631 = vmul.f32 %v4630, %v4421
    %v4632 = vadd.f32 %v4631, 1e-05
    %v4633 = vrsqrt.pop %v4632
    %v4634 = vmul.f32 %v4626, %v4633
    %v4636 = vlaneseq
    %v4637 = vshrl.u32 %v4636, 7
    %v4638 = vsub.s32 0, %v4637
    %v4639 = vrot.slane %v4620, %v4638
    %v4641 = vmul.f32 %v4634, %v4639
    %v4643 = vlaneseq
    %v4644 = vshrl.u32 %v4643, 7
    %v4645 = vsub.s32 0, %v4644
    %v4646 = vrot.slane %v4621, %v4645
    %v4648 = vadd.f32 %v4641, %v4646
    %v4649 = vsel %vm2906, %v4245, 0.0
    %4650 = vadd.xlane.f32.xlu0 %v4649
    %v4651 = vpop.xlane.xlu0 %4650
    %v4652 = vsel %vm4417, %v4648, 0.0
    %4653 = vadd.xlane.f32.xlu0 %v4652
    %v4654 = vpop.xlane.xlu0 %4653
    %v4655 = vadd.f32 %v4651, %v4654
    %v4656 = vrcp.pop 96.0
    %v4657 = vmul.f32 %v4655, %v4656
    %v4658 = vsub.f32 %v4245, %v4657
    %v4659 = vsub.f32 %v4648, %v4657
    %v4660 = vmul.f32 %v4658, %v4658
    %v4661 = vsel %vm2906, %v4660, 0.0
    %4662 = vadd.xlane.f32.xlu0 %v4661
    %v4663 = vpop.xlane.xlu0 %4662
    %v4664 = vmul.f32 %v4659, %v4659
    %v4665 = vsel %vm4417, %v4664, 0.0
    %4666 = vadd.xlane.f32.xlu0 %v4665
    %v4667 = vpop.xlane.xlu0 %4666
    %v4668 = vadd.f32 %v4663, %v4667
    %v4669 = vmul.f32 %v4668, %v4656
    %v4670 = vadd.f32 %v4669, 1e-05
    %v4671 = vrsqrt.pop %v4670
    %v4672 = vmul.f32 %v4658, %v4671
    %v4673 = vld [vmem:[#allocation38] sm:$0x1]
    %v4675 = vlaneseq
    %v4676 = vshrl.u32 %v4675, 7
    %v4677 = vsub.s32 0, %v4676
    %v4678 = vrot.slane %v4673, %v4677
    %v4680 = vmul.f32 %v4672, %v4678
    %v4681 = vld [vmem:[#allocation35] sm:$0x1]
    %v4683 = vlaneseq
    %v4684 = vshrl.u32 %v4683, 7
    %v4685 = vsub.s32 0, %v4684
    %v4686 = vrot.slane %v4681, %v4685
    %v4688 = vadd.f32 %v4680, %v4686
    %v4689 = vmul.f32 %v4659, %v4671
    %v4690 = vld [vmem:[#allocation37] sm:$0x1]
    %v4692 = vlaneseq
    %v4693 = vshrl.u32 %v4692, 7
    %v4694 = vsub.s32 0, %v4693
    %v4695 = vrot.slane %v4690, %v4694
    %v4697 = vmul.f32 %v4689, %v4695
    %v4698 = vld [vmem:[#allocation34] sm:$0x1]
    %v4700 = vlaneseq
    %v4701 = vshrl.u32 %v4700, 7
    %v4702 = vsub.s32 0, %v4701
    %v4703 = vrot.slane %v4698, %v4702
    %v4705 = vadd.f32 %v4697, %v4703
    %v4706 = vld [vmem:[%s5] sm:$0xff]
    %v4707 = vld [vmem:[%s5 + $0x8] sm:$0xff]
    %v4708 = vld [vmem:[%s5 + $0x10] sm:$0xff]
    %v4709 = vld [vmem:[%s5 + $0x18] sm:$0xff]
    %v4710 = vld [vmem:[%s5 + $0x20] sm:$0xff]
    %v4711 = vld [vmem:[%s5 + $0x28] sm:$0xff]
    %v4712 = vld [vmem:[%s5 + $0x30] sm:$0xff]
    %v4713 = vld [vmem:[%s5 + $0x38] sm:$0xff]
    %v4714 = vld [vmem:[%s3] sm:$0xff]
    %v4715 = vld [vmem:[%s3 + $0x8] sm:$0xff]
    %v4716 = vld [vmem:[%s3 + $0x10] sm:$0xff]
    %v4717 = vld [vmem:[%s3 + $0x18] sm:$0xff]
    %v4719 = vsel %vm2394, %v4705, 0
    %4721 = vmatprep.subr.mxu0 0.0
    %4722 = vmatpush1.msra.mxu0 %v4714
    %4723 = vmatprep.subr.mxu0 0.0
    %4724 = vmatpush1.msra.mxu0 %v4715
    %4725 = vmatprep.subr.mxu0 0.0
    %4726 = vmatpush1.msra.mxu0 %v4716
    %4727 = vmatprep.subr.mxu0 0.0
    %4728 = vmatpush1.msra.mxu0 %v4717
    %4729 = vmatprep.subr.mxu0 0.0
    %4730 = vmatpush1.msra.mxu0 0.0
    %4731 = vmatprep.subr.mxu0 0.0
    %4732 = vmatpush1.msra.mxu0 0.0
    %4733 = vmatprep.subr.mxu0 0.0
    %4734 = vmatpush1.msra.mxu0 0.0
    %4735 = vmatprep.subr.mxu0 0.0
    %4736 = vmatpush1.msra.mxu0 0.0
    %4737 = vmatprep.subr.mxu0 0.0
    %4738 = vmatpush1.msra.mxu0 0.0
    %4739 = vmatprep.subr.mxu0 0.0
    %4740 = vmatpush1.msra.mxu0 0.0
    %4741 = vmatprep.subr.mxu0 0.0
    %4742 = vmatpush1.msra.mxu0 0.0
    %4743 = vmatprep.subr.mxu0 0.0
    %4744 = vmatpush1.msra.mxu0 0.0
    %4745 = vmatprep.subr.mxu0 0.0
    %4746 = vmatpush1.msra.mxu0 0.0
    %4747 = vmatprep.subr.mxu0 0.0
    %4748 = vmatpush1.msra.mxu0 0.0
    %4749 = vmatprep.subr.mxu0 0.0
    %4750 = vmatpush1.msra.mxu0 0.0
    %4751 = vmatprep.subr.mxu0 0.0
    %4752 = vmatpush1.msra.mxu0 0.0
    %4753 = vmatprep.subr.mxu0 0.0
    %4754 = vmatpush1.msra.mxu0 0.0
    %4755 = vmatprep.subr.mxu0 0.0
    %4756 = vmatpush1.msra.mxu0 0.0
    %4757 = vmatprep.subr.mxu0 0.0
    %4758 = vmatpush1.msra.mxu0 0.0
    %4759 = vmatprep.subr.mxu0 0.0
    %4760 = vmatpush1.msra.mxu0 0.0
    %4761 = vmatprep.subr.mxu0 0.0
    %4762 = vmatpush1.msra.mxu0 0.0
    %4763 = vmatprep.subr.mxu0 0.0
    %4764 = vmatpush1.msra.mxu0 0.0
    %4765 = vmatprep.subr.mxu0 0.0
    %4766 = vmatpush1.msra.mxu0 0.0
    %4767 = vmatprep.subr.mxu0 0.0
    %4768 = vmatpush1.msra.mxu0 0.0
    %4769 = vmatprep.subr.mxu0 0.0
    %4770 = vmatpush1.msra.mxu0 0.0
    %4771 = vmatprep.subr.mxu0 0.0
    %4772 = vmatpush1.msra.mxu0 0.0
    %4773 = vmatprep.subr.mxu0 0.0
    %4774 = vmatpush1.msra.mxu0 0.0
    %4775 = vmatprep.subr.mxu0 0.0
    %4776 = vmatpush1.msra.mxu0 0.0
    %4777 = vmatprep.subr.mxu0 0.0
    %4778 = vmatpush1.msra.mxu0 0.0
    %4779 = vmatprep.subr.mxu0 0.0
    %4780 = vmatpush1.msra.mxu0 0.0
    %4781 = vmatprep.subr.mxu0 0.0
    %4782 = vmatpush1.msra.mxu0 0.0
    %4783 = vmatprep.subr.mxu0 0.0
    %4784 = vmatpush1.msra.mxu0 0.0
    %4785 = vmatprep.mubr.f32.mxu0 0.0
    %4786 = vmatmul.mubr.f32.gmra.mrb[0].mxu0 %v4719
    %v4787 = vpop.f32.mrb[0].mxu0
    %v4788 = vadd.f32 0.0, %v4787
    %v4789 = vpop.f32.mrb[0].mxu0
    %4790 = vdwg.mxu0
    %v4792 = vsel %vm935, %v4688, 0
    %4794 = vmatprep.subr.mxu0 0.0
    %4795 = vmatpush1.msra.mxu0 %v4706
    %4796 = vmatprep.subr.mxu0 0.0
    %4797 = vmatpush1.msra.mxu0 %v4707
    %4798 = vmatprep.subr.mxu0 0.0
    %4799 = vmatpush1.msra.mxu0 %v4708
    %4800 = vmatprep.subr.mxu0 0.0
    %4801 = vmatpush1.msra.mxu0 %v4709
    %4802 = vmatprep.subr.mxu0 0.0
    %4803 = vmatpush1.msra.mxu0 %v4710
    %4804 = vmatprep.subr.mxu0 0.0
    %4805 = vmatpush1.msra.mxu0 %v4711
    %4806 = vmatprep.subr.mxu0 0.0
    %4807 = vmatpush1.msra.mxu0 %v4712
    %4808 = vmatprep.subr.mxu0 0.0
    %4809 = vmatpush1.msra.mxu0 %v4713
    %4810 = vmatprep.subr.mxu0 0.0
    %4811 = vmatpush1.msra.mxu0 0.0
    %4812 = vmatprep.subr.mxu0 0.0
    %4813 = vmatpush1.msra.mxu0 0.0
    %4814 = vmatprep.subr.mxu0 0.0
    %4815 = vmatpush1.msra.mxu0 0.0
    %4816 = vmatprep.subr.mxu0 0.0
    %4817 = vmatpush1.msra.mxu0 0.0
    %4818 = vmatprep.subr.mxu0 0.0
    %4819 = vmatpush1.msra.mxu0 0.0
    %4820 = vmatprep.subr.mxu0 0.0
    %4821 = vmatpush1.msra.mxu0 0.0
    %4822 = vmatprep.subr.mxu0 0.0
    %4823 = vmatpush1.msra.mxu0 0.0
    %4824 = vmatprep.subr.mxu0 0.0
    %4825 = vmatpush1.msra.mxu0 0.0
    %4826 = vmatprep.subr.mxu0 0.0
    %4827 = vmatpush1.msra.mxu0 0.0
    %4828 = vmatprep.subr.mxu0 0.0
    %4829 = vmatpush1.msra.mxu0 0.0
    %4830 = vmatprep.subr.mxu0 0.0
    %4831 = vmatpush1.msra.mxu0 0.0
    %4832 = vmatprep.subr.mxu0 0.0
    %4833 = vmatpush1.msra.mxu0 0.0
    %4834 = vmatprep.subr.mxu0 0.0
    %4835 = vmatpush1.msra.mxu0 0.0
    %4836 = vmatprep.subr.mxu0 0.0
    %4837 = vmatpush1.msra.mxu0 0.0
    %4838 = vmatprep.subr.mxu0 0.0
    %4839 = vmatpush1.msra.mxu0 0.0
    %4840 = vmatprep.subr.mxu0 0.0
    %4841 = vmatpush1.msra.mxu0 0.0
    %4842 = vmatprep.subr.mxu0 0.0
    %4843 = vmatpush1.msra.mxu0 0.0
    %4844 = vmatprep.subr.mxu0 0.0
    %4845 = vmatpush1.msra.mxu0 0.0
    %4846 = vmatprep.subr.mxu0 0.0
    %4847 = vmatpush1.msra.mxu0 0.0
    %4848 = vmatprep.subr.mxu0 0.0
    %4849 = vmatpush1.msra.mxu0 0.0
    %4850 = vmatprep.subr.mxu0 0.0
    %4851 = vmatpush1.msra.mxu0 0.0
    %4852 = vmatprep.subr.mxu0 0.0
    %4853 = vmatpush1.msra.mxu0 0.0
    %4854 = vmatprep.subr.mxu0 0.0
    %4855 = vmatpush1.msra.mxu0 0.0
    %4856 = vmatprep.subr.mxu0 0.0
    %4857 = vmatpush1.msra.mxu0 0.0
    %4858 = vmatprep.mubr.f32.mxu0 0.0
    %4859 = vmatmul.mubr.f32.gmra.mrb[0].mxu0 %v4792
    %v4860 = vpop.f32.mrb[0].mxu0
    %v4861 = vadd.f32 %v4788, %v4860
    %v4862 = vpop.f32.mrb[0].mxu0
    %4863 = vdwg.mxu0
    %v4864 = vld [vmem:[#allocation2] sm:$0x1]
    %v4866 = vlaneseq
    %v4867 = vshrl.u32 %v4866, 7
    %v4868 = vsub.s32 0, %v4867
    %v4869 = vrot.slane %v4864, %v4868
    %v4871 = vadd.f32 %v4861, %v4869
    %vm4872 = vcmask 74752
    %4873 = vst.msk [vmem:[#allocation55] sm:$0x3] %vm4872, %v4871
    // Predicated region
    $region474: #{tpu_custom_call.1} parent=1 // pred_check
      _
    $region475: #{tpu_custom_call.1} parent=1 // pred_check_branch
      %4875 = sbr.rel (0) target = $region477
    $region476: #{tpu_custom_call.1} parent=1 // pred_region
      %s4877 = ssub.s32 32, 32
      %4878 = vsyncadd [#allocation4], %s4877
      %s4880 = sshll.u32 [#allocation55], 4
      %s4881 = int_to_ptr.vmem [resolvable:$true] %s4880
      %4883 = dma.vmem_to_hbm [thread:$0]  %s4881, 32, %s169, [#allocation4]
    $region477: #{tpu_custom_call.1} parent=1 // pred_fallthru
      _
    // Predicated region
    $region478: #{tpu_custom_call.1} parent=1 // pred_check
      _
    $region479: #{tpu_custom_call.1} parent=1 // pred_check_branch
      %4885 = sbr.rel (0) target = $region481
    $region480: #{tpu_custom_call.1} parent=1 // pred_region
      %4886 = dma.done [#allocation4], 32
    $region481: #{tpu_custom_call.1} parent=1 // pred_fallthru
      _
    %4887 = vsyncpa [#allocation3], 1
    %4888 = vsyncpa [#allocation6], 1
    %4889 = vsyncpa [#allocation9], 1
    %4890 = vsyncpa [#allocation12], 1
    %4891 = vsyncpa [#allocation15], 1
    %4892 = vsyncpa [#allocation18], 1
    %4893 = vsyncpa [#allocation21], 1
    %4894 = vsyncpa [#allocation24], 1
    %4895 = vsyncpa [#allocation27], 1
    %4896 = vsyncpa [#allocation30], 1
    %4897 = vsyncpa [#allocation33], 1
    %4898 = vsyncpa [#allocation36], 1
    %4899 = vsyncpa [#allocation39], 1
    %4900 = vsyncpa [#allocation42], 1
    %4901 = vsyncpa [#allocation45], 1
    %4902 = vsyncpa [#allocation48], 1
    %4903 = vsyncpa [#allocation51], 1
    %4904 = vsyncpa [#allocation54], 1
    %4905 = vsyncpa [#allocation4], 1

</llo_original>
